<compile_context>
chip_gen: v6e
topology: v6e:2x2x1
jax: 0.10.0
libtpu: 0.0.40
codegen_flags: <defaults>
</compile_context>

<pallas_src>
import functools

import jax
import jax.numpy as jnp
from jax.experimental import pallas as pl
from jax.experimental.pallas import tpu as pltpu

EMBEDDING_LENGTH = 10


def _bilstm_tagger_kernel(
    x_ref, mask_ref,
    wih0f_ref, whh0f_ref, b0f_ref,
    wih0b_ref, whh0b_ref, b0b_ref,
    wih1f_ref, whh1f_ref, b1f_ref,
    wih1b_ref, whh1b_ref, b1b_ref,
    wl_ref, bl_ref, w2_ref, b2_ref,
    out_ref,
    xgf, xgb, l0, l1,
    *, T, B, H):
  """Single-invocation kernel: the whole (toy-sized) problem lives in VMEM.

  B is the sublane-padded batch (a multiple of 8); padded rows carry length 0
  and are sliced off in the wrapper.
  """
  F32 = jnp.float32

  def cell(xg, h, c, whh):
    """One LSTM cell update.

    xg = x@W_ih + b_ih + b_hh, shape (B, 4H). whh is the full (H, 4H) tile, so
    the h-recurrence is ONE lane-dense (B,H)@(H,4H) MXU dot, and the gate
    nonlinearities are two lane-dense EUP passes over the whole (B,4H)
    pre-activation (gates sliced out of the activated tiles afterwards).
    PyTorch gate order: i, f, g, o.
    """
    z = xg + jnp.dot(h, whh, preferred_element_type=F32)          # (B, 4H)
    sig = jax.nn.sigmoid(z)                                       # EUP pass 1
    th = jnp.tanh(z)                                              # EUP pass 2
    i_t = sig[:, 0 * H:1 * H]
    f_t = sig[:, 1 * H:2 * H]
    g_t = th[:, 2 * H:3 * H]
    o_t = sig[:, 3 * H:4 * H]
    c_new = f_t * c + i_t * g_t
    h_new = o_t * jnp.tanh(c_new)                                 # EUP pass 3
    return h_new, c_new

  def run_layer(whhf_ref, whhb_ref, out):
    """Fused fwd+bwd recurrence reading the precomputed x-gate scratch.

    Forward hidden states go to lanes [0:H), backward to [H:2H) of `out`.
    """
    whhf = whhf_ref[...]          # (H, 4H): 4 vregs held across the unroll
    whhb = whhb_ref[...]
    z = jnp.zeros((B, H), F32)
    hf, cf, hb, cb = z, z, z, z
    # TODO(synk): switch to lax.fori_loop(..., unroll=True) with
    # pl.multiple_of row offsets if T grows beyond ~16 (static Python unroll
    # does not bound live ranges).
    for i in range(T):                      # static unroll (T small & static)
      ib = T - 1 - i
      rf = pl.ds(i * B, B)                  # rows of timestep i     (forward)
      rb = pl.ds(ib * B, B)                 # rows of timestep T-1-i (backward)
      mf = mask_ref[rf] > 0.5               # (B, 1) bool
      mb = mask_ref[rb] > 0.5
      hf_n, cf_n = cell(xgf[rf], hf, cf, whhf)
      hb_n, cb_n = cell(xgb[rb], hb, cb, whhb)
      # pad_packed_sequence semantics: padded timesteps emit exactly zero.
      out[rf, 0:H] = jnp.where(mf, hf_n, 0.0)
      out[rb, H:2 * H] = jnp.where(mb, hb_n, 0.0)
      # packed-sequence semantics: state frozen past each sequence's length
      # (for the backward pass this means it stays at the zero init until
      #  t = len_i - 1, i.e. it starts at each sequence's true end).
      hf = jnp.where(mf, hf_n, hf)
      cf = jnp.where(mf, cf_n, cf)
      hb = jnp.where(mb, hb_n, hb)
      cb = jnp.where(mb, cb_n, cb)

  # ---- layer 0: hoisted input projections (one MXU slab pass per direction) -
  x = x_ref[...]                                                  # (T*B, E)
  xgf[...] = jnp.dot(x, wih0f_ref[...], preferred_element_type=F32) + b0f_ref[...]
  xgb[...] = jnp.dot(x, wih0b_ref[...], preferred_element_type=F32) + b0b_ref[...]
  run_layer(whh0f_ref, whh0b_ref, l0)

  # ---- layer 1: input = concat(l0 fwd, l0 bwd) — already packed as (T*B, 2H),
  #      so each projection is a single (T*B,2H)@(2H,4H) slab dot -------------
  h0 = l0[...]                                                    # (T*B, 2H)
  xgf[...] = jnp.dot(h0, wih1f_ref[...], preferred_element_type=F32) + b1f_ref[...]
  xgb[...] = jnp.dot(h0, wih1b_ref[...], preferred_element_type=F32) + b1b_ref[...]
  run_layer(whh1f_ref, whh1b_ref, l1)

  # ---- head: linear -> tanh -> linear2 -> log_softmax, one slab pass --------
  hdn = jnp.tanh(jnp.dot(l1[...], wl_ref[...], preferred_element_type=F32)
                 + bl_ref[...])                                   # (T*B, H)
  # w2/b2 are padded to 128 output lanes; the pad bias is -1e30 so the padded
  # classes contribute ~0 to the log-sum-exp and the real log-probs are exact.
  logits = jnp.dot(hdn, w2_ref[...], preferred_element_type=F32) + b2_ref[...]
  mx = jnp.max(logits, axis=-1, keepdims=True)
  lse = jnp.log(jnp.sum(jnp.exp(logits - mx), axis=-1, keepdims=True)) + mx
  out_ref[...] = logits - lse                                     # lane-dense store


def init_params(key, vocab_size, hidden_size, tagging_size):
  """Deterministic synthetic parameters (shapes match the PyTorch module)."""
  H = hidden_size
  keys = iter(jax.random.split(key, 32))

  def u(shape, bound):
    return jax.random.uniform(next(keys), shape, jnp.float32, -bound, bound)

  p = {}
  p['emb'] = jax.random.normal(next(keys), (vocab_size, EMBEDDING_LENGTH),
                               jnp.float32)
  k_lstm = 1.0 / float(H) ** 0.5
  # (layer, direction): l0 fwd/bwd take E-dim input, l1 fwd/bwd take 2H input.
  for name, in_dim in (('l0f', EMBEDDING_LENGTH), ('l0b', EMBEDDING_LENGTH),
                       ('l1f', 2 * H), ('l1b', 2 * H)):
    p['wih_' + name] = u((in_dim, 4 * H), k_lstm)   # stored transposed: (in, 4H)
    p['whh_' + name] = u((H, 4 * H), k_lstm)        # stored transposed: (H, 4H)
    p['b_' + name] = u((1, 4 * H), k_lstm) + u((1, 4 * H), k_lstm)  # b_ih + b_hh
  k1 = 1.0 / float(2 * H) ** 0.5
  p['wl'] = u((2 * H, H), k1)                       # Linear(2H, H), transposed
  p['bl'] = u((1, H), k1)
  k2 = 1.0 / float(H) ** 0.5
  p['w2'] = u((H, tagging_size), k2)                # Linear(H, Tag), transposed
  p['b2'] = u((1, tagging_size), k2)
  return p


def bilstm_tagger_forward(params, tokens, lens_list, hidden_size, tagging_size):
  """tokens: (B, T) int32; lens_list: host-side list of lengths (mirrors the
  CPU lengths pack_padded_sequence(enforce_sorted=False) requires)."""
  B, T = tokens.shape
  H = hidden_size
  Bp = ((B + 7) // 8) * 8                         # pad batch to a sublane group
  tag_p = ((tagging_size + 127) // 128) * 128     # lane-dense padded class dim

  # Glue in plain JAX: batch padding, embedding gather, length mask, head pad.
  # TODO(synk): at larger sizes the embedding gather could move in-kernel via
  # scalar-prefetched token ids to skip one XLA dispatch; kept outside here.
  tokens_p = jnp.zeros((Bp, T), jnp.int32).at[:B].set(tokens)
  lens = jnp.zeros((Bp,), jnp.int32).at[:B].set(
      jnp.asarray(lens_list, jnp.int32))          # pad rows get length 0

  emb = jnp.take(params['emb'], tokens_p.T, axis=0)               # (T, Bp, E)
  emb2 = emb.reshape(T * Bp, EMBEDDING_LENGTH)                    # (T*Bp, E)
  mask = (jnp.arange(T)[:, None] < lens[None, :]).astype(jnp.float32)  # (T, Bp)
  mask2 = mask.reshape(T * Bp, 1)

  w2p = jnp.zeros((H, tag_p), jnp.float32).at[:, :tagging_size].set(params['w2'])
  b2p = jnp.full((1, tag_p), -1e30, jnp.float32).at[:, :tagging_size].set(params['b2'])

  # TODO(synk): on v7x (2 TensorCores) the two direction recurrences could be
  # split across cores via core_map once T/B grow; at this size the cross-core
  # barrier would eat the win, so the kernel stays single-core.
  kernel = functools.partial(_bilstm_tagger_kernel, T=T, B=Bp, H=H)
  out = pl.pallas_call(
      kernel,
      out_shape=jax.ShapeDtypeStruct((T * Bp, tag_p), jnp.float32),
      scratch_shapes=[
          pltpu.VMEM((T * Bp, 4 * H), jnp.float32),   # fwd x-gates (reused per layer)
          pltpu.VMEM((T * Bp, 4 * H), jnp.float32),   # bwd x-gates (reused per layer)
          pltpu.VMEM((T * Bp, 2 * H), jnp.float32),   # layer-0 packed fwd|bwd outputs
          pltpu.VMEM((T * Bp, 2 * H), jnp.float32),   # layer-1 packed fwd|bwd outputs
      ],
  )(emb2, mask2,
    params['wih_l0f'], params['whh_l0f'], params['b_l0f'],
    params['wih_l0b'], params['whh_l0b'], params['b_l0b'],
    params['wih_l1f'], params['whh_l1f'], params['b_l1f'],
    params['wih_l1b'], params['whh_l1b'], params['b_l1b'],
    params['wl'], params['bl'], w2p, b2p)

  # Drop batch-pad rows and padded class lanes outside the kernel.
  log_probs = out.reshape(T, Bp, tag_p)[:, :B, :tagging_size]
  # pad_packed_sequence truncates the time axis to max(lens).
  t_out = int(max(lens_list))
  return log_probs[:t_out]


if __name__ == "__main__":
  vocab_size, hidden_size, tagging_size = 20, 32, 5
  B, T = 2, 8

  key = jax.random.PRNGKey(0)
  pkey, tkey = jax.random.split(key)
  params = init_params(pkey, vocab_size, hidden_size, tagging_size)

  tokens = jax.random.randint(tkey, (B, T), 0, vocab_size, dtype=jnp.int32)
  lens = [T, 5]  # variable lengths, unsorted allowed (enforce_sorted=False)

  log_probs = bilstm_tagger_forward(params, tokens, lens,
                                    hidden_size, tagging_size)
  jax.block_until_ready(log_probs)
  assert log_probs.shape == (max(lens), B, tagging_size)
  # sanity: rows are valid log-probabilities
  assert jnp.allclose(jnp.exp(log_probs).sum(-1), 1.0, atol=1e-4)
  print("KERNEL_OK")
</pallas_src>

<mosaic_0001>
module attributes {stable_mosaic.version = 11 : i64} {
  func.func @_bilstm_tagger_kernel(%arg0: memref<64x10xf32, #tpu.memory_space<vmem>>, %arg1: memref<64x1xf32, #tpu.memory_space<vmem>>, %arg2: memref<10x128xf32, #tpu.memory_space<vmem>>, %arg3: memref<32x128xf32, #tpu.memory_space<vmem>>, %arg4: memref<1x128xf32, #tpu.memory_space<vmem>>, %arg5: memref<10x128xf32, #tpu.memory_space<vmem>>, %arg6: memref<32x128xf32, #tpu.memory_space<vmem>>, %arg7: memref<1x128xf32, #tpu.memory_space<vmem>>, %arg8: memref<64x128xf32, #tpu.memory_space<vmem>>, %arg9: memref<32x128xf32, #tpu.memory_space<vmem>>, %arg10: memref<1x128xf32, #tpu.memory_space<vmem>>, %arg11: memref<64x128xf32, #tpu.memory_space<vmem>>, %arg12: memref<32x128xf32, #tpu.memory_space<vmem>>, %arg13: memref<1x128xf32, #tpu.memory_space<vmem>>, %arg14: memref<64x32xf32, #tpu.memory_space<vmem>>, %arg15: memref<1x32xf32, #tpu.memory_space<vmem>>, %arg16: memref<32x128xf32, #tpu.memory_space<vmem>>, %arg17: memref<1x128xf32, #tpu.memory_space<vmem>>, %arg18: memref<64x128xf32, #tpu.memory_space<vmem>>, %arg19: memref<64x128xf32, #tpu.memory_space<vmem>>, %arg20: memref<64x128xf32, #tpu.memory_space<vmem>>, %arg21: memref<64x64xf32, #tpu.memory_space<vmem>>, %arg22: memref<64x64xf32, #tpu.memory_space<vmem>>) attributes {dimension_semantics = [], scalar_prefetch = 0 : i64, scratch_operands = 4 : i64, tpu.core_type = #tpu.core_type<tc>} {
    %c0 = arith.constant 0 : index
    %c0_0 = arith.constant 0 : index
    %0 = vector.load %arg0[%c0, %c0_0] : memref<64x10xf32, #tpu.memory_space<vmem>>, vector<64x10xf32>
    %c0_1 = arith.constant 0 : index
    %c0_2 = arith.constant 0 : index
    %1 = vector.load %arg2[%c0_1, %c0_2] : memref<10x128xf32, #tpu.memory_space<vmem>>, vector<10x128xf32>
    %cst = arith.constant dense<0.000000e+00> : vector<64x128xf32>
    %2 = tpu.matmul %0, %1, %cst {dimension_numbers = #tpu.dot_dimension_numbers<[1], [0], [0], [1], [0, 0, 1, 1], [], []>} : vector<64x10xf32>, vector<10x128xf32>, vector<64x128xf32> -> vector<64x128xf32>
    %c0_3 = arith.constant 0 : index
    %c0_4 = arith.constant 0 : index
    %3 = vector.load %arg4[%c0_3, %c0_4] : memref<1x128xf32, #tpu.memory_space<vmem>>, vector<1x128xf32>
    %4 = vector.broadcast %3 : vector<1x128xf32> to vector<64x128xf32>
    %5 = arith.addf %2, %4 : vector<64x128xf32>
    %c0_5 = arith.constant 0 : index
    %c0_6 = arith.constant 0 : index
    %6 = vector.load %arg19[%c0_5, %c0_6] : memref<64x128xf32, #tpu.memory_space<vmem>>, vector<64x128xf32>
    tpu.vector_store %arg19[%c0_5, %c0_6], %5 {strides = array<i32>} : memref<64x128xf32, #tpu.memory_space<vmem>>, vector<64x128xf32>,
    %c0_7 = arith.constant 0 : index
    %c0_8 = arith.constant 0 : index
    %7 = vector.load %arg5[%c0_7, %c0_8] : memref<10x128xf32, #tpu.memory_space<vmem>>, vector<10x128xf32>
    %cst_9 = arith.constant dense<0.000000e+00> : vector<64x128xf32>
    %8 = tpu.matmul %0, %7, %cst_9 {dimension_numbers = #tpu.dot_dimension_numbers<[1], [0], [0], [1], [0, 0, 1, 1], [], []>} : vector<64x10xf32>, vector<10x128xf32>, vector<64x128xf32> -> vector<64x128xf32>
    %c0_10 = arith.constant 0 : index
    %c0_11 = arith.constant 0 : index
    %9 = vector.load %arg7[%c0_10, %c0_11] : memref<1x128xf32, #tpu.memory_space<vmem>>, vector<1x128xf32>
    %10 = vector.broadcast %9 : vector<1x128xf32> to vector<64x128xf32>
    %11 = arith.addf %8, %10 : vector<64x128xf32>
    %c0_12 = arith.constant 0 : index
    %c0_13 = arith.constant 0 : index
    %12 = vector.load %arg20[%c0_12, %c0_13] : memref<64x128xf32, #tpu.memory_space<vmem>>, vector<64x128xf32>
    tpu.vector_store %arg20[%c0_12, %c0_13], %11 {strides = array<i32>} : memref<64x128xf32, #tpu.memory_space<vmem>>, vector<64x128xf32>,
    %c0_14 = arith.constant 0 : index
    %c0_15 = arith.constant 0 : index
    %13 = vector.load %arg3[%c0_14, %c0_15] : memref<32x128xf32, #tpu.memory_space<vmem>>, vector<32x128xf32>
    %c0_16 = arith.constant 0 : index
    %c0_17 = arith.constant 0 : index
    %14 = vector.load %arg6[%c0_16, %c0_17] : memref<32x128xf32, #tpu.memory_space<vmem>>, vector<32x128xf32>
    %cst_18 = arith.constant 0.000000e+00 : f32
    %15 = vector.broadcast %cst_18 : f32 to vector<8x32xf32>
    %c0_19 = arith.constant 0 : index
    %c0_20 = arith.constant 0 : index
    %16 = vector.load %arg1[%c0_19, %c0_20] : memref<64x1xf32, #tpu.memory_space<vmem>>, vector<8x1xf32>
    %cst_21 = arith.constant 5.000000e-01 : f32
    %17 = vector.broadcast %cst_21 : f32 to vector<8x1xf32>
    %18 = arith.cmpf ogt, %16, %17 : vector<8x1xf32>
    %c56 = arith.constant 56 : index
    %c0_22 = arith.constant 0 : index
    %19 = vector.load %arg1[%c56, %c0_22] : memref<64x1xf32, #tpu.memory_space<vmem>>, vector<8x1xf32>
    %cst_23 = arith.constant 5.000000e-01 : f32
    %20 = vector.broadcast %cst_23 : f32 to vector<8x1xf32>
    %21 = arith.cmpf ogt, %19, %20 : vector<8x1xf32>
    %c0_24 = arith.constant 0 : index
    %c0_25 = arith.constant 0 : index
    %22 = vector.load %arg19[%c0_24, %c0_25] : memref<64x128xf32, #tpu.memory_space<vmem>>, vector<8x128xf32>
    %cst_26 = arith.constant dense<0.000000e+00> : vector<8x128xf32>
    %23 = tpu.matmul %15, %13, %cst_26 {dimension_numbers = #tpu.dot_dimension_numbers<[1], [0], [0], [1], [0, 0, 1, 1], [], []>} : vector<8x32xf32>, vector<32x128xf32>, vector<8x128xf32> -> vector<8x128xf32>
    %24 = arith.addf %22, %23 : vector<8x128xf32>
    %25 = arith.negf %24 : vector<8x128xf32>
    %26 = math.exp %25 : vector<8x128xf32>
    %cst_27 = arith.constant 1.000000e+00 : f32
    %27 = vector.broadcast %cst_27 : f32 to vector<8x128xf32>
    %28 = arith.addf %27, %26 : vector<8x128xf32>
    %29 = arith.divf %27, %28 : vector<8x128xf32>
    %30 = math.tanh %24 : vector<8x128xf32>
    %31 = vector.extract_strided_slice %29 {offsets = [0, 0], sizes = [8, 32], strides = [1, 1]} : vector<8x128xf32> to vector<8x32xf32>
    %32 = vector.extract_strided_slice %29 {offsets = [0, 32], sizes = [8, 32], strides = [1, 1]} : vector<8x128xf32> to vector<8x32xf32>
    %33 = vector.extract_strided_slice %30 {offsets = [0, 64], sizes = [8, 32], strides = [1, 1]} : vector<8x128xf32> to vector<8x32xf32>
    %34 = vector.extract_strided_slice %29 {offsets = [0, 96], sizes = [8, 32], strides = [1, 1]} : vector<8x128xf32> to vector<8x32xf32>
    %35 = arith.mulf %32, %15 : vector<8x32xf32>
    %36 = arith.mulf %31, %33 : vector<8x32xf32>
    %37 = arith.addf %35, %36 : vector<8x32xf32>
    %38 = math.tanh %37 : vector<8x32xf32>
    %39 = arith.mulf %34, %38 : vector<8x32xf32>
    %c56_28 = arith.constant 56 : index
    %c0_29 = arith.constant 0 : index
    %40 = vector.load %arg20[%c56_28, %c0_29] : memref<64x128xf32, #tpu.memory_space<vmem>>, vector<8x128xf32>
    %cst_30 = arith.constant dense<0.000000e+00> : vector<8x128xf32>
    %41 = tpu.matmul %15, %14, %cst_30 {dimension_numbers = #tpu.dot_dimension_numbers<[1], [0], [0], [1], [0, 0, 1, 1], [], []>} : vector<8x32xf32>, vector<32x128xf32>, vector<8x128xf32> -> vector<8x128xf32>
    %42 = arith.addf %40, %41 : vector<8x128xf32>
    %43 = arith.negf %42 : vector<8x128xf32>
    %44 = math.exp %43 : vector<8x128xf32>
    %cst_31 = arith.constant 1.000000e+00 : f32
    %45 = vector.broadcast %cst_31 : f32 to vector<8x128xf32>
    %46 = arith.addf %45, %44 : vector<8x128xf32>
    %47 = arith.divf %45, %46 : vector<8x128xf32>
    %48 = math.tanh %42 : vector<8x128xf32>
    %49 = vector.extract_strided_slice %47 {offsets = [0, 0], sizes = [8, 32], strides = [1, 1]} : vector<8x128xf32> to vector<8x32xf32>
    %50 = vector.extract_strided_slice %47 {offsets = [0, 32], sizes = [8, 32], strides = [1, 1]} : vector<8x128xf32> to vector<8x32xf32>
    %51 = vector.extract_strided_slice %48 {offsets = [0, 64], sizes = [8, 32], strides = [1, 1]} : vector<8x128xf32> to vector<8x32xf32>
    %52 = vector.extract_strided_slice %47 {offsets = [0, 96], sizes = [8, 32], strides = [1, 1]} : vector<8x128xf32> to vector<8x32xf32>
    %53 = arith.mulf %50, %15 : vector<8x32xf32>
    %54 = arith.mulf %49, %51 : vector<8x32xf32>
    %55 = arith.addf %53, %54 : vector<8x32xf32>
    %56 = math.tanh %55 : vector<8x32xf32>
    %57 = arith.mulf %52, %56 : vector<8x32xf32>
    %cst_32 = arith.constant 0.000000e+00 : f32
    %58 = vector.shape_cast %18 : vector<8x1xi1> to vector<8x1xi1>
    %59 = vector.broadcast %58 : vector<8x1xi1> to vector<8x32xi1>
    %60 = vector.broadcast %cst_32 : f32 to vector<8x32xf32>
    %61 = arith.select %59, %39, %60 : vector<8x32xi1>, vector<8x32xf32>
    %c0_33 = arith.constant 0 : index
    %c0_34 = arith.constant 0 : index
    %62 = vector.load %arg21[%c0_33, %c0_34] : memref<64x64xf32, #tpu.memory_space<vmem>>, vector<8x32xf32>
    tpu.vector_store %arg21[%c0_33, %c0_34], %61 {strides = array<i32>} : memref<64x64xf32, #tpu.memory_space<vmem>>, vector<8x32xf32>,
    %cst_35 = arith.constant 0.000000e+00 : f32
    %63 = vector.shape_cast %21 : vector<8x1xi1> to vector<8x1xi1>
    %64 = vector.broadcast %63 : vector<8x1xi1> to vector<8x32xi1>
    %65 = vector.broadcast %cst_35 : f32 to vector<8x32xf32>
    %66 = arith.select %64, %57, %65 : vector<8x32xi1>, vector<8x32xf32>
    %c56_36 = arith.constant 56 : index
    %c32 = arith.constant 32 : index
    %67 = vector.load %arg21[%c56_36, %c32] : memref<64x64xf32, #tpu.memory_space<vmem>>, vector<8x32xf32>
    tpu.vector_store %arg21[%c56_36, %c32], %66 {strides = array<i32>} : memref<64x64xf32, #tpu.memory_space<vmem>>, vector<8x32xf32>,
    %68 = vector.shape_cast %18 : vector<8x1xi1> to vector<8x1xi1>
    %69 = vector.broadcast %68 : vector<8x1xi1> to vector<8x32xi1>
    %70 = arith.select %69, %39, %15 : vector<8x32xi1>, vector<8x32xf32>
    %71 = vector.shape_cast %18 : vector<8x1xi1> to vector<8x1xi1>
    %72 = vector.broadcast %71 : vector<8x1xi1> to vector<8x32xi1>
    %73 = arith.select %72, %37, %15 : vector<8x32xi1>, vector<8x32xf32>
    %74 = vector.shape_cast %21 : vector<8x1xi1> to vector<8x1xi1>
    %75 = vector.broadcast %74 : vector<8x1xi1> to vector<8x32xi1>
    %76 = arith.select %75, %57, %15 : vector<8x32xi1>, vector<8x32xf32>
    %77 = vector.shape_cast %21 : vector<8x1xi1> to vector<8x1xi1>
    %78 = vector.broadcast %77 : vector<8x1xi1> to vector<8x32xi1>
    %79 = arith.select %78, %55, %15 : vector<8x32xi1>, vector<8x32xf32>
    %c8 = arith.constant 8 : index
    %c0_37 = arith.constant 0 : index
    %80 = vector.load %arg1[%c8, %c0_37] : memref<64x1xf32, #tpu.memory_space<vmem>>, vector<8x1xf32>
    %cst_38 = arith.constant 5.000000e-01 : f32
    %81 = vector.broadcast %cst_38 : f32 to vector<8x1xf32>
    %82 = arith.cmpf ogt, %80, %81 : vector<8x1xf32>
    %c48 = arith.constant 48 : index
    %c0_39 = arith.constant 0 : index
    %83 = vector.load %arg1[%c48, %c0_39] : memref<64x1xf32, #tpu.memory_space<vmem>>, vector<8x1xf32>
    %cst_40 = arith.constant 5.000000e-01 : f32
    %84 = vector.broadcast %cst_40 : f32 to vector<8x1xf32>
    %85 = arith.cmpf ogt, %83, %84 : vector<8x1xf32>
    %c8_41 = arith.constant 8 : index
    %c0_42 = arith.constant 0 : index
    %86 = vector.load %arg19[%c8_41, %c0_42] : memref<64x128xf32, #tpu.memory_space<vmem>>, vector<8x128xf32>
    %cst_43 = arith.constant dense<0.000000e+00> : vector<8x128xf32>
    %87 = tpu.matmul %70, %13, %cst_43 {dimension_numbers = #tpu.dot_dimension_numbers<[1], [0], [0], [1], [0, 0, 1, 1], [], []>} : vector<8x32xf32>, vector<32x128xf32>, vector<8x128xf32> -> vector<8x128xf32>
    %88 = arith.addf %86, %87 : vector<8x128xf32>
    %89 = arith.negf %88 : vector<8x128xf32>
    %90 = math.exp %89 : vector<8x128xf32>
    %cst_44 = arith.constant 1.000000e+00 : f32
    %91 = vector.broadcast %cst_44 : f32 to vector<8x128xf32>
    %92 = arith.addf %91, %90 : vector<8x128xf32>
    %93 = arith.divf %91, %92 : vector<8x128xf32>
    %94 = math.tanh %88 : vector<8x128xf32>
    %95 = vector.extract_strided_slice %93 {offsets = [0, 0], sizes = [8, 32], strides = [1, 1]} : vector<8x128xf32> to vector<8x32xf32>
    %96 = vector.extract_strided_slice %93 {offsets = [0, 32], sizes = [8, 32], strides = [1, 1]} : vector<8x128xf32> to vector<8x32xf32>
    %97 = vector.extract_strided_slice %94 {offsets = [0, 64], sizes = [8, 32], strides = [1, 1]} : vector<8x128xf32> to vector<8x32xf32>
    %98 = vector.extract_strided_slice %93 {offsets = [0, 96], sizes = [8, 32], strides = [1, 1]} : vector<8x128xf32> to vector<8x32xf32>
    %99 = arith.mulf %96, %73 : vector<8x32xf32>
    %100 = arith.mulf %95, %97 : vector<8x32xf32>
    %101 = arith.addf %99, %100 : vector<8x32xf32>
    %102 = math.tanh %101 : vector<8x32xf32>
    %103 = arith.mulf %98, %102 : vector<8x32xf32>
    %c48_45 = arith.constant 48 : index
    %c0_46 = arith.constant 0 : index
    %104 = vector.load %arg20[%c48_45, %c0_46] : memref<64x128xf32, #tpu.memory_space<vmem>>, vector<8x128xf32>
    %cst_47 = arith.constant dense<0.000000e+00> : vector<8x128xf32>
    %105 = tpu.matmul %76, %14, %cst_47 {dimension_numbers = #tpu.dot_dimension_numbers<[1], [0], [0], [1], [0, 0, 1, 1], [], []>} : vector<8x32xf32>, vector<32x128xf32>, vector<8x128xf32> -> vector<8x128xf32>
    %106 = arith.addf %104, %105 : vector<8x128xf32>
    %107 = arith.negf %106 : vector<8x128xf32>
    %108 = math.exp %107 : vector<8x128xf32>
    %cst_48 = arith.constant 1.000000e+00 : f32
    %109 = vector.broadcast %cst_48 : f32 to vector<8x128xf32>
    %110 = arith.addf %109, %108 : vector<8x128xf32>
    %111 = arith.divf %109, %110 : vector<8x128xf32>
    %112 = math.tanh %106 : vector<8x128xf32>
    %113 = vector.extract_strided_slice %111 {offsets = [0, 0], sizes = [8, 32], strides = [1, 1]} : vector<8x128xf32> to vector<8x32xf32>
    %114 = vector.extract_strided_slice %111 {offsets = [0, 32], sizes = [8, 32], strides = [1, 1]} : vector<8x128xf32> to vector<8x32xf32>
    %115 = vector.extract_strided_slice %112 {offsets = [0, 64], sizes = [8, 32], strides = [1, 1]} : vector<8x128xf32> to vector<8x32xf32>
    %116 = vector.extract_strided_slice %111 {offsets = [0, 96], sizes = [8, 32], strides = [1, 1]} : vector<8x128xf32> to vector<8x32xf32>
    %117 = arith.mulf %114, %79 : vector<8x32xf32>
    %118 = arith.mulf %113, %115 : vector<8x32xf32>
    %119 = arith.addf %117, %118 : vector<8x32xf32>
    %120 = math.tanh %119 : vector<8x32xf32>
    %121 = arith.mulf %116, %120 : vector<8x32xf32>
    %cst_49 = arith.constant 0.000000e+00 : f32
    %122 = vector.shape_cast %82 : vector<8x1xi1> to vector<8x1xi1>
    %123 = vector.broadcast %122 : vector<8x1xi1> to vector<8x32xi1>
    %124 = vector.broadcast %cst_49 : f32 to vector<8x32xf32>
    %125 = arith.select %123, %103, %124 : vector<8x32xi1>, vector<8x32xf32>
    %c8_50 = arith.constant 8 : index
    %c0_51 = arith.constant 0 : index
    %126 = vector.load %arg21[%c8_50, %c0_51] : memref<64x64xf32, #tpu.memory_space<vmem>>, vector<8x32xf32>
    tpu.vector_store %arg21[%c8_50, %c0_51], %125 {strides = array<i32>} : memref<64x64xf32, #tpu.memory_space<vmem>>, vector<8x32xf32>,
    %cst_52 = arith.constant 0.000000e+00 : f32
    %127 = vector.shape_cast %85 : vector<8x1xi1> to vector<8x1xi1>
    %128 = vector.broadcast %127 : vector<8x1xi1> to vector<8x32xi1>
    %129 = vector.broadcast %cst_52 : f32 to vector<8x32xf32>
    %130 = arith.select %128, %121, %129 : vector<8x32xi1>, vector<8x32xf32>
    %c48_53 = arith.constant 48 : index
    %c32_54 = arith.constant 32 : index
    %131 = vector.load %arg21[%c48_53, %c32_54] : memref<64x64xf32, #tpu.memory_space<vmem>>, vector<8x32xf32>
    tpu.vector_store %arg21[%c48_53, %c32_54], %130 {strides = array<i32>} : memref<64x64xf32, #tpu.memory_space<vmem>>, vector<8x32xf32>,
    %132 = vector.shape_cast %82 : vector<8x1xi1> to vector<8x1xi1>
    %133 = vector.broadcast %132 : vector<8x1xi1> to vector<8x32xi1>
    %134 = arith.select %133, %103, %70 : vector<8x32xi1>, vector<8x32xf32>
    %135 = vector.shape_cast %82 : vector<8x1xi1> to vector<8x1xi1>
    %136 = vector.broadcast %135 : vector<8x1xi1> to vector<8x32xi1>
    %137 = arith.select %136, %101, %73 : vector<8x32xi1>, vector<8x32xf32>
    %138 = vector.shape_cast %85 : vector<8x1xi1> to vector<8x1xi1>
    %139 = vector.broadcast %138 : vector<8x1xi1> to vector<8x32xi1>
    %140 = arith.select %139, %121, %76 : vector<8x32xi1>, vector<8x32xf32>
    %141 = vector.shape_cast %85 : vector<8x1xi1> to vector<8x1xi1>
    %142 = vector.broadcast %141 : vector<8x1xi1> to vector<8x32xi1>
    %143 = arith.select %142, %119, %79 : vector<8x32xi1>, vector<8x32xf32>
    %c16 = arith.constant 16 : index
    %c0_55 = arith.constant 0 : index
    %144 = vector.load %arg1[%c16, %c0_55] : memref<64x1xf32, #tpu.memory_space<vmem>>, vector<8x1xf32>
    %cst_56 = arith.constant 5.000000e-01 : f32
    %145 = vector.broadcast %cst_56 : f32 to vector<8x1xf32>
    %146 = arith.cmpf ogt, %144, %145 : vector<8x1xf32>
    %c40 = arith.constant 40 : index
    %c0_57 = arith.constant 0 : index
    %147 = vector.load %arg1[%c40, %c0_57] : memref<64x1xf32, #tpu.memory_space<vmem>>, vector<8x1xf32>
    %cst_58 = arith.constant 5.000000e-01 : f32
    %148 = vector.broadcast %cst_58 : f32 to vector<8x1xf32>
    %149 = arith.cmpf ogt, %147, %148 : vector<8x1xf32>
    %c16_59 = arith.constant 16 : index
    %c0_60 = arith.constant 0 : index
    %150 = vector.load %arg19[%c16_59, %c0_60] : memref<64x128xf32, #tpu.memory_space<vmem>>, vector<8x128xf32>
    %cst_61 = arith.constant dense<0.000000e+00> : vector<8x128xf32>
    %151 = tpu.matmul %134, %13, %cst_61 {dimension_numbers = #tpu.dot_dimension_numbers<[1], [0], [0], [1], [0, 0, 1, 1], [], []>} : vector<8x32xf32>, vector<32x128xf32>, vector<8x128xf32> -> vector<8x128xf32>
    %152 = arith.addf %150, %151 : vector<8x128xf32>
    %153 = arith.negf %152 : vector<8x128xf32>
    %154 = math.exp %153 : vector<8x128xf32>
    %cst_62 = arith.constant 1.000000e+00 : f32
    %155 = vector.broadcast %cst_62 : f32 to vector<8x128xf32>
    %156 = arith.addf %155, %154 : vector<8x128xf32>
    %157 = arith.divf %155, %156 : vector<8x128xf32>
    %158 = math.tanh %152 : vector<8x128xf32>
    %159 = vector.extract_strided_slice %157 {offsets = [0, 0], sizes = [8, 32], strides = [1, 1]} : vector<8x128xf32> to vector<8x32xf32>
    %160 = vector.extract_strided_slice %157 {offsets = [0, 32], sizes = [8, 32], strides = [1, 1]} : vector<8x128xf32> to vector<8x32xf32>
    %161 = vector.extract_strided_slice %158 {offsets = [0, 64], sizes = [8, 32], strides = [1, 1]} : vector<8x128xf32> to vector<8x32xf32>
    %162 = vector.extract_strided_slice %157 {offsets = [0, 96], sizes = [8, 32], strides = [1, 1]} : vector<8x128xf32> to vector<8x32xf32>
    %163 = arith.mulf %160, %137 : vector<8x32xf32>
    %164 = arith.mulf %159, %161 : vector<8x32xf32>
    %165 = arith.addf %163, %164 : vector<8x32xf32>
    %166 = math.tanh %165 : vector<8x32xf32>
    %167 = arith.mulf %162, %166 : vector<8x32xf32>
    %c40_63 = arith.constant 40 : index
    %c0_64 = arith.constant 0 : index
    %168 = vector.load %arg20[%c40_63, %c0_64] : memref<64x128xf32, #tpu.memory_space<vmem>>, vector<8x128xf32>
    %cst_65 = arith.constant dense<0.000000e+00> : vector<8x128xf32>
    %169 = tpu.matmul %140, %14, %cst_65 {dimension_numbers = #tpu.dot_dimension_numbers<[1], [0], [0], [1], [0, 0, 1, 1], [], []>} : vector<8x32xf32>, vector<32x128xf32>, vector<8x128xf32> -> vector<8x128xf32>
    %170 = arith.addf %168, %169 : vector<8x128xf32>
    %171 = arith.negf %170 : vector<8x128xf32>
    %172 = math.exp %171 : vector<8x128xf32>
    %cst_66 = arith.constant 1.000000e+00 : f32
    %173 = vector.broadcast %cst_66 : f32 to vector<8x128xf32>
    %174 = arith.addf %173, %172 : vector<8x128xf32>
    %175 = arith.divf %173, %174 : vector<8x128xf32>
    %176 = math.tanh %170 : vector<8x128xf32>
    %177 = vector.extract_strided_slice %175 {offsets = [0, 0], sizes = [8, 32], strides = [1, 1]} : vector<8x128xf32> to vector<8x32xf32>
    %178 = vector.extract_strided_slice %175 {offsets = [0, 32], sizes = [8, 32], strides = [1, 1]} : vector<8x128xf32> to vector<8x32xf32>
    %179 = vector.extract_strided_slice %176 {offsets = [0, 64], sizes = [8, 32], strides = [1, 1]} : vector<8x128xf32> to vector<8x32xf32>
    %180 = vector.extract_strided_slice %175 {offsets = [0, 96], sizes = [8, 32], strides = [1, 1]} : vector<8x128xf32> to vector<8x32xf32>
    %181 = arith.mulf %178, %143 : vector<8x32xf32>
    %182 = arith.mulf %177, %179 : vector<8x32xf32>
    %183 = arith.addf %181, %182 : vector<8x32xf32>
    %184 = math.tanh %183 : vector<8x32xf32>
    %185 = arith.mulf %180, %184 : vector<8x32xf32>
    %cst_67 = arith.constant 0.000000e+00 : f32
    %186 = vector.shape_cast %146 : vector<8x1xi1> to vector<8x1xi1>
    %187 = vector.broadcast %186 : vector<8x1xi1> to vector<8x32xi1>
    %188 = vector.broadcast %cst_67 : f32 to vector<8x32xf32>
    %189 = arith.select %187, %167, %188 : vector<8x32xi1>, vector<8x32xf32>
    %c16_68 = arith.constant 16 : index
    %c0_69 = arith.constant 0 : index
    %190 = vector.load %arg21[%c16_68, %c0_69] : memref<64x64xf32, #tpu.memory_space<vmem>>, vector<8x32xf32>
    tpu.vector_store %arg21[%c16_68, %c0_69], %189 {strides = array<i32>} : memref<64x64xf32, #tpu.memory_space<vmem>>, vector<8x32xf32>,
    %cst_70 = arith.constant 0.000000e+00 : f32
    %191 = vector.shape_cast %149 : vector<8x1xi1> to vector<8x1xi1>
    %192 = vector.broadcast %191 : vector<8x1xi1> to vector<8x32xi1>
    %193 = vector.broadcast %cst_70 : f32 to vector<8x32xf32>
    %194 = arith.select %192, %185, %193 : vector<8x32xi1>, vector<8x32xf32>
    %c40_71 = arith.constant 40 : index
    %c32_72 = arith.constant 32 : index
    %195 = vector.load %arg21[%c40_71, %c32_72] : memref<64x64xf32, #tpu.memory_space<vmem>>, vector<8x32xf32>
    tpu.vector_store %arg21[%c40_71, %c32_72], %194 {strides = array<i32>} : memref<64x64xf32, #tpu.memory_space<vmem>>, vector<8x32xf32>,
    %196 = vector.shape_cast %146 : vector<8x1xi1> to vector<8x1xi1>
    %197 = vector.broadcast %196 : vector<8x1xi1> to vector<8x32xi1>
    %198 = arith.select %197, %167, %134 : vector<8x32xi1>, vector<8x32xf32>
    %199 = vector.shape_cast %146 : vector<8x1xi1> to vector<8x1xi1>
    %200 = vector.broadcast %199 : vector<8x1xi1> to vector<8x32xi1>
    %201 = arith.select %200, %165, %137 : vector<8x32xi1>, vector<8x32xf32>
    %202 = vector.shape_cast %149 : vector<8x1xi1> to vector<8x1xi1>
    %203 = vector.broadcast %202 : vector<8x1xi1> to vector<8x32xi1>
    %204 = arith.select %203, %185, %140 : vector<8x32xi1>, vector<8x32xf32>
    %205 = vector.shape_cast %149 : vector<8x1xi1> to vector<8x1xi1>
    %206 = vector.broadcast %205 : vector<8x1xi1> to vector<8x32xi1>
    %207 = arith.select %206, %183, %143 : vector<8x32xi1>, vector<8x32xf32>
    %c24 = arith.constant 24 : index
    %c0_73 = arith.constant 0 : index
    %208 = vector.load %arg1[%c24, %c0_73] : memref<64x1xf32, #tpu.memory_space<vmem>>, vector<8x1xf32>
    %cst_74 = arith.constant 5.000000e-01 : f32
    %209 = vector.broadcast %cst_74 : f32 to vector<8x1xf32>
    %210 = arith.cmpf ogt, %208, %209 : vector<8x1xf32>
    %c32_75 = arith.constant 32 : index
    %c0_76 = arith.constant 0 : index
    %211 = vector.load %arg1[%c32_75, %c0_76] : memref<64x1xf32, #tpu.memory_space<vmem>>, vector<8x1xf32>
    %cst_77 = arith.constant 5.000000e-01 : f32
    %212 = vector.broadcast %cst_77 : f32 to vector<8x1xf32>
    %213 = arith.cmpf ogt, %211, %212 : vector<8x1xf32>
    %c24_78 = arith.constant 24 : index
    %c0_79 = arith.constant 0 : index
    %214 = vector.load %arg19[%c24_78, %c0_79] : memref<64x128xf32, #tpu.memory_space<vmem>>, vector<8x128xf32>
    %cst_80 = arith.constant dense<0.000000e+00> : vector<8x128xf32>
    %215 = tpu.matmul %198, %13, %cst_80 {dimension_numbers = #tpu.dot_dimension_numbers<[1], [0], [0], [1], [0, 0, 1, 1], [], []>} : vector<8x32xf32>, vector<32x128xf32>, vector<8x128xf32> -> vector<8x128xf32>
    %216 = arith.addf %214, %215 : vector<8x128xf32>
    %217 = arith.negf %216 : vector<8x128xf32>
    %218 = math.exp %217 : vector<8x128xf32>
    %cst_81 = arith.constant 1.000000e+00 : f32
    %219 = vector.broadcast %cst_81 : f32 to vector<8x128xf32>
    %220 = arith.addf %219, %218 : vector<8x128xf32>
    %221 = arith.divf %219, %220 : vector<8x128xf32>
    %222 = math.tanh %216 : vector<8x128xf32>
    %223 = vector.extract_strided_slice %221 {offsets = [0, 0], sizes = [8, 32], strides = [1, 1]} : vector<8x128xf32> to vector<8x32xf32>
    %224 = vector.extract_strided_slice %221 {offsets = [0, 32], sizes = [8, 32], strides = [1, 1]} : vector<8x128xf32> to vector<8x32xf32>
    %225 = vector.extract_strided_slice %222 {offsets = [0, 64], sizes = [8, 32], strides = [1, 1]} : vector<8x128xf32> to vector<8x32xf32>
    %226 = vector.extract_strided_slice %221 {offsets = [0, 96], sizes = [8, 32], strides = [1, 1]} : vector<8x128xf32> to vector<8x32xf32>
    %227 = arith.mulf %224, %201 : vector<8x32xf32>
    %228 = arith.mulf %223, %225 : vector<8x32xf32>
    %229 = arith.addf %227, %228 : vector<8x32xf32>
    %230 = math.tanh %229 : vector<8x32xf32>
    %231 = arith.mulf %226, %230 : vector<8x32xf32>
    %c32_82 = arith.constant 32 : index
    %c0_83 = arith.constant 0 : index
    %232 = vector.load %arg20[%c32_82, %c0_83] : memref<64x128xf32, #tpu.memory_space<vmem>>, vector<8x128xf32>
    %cst_84 = arith.constant dense<0.000000e+00> : vector<8x128xf32>
    %233 = tpu.matmul %204, %14, %cst_84 {dimension_numbers = #tpu.dot_dimension_numbers<[1], [0], [0], [1], [0, 0, 1, 1], [], []>} : vector<8x32xf32>, vector<32x128xf32>, vector<8x128xf32> -> vector<8x128xf32>
    %234 = arith.addf %232, %233 : vector<8x128xf32>
    %235 = arith.negf %234 : vector<8x128xf32>
    %236 = math.exp %235 : vector<8x128xf32>
    %cst_85 = arith.constant 1.000000e+00 : f32
    %237 = vector.broadcast %cst_85 : f32 to vector<8x128xf32>
    %238 = arith.addf %237, %236 : vector<8x128xf32>
    %239 = arith.divf %237, %238 : vector<8x128xf32>
    %240 = math.tanh %234 : vector<8x128xf32>
    %241 = vector.extract_strided_slice %239 {offsets = [0, 0], sizes = [8, 32], strides = [1, 1]} : vector<8x128xf32> to vector<8x32xf32>
    %242 = vector.extract_strided_slice %239 {offsets = [0, 32], sizes = [8, 32], strides = [1, 1]} : vector<8x128xf32> to vector<8x32xf32>
    %243 = vector.extract_strided_slice %240 {offsets = [0, 64], sizes = [8, 32], strides = [1, 1]} : vector<8x128xf32> to vector<8x32xf32>
    %244 = vector.extract_strided_slice %239 {offsets = [0, 96], sizes = [8, 32], strides = [1, 1]} : vector<8x128xf32> to vector<8x32xf32>
    %245 = arith.mulf %242, %207 : vector<8x32xf32>
    %246 = arith.mulf %241, %243 : vector<8x32xf32>
    %247 = arith.addf %245, %246 : vector<8x32xf32>
    %248 = math.tanh %247 : vector<8x32xf32>
    %249 = arith.mulf %244, %248 : vector<8x32xf32>
    %cst_86 = arith.constant 0.000000e+00 : f32
    %250 = vector.shape_cast %210 : vector<8x1xi1> to vector<8x1xi1>
    %251 = vector.broadcast %250 : vector<8x1xi1> to vector<8x32xi1>
    %252 = vector.broadcast %cst_86 : f32 to vector<8x32xf32>
    %253 = arith.select %251, %231, %252 : vector<8x32xi1>, vector<8x32xf32>
    %c24_87 = arith.constant 24 : index
    %c0_88 = arith.constant 0 : index
    %254 = vector.load %arg21[%c24_87, %c0_88] : memref<64x64xf32, #tpu.memory_space<vmem>>, vector<8x32xf32>
    tpu.vector_store %arg21[%c24_87, %c0_88], %253 {strides = array<i32>} : memref<64x64xf32, #tpu.memory_space<vmem>>, vector<8x32xf32>,
    %cst_89 = arith.constant 0.000000e+00 : f32
    %255 = vector.shape_cast %213 : vector<8x1xi1> to vector<8x1xi1>
    %256 = vector.broadcast %255 : vector<8x1xi1> to vector<8x32xi1>
    %257 = vector.broadcast %cst_89 : f32 to vector<8x32xf32>
    %258 = arith.select %256, %249, %257 : vector<8x32xi1>, vector<8x32xf32>
    %c32_90 = arith.constant 32 : index
    %c32_91 = arith.constant 32 : index
    %259 = vector.load %arg21[%c32_90, %c32_91] : memref<64x64xf32, #tpu.memory_space<vmem>>, vector<8x32xf32>
    tpu.vector_store %arg21[%c32_90, %c32_91], %258 {strides = array<i32>} : memref<64x64xf32, #tpu.memory_space<vmem>>, vector<8x32xf32>,
    %260 = vector.shape_cast %210 : vector<8x1xi1> to vector<8x1xi1>
    %261 = vector.broadcast %260 : vector<8x1xi1> to vector<8x32xi1>
    %262 = arith.select %261, %231, %198 : vector<8x32xi1>, vector<8x32xf32>
    %263 = vector.shape_cast %210 : vector<8x1xi1> to vector<8x1xi1>
    %264 = vector.broadcast %263 : vector<8x1xi1> to vector<8x32xi1>
    %265 = arith.select %264, %229, %201 : vector<8x32xi1>, vector<8x32xf32>
    %266 = vector.shape_cast %213 : vector<8x1xi1> to vector<8x1xi1>
    %267 = vector.broadcast %266 : vector<8x1xi1> to vector<8x32xi1>
    %268 = arith.select %267, %249, %204 : vector<8x32xi1>, vector<8x32xf32>
    %269 = vector.shape_cast %213 : vector<8x1xi1> to vector<8x1xi1>
    %270 = vector.broadcast %269 : vector<8x1xi1> to vector<8x32xi1>
    %271 = arith.select %270, %247, %207 : vector<8x32xi1>, vector<8x32xf32>
    %c32_92 = arith.constant 32 : index
    %c0_93 = arith.constant 0 : index
    %272 = vector.load %arg1[%c32_92, %c0_93] : memref<64x1xf32, #tpu.memory_space<vmem>>, vector<8x1xf32>
    %cst_94 = arith.constant 5.000000e-01 : f32
    %273 = vector.broadcast %cst_94 : f32 to vector<8x1xf32>
    %274 = arith.cmpf ogt, %272, %273 : vector<8x1xf32>
    %c24_95 = arith.constant 24 : index
    %c0_96 = arith.constant 0 : index
    %275 = vector.load %arg1[%c24_95, %c0_96] : memref<64x1xf32, #tpu.memory_space<vmem>>, vector<8x1xf32>
    %cst_97 = arith.constant 5.000000e-01 : f32
    %276 = vector.broadcast %cst_97 : f32 to vector<8x1xf32>
    %277 = arith.cmpf ogt, %275, %276 : vector<8x1xf32>
    %c32_98 = arith.constant 32 : index
    %c0_99 = arith.constant 0 : index
    %278 = vector.load %arg19[%c32_98, %c0_99] : memref<64x128xf32, #tpu.memory_space<vmem>>, vector<8x128xf32>
    %cst_100 = arith.constant dense<0.000000e+00> : vector<8x128xf32>
    %279 = tpu.matmul %262, %13, %cst_100 {dimension_numbers = #tpu.dot_dimension_numbers<[1], [0], [0], [1], [0, 0, 1, 1], [], []>} : vector<8x32xf32>, vector<32x128xf32>, vector<8x128xf32> -> vector<8x128xf32>
    %280 = arith.addf %278, %279 : vector<8x128xf32>
    %281 = arith.negf %280 : vector<8x128xf32>
    %282 = math.exp %281 : vector<8x128xf32>
    %cst_101 = arith.constant 1.000000e+00 : f32
    %283 = vector.broadcast %cst_101 : f32 to vector<8x128xf32>
    %284 = arith.addf %283, %282 : vector<8x128xf32>
    %285 = arith.divf %283, %284 : vector<8x128xf32>
    %286 = math.tanh %280 : vector<8x128xf32>
    %287 = vector.extract_strided_slice %285 {offsets = [0, 0], sizes = [8, 32], strides = [1, 1]} : vector<8x128xf32> to vector<8x32xf32>
    %288 = vector.extract_strided_slice %285 {offsets = [0, 32], sizes = [8, 32], strides = [1, 1]} : vector<8x128xf32> to vector<8x32xf32>
    %289 = vector.extract_strided_slice %286 {offsets = [0, 64], sizes = [8, 32], strides = [1, 1]} : vector<8x128xf32> to vector<8x32xf32>
    %290 = vector.extract_strided_slice %285 {offsets = [0, 96], sizes = [8, 32], strides = [1, 1]} : vector<8x128xf32> to vector<8x32xf32>
    %291 = arith.mulf %288, %265 : vector<8x32xf32>
    %292 = arith.mulf %287, %289 : vector<8x32xf32>
    %293 = arith.addf %291, %292 : vector<8x32xf32>
    %294 = math.tanh %293 : vector<8x32xf32>
    %295 = arith.mulf %290, %294 : vector<8x32xf32>
    %c24_102 = arith.constant 24 : index
    %c0_103 = arith.constant 0 : index
    %296 = vector.load %arg20[%c24_102, %c0_103] : memref<64x128xf32, #tpu.memory_space<vmem>>, vector<8x128xf32>
    %cst_104 = arith.constant dense<0.000000e+00> : vector<8x128xf32>
    %297 = tpu.matmul %268, %14, %cst_104 {dimension_numbers = #tpu.dot_dimension_numbers<[1], [0], [0], [1], [0, 0, 1, 1], [], []>} : vector<8x32xf32>, vector<32x128xf32>, vector<8x128xf32> -> vector<8x128xf32>
    %298 = arith.addf %296, %297 : vector<8x128xf32>
    %299 = arith.negf %298 : vector<8x128xf32>
    %300 = math.exp %299 : vector<8x128xf32>
    %cst_105 = arith.constant 1.000000e+00 : f32
    %301 = vector.broadcast %cst_105 : f32 to vector<8x128xf32>
    %302 = arith.addf %301, %300 : vector<8x128xf32>
    %303 = arith.divf %301, %302 : vector<8x128xf32>
    %304 = math.tanh %298 : vector<8x128xf32>
    %305 = vector.extract_strided_slice %303 {offsets = [0, 0], sizes = [8, 32], strides = [1, 1]} : vector<8x128xf32> to vector<8x32xf32>
    %306 = vector.extract_strided_slice %303 {offsets = [0, 32], sizes = [8, 32], strides = [1, 1]} : vector<8x128xf32> to vector<8x32xf32>
    %307 = vector.extract_strided_slice %304 {offsets = [0, 64], sizes = [8, 32], strides = [1, 1]} : vector<8x128xf32> to vector<8x32xf32>
    %308 = vector.extract_strided_slice %303 {offsets = [0, 96], sizes = [8, 32], strides = [1, 1]} : vector<8x128xf32> to vector<8x32xf32>
    %309 = arith.mulf %306, %271 : vector<8x32xf32>
    %310 = arith.mulf %305, %307 : vector<8x32xf32>
    %311 = arith.addf %309, %310 : vector<8x32xf32>
    %312 = math.tanh %311 : vector<8x32xf32>
    %313 = arith.mulf %308, %312 : vector<8x32xf32>
    %cst_106 = arith.constant 0.000000e+00 : f32
    %314 = vector.shape_cast %274 : vector<8x1xi1> to vector<8x1xi1>
    %315 = vector.broadcast %314 : vector<8x1xi1> to vector<8x32xi1>
    %316 = vector.broadcast %cst_106 : f32 to vector<8x32xf32>
    %317 = arith.select %315, %295, %316 : vector<8x32xi1>, vector<8x32xf32>
    %c32_107 = arith.constant 32 : index
    %c0_108 = arith.constant 0 : index
    %318 = vector.load %arg21[%c32_107, %c0_108] : memref<64x64xf32, #tpu.memory_space<vmem>>, vector<8x32xf32>
    tpu.vector_store %arg21[%c32_107, %c0_108], %317 {strides = array<i32>} : memref<64x64xf32, #tpu.memory_space<vmem>>, vector<8x32xf32>,
    %cst_109 = arith.constant 0.000000e+00 : f32
    %319 = vector.shape_cast %277 : vector<8x1xi1> to vector<8x1xi1>
    %320 = vector.broadcast %319 : vector<8x1xi1> to vector<8x32xi1>
    %321 = vector.broadcast %cst_109 : f32 to vector<8x32xf32>
    %322 = arith.select %320, %313, %321 : vector<8x32xi1>, vector<8x32xf32>
    %c24_110 = arith.constant 24 : index
    %c32_111 = arith.constant 32 : index
    %323 = vector.load %arg21[%c24_110, %c32_111] : memref<64x64xf32, #tpu.memory_space<vmem>>, vector<8x32xf32>
    tpu.vector_store %arg21[%c24_110, %c32_111], %322 {strides = array<i32>} : memref<64x64xf32, #tpu.memory_space<vmem>>, vector<8x32xf32>,
    %324 = vector.shape_cast %274 : vector<8x1xi1> to vector<8x1xi1>
    %325 = vector.broadcast %324 : vector<8x1xi1> to vector<8x32xi1>
    %326 = arith.select %325, %295, %262 : vector<8x32xi1>, vector<8x32xf32>
    %327 = vector.shape_cast %274 : vector<8x1xi1> to vector<8x1xi1>
    %328 = vector.broadcast %327 : vector<8x1xi1> to vector<8x32xi1>
    %329 = arith.select %328, %293, %265 : vector<8x32xi1>, vector<8x32xf32>
    %330 = vector.shape_cast %277 : vector<8x1xi1> to vector<8x1xi1>
    %331 = vector.broadcast %330 : vector<8x1xi1> to vector<8x32xi1>
    %332 = arith.select %331, %313, %268 : vector<8x32xi1>, vector<8x32xf32>
    %333 = vector.shape_cast %277 : vector<8x1xi1> to vector<8x1xi1>
    %334 = vector.broadcast %333 : vector<8x1xi1> to vector<8x32xi1>
    %335 = arith.select %334, %311, %271 : vector<8x32xi1>, vector<8x32xf32>
    %c40_112 = arith.constant 40 : index
    %c0_113 = arith.constant 0 : index
    %336 = vector.load %arg1[%c40_112, %c0_113] : memref<64x1xf32, #tpu.memory_space<vmem>>, vector<8x1xf32>
    %cst_114 = arith.constant 5.000000e-01 : f32
    %337 = vector.broadcast %cst_114 : f32 to vector<8x1xf32>
    %338 = arith.cmpf ogt, %336, %337 : vector<8x1xf32>
    %c16_115 = arith.constant 16 : index
    %c0_116 = arith.constant 0 : index
    %339 = vector.load %arg1[%c16_115, %c0_116] : memref<64x1xf32, #tpu.memory_space<vmem>>, vector<8x1xf32>
    %cst_117 = arith.constant 5.000000e-01 : f32
    %340 = vector.broadcast %cst_117 : f32 to vector<8x1xf32>
    %341 = arith.cmpf ogt, %339, %340 : vector<8x1xf32>
    %c40_118 = arith.constant 40 : index
    %c0_119 = arith.constant 0 : index
    %342 = vector.load %arg19[%c40_118, %c0_119] : memref<64x128xf32, #tpu.memory_space<vmem>>, vector<8x128xf32>
    %cst_120 = arith.constant dense<0.000000e+00> : vector<8x128xf32>
    %343 = tpu.matmul %326, %13, %cst_120 {dimension_numbers = #tpu.dot_dimension_numbers<[1], [0], [0], [1], [0, 0, 1, 1], [], []>} : vector<8x32xf32>, vector<32x128xf32>, vector<8x128xf32> -> vector<8x128xf32>
    %344 = arith.addf %342, %343 : vector<8x128xf32>
    %345 = arith.negf %344 : vector<8x128xf32>
    %346 = math.exp %345 : vector<8x128xf32>
    %cst_121 = arith.constant 1.000000e+00 : f32
    %347 = vector.broadcast %cst_121 : f32 to vector<8x128xf32>
    %348 = arith.addf %347, %346 : vector<8x128xf32>
    %349 = arith.divf %347, %348 : vector<8x128xf32>
    %350 = math.tanh %344 : vector<8x128xf32>
    %351 = vector.extract_strided_slice %349 {offsets = [0, 0], sizes = [8, 32], strides = [1, 1]} : vector<8x128xf32> to vector<8x32xf32>
    %352 = vector.extract_strided_slice %349 {offsets = [0, 32], sizes = [8, 32], strides = [1, 1]} : vector<8x128xf32> to vector<8x32xf32>
    %353 = vector.extract_strided_slice %350 {offsets = [0, 64], sizes = [8, 32], strides = [1, 1]} : vector<8x128xf32> to vector<8x32xf32>
    %354 = vector.extract_strided_slice %349 {offsets = [0, 96], sizes = [8, 32], strides = [1, 1]} : vector<8x128xf32> to vector<8x32xf32>
    %355 = arith.mulf %352, %329 : vector<8x32xf32>
    %356 = arith.mulf %351, %353 : vector<8x32xf32>
    %357 = arith.addf %355, %356 : vector<8x32xf32>
    %358 = math.tanh %357 : vector<8x32xf32>
    %359 = arith.mulf %354, %358 : vector<8x32xf32>
    %c16_122 = arith.constant 16 : index
    %c0_123 = arith.constant 0 : index
    %360 = vector.load %arg20[%c16_122, %c0_123] : memref<64x128xf32, #tpu.memory_space<vmem>>, vector<8x128xf32>
    %cst_124 = arith.constant dense<0.000000e+00> : vector<8x128xf32>
    %361 = tpu.matmul %332, %14, %cst_124 {dimension_numbers = #tpu.dot_dimension_numbers<[1], [0], [0], [1], [0, 0, 1, 1], [], []>} : vector<8x32xf32>, vector<32x128xf32>, vector<8x128xf32> -> vector<8x128xf32>
    %362 = arith.addf %360, %361 : vector<8x128xf32>
    %363 = arith.negf %362 : vector<8x128xf32>
    %364 = math.exp %363 : vector<8x128xf32>
    %cst_125 = arith.constant 1.000000e+00 : f32
    %365 = vector.broadcast %cst_125 : f32 to vector<8x128xf32>
    %366 = arith.addf %365, %364 : vector<8x128xf32>
    %367 = arith.divf %365, %366 : vector<8x128xf32>
    %368 = math.tanh %362 : vector<8x128xf32>
    %369 = vector.extract_strided_slice %367 {offsets = [0, 0], sizes = [8, 32], strides = [1, 1]} : vector<8x128xf32> to vector<8x32xf32>
    %370 = vector.extract_strided_slice %367 {offsets = [0, 32], sizes = [8, 32], strides = [1, 1]} : vector<8x128xf32> to vector<8x32xf32>
    %371 = vector.extract_strided_slice %368 {offsets = [0, 64], sizes = [8, 32], strides = [1, 1]} : vector<8x128xf32> to vector<8x32xf32>
    %372 = vector.extract_strided_slice %367 {offsets = [0, 96], sizes = [8, 32], strides = [1, 1]} : vector<8x128xf32> to vector<8x32xf32>
    %373 = arith.mulf %370, %335 : vector<8x32xf32>
    %374 = arith.mulf %369, %371 : vector<8x32xf32>
    %375 = arith.addf %373, %374 : vector<8x32xf32>
    %376 = math.tanh %375 : vector<8x32xf32>
    %377 = arith.mulf %372, %376 : vector<8x32xf32>
    %cst_126 = arith.constant 0.000000e+00 : f32
    %378 = vector.shape_cast %338 : vector<8x1xi1> to vector<8x1xi1>
    %379 = vector.broadcast %378 : vector<8x1xi1> to vector<8x32xi1>
    %380 = vector.broadcast %cst_126 : f32 to vector<8x32xf32>
    %381 = arith.select %379, %359, %380 : vector<8x32xi1>, vector<8x32xf32>
    %c40_127 = arith.constant 40 : index
    %c0_128 = arith.constant 0 : index
    %382 = vector.load %arg21[%c40_127, %c0_128] : memref<64x64xf32, #tpu.memory_space<vmem>>, vector<8x32xf32>
    tpu.vector_store %arg21[%c40_127, %c0_128], %381 {strides = array<i32>} : memref<64x64xf32, #tpu.memory_space<vmem>>, vector<8x32xf32>,
    %cst_129 = arith.constant 0.000000e+00 : f32
    %383 = vector.shape_cast %341 : vector<8x1xi1> to vector<8x1xi1>
    %384 = vector.broadcast %383 : vector<8x1xi1> to vector<8x32xi1>
    %385 = vector.broadcast %cst_129 : f32 to vector<8x32xf32>
    %386 = arith.select %384, %377, %385 : vector<8x32xi1>, vector<8x32xf32>
    %c16_130 = arith.constant 16 : index
    %c32_131 = arith.constant 32 : index
    %387 = vector.load %arg21[%c16_130, %c32_131] : memref<64x64xf32, #tpu.memory_space<vmem>>, vector<8x32xf32>
    tpu.vector_store %arg21[%c16_130, %c32_131], %386 {strides = array<i32>} : memref<64x64xf32, #tpu.memory_space<vmem>>, vector<8x32xf32>,
    %388 = vector.shape_cast %338 : vector<8x1xi1> to vector<8x1xi1>
    %389 = vector.broadcast %388 : vector<8x1xi1> to vector<8x32xi1>
    %390 = arith.select %389, %359, %326 : vector<8x32xi1>, vector<8x32xf32>
    %391 = vector.shape_cast %338 : vector<8x1xi1> to vector<8x1xi1>
    %392 = vector.broadcast %391 : vector<8x1xi1> to vector<8x32xi1>
    %393 = arith.select %392, %357, %329 : vector<8x32xi1>, vector<8x32xf32>
    %394 = vector.shape_cast %341 : vector<8x1xi1> to vector<8x1xi1>
    %395 = vector.broadcast %394 : vector<8x1xi1> to vector<8x32xi1>
    %396 = arith.select %395, %377, %332 : vector<8x32xi1>, vector<8x32xf32>
    %397 = vector.shape_cast %341 : vector<8x1xi1> to vector<8x1xi1>
    %398 = vector.broadcast %397 : vector<8x1xi1> to vector<8x32xi1>
    %399 = arith.select %398, %375, %335 : vector<8x32xi1>, vector<8x32xf32>
    %c48_132 = arith.constant 48 : index
    %c0_133 = arith.constant 0 : index
    %400 = vector.load %arg1[%c48_132, %c0_133] : memref<64x1xf32, #tpu.memory_space<vmem>>, vector<8x1xf32>
    %cst_134 = arith.constant 5.000000e-01 : f32
    %401 = vector.broadcast %cst_134 : f32 to vector<8x1xf32>
    %402 = arith.cmpf ogt, %400, %401 : vector<8x1xf32>
    %c8_135 = arith.constant 8 : index
    %c0_136 = arith.constant 0 : index
    %403 = vector.load %arg1[%c8_135, %c0_136] : memref<64x1xf32, #tpu.memory_space<vmem>>, vector<8x1xf32>
    %cst_137 = arith.constant 5.000000e-01 : f32
    %404 = vector.broadcast %cst_137 : f32 to vector<8x1xf32>
    %405 = arith.cmpf ogt, %403, %404 : vector<8x1xf32>
    %c48_138 = arith.constant 48 : index
    %c0_139 = arith.constant 0 : index
    %406 = vector.load %arg19[%c48_138, %c0_139] : memref<64x128xf32, #tpu.memory_space<vmem>>, vector<8x128xf32>
    %cst_140 = arith.constant dense<0.000000e+00> : vector<8x128xf32>
    %407 = tpu.matmul %390, %13, %cst_140 {dimension_numbers = #tpu.dot_dimension_numbers<[1], [0], [0], [1], [0, 0, 1, 1], [], []>} : vector<8x32xf32>, vector<32x128xf32>, vector<8x128xf32> -> vector<8x128xf32>
    %408 = arith.addf %406, %407 : vector<8x128xf32>
    %409 = arith.negf %408 : vector<8x128xf32>
    %410 = math.exp %409 : vector<8x128xf32>
    %cst_141 = arith.constant 1.000000e+00 : f32
    %411 = vector.broadcast %cst_141 : f32 to vector<8x128xf32>
    %412 = arith.addf %411, %410 : vector<8x128xf32>
    %413 = arith.divf %411, %412 : vector<8x128xf32>
    %414 = math.tanh %408 : vector<8x128xf32>
    %415 = vector.extract_strided_slice %413 {offsets = [0, 0], sizes = [8, 32], strides = [1, 1]} : vector<8x128xf32> to vector<8x32xf32>
    %416 = vector.extract_strided_slice %413 {offsets = [0, 32], sizes = [8, 32], strides = [1, 1]} : vector<8x128xf32> to vector<8x32xf32>
    %417 = vector.extract_strided_slice %414 {offsets = [0, 64], sizes = [8, 32], strides = [1, 1]} : vector<8x128xf32> to vector<8x32xf32>
    %418 = vector.extract_strided_slice %413 {offsets = [0, 96], sizes = [8, 32], strides = [1, 1]} : vector<8x128xf32> to vector<8x32xf32>
    %419 = arith.mulf %416, %393 : vector<8x32xf32>
    %420 = arith.mulf %415, %417 : vector<8x32xf32>
    %421 = arith.addf %419, %420 : vector<8x32xf32>
    %422 = math.tanh %421 : vector<8x32xf32>
    %423 = arith.mulf %418, %422 : vector<8x32xf32>
    %c8_142 = arith.constant 8 : index
    %c0_143 = arith.constant 0 : index
    %424 = vector.load %arg20[%c8_142, %c0_143] : memref<64x128xf32, #tpu.memory_space<vmem>>, vector<8x128xf32>
    %cst_144 = arith.constant dense<0.000000e+00> : vector<8x128xf32>
    %425 = tpu.matmul %396, %14, %cst_144 {dimension_numbers = #tpu.dot_dimension_numbers<[1], [0], [0], [1], [0, 0, 1, 1], [], []>} : vector<8x32xf32>, vector<32x128xf32>, vector<8x128xf32> -> vector<8x128xf32>
    %426 = arith.addf %424, %425 : vector<8x128xf32>
    %427 = arith.negf %426 : vector<8x128xf32>
    %428 = math.exp %427 : vector<8x128xf32>
    %cst_145 = arith.constant 1.000000e+00 : f32
    %429 = vector.broadcast %cst_145 : f32 to vector<8x128xf32>
    %430 = arith.addf %429, %428 : vector<8x128xf32>
    %431 = arith.divf %429, %430 : vector<8x128xf32>
    %432 = math.tanh %426 : vector<8x128xf32>
    %433 = vector.extract_strided_slice %431 {offsets = [0, 0], sizes = [8, 32], strides = [1, 1]} : vector<8x128xf32> to vector<8x32xf32>
    %434 = vector.extract_strided_slice %431 {offsets = [0, 32], sizes = [8, 32], strides = [1, 1]} : vector<8x128xf32> to vector<8x32xf32>
    %435 = vector.extract_strided_slice %432 {offsets = [0, 64], sizes = [8, 32], strides = [1, 1]} : vector<8x128xf32> to vector<8x32xf32>
    %436 = vector.extract_strided_slice %431 {offsets = [0, 96], sizes = [8, 32], strides = [1, 1]} : vector<8x128xf32> to vector<8x32xf32>
    %437 = arith.mulf %434, %399 : vector<8x32xf32>
    %438 = arith.mulf %433, %435 : vector<8x32xf32>
    %439 = arith.addf %437, %438 : vector<8x32xf32>
    %440 = math.tanh %439 : vector<8x32xf32>
    %441 = arith.mulf %436, %440 : vector<8x32xf32>
    %cst_146 = arith.constant 0.000000e+00 : f32
    %442 = vector.shape_cast %402 : vector<8x1xi1> to vector<8x1xi1>
    %443 = vector.broadcast %442 : vector<8x1xi1> to vector<8x32xi1>
    %444 = vector.broadcast %cst_146 : f32 to vector<8x32xf32>
    %445 = arith.select %443, %423, %444 : vector<8x32xi1>, vector<8x32xf32>
    %c48_147 = arith.constant 48 : index
    %c0_148 = arith.constant 0 : index
    %446 = vector.load %arg21[%c48_147, %c0_148] : memref<64x64xf32, #tpu.memory_space<vmem>>, vector<8x32xf32>
    tpu.vector_store %arg21[%c48_147, %c0_148], %445 {strides = array<i32>} : memref<64x64xf32, #tpu.memory_space<vmem>>, vector<8x32xf32>,
    %cst_149 = arith.constant 0.000000e+00 : f32
    %447 = vector.shape_cast %405 : vector<8x1xi1> to vector<8x1xi1>
    %448 = vector.broadcast %447 : vector<8x1xi1> to vector<8x32xi1>
    %449 = vector.broadcast %cst_149 : f32 to vector<8x32xf32>
    %450 = arith.select %448, %441, %449 : vector<8x32xi1>, vector<8x32xf32>
    %c8_150 = arith.constant 8 : index
    %c32_151 = arith.constant 32 : index
    %451 = vector.load %arg21[%c8_150, %c32_151] : memref<64x64xf32, #tpu.memory_space<vmem>>, vector<8x32xf32>
    tpu.vector_store %arg21[%c8_150, %c32_151], %450 {strides = array<i32>} : memref<64x64xf32, #tpu.memory_space<vmem>>, vector<8x32xf32>,
    %452 = vector.shape_cast %402 : vector<8x1xi1> to vector<8x1xi1>
    %453 = vector.broadcast %452 : vector<8x1xi1> to vector<8x32xi1>
    %454 = arith.select %453, %423, %390 : vector<8x32xi1>, vector<8x32xf32>
    %455 = vector.shape_cast %402 : vector<8x1xi1> to vector<8x1xi1>
    %456 = vector.broadcast %455 : vector<8x1xi1> to vector<8x32xi1>
    %457 = arith.select %456, %421, %393 : vector<8x32xi1>, vector<8x32xf32>
    %458 = vector.shape_cast %405 : vector<8x1xi1> to vector<8x1xi1>
    %459 = vector.broadcast %458 : vector<8x1xi1> to vector<8x32xi1>
    %460 = arith.select %459, %441, %396 : vector<8x32xi1>, vector<8x32xf32>
    %461 = vector.shape_cast %405 : vector<8x1xi1> to vector<8x1xi1>
    %462 = vector.broadcast %461 : vector<8x1xi1> to vector<8x32xi1>
    %463 = arith.select %462, %439, %399 : vector<8x32xi1>, vector<8x32xf32>
    %c56_152 = arith.constant 56 : index
    %c0_153 = arith.constant 0 : index
    %464 = vector.load %arg1[%c56_152, %c0_153] : memref<64x1xf32, #tpu.memory_space<vmem>>, vector<8x1xf32>
    %cst_154 = arith.constant 5.000000e-01 : f32
    %465 = vector.broadcast %cst_154 : f32 to vector<8x1xf32>
    %466 = arith.cmpf ogt, %464, %465 : vector<8x1xf32>
    %c0_155 = arith.constant 0 : index
    %c0_156 = arith.constant 0 : index
    %467 = vector.load %arg1[%c0_155, %c0_156] : memref<64x1xf32, #tpu.memory_space<vmem>>, vector<8x1xf32>
    %cst_157 = arith.constant 5.000000e-01 : f32
    %468 = vector.broadcast %cst_157 : f32 to vector<8x1xf32>
    %469 = arith.cmpf ogt, %467, %468 : vector<8x1xf32>
    %c56_158 = arith.constant 56 : index
    %c0_159 = arith.constant 0 : index
    %470 = vector.load %arg19[%c56_158, %c0_159] : memref<64x128xf32, #tpu.memory_space<vmem>>, vector<8x128xf32>
    %cst_160 = arith.constant dense<0.000000e+00> : vector<8x128xf32>
    %471 = tpu.matmul %454, %13, %cst_160 {dimension_numbers = #tpu.dot_dimension_numbers<[1], [0], [0], [1], [0, 0, 1, 1], [], []>} : vector<8x32xf32>, vector<32x128xf32>, vector<8x128xf32> -> vector<8x128xf32>
    %472 = arith.addf %470, %471 : vector<8x128xf32>
    %473 = arith.negf %472 : vector<8x128xf32>
    %474 = math.exp %473 : vector<8x128xf32>
    %cst_161 = arith.constant 1.000000e+00 : f32
    %475 = vector.broadcast %cst_161 : f32 to vector<8x128xf32>
    %476 = arith.addf %475, %474 : vector<8x128xf32>
    %477 = arith.divf %475, %476 : vector<8x128xf32>
    %478 = math.tanh %472 : vector<8x128xf32>
    %479 = vector.extract_strided_slice %477 {offsets = [0, 0], sizes = [8, 32], strides = [1, 1]} : vector<8x128xf32> to vector<8x32xf32>
    %480 = vector.extract_strided_slice %477 {offsets = [0, 32], sizes = [8, 32], strides = [1, 1]} : vector<8x128xf32> to vector<8x32xf32>
    %481 = vector.extract_strided_slice %478 {offsets = [0, 64], sizes = [8, 32], strides = [1, 1]} : vector<8x128xf32> to vector<8x32xf32>
    %482 = vector.extract_strided_slice %477 {offsets = [0, 96], sizes = [8, 32], strides = [1, 1]} : vector<8x128xf32> to vector<8x32xf32>
    %483 = arith.mulf %480, %457 : vector<8x32xf32>
    %484 = arith.mulf %479, %481 : vector<8x32xf32>
    %485 = arith.addf %483, %484 : vector<8x32xf32>
    %486 = math.tanh %485 : vector<8x32xf32>
    %487 = arith.mulf %482, %486 : vector<8x32xf32>
    %c0_162 = arith.constant 0 : index
    %c0_163 = arith.constant 0 : index
    %488 = vector.load %arg20[%c0_162, %c0_163] : memref<64x128xf32, #tpu.memory_space<vmem>>, vector<8x128xf32>
    %cst_164 = arith.constant dense<0.000000e+00> : vector<8x128xf32>
    %489 = tpu.matmul %460, %14, %cst_164 {dimension_numbers = #tpu.dot_dimension_numbers<[1], [0], [0], [1], [0, 0, 1, 1], [], []>} : vector<8x32xf32>, vector<32x128xf32>, vector<8x128xf32> -> vector<8x128xf32>
    %490 = arith.addf %488, %489 : vector<8x128xf32>
    %491 = arith.negf %490 : vector<8x128xf32>
    %492 = math.exp %491 : vector<8x128xf32>
    %cst_165 = arith.constant 1.000000e+00 : f32
    %493 = vector.broadcast %cst_165 : f32 to vector<8x128xf32>
    %494 = arith.addf %493, %492 : vector<8x128xf32>
    %495 = arith.divf %493, %494 : vector<8x128xf32>
    %496 = math.tanh %490 : vector<8x128xf32>
    %497 = vector.extract_strided_slice %495 {offsets = [0, 0], sizes = [8, 32], strides = [1, 1]} : vector<8x128xf32> to vector<8x32xf32>
    %498 = vector.extract_strided_slice %495 {offsets = [0, 32], sizes = [8, 32], strides = [1, 1]} : vector<8x128xf32> to vector<8x32xf32>
    %499 = vector.extract_strided_slice %496 {offsets = [0, 64], sizes = [8, 32], strides = [1, 1]} : vector<8x128xf32> to vector<8x32xf32>
    %500 = vector.extract_strided_slice %495 {offsets = [0, 96], sizes = [8, 32], strides = [1, 1]} : vector<8x128xf32> to vector<8x32xf32>
    %501 = arith.mulf %498, %463 : vector<8x32xf32>
    %502 = arith.mulf %497, %499 : vector<8x32xf32>
    %503 = arith.addf %501, %502 : vector<8x32xf32>
    %504 = math.tanh %503 : vector<8x32xf32>
    %505 = arith.mulf %500, %504 : vector<8x32xf32>
    %cst_166 = arith.constant 0.000000e+00 : f32
    %506 = vector.shape_cast %466 : vector<8x1xi1> to vector<8x1xi1>
    %507 = vector.broadcast %506 : vector<8x1xi1> to vector<8x32xi1>
    %508 = vector.broadcast %cst_166 : f32 to vector<8x32xf32>
    %509 = arith.select %507, %487, %508 : vector<8x32xi1>, vector<8x32xf32>
    %c56_167 = arith.constant 56 : index
    %c0_168 = arith.constant 0 : index
    %510 = vector.load %arg21[%c56_167, %c0_168] : memref<64x64xf32, #tpu.memory_space<vmem>>, vector<8x32xf32>
    tpu.vector_store %arg21[%c56_167, %c0_168], %509 {strides = array<i32>} : memref<64x64xf32, #tpu.memory_space<vmem>>, vector<8x32xf32>,
    %cst_169 = arith.constant 0.000000e+00 : f32
    %511 = vector.shape_cast %469 : vector<8x1xi1> to vector<8x1xi1>
    %512 = vector.broadcast %511 : vector<8x1xi1> to vector<8x32xi1>
    %513 = vector.broadcast %cst_169 : f32 to vector<8x32xf32>
    %514 = arith.select %512, %505, %513 : vector<8x32xi1>, vector<8x32xf32>
    %c0_170 = arith.constant 0 : index
    %c32_171 = arith.constant 32 : index
    %515 = vector.load %arg21[%c0_170, %c32_171] : memref<64x64xf32, #tpu.memory_space<vmem>>, vector<8x32xf32>
    tpu.vector_store %arg21[%c0_170, %c32_171], %514 {strides = array<i32>} : memref<64x64xf32, #tpu.memory_space<vmem>>, vector<8x32xf32>,
    %c0_172 = arith.constant 0 : index
    %c0_173 = arith.constant 0 : index
    %516 = vector.load %arg21[%c0_172, %c0_173] : memref<64x64xf32, #tpu.memory_space<vmem>>, vector<64x64xf32>
    %c0_174 = arith.constant 0 : index
    %c0_175 = arith.constant 0 : index
    %517 = vector.load %arg8[%c0_174, %c0_175] : memref<64x128xf32, #tpu.memory_space<vmem>>, vector<64x128xf32>
    %cst_176 = arith.constant dense<0.000000e+00> : vector<64x128xf32>
    %518 = tpu.matmul %516, %517, %cst_176 {dimension_numbers = #tpu.dot_dimension_numbers<[1], [0], [0], [1], [0, 0, 1, 1], [], []>} : vector<64x64xf32>, vector<64x128xf32>, vector<64x128xf32> -> vector<64x128xf32>
    %c0_177 = arith.constant 0 : index
    %c0_178 = arith.constant 0 : index
    %519 = vector.load %arg10[%c0_177, %c0_178] : memref<1x128xf32, #tpu.memory_space<vmem>>, vector<1x128xf32>
    %520 = vector.broadcast %519 : vector<1x128xf32> to vector<64x128xf32>
    %521 = arith.addf %518, %520 : vector<64x128xf32>
    %c0_179 = arith.constant 0 : index
    %c0_180 = arith.constant 0 : index
    %522 = vector.load %arg19[%c0_179, %c0_180] : memref<64x128xf32, #tpu.memory_space<vmem>>, vector<64x128xf32>
    tpu.vector_store %arg19[%c0_179, %c0_180], %521 {strides = array<i32>} : memref<64x128xf32, #tpu.memory_space<vmem>>, vector<64x128xf32>,
    %c0_181 = arith.constant 0 : index
    %c0_182 = arith.constant 0 : index
    %523 = vector.load %arg11[%c0_181, %c0_182] : memref<64x128xf32, #tpu.memory_space<vmem>>, vector<64x128xf32>
    %cst_183 = arith.constant dense<0.000000e+00> : vector<64x128xf32>
    %524 = tpu.matmul %516, %523, %cst_183 {dimension_numbers = #tpu.dot_dimension_numbers<[1], [0], [0], [1], [0, 0, 1, 1], [], []>} : vector<64x64xf32>, vector<64x128xf32>, vector<64x128xf32> -> vector<64x128xf32>
    %c0_184 = arith.constant 0 : index
    %c0_185 = arith.constant 0 : index
    %525 = vector.load %arg13[%c0_184, %c0_185] : memref<1x128xf32, #tpu.memory_space<vmem>>, vector<1x128xf32>
    %526 = vector.broadcast %525 : vector<1x128xf32> to vector<64x128xf32>
    %527 = arith.addf %524, %526 : vector<64x128xf32>
    %c0_186 = arith.constant 0 : index
    %c0_187 = arith.constant 0 : index
    %528 = vector.load %arg20[%c0_186, %c0_187] : memref<64x128xf32, #tpu.memory_space<vmem>>, vector<64x128xf32>
    tpu.vector_store %arg20[%c0_186, %c0_187], %527 {strides = array<i32>} : memref<64x128xf32, #tpu.memory_space<vmem>>, vector<64x128xf32>,
    %c0_188 = arith.constant 0 : index
    %c0_189 = arith.constant 0 : index
    %529 = vector.load %arg9[%c0_188, %c0_189] : memref<32x128xf32, #tpu.memory_space<vmem>>, vector<32x128xf32>
    %c0_190 = arith.constant 0 : index
    %c0_191 = arith.constant 0 : index
    %530 = vector.load %arg12[%c0_190, %c0_191] : memref<32x128xf32, #tpu.memory_space<vmem>>, vector<32x128xf32>
    %cst_192 = arith.constant 0.000000e+00 : f32
    %531 = vector.broadcast %cst_192 : f32 to vector<8x32xf32>
    %c0_193 = arith.constant 0 : index
    %c0_194 = arith.constant 0 : index
    %532 = vector.load %arg1[%c0_193, %c0_194] : memref<64x1xf32, #tpu.memory_space<vmem>>, vector<8x1xf32>
    %cst_195 = arith.constant 5.000000e-01 : f32
    %533 = vector.broadcast %cst_195 : f32 to vector<8x1xf32>
    %534 = arith.cmpf ogt, %532, %533 : vector<8x1xf32>
    %c56_196 = arith.constant 56 : index
    %c0_197 = arith.constant 0 : index
    %535 = vector.load %arg1[%c56_196, %c0_197] : memref<64x1xf32, #tpu.memory_space<vmem>>, vector<8x1xf32>
    %cst_198 = arith.constant 5.000000e-01 : f32
    %536 = vector.broadcast %cst_198 : f32 to vector<8x1xf32>
    %537 = arith.cmpf ogt, %535, %536 : vector<8x1xf32>
    %c0_199 = arith.constant 0 : index
    %c0_200 = arith.constant 0 : index
    %538 = vector.load %arg19[%c0_199, %c0_200] : memref<64x128xf32, #tpu.memory_space<vmem>>, vector<8x128xf32>
    %cst_201 = arith.constant dense<0.000000e+00> : vector<8x128xf32>
    %539 = tpu.matmul %531, %529, %cst_201 {dimension_numbers = #tpu.dot_dimension_numbers<[1], [0], [0], [1], [0, 0, 1, 1], [], []>} : vector<8x32xf32>, vector<32x128xf32>, vector<8x128xf32> -> vector<8x128xf32>
    %540 = arith.addf %538, %539 : vector<8x128xf32>
    %541 = arith.negf %540 : vector<8x128xf32>
    %542 = math.exp %541 : vector<8x128xf32>
    %cst_202 = arith.constant 1.000000e+00 : f32
    %543 = vector.broadcast %cst_202 : f32 to vector<8x128xf32>
    %544 = arith.addf %543, %542 : vector<8x128xf32>
    %545 = arith.divf %543, %544 : vector<8x128xf32>
    %546 = math.tanh %540 : vector<8x128xf32>
    %547 = vector.extract_strided_slice %545 {offsets = [0, 0], sizes = [8, 32], strides = [1, 1]} : vector<8x128xf32> to vector<8x32xf32>
    %548 = vector.extract_strided_slice %545 {offsets = [0, 32], sizes = [8, 32], strides = [1, 1]} : vector<8x128xf32> to vector<8x32xf32>
    %549 = vector.extract_strided_slice %546 {offsets = [0, 64], sizes = [8, 32], strides = [1, 1]} : vector<8x128xf32> to vector<8x32xf32>
    %550 = vector.extract_strided_slice %545 {offsets = [0, 96], sizes = [8, 32], strides = [1, 1]} : vector<8x128xf32> to vector<8x32xf32>
    %551 = arith.mulf %548, %531 : vector<8x32xf32>
    %552 = arith.mulf %547, %549 : vector<8x32xf32>
    %553 = arith.addf %551, %552 : vector<8x32xf32>
    %554 = math.tanh %553 : vector<8x32xf32>
    %555 = arith.mulf %550, %554 : vector<8x32xf32>
    %c56_203 = arith.constant 56 : index
    %c0_204 = arith.constant 0 : index
    %556 = vector.load %arg20[%c56_203, %c0_204] : memref<64x128xf32, #tpu.memory_space<vmem>>, vector<8x128xf32>
    %cst_205 = arith.constant dense<0.000000e+00> : vector<8x128xf32>
    %557 = tpu.matmul %531, %530, %cst_205 {dimension_numbers = #tpu.dot_dimension_numbers<[1], [0], [0], [1], [0, 0, 1, 1], [], []>} : vector<8x32xf32>, vector<32x128xf32>, vector<8x128xf32> -> vector<8x128xf32>
    %558 = arith.addf %556, %557 : vector<8x128xf32>
    %559 = arith.negf %558 : vector<8x128xf32>
    %560 = math.exp %559 : vector<8x128xf32>
    %cst_206 = arith.constant 1.000000e+00 : f32
    %561 = vector.broadcast %cst_206 : f32 to vector<8x128xf32>
    %562 = arith.addf %561, %560 : vector<8x128xf32>
    %563 = arith.divf %561, %562 : vector<8x128xf32>
    %564 = math.tanh %558 : vector<8x128xf32>
    %565 = vector.extract_strided_slice %563 {offsets = [0, 0], sizes = [8, 32], strides = [1, 1]} : vector<8x128xf32> to vector<8x32xf32>
    %566 = vector.extract_strided_slice %563 {offsets = [0, 32], sizes = [8, 32], strides = [1, 1]} : vector<8x128xf32> to vector<8x32xf32>
    %567 = vector.extract_strided_slice %564 {offsets = [0, 64], sizes = [8, 32], strides = [1, 1]} : vector<8x128xf32> to vector<8x32xf32>
    %568 = vector.extract_strided_slice %563 {offsets = [0, 96], sizes = [8, 32], strides = [1, 1]} : vector<8x128xf32> to vector<8x32xf32>
    %569 = arith.mulf %566, %531 : vector<8x32xf32>
    %570 = arith.mulf %565, %567 : vector<8x32xf32>
    %571 = arith.addf %569, %570 : vector<8x32xf32>
    %572 = math.tanh %571 : vector<8x32xf32>
    %573 = arith.mulf %568, %572 : vector<8x32xf32>
    %cst_207 = arith.constant 0.000000e+00 : f32
    %574 = vector.shape_cast %534 : vector<8x1xi1> to vector<8x1xi1>
    %575 = vector.broadcast %574 : vector<8x1xi1> to vector<8x32xi1>
    %576 = vector.broadcast %cst_207 : f32 to vector<8x32xf32>
    %577 = arith.select %575, %555, %576 : vector<8x32xi1>, vector<8x32xf32>
    %c0_208 = arith.constant 0 : index
    %c0_209 = arith.constant 0 : index
    %578 = vector.load %arg22[%c0_208, %c0_209] : memref<64x64xf32, #tpu.memory_space<vmem>>, vector<8x32xf32>
    tpu.vector_store %arg22[%c0_208, %c0_209], %577 {strides = array<i32>} : memref<64x64xf32, #tpu.memory_space<vmem>>, vector<8x32xf32>,
    %cst_210 = arith.constant 0.000000e+00 : f32
    %579 = vector.shape_cast %537 : vector<8x1xi1> to vector<8x1xi1>
    %580 = vector.broadcast %579 : vector<8x1xi1> to vector<8x32xi1>
    %581 = vector.broadcast %cst_210 : f32 to vector<8x32xf32>
    %582 = arith.select %580, %573, %581 : vector<8x32xi1>, vector<8x32xf32>
    %c56_211 = arith.constant 56 : index
    %c32_212 = arith.constant 32 : index
    %583 = vector.load %arg22[%c56_211, %c32_212] : memref<64x64xf32, #tpu.memory_space<vmem>>, vector<8x32xf32>
    tpu.vector_store %arg22[%c56_211, %c32_212], %582 {strides = array<i32>} : memref<64x64xf32, #tpu.memory_space<vmem>>, vector<8x32xf32>,
    %584 = vector.shape_cast %534 : vector<8x1xi1> to vector<8x1xi1>
    %585 = vector.broadcast %584 : vector<8x1xi1> to vector<8x32xi1>
    %586 = arith.select %585, %555, %531 : vector<8x32xi1>, vector<8x32xf32>
    %587 = vector.shape_cast %534 : vector<8x1xi1> to vector<8x1xi1>
    %588 = vector.broadcast %587 : vector<8x1xi1> to vector<8x32xi1>
    %589 = arith.select %588, %553, %531 : vector<8x32xi1>, vector<8x32xf32>
    %590 = vector.shape_cast %537 : vector<8x1xi1> to vector<8x1xi1>
    %591 = vector.broadcast %590 : vector<8x1xi1> to vector<8x32xi1>
    %592 = arith.select %591, %573, %531 : vector<8x32xi1>, vector<8x32xf32>
    %593 = vector.shape_cast %537 : vector<8x1xi1> to vector<8x1xi1>
    %594 = vector.broadcast %593 : vector<8x1xi1> to vector<8x32xi1>
    %595 = arith.select %594, %571, %531 : vector<8x32xi1>, vector<8x32xf32>
    %c8_213 = arith.constant 8 : index
    %c0_214 = arith.constant 0 : index
    %596 = vector.load %arg1[%c8_213, %c0_214] : memref<64x1xf32, #tpu.memory_space<vmem>>, vector<8x1xf32>
    %cst_215 = arith.constant 5.000000e-01 : f32
    %597 = vector.broadcast %cst_215 : f32 to vector<8x1xf32>
    %598 = arith.cmpf ogt, %596, %597 : vector<8x1xf32>
    %c48_216 = arith.constant 48 : index
    %c0_217 = arith.constant 0 : index
    %599 = vector.load %arg1[%c48_216, %c0_217] : memref<64x1xf32, #tpu.memory_space<vmem>>, vector<8x1xf32>
    %cst_218 = arith.constant 5.000000e-01 : f32
    %600 = vector.broadcast %cst_218 : f32 to vector<8x1xf32>
    %601 = arith.cmpf ogt, %599, %600 : vector<8x1xf32>
    %c8_219 = arith.constant 8 : index
    %c0_220 = arith.constant 0 : index
    %602 = vector.load %arg19[%c8_219, %c0_220] : memref<64x128xf32, #tpu.memory_space<vmem>>, vector<8x128xf32>
    %cst_221 = arith.constant dense<0.000000e+00> : vector<8x128xf32>
    %603 = tpu.matmul %586, %529, %cst_221 {dimension_numbers = #tpu.dot_dimension_numbers<[1], [0], [0], [1], [0, 0, 1, 1], [], []>} : vector<8x32xf32>, vector<32x128xf32>, vector<8x128xf32> -> vector<8x128xf32>
    %604 = arith.addf %602, %603 : vector<8x128xf32>
    %605 = arith.negf %604 : vector<8x128xf32>
    %606 = math.exp %605 : vector<8x128xf32>
    %cst_222 = arith.constant 1.000000e+00 : f32
    %607 = vector.broadcast %cst_222 : f32 to vector<8x128xf32>
    %608 = arith.addf %607, %606 : vector<8x128xf32>
    %609 = arith.divf %607, %608 : vector<8x128xf32>
    %610 = math.tanh %604 : vector<8x128xf32>
    %611 = vector.extract_strided_slice %609 {offsets = [0, 0], sizes = [8, 32], strides = [1, 1]} : vector<8x128xf32> to vector<8x32xf32>
    %612 = vector.extract_strided_slice %609 {offsets = [0, 32], sizes = [8, 32], strides = [1, 1]} : vector<8x128xf32> to vector<8x32xf32>
    %613 = vector.extract_strided_slice %610 {offsets = [0, 64], sizes = [8, 32], strides = [1, 1]} : vector<8x128xf32> to vector<8x32xf32>
    %614 = vector.extract_strided_slice %609 {offsets = [0, 96], sizes = [8, 32], strides = [1, 1]} : vector<8x128xf32> to vector<8x32xf32>
    %615 = arith.mulf %612, %589 : vector<8x32xf32>
    %616 = arith.mulf %611, %613 : vector<8x32xf32>
    %617 = arith.addf %615, %616 : vector<8x32xf32>
    %618 = math.tanh %617 : vector<8x32xf32>
    %619 = arith.mulf %614, %618 : vector<8x32xf32>
    %c48_223 = arith.constant 48 : index
    %c0_224 = arith.constant 0 : index
    %620 = vector.load %arg20[%c48_223, %c0_224] : memref<64x128xf32, #tpu.memory_space<vmem>>, vector<8x128xf32>
    %cst_225 = arith.constant dense<0.000000e+00> : vector<8x128xf32>
    %621 = tpu.matmul %592, %530, %cst_225 {dimension_numbers = #tpu.dot_dimension_numbers<[1], [0], [0], [1], [0, 0, 1, 1], [], []>} : vector<8x32xf32>, vector<32x128xf32>, vector<8x128xf32> -> vector<8x128xf32>
    %622 = arith.addf %620, %621 : vector<8x128xf32>
    %623 = arith.negf %622 : vector<8x128xf32>
    %624 = math.exp %623 : vector<8x128xf32>
    %cst_226 = arith.constant 1.000000e+00 : f32
    %625 = vector.broadcast %cst_226 : f32 to vector<8x128xf32>
    %626 = arith.addf %625, %624 : vector<8x128xf32>
    %627 = arith.divf %625, %626 : vector<8x128xf32>
    %628 = math.tanh %622 : vector<8x128xf32>
    %629 = vector.extract_strided_slice %627 {offsets = [0, 0], sizes = [8, 32], strides = [1, 1]} : vector<8x128xf32> to vector<8x32xf32>
    %630 = vector.extract_strided_slice %627 {offsets = [0, 32], sizes = [8, 32], strides = [1, 1]} : vector<8x128xf32> to vector<8x32xf32>
    %631 = vector.extract_strided_slice %628 {offsets = [0, 64], sizes = [8, 32], strides = [1, 1]} : vector<8x128xf32> to vector<8x32xf32>
    %632 = vector.extract_strided_slice %627 {offsets = [0, 96], sizes = [8, 32], strides = [1, 1]} : vector<8x128xf32> to vector<8x32xf32>
    %633 = arith.mulf %630, %595 : vector<8x32xf32>
    %634 = arith.mulf %629, %631 : vector<8x32xf32>
    %635 = arith.addf %633, %634 : vector<8x32xf32>
    %636 = math.tanh %635 : vector<8x32xf32>
    %637 = arith.mulf %632, %636 : vector<8x32xf32>
    %cst_227 = arith.constant 0.000000e+00 : f32
    %638 = vector.shape_cast %598 : vector<8x1xi1> to vector<8x1xi1>
    %639 = vector.broadcast %638 : vector<8x1xi1> to vector<8x32xi1>
    %640 = vector.broadcast %cst_227 : f32 to vector<8x32xf32>
    %641 = arith.select %639, %619, %640 : vector<8x32xi1>, vector<8x32xf32>
    %c8_228 = arith.constant 8 : index
    %c0_229 = arith.constant 0 : index
    %642 = vector.load %arg22[%c8_228, %c0_229] : memref<64x64xf32, #tpu.memory_space<vmem>>, vector<8x32xf32>
    tpu.vector_store %arg22[%c8_228, %c0_229], %641 {strides = array<i32>} : memref<64x64xf32, #tpu.memory_space<vmem>>, vector<8x32xf32>,
    %cst_230 = arith.constant 0.000000e+00 : f32
    %643 = vector.shape_cast %601 : vector<8x1xi1> to vector<8x1xi1>
    %644 = vector.broadcast %643 : vector<8x1xi1> to vector<8x32xi1>
    %645 = vector.broadcast %cst_230 : f32 to vector<8x32xf32>
    %646 = arith.select %644, %637, %645 : vector<8x32xi1>, vector<8x32xf32>
    %c48_231 = arith.constant 48 : index
    %c32_232 = arith.constant 32 : index
    %647 = vector.load %arg22[%c48_231, %c32_232] : memref<64x64xf32, #tpu.memory_space<vmem>>, vector<8x32xf32>
    tpu.vector_store %arg22[%c48_231, %c32_232], %646 {strides = array<i32>} : memref<64x64xf32, #tpu.memory_space<vmem>>, vector<8x32xf32>,
    %648 = vector.shape_cast %598 : vector<8x1xi1> to vector<8x1xi1>
    %649 = vector.broadcast %648 : vector<8x1xi1> to vector<8x32xi1>
    %650 = arith.select %649, %619, %586 : vector<8x32xi1>, vector<8x32xf32>
    %651 = vector.shape_cast %598 : vector<8x1xi1> to vector<8x1xi1>
    %652 = vector.broadcast %651 : vector<8x1xi1> to vector<8x32xi1>
    %653 = arith.select %652, %617, %589 : vector<8x32xi1>, vector<8x32xf32>
    %654 = vector.shape_cast %601 : vector<8x1xi1> to vector<8x1xi1>
    %655 = vector.broadcast %654 : vector<8x1xi1> to vector<8x32xi1>
    %656 = arith.select %655, %637, %592 : vector<8x32xi1>, vector<8x32xf32>
    %657 = vector.shape_cast %601 : vector<8x1xi1> to vector<8x1xi1>
    %658 = vector.broadcast %657 : vector<8x1xi1> to vector<8x32xi1>
    %659 = arith.select %658, %635, %595 : vector<8x32xi1>, vector<8x32xf32>
    %c16_233 = arith.constant 16 : index
    %c0_234 = arith.constant 0 : index
    %660 = vector.load %arg1[%c16_233, %c0_234] : memref<64x1xf32, #tpu.memory_space<vmem>>, vector<8x1xf32>
    %cst_235 = arith.constant 5.000000e-01 : f32
    %661 = vector.broadcast %cst_235 : f32 to vector<8x1xf32>
    %662 = arith.cmpf ogt, %660, %661 : vector<8x1xf32>
    %c40_236 = arith.constant 40 : index
    %c0_237 = arith.constant 0 : index
    %663 = vector.load %arg1[%c40_236, %c0_237] : memref<64x1xf32, #tpu.memory_space<vmem>>, vector<8x1xf32>
    %cst_238 = arith.constant 5.000000e-01 : f32
    %664 = vector.broadcast %cst_238 : f32 to vector<8x1xf32>
    %665 = arith.cmpf ogt, %663, %664 : vector<8x1xf32>
    %c16_239 = arith.constant 16 : index
    %c0_240 = arith.constant 0 : index
    %666 = vector.load %arg19[%c16_239, %c0_240] : memref<64x128xf32, #tpu.memory_space<vmem>>, vector<8x128xf32>
    %cst_241 = arith.constant dense<0.000000e+00> : vector<8x128xf32>
    %667 = tpu.matmul %650, %529, %cst_241 {dimension_numbers = #tpu.dot_dimension_numbers<[1], [0], [0], [1], [0, 0, 1, 1], [], []>} : vector<8x32xf32>, vector<32x128xf32>, vector<8x128xf32> -> vector<8x128xf32>
    %668 = arith.addf %666, %667 : vector<8x128xf32>
    %669 = arith.negf %668 : vector<8x128xf32>
    %670 = math.exp %669 : vector<8x128xf32>
    %cst_242 = arith.constant 1.000000e+00 : f32
    %671 = vector.broadcast %cst_242 : f32 to vector<8x128xf32>
    %672 = arith.addf %671, %670 : vector<8x128xf32>
    %673 = arith.divf %671, %672 : vector<8x128xf32>
    %674 = math.tanh %668 : vector<8x128xf32>
    %675 = vector.extract_strided_slice %673 {offsets = [0, 0], sizes = [8, 32], strides = [1, 1]} : vector<8x128xf32> to vector<8x32xf32>
    %676 = vector.extract_strided_slice %673 {offsets = [0, 32], sizes = [8, 32], strides = [1, 1]} : vector<8x128xf32> to vector<8x32xf32>
    %677 = vector.extract_strided_slice %674 {offsets = [0, 64], sizes = [8, 32], strides = [1, 1]} : vector<8x128xf32> to vector<8x32xf32>
    %678 = vector.extract_strided_slice %673 {offsets = [0, 96], sizes = [8, 32], strides = [1, 1]} : vector<8x128xf32> to vector<8x32xf32>
    %679 = arith.mulf %676, %653 : vector<8x32xf32>
    %680 = arith.mulf %675, %677 : vector<8x32xf32>
    %681 = arith.addf %679, %680 : vector<8x32xf32>
    %682 = math.tanh %681 : vector<8x32xf32>
    %683 = arith.mulf %678, %682 : vector<8x32xf32>
    %c40_243 = arith.constant 40 : index
    %c0_244 = arith.constant 0 : index
    %684 = vector.load %arg20[%c40_243, %c0_244] : memref<64x128xf32, #tpu.memory_space<vmem>>, vector<8x128xf32>
    %cst_245 = arith.constant dense<0.000000e+00> : vector<8x128xf32>
    %685 = tpu.matmul %656, %530, %cst_245 {dimension_numbers = #tpu.dot_dimension_numbers<[1], [0], [0], [1], [0, 0, 1, 1], [], []>} : vector<8x32xf32>, vector<32x128xf32>, vector<8x128xf32> -> vector<8x128xf32>
    %686 = arith.addf %684, %685 : vector<8x128xf32>
    %687 = arith.negf %686 : vector<8x128xf32>
    %688 = math.exp %687 : vector<8x128xf32>
    %cst_246 = arith.constant 1.000000e+00 : f32
    %689 = vector.broadcast %cst_246 : f32 to vector<8x128xf32>
    %690 = arith.addf %689, %688 : vector<8x128xf32>
    %691 = arith.divf %689, %690 : vector<8x128xf32>
    %692 = math.tanh %686 : vector<8x128xf32>
    %693 = vector.extract_strided_slice %691 {offsets = [0, 0], sizes = [8, 32], strides = [1, 1]} : vector<8x128xf32> to vector<8x32xf32>
    %694 = vector.extract_strided_slice %691 {offsets = [0, 32], sizes = [8, 32], strides = [1, 1]} : vector<8x128xf32> to vector<8x32xf32>
    %695 = vector.extract_strided_slice %692 {offsets = [0, 64], sizes = [8, 32], strides = [1, 1]} : vector<8x128xf32> to vector<8x32xf32>
    %696 = vector.extract_strided_slice %691 {offsets = [0, 96], sizes = [8, 32], strides = [1, 1]} : vector<8x128xf32> to vector<8x32xf32>
    %697 = arith.mulf %694, %659 : vector<8x32xf32>
    %698 = arith.mulf %693, %695 : vector<8x32xf32>
    %699 = arith.addf %697, %698 : vector<8x32xf32>
    %700 = math.tanh %699 : vector<8x32xf32>
    %701 = arith.mulf %696, %700 : vector<8x32xf32>
    %cst_247 = arith.constant 0.000000e+00 : f32
    %702 = vector.shape_cast %662 : vector<8x1xi1> to vector<8x1xi1>
    %703 = vector.broadcast %702 : vector<8x1xi1> to vector<8x32xi1>
    %704 = vector.broadcast %cst_247 : f32 to vector<8x32xf32>
    %705 = arith.select %703, %683, %704 : vector<8x32xi1>, vector<8x32xf32>
    %c16_248 = arith.constant 16 : index
    %c0_249 = arith.constant 0 : index
    %706 = vector.load %arg22[%c16_248, %c0_249] : memref<64x64xf32, #tpu.memory_space<vmem>>, vector<8x32xf32>
    tpu.vector_store %arg22[%c16_248, %c0_249], %705 {strides = array<i32>} : memref<64x64xf32, #tpu.memory_space<vmem>>, vector<8x32xf32>,
    %cst_250 = arith.constant 0.000000e+00 : f32
    %707 = vector.shape_cast %665 : vector<8x1xi1> to vector<8x1xi1>
    %708 = vector.broadcast %707 : vector<8x1xi1> to vector<8x32xi1>
    %709 = vector.broadcast %cst_250 : f32 to vector<8x32xf32>
    %710 = arith.select %708, %701, %709 : vector<8x32xi1>, vector<8x32xf32>
    %c40_251 = arith.constant 40 : index
    %c32_252 = arith.constant 32 : index
    %711 = vector.load %arg22[%c40_251, %c32_252] : memref<64x64xf32, #tpu.memory_space<vmem>>, vector<8x32xf32>
    tpu.vector_store %arg22[%c40_251, %c32_252], %710 {strides = array<i32>} : memref<64x64xf32, #tpu.memory_space<vmem>>, vector<8x32xf32>,
    %712 = vector.shape_cast %662 : vector<8x1xi1> to vector<8x1xi1>
    %713 = vector.broadcast %712 : vector<8x1xi1> to vector<8x32xi1>
    %714 = arith.select %713, %683, %650 : vector<8x32xi1>, vector<8x32xf32>
    %715 = vector.shape_cast %662 : vector<8x1xi1> to vector<8x1xi1>
    %716 = vector.broadcast %715 : vector<8x1xi1> to vector<8x32xi1>
    %717 = arith.select %716, %681, %653 : vector<8x32xi1>, vector<8x32xf32>
    %718 = vector.shape_cast %665 : vector<8x1xi1> to vector<8x1xi1>
    %719 = vector.broadcast %718 : vector<8x1xi1> to vector<8x32xi1>
    %720 = arith.select %719, %701, %656 : vector<8x32xi1>, vector<8x32xf32>
    %721 = vector.shape_cast %665 : vector<8x1xi1> to vector<8x1xi1>
    %722 = vector.broadcast %721 : vector<8x1xi1> to vector<8x32xi1>
    %723 = arith.select %722, %699, %659 : vector<8x32xi1>, vector<8x32xf32>
    %c24_253 = arith.constant 24 : index
    %c0_254 = arith.constant 0 : index
    %724 = vector.load %arg1[%c24_253, %c0_254] : memref<64x1xf32, #tpu.memory_space<vmem>>, vector<8x1xf32>
    %cst_255 = arith.constant 5.000000e-01 : f32
    %725 = vector.broadcast %cst_255 : f32 to vector<8x1xf32>
    %726 = arith.cmpf ogt, %724, %725 : vector<8x1xf32>
    %c32_256 = arith.constant 32 : index
    %c0_257 = arith.constant 0 : index
    %727 = vector.load %arg1[%c32_256, %c0_257] : memref<64x1xf32, #tpu.memory_space<vmem>>, vector<8x1xf32>
    %cst_258 = arith.constant 5.000000e-01 : f32
    %728 = vector.broadcast %cst_258 : f32 to vector<8x1xf32>
    %729 = arith.cmpf ogt, %727, %728 : vector<8x1xf32>
    %c24_259 = arith.constant 24 : index
    %c0_260 = arith.constant 0 : index
    %730 = vector.load %arg19[%c24_259, %c0_260] : memref<64x128xf32, #tpu.memory_space<vmem>>, vector<8x128xf32>
    %cst_261 = arith.constant dense<0.000000e+00> : vector<8x128xf32>
    %731 = tpu.matmul %714, %529, %cst_261 {dimension_numbers = #tpu.dot_dimension_numbers<[1], [0], [0], [1], [0, 0, 1, 1], [], []>} : vector<8x32xf32>, vector<32x128xf32>, vector<8x128xf32> -> vector<8x128xf32>
    %732 = arith.addf %730, %731 : vector<8x128xf32>
    %733 = arith.negf %732 : vector<8x128xf32>
    %734 = math.exp %733 : vector<8x128xf32>
    %cst_262 = arith.constant 1.000000e+00 : f32
    %735 = vector.broadcast %cst_262 : f32 to vector<8x128xf32>
    %736 = arith.addf %735, %734 : vector<8x128xf32>
    %737 = arith.divf %735, %736 : vector<8x128xf32>
    %738 = math.tanh %732 : vector<8x128xf32>
    %739 = vector.extract_strided_slice %737 {offsets = [0, 0], sizes = [8, 32], strides = [1, 1]} : vector<8x128xf32> to vector<8x32xf32>
    %740 = vector.extract_strided_slice %737 {offsets = [0, 32], sizes = [8, 32], strides = [1, 1]} : vector<8x128xf32> to vector<8x32xf32>
    %741 = vector.extract_strided_slice %738 {offsets = [0, 64], sizes = [8, 32], strides = [1, 1]} : vector<8x128xf32> to vector<8x32xf32>
    %742 = vector.extract_strided_slice %737 {offsets = [0, 96], sizes = [8, 32], strides = [1, 1]} : vector<8x128xf32> to vector<8x32xf32>
    %743 = arith.mulf %740, %717 : vector<8x32xf32>
    %744 = arith.mulf %739, %741 : vector<8x32xf32>
    %745 = arith.addf %743, %744 : vector<8x32xf32>
    %746 = math.tanh %745 : vector<8x32xf32>
    %747 = arith.mulf %742, %746 : vector<8x32xf32>
    %c32_263 = arith.constant 32 : index
    %c0_264 = arith.constant 0 : index
    %748 = vector.load %arg20[%c32_263, %c0_264] : memref<64x128xf32, #tpu.memory_space<vmem>>, vector<8x128xf32>
    %cst_265 = arith.constant dense<0.000000e+00> : vector<8x128xf32>
    %749 = tpu.matmul %720, %530, %cst_265 {dimension_numbers = #tpu.dot_dimension_numbers<[1], [0], [0], [1], [0, 0, 1, 1], [], []>} : vector<8x32xf32>, vector<32x128xf32>, vector<8x128xf32> -> vector<8x128xf32>
    %750 = arith.addf %748, %749 : vector<8x128xf32>
    %751 = arith.negf %750 : vector<8x128xf32>
    %752 = math.exp %751 : vector<8x128xf32>
    %cst_266 = arith.constant 1.000000e+00 : f32
    %753 = vector.broadcast %cst_266 : f32 to vector<8x128xf32>
    %754 = arith.addf %753, %752 : vector<8x128xf32>
    %755 = arith.divf %753, %754 : vector<8x128xf32>
    %756 = math.tanh %750 : vector<8x128xf32>
    %757 = vector.extract_strided_slice %755 {offsets = [0, 0], sizes = [8, 32], strides = [1, 1]} : vector<8x128xf32> to vector<8x32xf32>
    %758 = vector.extract_strided_slice %755 {offsets = [0, 32], sizes = [8, 32], strides = [1, 1]} : vector<8x128xf32> to vector<8x32xf32>
    %759 = vector.extract_strided_slice %756 {offsets = [0, 64], sizes = [8, 32], strides = [1, 1]} : vector<8x128xf32> to vector<8x32xf32>
    %760 = vector.extract_strided_slice %755 {offsets = [0, 96], sizes = [8, 32], strides = [1, 1]} : vector<8x128xf32> to vector<8x32xf32>
    %761 = arith.mulf %758, %723 : vector<8x32xf32>
    %762 = arith.mulf %757, %759 : vector<8x32xf32>
    %763 = arith.addf %761, %762 : vector<8x32xf32>
    %764 = math.tanh %763 : vector<8x32xf32>
    %765 = arith.mulf %760, %764 : vector<8x32xf32>
    %cst_267 = arith.constant 0.000000e+00 : f32
    %766 = vector.shape_cast %726 : vector<8x1xi1> to vector<8x1xi1>
    %767 = vector.broadcast %766 : vector<8x1xi1> to vector<8x32xi1>
    %768 = vector.broadcast %cst_267 : f32 to vector<8x32xf32>
    %769 = arith.select %767, %747, %768 : vector<8x32xi1>, vector<8x32xf32>
    %c24_268 = arith.constant 24 : index
    %c0_269 = arith.constant 0 : index
    %770 = vector.load %arg22[%c24_268, %c0_269] : memref<64x64xf32, #tpu.memory_space<vmem>>, vector<8x32xf32>
    tpu.vector_store %arg22[%c24_268, %c0_269], %769 {strides = array<i32>} : memref<64x64xf32, #tpu.memory_space<vmem>>, vector<8x32xf32>,
    %cst_270 = arith.constant 0.000000e+00 : f32
    %771 = vector.shape_cast %729 : vector<8x1xi1> to vector<8x1xi1>
    %772 = vector.broadcast %771 : vector<8x1xi1> to vector<8x32xi1>
    %773 = vector.broadcast %cst_270 : f32 to vector<8x32xf32>
    %774 = arith.select %772, %765, %773 : vector<8x32xi1>, vector<8x32xf32>
    %c32_271 = arith.constant 32 : index
    %c32_272 = arith.constant 32 : index
    %775 = vector.load %arg22[%c32_271, %c32_272] : memref<64x64xf32, #tpu.memory_space<vmem>>, vector<8x32xf32>
    tpu.vector_store %arg22[%c32_271, %c32_272], %774 {strides = array<i32>} : memref<64x64xf32, #tpu.memory_space<vmem>>, vector<8x32xf32>,
    %776 = vector.shape_cast %726 : vector<8x1xi1> to vector<8x1xi1>
    %777 = vector.broadcast %776 : vector<8x1xi1> to vector<8x32xi1>
    %778 = arith.select %777, %747, %714 : vector<8x32xi1>, vector<8x32xf32>
    %779 = vector.shape_cast %726 : vector<8x1xi1> to vector<8x1xi1>
    %780 = vector.broadcast %779 : vector<8x1xi1> to vector<8x32xi1>
    %781 = arith.select %780, %745, %717 : vector<8x32xi1>, vector<8x32xf32>
    %782 = vector.shape_cast %729 : vector<8x1xi1> to vector<8x1xi1>
    %783 = vector.broadcast %782 : vector<8x1xi1> to vector<8x32xi1>
    %784 = arith.select %783, %765, %720 : vector<8x32xi1>, vector<8x32xf32>
    %785 = vector.shape_cast %729 : vector<8x1xi1> to vector<8x1xi1>
    %786 = vector.broadcast %785 : vector<8x1xi1> to vector<8x32xi1>
    %787 = arith.select %786, %763, %723 : vector<8x32xi1>, vector<8x32xf32>
    %c32_273 = arith.constant 32 : index
    %c0_274 = arith.constant 0 : index
    %788 = vector.load %arg1[%c32_273, %c0_274] : memref<64x1xf32, #tpu.memory_space<vmem>>, vector<8x1xf32>
    %cst_275 = arith.constant 5.000000e-01 : f32
    %789 = vector.broadcast %cst_275 : f32 to vector<8x1xf32>
    %790 = arith.cmpf ogt, %788, %789 : vector<8x1xf32>
    %c24_276 = arith.constant 24 : index
    %c0_277 = arith.constant 0 : index
    %791 = vector.load %arg1[%c24_276, %c0_277] : memref<64x1xf32, #tpu.memory_space<vmem>>, vector<8x1xf32>
    %cst_278 = arith.constant 5.000000e-01 : f32
    %792 = vector.broadcast %cst_278 : f32 to vector<8x1xf32>
    %793 = arith.cmpf ogt, %791, %792 : vector<8x1xf32>
    %c32_279 = arith.constant 32 : index
    %c0_280 = arith.constant 0 : index
    %794 = vector.load %arg19[%c32_279, %c0_280] : memref<64x128xf32, #tpu.memory_space<vmem>>, vector<8x128xf32>
    %cst_281 = arith.constant dense<0.000000e+00> : vector<8x128xf32>
    %795 = tpu.matmul %778, %529, %cst_281 {dimension_numbers = #tpu.dot_dimension_numbers<[1], [0], [0], [1], [0, 0, 1, 1], [], []>} : vector<8x32xf32>, vector<32x128xf32>, vector<8x128xf32> -> vector<8x128xf32>
    %796 = arith.addf %794, %795 : vector<8x128xf32>
    %797 = arith.negf %796 : vector<8x128xf32>
    %798 = math.exp %797 : vector<8x128xf32>
    %cst_282 = arith.constant 1.000000e+00 : f32
    %799 = vector.broadcast %cst_282 : f32 to vector<8x128xf32>
    %800 = arith.addf %799, %798 : vector<8x128xf32>
    %801 = arith.divf %799, %800 : vector<8x128xf32>
    %802 = math.tanh %796 : vector<8x128xf32>
    %803 = vector.extract_strided_slice %801 {offsets = [0, 0], sizes = [8, 32], strides = [1, 1]} : vector<8x128xf32> to vector<8x32xf32>
    %804 = vector.extract_strided_slice %801 {offsets = [0, 32], sizes = [8, 32], strides = [1, 1]} : vector<8x128xf32> to vector<8x32xf32>
    %805 = vector.extract_strided_slice %802 {offsets = [0, 64], sizes = [8, 32], strides = [1, 1]} : vector<8x128xf32> to vector<8x32xf32>
    %806 = vector.extract_strided_slice %801 {offsets = [0, 96], sizes = [8, 32], strides = [1, 1]} : vector<8x128xf32> to vector<8x32xf32>
    %807 = arith.mulf %804, %781 : vector<8x32xf32>
    %808 = arith.mulf %803, %805 : vector<8x32xf32>
    %809 = arith.addf %807, %808 : vector<8x32xf32>
    %810 = math.tanh %809 : vector<8x32xf32>
    %811 = arith.mulf %806, %810 : vector<8x32xf32>
    %c24_283 = arith.constant 24 : index
    %c0_284 = arith.constant 0 : index
    %812 = vector.load %arg20[%c24_283, %c0_284] : memref<64x128xf32, #tpu.memory_space<vmem>>, vector<8x128xf32>
    %cst_285 = arith.constant dense<0.000000e+00> : vector<8x128xf32>
    %813 = tpu.matmul %784, %530, %cst_285 {dimension_numbers = #tpu.dot_dimension_numbers<[1], [0], [0], [1], [0, 0, 1, 1], [], []>} : vector<8x32xf32>, vector<32x128xf32>, vector<8x128xf32> -> vector<8x128xf32>
    %814 = arith.addf %812, %813 : vector<8x128xf32>
    %815 = arith.negf %814 : vector<8x128xf32>
    %816 = math.exp %815 : vector<8x128xf32>
    %cst_286 = arith.constant 1.000000e+00 : f32
    %817 = vector.broadcast %cst_286 : f32 to vector<8x128xf32>
    %818 = arith.addf %817, %816 : vector<8x128xf32>
    %819 = arith.divf %817, %818 : vector<8x128xf32>
    %820 = math.tanh %814 : vector<8x128xf32>
    %821 = vector.extract_strided_slice %819 {offsets = [0, 0], sizes = [8, 32], strides = [1, 1]} : vector<8x128xf32> to vector<8x32xf32>
    %822 = vector.extract_strided_slice %819 {offsets = [0, 32], sizes = [8, 32], strides = [1, 1]} : vector<8x128xf32> to vector<8x32xf32>
    %823 = vector.extract_strided_slice %820 {offsets = [0, 64], sizes = [8, 32], strides = [1, 1]} : vector<8x128xf32> to vector<8x32xf32>
    %824 = vector.extract_strided_slice %819 {offsets = [0, 96], sizes = [8, 32], strides = [1, 1]} : vector<8x128xf32> to vector<8x32xf32>
    %825 = arith.mulf %822, %787 : vector<8x32xf32>
    %826 = arith.mulf %821, %823 : vector<8x32xf32>
    %827 = arith.addf %825, %826 : vector<8x32xf32>
    %828 = math.tanh %827 : vector<8x32xf32>
    %829 = arith.mulf %824, %828 : vector<8x32xf32>
    %cst_287 = arith.constant 0.000000e+00 : f32
    %830 = vector.shape_cast %790 : vector<8x1xi1> to vector<8x1xi1>
    %831 = vector.broadcast %830 : vector<8x1xi1> to vector<8x32xi1>
    %832 = vector.broadcast %cst_287 : f32 to vector<8x32xf32>
    %833 = arith.select %831, %811, %832 : vector<8x32xi1>, vector<8x32xf32>
    %c32_288 = arith.constant 32 : index
    %c0_289 = arith.constant 0 : index
    %834 = vector.load %arg22[%c32_288, %c0_289] : memref<64x64xf32, #tpu.memory_space<vmem>>, vector<8x32xf32>
    tpu.vector_store %arg22[%c32_288, %c0_289], %833 {strides = array<i32>} : memref<64x64xf32, #tpu.memory_space<vmem>>, vector<8x32xf32>,
    %cst_290 = arith.constant 0.000000e+00 : f32
    %835 = vector.shape_cast %793 : vector<8x1xi1> to vector<8x1xi1>
    %836 = vector.broadcast %835 : vector<8x1xi1> to vector<8x32xi1>
    %837 = vector.broadcast %cst_290 : f32 to vector<8x32xf32>
    %838 = arith.select %836, %829, %837 : vector<8x32xi1>, vector<8x32xf32>
    %c24_291 = arith.constant 24 : index
    %c32_292 = arith.constant 32 : index
    %839 = vector.load %arg22[%c24_291, %c32_292] : memref<64x64xf32, #tpu.memory_space<vmem>>, vector<8x32xf32>
    tpu.vector_store %arg22[%c24_291, %c32_292], %838 {strides = array<i32>} : memref<64x64xf32, #tpu.memory_space<vmem>>, vector<8x32xf32>,
    %840 = vector.shape_cast %790 : vector<8x1xi1> to vector<8x1xi1>
    %841 = vector.broadcast %840 : vector<8x1xi1> to vector<8x32xi1>
    %842 = arith.select %841, %811, %778 : vector<8x32xi1>, vector<8x32xf32>
    %843 = vector.shape_cast %790 : vector<8x1xi1> to vector<8x1xi1>
    %844 = vector.broadcast %843 : vector<8x1xi1> to vector<8x32xi1>
    %845 = arith.select %844, %809, %781 : vector<8x32xi1>, vector<8x32xf32>
    %846 = vector.shape_cast %793 : vector<8x1xi1> to vector<8x1xi1>
    %847 = vector.broadcast %846 : vector<8x1xi1> to vector<8x32xi1>
    %848 = arith.select %847, %829, %784 : vector<8x32xi1>, vector<8x32xf32>
    %849 = vector.shape_cast %793 : vector<8x1xi1> to vector<8x1xi1>
    %850 = vector.broadcast %849 : vector<8x1xi1> to vector<8x32xi1>
    %851 = arith.select %850, %827, %787 : vector<8x32xi1>, vector<8x32xf32>
    %c40_293 = arith.constant 40 : index
    %c0_294 = arith.constant 0 : index
    %852 = vector.load %arg1[%c40_293, %c0_294] : memref<64x1xf32, #tpu.memory_space<vmem>>, vector<8x1xf32>
    %cst_295 = arith.constant 5.000000e-01 : f32
    %853 = vector.broadcast %cst_295 : f32 to vector<8x1xf32>
    %854 = arith.cmpf ogt, %852, %853 : vector<8x1xf32>
    %c16_296 = arith.constant 16 : index
    %c0_297 = arith.constant 0 : index
    %855 = vector.load %arg1[%c16_296, %c0_297] : memref<64x1xf32, #tpu.memory_space<vmem>>, vector<8x1xf32>
    %cst_298 = arith.constant 5.000000e-01 : f32
    %856 = vector.broadcast %cst_298 : f32 to vector<8x1xf32>
    %857 = arith.cmpf ogt, %855, %856 : vector<8x1xf32>
    %c40_299 = arith.constant 40 : index
    %c0_300 = arith.constant 0 : index
    %858 = vector.load %arg19[%c40_299, %c0_300] : memref<64x128xf32, #tpu.memory_space<vmem>>, vector<8x128xf32>
    %cst_301 = arith.constant dense<0.000000e+00> : vector<8x128xf32>
    %859 = tpu.matmul %842, %529, %cst_301 {dimension_numbers = #tpu.dot_dimension_numbers<[1], [0], [0], [1], [0, 0, 1, 1], [], []>} : vector<8x32xf32>, vector<32x128xf32>, vector<8x128xf32> -> vector<8x128xf32>
    %860 = arith.addf %858, %859 : vector<8x128xf32>
    %861 = arith.negf %860 : vector<8x128xf32>
    %862 = math.exp %861 : vector<8x128xf32>
    %cst_302 = arith.constant 1.000000e+00 : f32
    %863 = vector.broadcast %cst_302 : f32 to vector<8x128xf32>
    %864 = arith.addf %863, %862 : vector<8x128xf32>
    %865 = arith.divf %863, %864 : vector<8x128xf32>
    %866 = math.tanh %860 : vector<8x128xf32>
    %867 = vector.extract_strided_slice %865 {offsets = [0, 0], sizes = [8, 32], strides = [1, 1]} : vector<8x128xf32> to vector<8x32xf32>
    %868 = vector.extract_strided_slice %865 {offsets = [0, 32], sizes = [8, 32], strides = [1, 1]} : vector<8x128xf32> to vector<8x32xf32>
    %869 = vector.extract_strided_slice %866 {offsets = [0, 64], sizes = [8, 32], strides = [1, 1]} : vector<8x128xf32> to vector<8x32xf32>
    %870 = vector.extract_strided_slice %865 {offsets = [0, 96], sizes = [8, 32], strides = [1, 1]} : vector<8x128xf32> to vector<8x32xf32>
    %871 = arith.mulf %868, %845 : vector<8x32xf32>
    %872 = arith.mulf %867, %869 : vector<8x32xf32>
    %873 = arith.addf %871, %872 : vector<8x32xf32>
    %874 = math.tanh %873 : vector<8x32xf32>
    %875 = arith.mulf %870, %874 : vector<8x32xf32>
    %c16_303 = arith.constant 16 : index
    %c0_304 = arith.constant 0 : index
    %876 = vector.load %arg20[%c16_303, %c0_304] : memref<64x128xf32, #tpu.memory_space<vmem>>, vector<8x128xf32>
    %cst_305 = arith.constant dense<0.000000e+00> : vector<8x128xf32>
    %877 = tpu.matmul %848, %530, %cst_305 {dimension_numbers = #tpu.dot_dimension_numbers<[1], [0], [0], [1], [0, 0, 1, 1], [], []>} : vector<8x32xf32>, vector<32x128xf32>, vector<8x128xf32> -> vector<8x128xf32>
    %878 = arith.addf %876, %877 : vector<8x128xf32>
    %879 = arith.negf %878 : vector<8x128xf32>
    %880 = math.exp %879 : vector<8x128xf32>
    %cst_306 = arith.constant 1.000000e+00 : f32
    %881 = vector.broadcast %cst_306 : f32 to vector<8x128xf32>
    %882 = arith.addf %881, %880 : vector<8x128xf32>
    %883 = arith.divf %881, %882 : vector<8x128xf32>
    %884 = math.tanh %878 : vector<8x128xf32>
    %885 = vector.extract_strided_slice %883 {offsets = [0, 0], sizes = [8, 32], strides = [1, 1]} : vector<8x128xf32> to vector<8x32xf32>
    %886 = vector.extract_strided_slice %883 {offsets = [0, 32], sizes = [8, 32], strides = [1, 1]} : vector<8x128xf32> to vector<8x32xf32>
    %887 = vector.extract_strided_slice %884 {offsets = [0, 64], sizes = [8, 32], strides = [1, 1]} : vector<8x128xf32> to vector<8x32xf32>
    %888 = vector.extract_strided_slice %883 {offsets = [0, 96], sizes = [8, 32], strides = [1, 1]} : vector<8x128xf32> to vector<8x32xf32>
    %889 = arith.mulf %886, %851 : vector<8x32xf32>
    %890 = arith.mulf %885, %887 : vector<8x32xf32>
    %891 = arith.addf %889, %890 : vector<8x32xf32>
    %892 = math.tanh %891 : vector<8x32xf32>
    %893 = arith.mulf %888, %892 : vector<8x32xf32>
    %cst_307 = arith.constant 0.000000e+00 : f32
    %894 = vector.shape_cast %854 : vector<8x1xi1> to vector<8x1xi1>
    %895 = vector.broadcast %894 : vector<8x1xi1> to vector<8x32xi1>
    %896 = vector.broadcast %cst_307 : f32 to vector<8x32xf32>
    %897 = arith.select %895, %875, %896 : vector<8x32xi1>, vector<8x32xf32>
    %c40_308 = arith.constant 40 : index
    %c0_309 = arith.constant 0 : index
    %898 = vector.load %arg22[%c40_308, %c0_309] : memref<64x64xf32, #tpu.memory_space<vmem>>, vector<8x32xf32>
    tpu.vector_store %arg22[%c40_308, %c0_309], %897 {strides = array<i32>} : memref<64x64xf32, #tpu.memory_space<vmem>>, vector<8x32xf32>,
    %cst_310 = arith.constant 0.000000e+00 : f32
    %899 = vector.shape_cast %857 : vector<8x1xi1> to vector<8x1xi1>
    %900 = vector.broadcast %899 : vector<8x1xi1> to vector<8x32xi1>
    %901 = vector.broadcast %cst_310 : f32 to vector<8x32xf32>
    %902 = arith.select %900, %893, %901 : vector<8x32xi1>, vector<8x32xf32>
    %c16_311 = arith.constant 16 : index
    %c32_312 = arith.constant 32 : index
    %903 = vector.load %arg22[%c16_311, %c32_312] : memref<64x64xf32, #tpu.memory_space<vmem>>, vector<8x32xf32>
    tpu.vector_store %arg22[%c16_311, %c32_312], %902 {strides = array<i32>} : memref<64x64xf32, #tpu.memory_space<vmem>>, vector<8x32xf32>,
    %904 = vector.shape_cast %854 : vector<8x1xi1> to vector<8x1xi1>
    %905 = vector.broadcast %904 : vector<8x1xi1> to vector<8x32xi1>
    %906 = arith.select %905, %875, %842 : vector<8x32xi1>, vector<8x32xf32>
    %907 = vector.shape_cast %854 : vector<8x1xi1> to vector<8x1xi1>
    %908 = vector.broadcast %907 : vector<8x1xi1> to vector<8x32xi1>
    %909 = arith.select %908, %873, %845 : vector<8x32xi1>, vector<8x32xf32>
    %910 = vector.shape_cast %857 : vector<8x1xi1> to vector<8x1xi1>
    %911 = vector.broadcast %910 : vector<8x1xi1> to vector<8x32xi1>
    %912 = arith.select %911, %893, %848 : vector<8x32xi1>, vector<8x32xf32>
    %913 = vector.shape_cast %857 : vector<8x1xi1> to vector<8x1xi1>
    %914 = vector.broadcast %913 : vector<8x1xi1> to vector<8x32xi1>
    %915 = arith.select %914, %891, %851 : vector<8x32xi1>, vector<8x32xf32>
    %c48_313 = arith.constant 48 : index
    %c0_314 = arith.constant 0 : index
    %916 = vector.load %arg1[%c48_313, %c0_314] : memref<64x1xf32, #tpu.memory_space<vmem>>, vector<8x1xf32>
    %cst_315 = arith.constant 5.000000e-01 : f32
    %917 = vector.broadcast %cst_315 : f32 to vector<8x1xf32>
    %918 = arith.cmpf ogt, %916, %917 : vector<8x1xf32>
    %c8_316 = arith.constant 8 : index
    %c0_317 = arith.constant 0 : index
    %919 = vector.load %arg1[%c8_316, %c0_317] : memref<64x1xf32, #tpu.memory_space<vmem>>, vector<8x1xf32>
    %cst_318 = arith.constant 5.000000e-01 : f32
    %920 = vector.broadcast %cst_318 : f32 to vector<8x1xf32>
    %921 = arith.cmpf ogt, %919, %920 : vector<8x1xf32>
    %c48_319 = arith.constant 48 : index
    %c0_320 = arith.constant 0 : index
    %922 = vector.load %arg19[%c48_319, %c0_320] : memref<64x128xf32, #tpu.memory_space<vmem>>, vector<8x128xf32>
    %cst_321 = arith.constant dense<0.000000e+00> : vector<8x128xf32>
    %923 = tpu.matmul %906, %529, %cst_321 {dimension_numbers = #tpu.dot_dimension_numbers<[1], [0], [0], [1], [0, 0, 1, 1], [], []>} : vector<8x32xf32>, vector<32x128xf32>, vector<8x128xf32> -> vector<8x128xf32>
    %924 = arith.addf %922, %923 : vector<8x128xf32>
    %925 = arith.negf %924 : vector<8x128xf32>
    %926 = math.exp %925 : vector<8x128xf32>
    %cst_322 = arith.constant 1.000000e+00 : f32
    %927 = vector.broadcast %cst_322 : f32 to vector<8x128xf32>
    %928 = arith.addf %927, %926 : vector<8x128xf32>
    %929 = arith.divf %927, %928 : vector<8x128xf32>
    %930 = math.tanh %924 : vector<8x128xf32>
    %931 = vector.extract_strided_slice %929 {offsets = [0, 0], sizes = [8, 32], strides = [1, 1]} : vector<8x128xf32> to vector<8x32xf32>
    %932 = vector.extract_strided_slice %929 {offsets = [0, 32], sizes = [8, 32], strides = [1, 1]} : vector<8x128xf32> to vector<8x32xf32>
    %933 = vector.extract_strided_slice %930 {offsets = [0, 64], sizes = [8, 32], strides = [1, 1]} : vector<8x128xf32> to vector<8x32xf32>
    %934 = vector.extract_strided_slice %929 {offsets = [0, 96], sizes = [8, 32], strides = [1, 1]} : vector<8x128xf32> to vector<8x32xf32>
    %935 = arith.mulf %932, %909 : vector<8x32xf32>
    %936 = arith.mulf %931, %933 : vector<8x32xf32>
    %937 = arith.addf %935, %936 : vector<8x32xf32>
    %938 = math.tanh %937 : vector<8x32xf32>
    %939 = arith.mulf %934, %938 : vector<8x32xf32>
    %c8_323 = arith.constant 8 : index
    %c0_324 = arith.constant 0 : index
    %940 = vector.load %arg20[%c8_323, %c0_324] : memref<64x128xf32, #tpu.memory_space<vmem>>, vector<8x128xf32>
    %cst_325 = arith.constant dense<0.000000e+00> : vector<8x128xf32>
    %941 = tpu.matmul %912, %530, %cst_325 {dimension_numbers = #tpu.dot_dimension_numbers<[1], [0], [0], [1], [0, 0, 1, 1], [], []>} : vector<8x32xf32>, vector<32x128xf32>, vector<8x128xf32> -> vector<8x128xf32>
    %942 = arith.addf %940, %941 : vector<8x128xf32>
    %943 = arith.negf %942 : vector<8x128xf32>
    %944 = math.exp %943 : vector<8x128xf32>
    %cst_326 = arith.constant 1.000000e+00 : f32
    %945 = vector.broadcast %cst_326 : f32 to vector<8x128xf32>
    %946 = arith.addf %945, %944 : vector<8x128xf32>
    %947 = arith.divf %945, %946 : vector<8x128xf32>
    %948 = math.tanh %942 : vector<8x128xf32>
    %949 = vector.extract_strided_slice %947 {offsets = [0, 0], sizes = [8, 32], strides = [1, 1]} : vector<8x128xf32> to vector<8x32xf32>
    %950 = vector.extract_strided_slice %947 {offsets = [0, 32], sizes = [8, 32], strides = [1, 1]} : vector<8x128xf32> to vector<8x32xf32>
    %951 = vector.extract_strided_slice %948 {offsets = [0, 64], sizes = [8, 32], strides = [1, 1]} : vector<8x128xf32> to vector<8x32xf32>
    %952 = vector.extract_strided_slice %947 {offsets = [0, 96], sizes = [8, 32], strides = [1, 1]} : vector<8x128xf32> to vector<8x32xf32>
    %953 = arith.mulf %950, %915 : vector<8x32xf32>
    %954 = arith.mulf %949, %951 : vector<8x32xf32>
    %955 = arith.addf %953, %954 : vector<8x32xf32>
    %956 = math.tanh %955 : vector<8x32xf32>
    %957 = arith.mulf %952, %956 : vector<8x32xf32>
    %cst_327 = arith.constant 0.000000e+00 : f32
    %958 = vector.shape_cast %918 : vector<8x1xi1> to vector<8x1xi1>
    %959 = vector.broadcast %958 : vector<8x1xi1> to vector<8x32xi1>
    %960 = vector.broadcast %cst_327 : f32 to vector<8x32xf32>
    %961 = arith.select %959, %939, %960 : vector<8x32xi1>, vector<8x32xf32>
    %c48_328 = arith.constant 48 : index
    %c0_329 = arith.constant 0 : index
    %962 = vector.load %arg22[%c48_328, %c0_329] : memref<64x64xf32, #tpu.memory_space<vmem>>, vector<8x32xf32>
    tpu.vector_store %arg22[%c48_328, %c0_329], %961 {strides = array<i32>} : memref<64x64xf32, #tpu.memory_space<vmem>>, vector<8x32xf32>,
    %cst_330 = arith.constant 0.000000e+00 : f32
    %963 = vector.shape_cast %921 : vector<8x1xi1> to vector<8x1xi1>
    %964 = vector.broadcast %963 : vector<8x1xi1> to vector<8x32xi1>
    %965 = vector.broadcast %cst_330 : f32 to vector<8x32xf32>
    %966 = arith.select %964, %957, %965 : vector<8x32xi1>, vector<8x32xf32>
    %c8_331 = arith.constant 8 : index
    %c32_332 = arith.constant 32 : index
    %967 = vector.load %arg22[%c8_331, %c32_332] : memref<64x64xf32, #tpu.memory_space<vmem>>, vector<8x32xf32>
    tpu.vector_store %arg22[%c8_331, %c32_332], %966 {strides = array<i32>} : memref<64x64xf32, #tpu.memory_space<vmem>>, vector<8x32xf32>,
    %968 = vector.shape_cast %918 : vector<8x1xi1> to vector<8x1xi1>
    %969 = vector.broadcast %968 : vector<8x1xi1> to vector<8x32xi1>
    %970 = arith.select %969, %939, %906 : vector<8x32xi1>, vector<8x32xf32>
    %971 = vector.shape_cast %918 : vector<8x1xi1> to vector<8x1xi1>
    %972 = vector.broadcast %971 : vector<8x1xi1> to vector<8x32xi1>
    %973 = arith.select %972, %937, %909 : vector<8x32xi1>, vector<8x32xf32>
    %974 = vector.shape_cast %921 : vector<8x1xi1> to vector<8x1xi1>
    %975 = vector.broadcast %974 : vector<8x1xi1> to vector<8x32xi1>
    %976 = arith.select %975, %957, %912 : vector<8x32xi1>, vector<8x32xf32>
    %977 = vector.shape_cast %921 : vector<8x1xi1> to vector<8x1xi1>
    %978 = vector.broadcast %977 : vector<8x1xi1> to vector<8x32xi1>
    %979 = arith.select %978, %955, %915 : vector<8x32xi1>, vector<8x32xf32>
    %c56_333 = arith.constant 56 : index
    %c0_334 = arith.constant 0 : index
    %980 = vector.load %arg1[%c56_333, %c0_334] : memref<64x1xf32, #tpu.memory_space<vmem>>, vector<8x1xf32>
    %cst_335 = arith.constant 5.000000e-01 : f32
    %981 = vector.broadcast %cst_335 : f32 to vector<8x1xf32>
    %982 = arith.cmpf ogt, %980, %981 : vector<8x1xf32>
    %c0_336 = arith.constant 0 : index
    %c0_337 = arith.constant 0 : index
    %983 = vector.load %arg1[%c0_336, %c0_337] : memref<64x1xf32, #tpu.memory_space<vmem>>, vector<8x1xf32>
    %cst_338 = arith.constant 5.000000e-01 : f32
    %984 = vector.broadcast %cst_338 : f32 to vector<8x1xf32>
    %985 = arith.cmpf ogt, %983, %984 : vector<8x1xf32>
    %c56_339 = arith.constant 56 : index
    %c0_340 = arith.constant 0 : index
    %986 = vector.load %arg19[%c56_339, %c0_340] : memref<64x128xf32, #tpu.memory_space<vmem>>, vector<8x128xf32>
    %cst_341 = arith.constant dense<0.000000e+00> : vector<8x128xf32>
    %987 = tpu.matmul %970, %529, %cst_341 {dimension_numbers = #tpu.dot_dimension_numbers<[1], [0], [0], [1], [0, 0, 1, 1], [], []>} : vector<8x32xf32>, vector<32x128xf32>, vector<8x128xf32> -> vector<8x128xf32>
    %988 = arith.addf %986, %987 : vector<8x128xf32>
    %989 = arith.negf %988 : vector<8x128xf32>
    %990 = math.exp %989 : vector<8x128xf32>
    %cst_342 = arith.constant 1.000000e+00 : f32
    %991 = vector.broadcast %cst_342 : f32 to vector<8x128xf32>
    %992 = arith.addf %991, %990 : vector<8x128xf32>
    %993 = arith.divf %991, %992 : vector<8x128xf32>
    %994 = math.tanh %988 : vector<8x128xf32>
    %995 = vector.extract_strided_slice %993 {offsets = [0, 0], sizes = [8, 32], strides = [1, 1]} : vector<8x128xf32> to vector<8x32xf32>
    %996 = vector.extract_strided_slice %993 {offsets = [0, 32], sizes = [8, 32], strides = [1, 1]} : vector<8x128xf32> to vector<8x32xf32>
    %997 = vector.extract_strided_slice %994 {offsets = [0, 64], sizes = [8, 32], strides = [1, 1]} : vector<8x128xf32> to vector<8x32xf32>
    %998 = vector.extract_strided_slice %993 {offsets = [0, 96], sizes = [8, 32], strides = [1, 1]} : vector<8x128xf32> to vector<8x32xf32>
    %999 = arith.mulf %996, %973 : vector<8x32xf32>
    %1000 = arith.mulf %995, %997 : vector<8x32xf32>
    %1001 = arith.addf %999, %1000 : vector<8x32xf32>
    %1002 = math.tanh %1001 : vector<8x32xf32>
    %1003 = arith.mulf %998, %1002 : vector<8x32xf32>
    %c0_343 = arith.constant 0 : index
    %c0_344 = arith.constant 0 : index
    %1004 = vector.load %arg20[%c0_343, %c0_344] : memref<64x128xf32, #tpu.memory_space<vmem>>, vector<8x128xf32>
    %cst_345 = arith.constant dense<0.000000e+00> : vector<8x128xf32>
    %1005 = tpu.matmul %976, %530, %cst_345 {dimension_numbers = #tpu.dot_dimension_numbers<[1], [0], [0], [1], [0, 0, 1, 1], [], []>} : vector<8x32xf32>, vector<32x128xf32>, vector<8x128xf32> -> vector<8x128xf32>
    %1006 = arith.addf %1004, %1005 : vector<8x128xf32>
    %1007 = arith.negf %1006 : vector<8x128xf32>
    %1008 = math.exp %1007 : vector<8x128xf32>
    %cst_346 = arith.constant 1.000000e+00 : f32
    %1009 = vector.broadcast %cst_346 : f32 to vector<8x128xf32>
    %1010 = arith.addf %1009, %1008 : vector<8x128xf32>
    %1011 = arith.divf %1009, %1010 : vector<8x128xf32>
    %1012 = math.tanh %1006 : vector<8x128xf32>
    %1013 = vector.extract_strided_slice %1011 {offsets = [0, 0], sizes = [8, 32], strides = [1, 1]} : vector<8x128xf32> to vector<8x32xf32>
    %1014 = vector.extract_strided_slice %1011 {offsets = [0, 32], sizes = [8, 32], strides = [1, 1]} : vector<8x128xf32> to vector<8x32xf32>
    %1015 = vector.extract_strided_slice %1012 {offsets = [0, 64], sizes = [8, 32], strides = [1, 1]} : vector<8x128xf32> to vector<8x32xf32>
    %1016 = vector.extract_strided_slice %1011 {offsets = [0, 96], sizes = [8, 32], strides = [1, 1]} : vector<8x128xf32> to vector<8x32xf32>
    %1017 = arith.mulf %1014, %979 : vector<8x32xf32>
    %1018 = arith.mulf %1013, %1015 : vector<8x32xf32>
    %1019 = arith.addf %1017, %1018 : vector<8x32xf32>
    %1020 = math.tanh %1019 : vector<8x32xf32>
    %1021 = arith.mulf %1016, %1020 : vector<8x32xf32>
    %cst_347 = arith.constant 0.000000e+00 : f32
    %1022 = vector.shape_cast %982 : vector<8x1xi1> to vector<8x1xi1>
    %1023 = vector.broadcast %1022 : vector<8x1xi1> to vector<8x32xi1>
    %1024 = vector.broadcast %cst_347 : f32 to vector<8x32xf32>
    %1025 = arith.select %1023, %1003, %1024 : vector<8x32xi1>, vector<8x32xf32>
    %c56_348 = arith.constant 56 : index
    %c0_349 = arith.constant 0 : index
    %1026 = vector.load %arg22[%c56_348, %c0_349] : memref<64x64xf32, #tpu.memory_space<vmem>>, vector<8x32xf32>
    tpu.vector_store %arg22[%c56_348, %c0_349], %1025 {strides = array<i32>} : memref<64x64xf32, #tpu.memory_space<vmem>>, vector<8x32xf32>,
    %cst_350 = arith.constant 0.000000e+00 : f32
    %1027 = vector.shape_cast %985 : vector<8x1xi1> to vector<8x1xi1>
    %1028 = vector.broadcast %1027 : vector<8x1xi1> to vector<8x32xi1>
    %1029 = vector.broadcast %cst_350 : f32 to vector<8x32xf32>
    %1030 = arith.select %1028, %1021, %1029 : vector<8x32xi1>, vector<8x32xf32>
    %c0_351 = arith.constant 0 : index
    %c32_352 = arith.constant 32 : index
    %1031 = vector.load %arg22[%c0_351, %c32_352] : memref<64x64xf32, #tpu.memory_space<vmem>>, vector<8x32xf32>
    tpu.vector_store %arg22[%c0_351, %c32_352], %1030 {strides = array<i32>} : memref<64x64xf32, #tpu.memory_space<vmem>>, vector<8x32xf32>,
    %c0_353 = arith.constant 0 : index
    %c0_354 = arith.constant 0 : index
    %1032 = vector.load %arg22[%c0_353, %c0_354] : memref<64x64xf32, #tpu.memory_space<vmem>>, vector<64x64xf32>
    %c0_355 = arith.constant 0 : index
    %c0_356 = arith.constant 0 : index
    %1033 = vector.load %arg14[%c0_355, %c0_356] : memref<64x32xf32, #tpu.memory_space<vmem>>, vector<64x32xf32>
    %cst_357 = arith.constant dense<0.000000e+00> : vector<64x32xf32>
    %1034 = tpu.matmul %1032, %1033, %cst_357 {dimension_numbers = #tpu.dot_dimension_numbers<[1], [0], [0], [1], [0, 0, 1, 1], [], []>} : vector<64x64xf32>, vector<64x32xf32>, vector<64x32xf32> -> vector<64x32xf32>
    %c0_358 = arith.constant 0 : index
    %c0_359 = arith.constant 0 : index
    %1035 = vector.load %arg15[%c0_358, %c0_359] : memref<1x32xf32, #tpu.memory_space<vmem>>, vector<1x32xf32>
    %1036 = vector.broadcast %1035 : vector<1x32xf32> to vector<64x32xf32>
    %1037 = arith.addf %1034, %1036 : vector<64x32xf32>
    %1038 = math.tanh %1037 : vector<64x32xf32>
    %c0_360 = arith.constant 0 : index
    %c0_361 = arith.constant 0 : index
    %1039 = vector.load %arg16[%c0_360, %c0_361] : memref<32x128xf32, #tpu.memory_space<vmem>>, vector<32x128xf32>
    %cst_362 = arith.constant dense<0.000000e+00> : vector<64x128xf32>
    %1040 = tpu.matmul %1038, %1039, %cst_362 {dimension_numbers = #tpu.dot_dimension_numbers<[1], [0], [0], [1], [0, 0, 1, 1], [], []>} : vector<64x32xf32>, vector<32x128xf32>, vector<64x128xf32> -> vector<64x128xf32>
    %c0_363 = arith.constant 0 : index
    %c0_364 = arith.constant 0 : index
    %1041 = vector.load %arg17[%c0_363, %c0_364] : memref<1x128xf32, #tpu.memory_space<vmem>>, vector<1x128xf32>
    %1042 = vector.broadcast %1041 : vector<1x128xf32> to vector<64x128xf32>
    %1043 = arith.addf %1040, %1042 : vector<64x128xf32>
    %cst_365 = arith.constant dense<0xFF800000> : vector<64xf32>
    %1044 = vector.multi_reduction <maximumf>, %1043, %cst_365 [1] : vector<64x128xf32> to vector<64xf32>
    %1045 = vector.shape_cast %1044 : vector<64xf32> to vector<64x1xf32>
    %1046 = vector.broadcast %1045 : vector<64x1xf32> to vector<64x128xf32>
    %1047 = arith.subf %1043, %1046 : vector<64x128xf32>
    %1048 = math.exp %1047 : vector<64x128xf32>
    %cst_366 = arith.constant dense<0.000000e+00> : vector<64xf32>
    %1049 = vector.multi_reduction <add>, %1048, %cst_366 [1] : vector<64x128xf32> to vector<64xf32>
    %1050 = vector.shape_cast %1049 : vector<64xf32> to vector<64x1xf32>
    %1051 = math.log %1050 : vector<64x1xf32>
    %1052 = arith.addf %1051, %1045 : vector<64x1xf32>
    %1053 = vector.broadcast %1052 : vector<64x1xf32> to vector<64x128xf32>
    %1054 = arith.subf %1043, %1053 : vector<64x128xf32>
    %c0_367 = arith.constant 0 : index
    %c0_368 = arith.constant 0 : index
    %1055 = vector.load %arg18[%c0_367, %c0_368] : memref<64x128xf32, #tpu.memory_space<vmem>>, vector<64x128xf32>
    tpu.vector_store %arg18[%c0_367, %c0_368], %1054 {strides = array<i32>} : memref<64x128xf32, #tpu.memory_space<vmem>>, vector<64x128xf32>,
    return
  }
}

</mosaic_0001>

<llo_original>
// kernel: tpu_custom_call.1
$region0: #{tpu_custom_call.1}
  #allocation0 [shape = 'u32[]', space=smem, size = 0x4, offset = 0x4, fixed_abs, tag = 'smem constant byte address 0x4 - core index']
  #allocation1 [shape = 'u32[144,128]{1,0:T(1,128)}', space=vmem, size = 0x12000, scoped, tag = 'internal scratch']
  #allocation2 [shape = 'f32[64,128]{1,0:T(8,128)}', space=vmem, size = 0x8000, scoped, tag = 'scratch operand']
  #allocation3 [shape = 'f32[64,128]{1,0:T(8,128)}', space=vmem, size = 0x8000, scoped, tag = 'scratch operand']
  #allocation4 [shape = 'f32[64,64]{1,0:T(8,128)}', space=vmem, size = 0x8000, scoped, tag = 'scratch operand']
  #allocation5 [shape = 'f32[64,64]{1,0:T(8,128)}', space=vmem, size = 0x8000, scoped, tag = 'scratch operand']
  %s0 = inlined_call_operand.vmem [shape: f32[64,10], index: 0, kind: input, shape index: {}]
  %s1 = inlined_call_operand.vmem [shape: f32[64,1], index: 1, kind: input, shape index: {}]
  %s2 = inlined_call_operand.hbm [shape: f32[10,128], index: 2, kind: input, shape index: {}]
  %s3 = inlined_call_operand.vmem [shape: f32[32,128], index: 3, kind: input, shape index: {}]
  %s4 = inlined_call_operand.vmem [shape: f32[1,128], index: 4, kind: input, shape index: {}]
  %s5 = inlined_call_operand.hbm [shape: f32[10,128], index: 5, kind: input, shape index: {}]
  %s6 = inlined_call_operand.vmem [shape: f32[32,128], index: 6, kind: input, shape index: {}]
  %s7 = inlined_call_operand.vmem [shape: f32[1,128], index: 7, kind: input, shape index: {}]
  %s8 = inlined_call_operand.vmem [shape: f32[64,128], index: 8, kind: input, shape index: {}]
  %s9 = inlined_call_operand.vmem [shape: f32[32,128], index: 9, kind: input, shape index: {}]
  %s10 = inlined_call_operand.vmem [shape: f32[1,128], index: 10, kind: input, shape index: {}]
  %s11 = inlined_call_operand.vmem [shape: f32[64,128], index: 11, kind: input, shape index: {}]
  %s12 = inlined_call_operand.vmem [shape: f32[32,128], index: 12, kind: input, shape index: {}]
  %s13 = inlined_call_operand.vmem [shape: f32[1,128], index: 13, kind: input, shape index: {}]
  %s14 = inlined_call_operand.vmem [shape: f32[64,32], index: 14, kind: input, shape index: {}]
  %s15 = inlined_call_operand.vmem [shape: f32[1,32], index: 15, kind: input, shape index: {}]
  %s16 = inlined_call_operand.hbm [shape: f32[32,128], index: 16, kind: input, shape index: {}]
  %s17 = inlined_call_operand.vmem [shape: f32[1,128], index: 17, kind: input, shape index: {}]
  %s18 = inlined_call_operand.hbm [shape: f32[64,128], index: 18, kind: output, shape index: {}]
  %s19 = sld [smem:[#allocation0]]
  $region94: #{tpu_custom_call.1} parent=0
    _
  %s21 = ssub.s32 1, %s19
  %s22 = scalar_select 0, %s21, %s19
  $region1: #{tpu_custom_call.1} parent=0
    #allocation6 [shape = 'u8[8192]{0}', space=vmem, size = 0x2000, scoped, tag = 'input window, operand 2, single buffered']
    #allocation7 [shape = 's32[1]{0}', space=sflag, size = 0x4, scoped, tag = 'scoped memory for tpu_custom_call.1']
    #allocation8 [shape = 's32[1]{0}', space=sflag, size = 0x4, scoped, tag = 'scoped memory for tpu_custom_call.1']
    #allocation9 [shape = 'u8[8192]{0}', space=vmem, size = 0x2000, scoped, tag = 'input window, operand 5, single buffered']
    #allocation10 [shape = 's32[1]{0}', space=sflag, size = 0x4, scoped, tag = 'scoped memory for tpu_custom_call.1']
    #allocation11 [shape = 'u8[16384]{0}', space=vmem, size = 0x4000, scoped, tag = 'input window, operand 16, single buffered']
    #allocation12 [shape = 'u8[32768]{0}', space=vmem, size = 0x8000, scoped, tag = 'output window, operand 0, single buffered']
    %23 = vsyncpa [#allocation7], 0
    %24 = vsyncpa [#allocation10], 0
    %25 = vsyncpa [#allocation8], 0
    // Predicated region
    $region2: #{tpu_custom_call.1} parent=1 // pred_check
      _
    $region3: #{tpu_custom_call.1} parent=1 // pred_check_branch
      %27 = sbr.rel (0) target = $region5
    $region4: #{tpu_custom_call.1} parent=1 // pred_region
      _
    $region5: #{tpu_custom_call.1} parent=1 // pred_fallthru
      _
    // Predicated region
    $region6: #{tpu_custom_call.1} parent=1 // pred_check
      _
    $region7: #{tpu_custom_call.1} parent=1 // pred_check_branch
      %29 = sbr.rel (0) target = $region9
    $region8: #{tpu_custom_call.1} parent=1 // pred_region
      _
    $region9: #{tpu_custom_call.1} parent=1 // pred_fallthru
      _
    // Predicated region
    $region10: #{tpu_custom_call.1} parent=1 // pred_check
      _
    $region11: #{tpu_custom_call.1} parent=1 // pred_check_branch
      %31 = sbr.rel (0) target = $region13
    $region12: #{tpu_custom_call.1} parent=1 // pred_region
      %s33 = ssub.s32 256, 256
      %34 = vsyncadd [#allocation7], %s33
      %s35 = sshll.u32 [#allocation6], 4
      %s36 = int_to_ptr.vmem [resolvable:$true] %s35
      %41 = dma.hbm_to_vmem [thread:$0]  %s2, 256, %s36, [#allocation7], 128, 128, 8
    $region13: #{tpu_custom_call.1} parent=1 // pred_fallthru
      _
    // Predicated region
    $region14: #{tpu_custom_call.1} parent=1 // pred_check
      _
    $region15: #{tpu_custom_call.1} parent=1 // pred_check_branch
      %43 = sbr.rel (0) target = $region17
    $region16: #{tpu_custom_call.1} parent=1 // pred_region
      _
    $region17: #{tpu_custom_call.1} parent=1 // pred_fallthru
      _
    // Predicated region
    $region18: #{tpu_custom_call.1} parent=1 // pred_check
      _
    $region19: #{tpu_custom_call.1} parent=1 // pred_check_branch
      %45 = sbr.rel (0) target = $region21
    $region20: #{tpu_custom_call.1} parent=1 // pred_region
      _
    $region21: #{tpu_custom_call.1} parent=1 // pred_fallthru
      _
    // Predicated region
    $region22: #{tpu_custom_call.1} parent=1 // pred_check
      _
    $region23: #{tpu_custom_call.1} parent=1 // pred_check_branch
      %47 = sbr.rel (0) target = $region25
    $region24: #{tpu_custom_call.1} parent=1 // pred_region
      %s49 = ssub.s32 256, 256
      %50 = vsyncadd [#allocation10], %s49
      %s51 = sshll.u32 [#allocation9], 4
      %s52 = int_to_ptr.vmem [resolvable:$true] %s51
      %57 = dma.hbm_to_vmem [thread:$0]  %s5, 256, %s52, [#allocation10], 128, 128, 8
    $region25: #{tpu_custom_call.1} parent=1 // pred_fallthru
      _
    // Predicated region
    $region26: #{tpu_custom_call.1} parent=1 // pred_check
      _
    $region27: #{tpu_custom_call.1} parent=1 // pred_check_branch
      %59 = sbr.rel (0) target = $region29
    $region28: #{tpu_custom_call.1} parent=1 // pred_region
      _
    $region29: #{tpu_custom_call.1} parent=1 // pred_fallthru
      _
    // Predicated region
    $region30: #{tpu_custom_call.1} parent=1 // pred_check
      _
    $region31: #{tpu_custom_call.1} parent=1 // pred_check_branch
      %61 = sbr.rel (0) target = $region33
    $region32: #{tpu_custom_call.1} parent=1 // pred_region
      _
    $region33: #{tpu_custom_call.1} parent=1 // pred_fallthru
      _
    // Predicated region
    $region34: #{tpu_custom_call.1} parent=1 // pred_check
      _
    $region35: #{tpu_custom_call.1} parent=1 // pred_check_branch
      %63 = sbr.rel (0) target = $region37
    $region36: #{tpu_custom_call.1} parent=1 // pred_region
      _
    $region37: #{tpu_custom_call.1} parent=1 // pred_fallthru
      _
    // Predicated region
    $region38: #{tpu_custom_call.1} parent=1 // pred_check
      _
    $region39: #{tpu_custom_call.1} parent=1 // pred_check_branch
      %65 = sbr.rel (0) target = $region41
    $region40: #{tpu_custom_call.1} parent=1 // pred_region
      _
    $region41: #{tpu_custom_call.1} parent=1 // pred_fallthru
      _
    // Predicated region
    $region42: #{tpu_custom_call.1} parent=1 // pred_check
      _
    $region43: #{tpu_custom_call.1} parent=1 // pred_check_branch
      %67 = sbr.rel (0) target = $region45
    $region44: #{tpu_custom_call.1} parent=1 // pred_region
      _
    $region45: #{tpu_custom_call.1} parent=1 // pred_fallthru
      _
    // Predicated region
    $region46: #{tpu_custom_call.1} parent=1 // pred_check
      _
    $region47: #{tpu_custom_call.1} parent=1 // pred_check_branch
      %69 = sbr.rel (0) target = $region49
    $region48: #{tpu_custom_call.1} parent=1 // pred_region
      _
    $region49: #{tpu_custom_call.1} parent=1 // pred_fallthru
      _
    // Predicated region
    $region50: #{tpu_custom_call.1} parent=1 // pred_check
      _
    $region51: #{tpu_custom_call.1} parent=1 // pred_check_branch
      %71 = sbr.rel (0) target = $region53
    $region52: #{tpu_custom_call.1} parent=1 // pred_region
      _
    $region53: #{tpu_custom_call.1} parent=1 // pred_fallthru
      _
    // Predicated region
    $region54: #{tpu_custom_call.1} parent=1 // pred_check
      _
    $region55: #{tpu_custom_call.1} parent=1 // pred_check_branch
      %73 = sbr.rel (0) target = $region57
    $region56: #{tpu_custom_call.1} parent=1 // pred_region
      _
    $region57: #{tpu_custom_call.1} parent=1 // pred_fallthru
      _
    // Predicated region
    $region58: #{tpu_custom_call.1} parent=1 // pred_check
      _
    $region59: #{tpu_custom_call.1} parent=1 // pred_check_branch
      %75 = sbr.rel (0) target = $region61
    $region60: #{tpu_custom_call.1} parent=1 // pred_region
      _
    $region61: #{tpu_custom_call.1} parent=1 // pred_fallthru
      _
    // Predicated region
    $region62: #{tpu_custom_call.1} parent=1 // pred_check
      _
    $region63: #{tpu_custom_call.1} parent=1 // pred_check_branch
      %77 = sbr.rel (0) target = $region65
    $region64: #{tpu_custom_call.1} parent=1 // pred_region
      _
    $region65: #{tpu_custom_call.1} parent=1 // pred_fallthru
      _
    // Predicated region
    $region66: #{tpu_custom_call.1} parent=1 // pred_check
      _
    $region67: #{tpu_custom_call.1} parent=1 // pred_check_branch
      %79 = sbr.rel (0) target = $region69
    $region68: #{tpu_custom_call.1} parent=1 // pred_region
      %s81 = ssub.s32 512, 512
      %82 = vsyncadd [#allocation10], %s81
      %s83 = sshll.u32 [#allocation11], 4
      %s84 = int_to_ptr.vmem [resolvable:$true] %s83
      %89 = dma.hbm_to_vmem [thread:$0]  %s16, 512, %s84, [#allocation10], 128, 128, 8
    $region69: #{tpu_custom_call.1} parent=1 // pred_fallthru
      _
    // Predicated region
    $region70: #{tpu_custom_call.1} parent=1 // pred_check
      _
    $region71: #{tpu_custom_call.1} parent=1 // pred_check_branch
      %91 = sbr.rel (0) target = $region73
    $region72: #{tpu_custom_call.1} parent=1 // pred_region
      _
    $region73: #{tpu_custom_call.1} parent=1 // pred_fallthru
      _
    // Predicated region
    $region74: #{tpu_custom_call.1} parent=1 // pred_check
      _
    $region75: #{tpu_custom_call.1} parent=1 // pred_check_branch
      %93 = sbr.rel (0) target = $region77
    $region76: #{tpu_custom_call.1} parent=1 // pred_region
      %94 = dma.done [#allocation7], 256
    $region77: #{tpu_custom_call.1} parent=1 // pred_fallthru
      _
    // Predicated region
    $region78: #{tpu_custom_call.1} parent=1 // pred_check
      _
    $region79: #{tpu_custom_call.1} parent=1 // pred_check_branch
      %96 = sbr.rel (0) target = $region81
    $region80: #{tpu_custom_call.1} parent=1 // pred_region
      %97 = dma.done [#allocation10], 256
    $region81: #{tpu_custom_call.1} parent=1 // pred_fallthru
      _
    // Predicated region
    $region82: #{tpu_custom_call.1} parent=1 // pred_check
      _
    $region83: #{tpu_custom_call.1} parent=1 // pred_check_branch
      %99 = sbr.rel (0) target = $region85
    $region84: #{tpu_custom_call.1} parent=1 // pred_region
      %100 = dma.done [#allocation10], 512
    $region85: #{tpu_custom_call.1} parent=1 // pred_fallthru
      _
    %v101 = vld [vmem:[%s0] sm:$0xff]
    %v102 = vld [vmem:[%s0 + $0x8] sm:$0xff]
    %v103 = vld [vmem:[%s0 + $0x10] sm:$0xff]
    %v104 = vld [vmem:[%s0 + $0x18] sm:$0xff]
    %v105 = vld [vmem:[%s0 + $0x20] sm:$0xff]
    %v106 = vld [vmem:[%s0 + $0x28] sm:$0xff]
    %v107 = vld [vmem:[%s0 + $0x30] sm:$0xff]
    %v108 = vld [vmem:[%s0 + $0x38] sm:$0xff]
    %v109 = vld [vmem:[#allocation6] sm:$0xff]
    %v110 = vld [vmem:[#allocation6 + $0x8] sm:$0x3]
    %v111 = vld [vmem:[%s4] sm:$0x1]
    %v113 = vlaneseq
    %v114 = vshrl.u32 %v113, 7
    %v115 = vsub.s32 0, %v114
    %v116 = vrot.slane %v111, %v115
    %vm118 = vcmask 80896
    %v120 = vsel %vm118, %v101, 0
    %v123 = vsel %vm118, %v102, 0
    %v126 = vsel %vm118, %v103, 0
    %v129 = vsel %vm118, %v104, 0
    %v132 = vsel %vm118, %v105, 0
    %v135 = vsel %vm118, %v106, 0
    %v138 = vsel %vm118, %v107, 0
    %v141 = vsel %vm118, %v108, 0
    %vm143 = vcmask 1041408
    %v145 = vsel %vm143, %v110, 0
    %147 = vmatprep.subr.mxu0 0.0
    %148 = vmatpush1.msra.mxu0 0.0
    %149 = vmatprep.subr.mxu0 0.0
    %150 = vmatpush1.msra.mxu0 0.0
    %151 = vmatprep.subr.mxu0 0.0
    %152 = vmatpush1.msra.mxu0 0.0
    %153 = vmatprep.subr.mxu0 0.0
    %154 = vmatpush1.msra.mxu0 0.0
    %155 = vmatprep.subr.mxu0 0.0
    %156 = vmatpush1.msra.mxu0 0.0
    %157 = vmatprep.subr.mxu0 0.0
    %158 = vmatpush1.msra.mxu0 0.0
    %159 = vmatprep.subr.mxu0 0.0
    %160 = vmatpush1.msra.mxu0 0.0
    %161 = vmatprep.subr.mxu0 0.0
    %162 = vmatpush1.msra.mxu0 0.0
    %163 = vmatprep.subr.mxu0 0.0
    %164 = vmatpush1.msra.mxu0 0.0
    %165 = vmatprep.subr.mxu0 0.0
    %166 = vmatpush1.msra.mxu0 0.0
    %167 = vmatprep.subr.mxu0 0.0
    %168 = vmatpush1.msra.mxu0 0.0
    %169 = vmatprep.subr.mxu0 0.0
    %170 = vmatpush1.msra.mxu0 0.0
    %171 = vmatprep.subr.mxu0 0.0
    %172 = vmatpush1.msra.mxu0 0.0
    %173 = vmatprep.subr.mxu0 0.0
    %174 = vmatpush1.msra.mxu0 0.0
    %175 = vmatprep.subr.mxu0 0.0
    %176 = vmatpush1.msra.mxu0 %v145
    %177 = vmatprep.subr.mxu0 0.0
    %178 = vmatpush1.msra.mxu0 %v109
    %179 = vmatprep.subr.mxu0 0.0
    %180 = vmatpush2.msra.mxu0 0.0
    %181 = vmatprep.subr.mxu0 0.0
    %182 = vmatpush2.msra.mxu0 0.0
    %183 = vmatprep.subr.mxu0 0.0
    %184 = vmatpush2.msra.mxu0 0.0
    %185 = vmatprep.subr.mxu0 0.0
    %186 = vmatpush2.msra.mxu0 0.0
    %187 = vmatprep.subr.mxu0 0.0
    %188 = vmatpush2.msra.mxu0 0.0
    %189 = vmatprep.subr.mxu0 0.0
    %190 = vmatpush2.msra.mxu0 0.0
    %191 = vmatprep.subr.mxu0 0.0
    %192 = vmatpush2.msra.mxu0 0.0
    %193 = vmatprep.subr.mxu0 0.0
    %194 = vmatpush2.msra.mxu0 0.0
    %195 = vmatprep.subr.mxu0 0.0
    %196 = vmatpush2.msra.mxu0 0.0
    %197 = vmatprep.subr.mxu0 0.0
    %198 = vmatpush2.msra.mxu0 0.0
    %199 = vmatprep.subr.mxu0 0.0
    %200 = vmatpush2.msra.mxu0 0.0
    %201 = vmatprep.subr.mxu0 0.0
    %202 = vmatpush2.msra.mxu0 0.0
    %203 = vmatprep.subr.mxu0 0.0
    %204 = vmatpush2.msra.mxu0 0.0
    %205 = vmatprep.subr.mxu0 0.0
    %206 = vmatpush2.msra.mxu0 0.0
    %207 = vmatprep.subr.mxu0 0.0
    %208 = vmatpush2.msra.mxu0 0.0
    %209 = vmatprep.subr.mxu0 0.0
    %210 = vmatpush2.msra.mxu0 0.0
    %211 = vmatprep.mubr.f32.mxu0 0.0
    %212 = vmatmul.mubr.f32.gmra.mxu0 %v120
    %v213 = vpop.f32.mrf.mxu0
    %v214 = vadd.f32 %v116, %v213
    %v215 = vpop.f32.mrf.mxu0
    %216 = vmatprep.mubr.f32.mxu0 0.0
    %217 = vmatmul.mubr.f32.gmra.mxu0 %v123
    %v218 = vpop.f32.mrf.mxu0
    %v219 = vadd.f32 %v116, %v218
    %v220 = vpop.f32.mrf.mxu0
    %221 = vmatprep.mubr.f32.mxu0 0.0
    %222 = vmatmul.mubr.f32.gmra.mxu0 %v126
    %v223 = vpop.f32.mrf.mxu0
    %v224 = vadd.f32 %v116, %v223
    %v225 = vpop.f32.mrf.mxu0
    %226 = vmatprep.mubr.f32.mxu0 0.0
    %227 = vmatmul.mubr.f32.gmra.mxu0 %v129
    %v228 = vpop.f32.mrf.mxu0
    %v229 = vadd.f32 %v116, %v228
    %v230 = vpop.f32.mrf.mxu0
    %231 = vmatprep.mubr.f32.mxu0 0.0
    %232 = vmatmul.mubr.f32.gmra.mxu0 %v132
    %v233 = vpop.f32.mrf.mxu0
    %v234 = vadd.f32 %v116, %v233
    %v235 = vpop.f32.mrf.mxu0
    %236 = vmatprep.mubr.f32.mxu0 0.0
    %237 = vmatmul.mubr.f32.gmra.mxu0 %v135
    %v238 = vpop.f32.mrf.mxu0
    %v239 = vadd.f32 %v116, %v238
    %v240 = vpop.f32.mrf.mxu0
    %241 = vmatprep.mubr.f32.mxu0 0.0
    %242 = vmatmul.mubr.f32.gmra.mxu0 %v138
    %v243 = vpop.f32.mrf.mxu0
    %v244 = vadd.f32 %v116, %v243
    %v245 = vpop.f32.mrf.mxu0
    %246 = vmatprep.mubr.f32.mxu0 0.0
    %247 = vmatmul.mubr.f32.gmra.mxu0 %v141
    %v248 = vpop.f32.mrf.mxu0
    %v249 = vadd.f32 %v116, %v248
    %v250 = vpop.f32.mrf.mxu0
    %251 = vdwg.mxu0
    %252 = vst [vmem:[#allocation2] sm:$0xff] %v214
    %253 = vst [vmem:[#allocation2 + $0x8] sm:$0xff] %v219
    %254 = vst [vmem:[#allocation2 + $0x10] sm:$0xff] %v224
    %255 = vst [vmem:[#allocation2 + $0x18] sm:$0xff] %v229
    %256 = vst [vmem:[#allocation2 + $0x20] sm:$0xff] %v234
    %257 = vst [vmem:[#allocation2 + $0x28] sm:$0xff] %v239
    %258 = vst [vmem:[#allocation2 + $0x30] sm:$0xff] %v244
    %259 = vst [vmem:[#allocation2 + $0x38] sm:$0xff] %v249
    %v260 = vld [vmem:[#allocation9] sm:$0xff]
    %v261 = vld [vmem:[#allocation9 + $0x8] sm:$0x3]
    %v262 = vld [vmem:[%s7] sm:$0x1]
    %v264 = vlaneseq
    %v265 = vshrl.u32 %v264, 7
    %v266 = vsub.s32 0, %v265
    %v267 = vrot.slane %v262, %v266
    %v270 = vsel %vm143, %v261, 0
    %272 = vmatprep.subr.mxu0 0.0
    %273 = vmatpush1.msra.mxu0 0.0
    %274 = vmatprep.subr.mxu0 0.0
    %275 = vmatpush1.msra.mxu0 0.0
    %276 = vmatprep.subr.mxu0 0.0
    %277 = vmatpush1.msra.mxu0 0.0
    %278 = vmatprep.subr.mxu0 0.0
    %279 = vmatpush1.msra.mxu0 0.0
    %280 = vmatprep.subr.mxu0 0.0
    %281 = vmatpush1.msra.mxu0 0.0
    %282 = vmatprep.subr.mxu0 0.0
    %283 = vmatpush1.msra.mxu0 0.0
    %284 = vmatprep.subr.mxu0 0.0
    %285 = vmatpush1.msra.mxu0 0.0
    %286 = vmatprep.subr.mxu0 0.0
    %287 = vmatpush1.msra.mxu0 0.0
    %288 = vmatprep.subr.mxu0 0.0
    %289 = vmatpush1.msra.mxu0 0.0
    %290 = vmatprep.subr.mxu0 0.0
    %291 = vmatpush1.msra.mxu0 0.0
    %292 = vmatprep.subr.mxu0 0.0
    %293 = vmatpush1.msra.mxu0 0.0
    %294 = vmatprep.subr.mxu0 0.0
    %295 = vmatpush1.msra.mxu0 0.0
    %296 = vmatprep.subr.mxu0 0.0
    %297 = vmatpush1.msra.mxu0 0.0
    %298 = vmatprep.subr.mxu0 0.0
    %299 = vmatpush1.msra.mxu0 0.0
    %300 = vmatprep.subr.mxu0 0.0
    %301 = vmatpush1.msra.mxu0 %v270
    %302 = vmatprep.subr.mxu0 0.0
    %303 = vmatpush1.msra.mxu0 %v260
    %304 = vmatprep.subr.mxu0 0.0
    %305 = vmatpush2.msra.mxu0 0.0
    %306 = vmatprep.subr.mxu0 0.0
    %307 = vmatpush2.msra.mxu0 0.0
    %308 = vmatprep.subr.mxu0 0.0
    %309 = vmatpush2.msra.mxu0 0.0
    %310 = vmatprep.subr.mxu0 0.0
    %311 = vmatpush2.msra.mxu0 0.0
    %312 = vmatprep.subr.mxu0 0.0
    %313 = vmatpush2.msra.mxu0 0.0
    %314 = vmatprep.subr.mxu0 0.0
    %315 = vmatpush2.msra.mxu0 0.0
    %316 = vmatprep.subr.mxu0 0.0
    %317 = vmatpush2.msra.mxu0 0.0
    %318 = vmatprep.subr.mxu0 0.0
    %319 = vmatpush2.msra.mxu0 0.0
    %320 = vmatprep.subr.mxu0 0.0
    %321 = vmatpush2.msra.mxu0 0.0
    %322 = vmatprep.subr.mxu0 0.0
    %323 = vmatpush2.msra.mxu0 0.0
    %324 = vmatprep.subr.mxu0 0.0
    %325 = vmatpush2.msra.mxu0 0.0
    %326 = vmatprep.subr.mxu0 0.0
    %327 = vmatpush2.msra.mxu0 0.0
    %328 = vmatprep.subr.mxu0 0.0
    %329 = vmatpush2.msra.mxu0 0.0
    %330 = vmatprep.subr.mxu0 0.0
    %331 = vmatpush2.msra.mxu0 0.0
    %332 = vmatprep.subr.mxu0 0.0
    %333 = vmatpush2.msra.mxu0 0.0
    %334 = vmatprep.subr.mxu0 0.0
    %335 = vmatpush2.msra.mxu0 0.0
    %336 = vmatprep.mubr.f32.mxu0 0.0
    %337 = vmatmul.mubr.f32.gmra.mxu0 %v120
    %v338 = vpop.f32.mrf.mxu0
    %v339 = vadd.f32 %v267, %v338
    %v340 = vpop.f32.mrf.mxu0
    %341 = vmatprep.mubr.f32.mxu0 0.0
    %342 = vmatmul.mubr.f32.gmra.mxu0 %v123
    %v343 = vpop.f32.mrf.mxu0
    %v344 = vadd.f32 %v267, %v343
    %v345 = vpop.f32.mrf.mxu0
    %346 = vmatprep.mubr.f32.mxu0 0.0
    %347 = vmatmul.mubr.f32.gmra.mxu0 %v126
    %v348 = vpop.f32.mrf.mxu0
    %v349 = vadd.f32 %v267, %v348
    %v350 = vpop.f32.mrf.mxu0
    %351 = vmatprep.mubr.f32.mxu0 0.0
    %352 = vmatmul.mubr.f32.gmra.mxu0 %v129
    %v353 = vpop.f32.mrf.mxu0
    %v354 = vadd.f32 %v267, %v353
    %v355 = vpop.f32.mrf.mxu0
    %356 = vmatprep.mubr.f32.mxu0 0.0
    %357 = vmatmul.mubr.f32.gmra.mxu0 %v132
    %v358 = vpop.f32.mrf.mxu0
    %v359 = vadd.f32 %v267, %v358
    %v360 = vpop.f32.mrf.mxu0
    %361 = vmatprep.mubr.f32.mxu0 0.0
    %362 = vmatmul.mubr.f32.gmra.mxu0 %v135
    %v363 = vpop.f32.mrf.mxu0
    %v364 = vadd.f32 %v267, %v363
    %v365 = vpop.f32.mrf.mxu0
    %366 = vmatprep.mubr.f32.mxu0 0.0
    %367 = vmatmul.mubr.f32.gmra.mxu0 %v138
    %v368 = vpop.f32.mrf.mxu0
    %v369 = vadd.f32 %v267, %v368
    %v370 = vpop.f32.mrf.mxu0
    %371 = vmatprep.mubr.f32.mxu0 0.0
    %372 = vmatmul.mubr.f32.gmra.mxu0 %v141
    %v373 = vpop.f32.mrf.mxu0
    %v374 = vadd.f32 %v267, %v373
    %v375 = vpop.f32.mrf.mxu0
    %376 = vdwg.mxu0
    %377 = vst [vmem:[#allocation3] sm:$0xff] %v339
    %378 = vst [vmem:[#allocation3 + $0x8] sm:$0xff] %v344
    %379 = vst [vmem:[#allocation3 + $0x10] sm:$0xff] %v349
    %380 = vst [vmem:[#allocation3 + $0x18] sm:$0xff] %v354
    %381 = vst [vmem:[#allocation3 + $0x20] sm:$0xff] %v359
    %382 = vst [vmem:[#allocation3 + $0x28] sm:$0xff] %v364
    %383 = vst [vmem:[#allocation3 + $0x30] sm:$0xff] %v369
    %384 = vst [vmem:[#allocation3 + $0x38] sm:$0xff] %v374
    %v385 = vld [vmem:[%s3] sm:$0xff]
    %v386 = vld [vmem:[%s3 + $0x8] sm:$0xff]
    %v387 = vld [vmem:[%s3 + $0x10] sm:$0xff]
    %v388 = vld [vmem:[%s3 + $0x18] sm:$0xff]
    %v389 = vld [vmem:[%s6] sm:$0xff]
    %v390 = vld [vmem:[%s6 + $0x8] sm:$0xff]
    %v391 = vld [vmem:[%s6 + $0x10] sm:$0xff]
    %v392 = vld [vmem:[%s6 + $0x18] sm:$0xff]
    %v393 = vld [vmem:[%s1] sm:$0xff]
    %vm394 = vcmp.gt.f32.partialorder %v393, 0.5
    %v395 = vld [vmem:[%s1 + $0x38] sm:$0xff]
    %vm396 = vcmp.gt.f32.partialorder %v395, 0.5
    %v397 = vld [vmem:[#allocation2] sm:$0xff]
    %vm398 = vcmask 261120
    %v400 = vsel %vm398, 0.0, 0
    %402 = vmatprep.subr.mxu0 0.0
    %403 = vmatpush1.msra.mxu0 0.0
    %404 = vmatprep.subr.mxu0 0.0
    %405 = vmatpush1.msra.mxu0 0.0
    %406 = vmatprep.subr.mxu0 0.0
    %407 = vmatpush1.msra.mxu0 0.0
    %408 = vmatprep.subr.mxu0 0.0
    %409 = vmatpush1.msra.mxu0 0.0
    %410 = vmatprep.subr.mxu0 0.0
    %411 = vmatpush1.msra.mxu0 0.0
    %412 = vmatprep.subr.mxu0 0.0
    %413 = vmatpush1.msra.mxu0 0.0
    %414 = vmatprep.subr.mxu0 0.0
    %415 = vmatpush1.msra.mxu0 0.0
    %416 = vmatprep.subr.mxu0 0.0
    %417 = vmatpush1.msra.mxu0 0.0
    %418 = vmatprep.subr.mxu0 0.0
    %419 = vmatpush1.msra.mxu0 0.0
    %420 = vmatprep.subr.mxu0 0.0
    %421 = vmatpush1.msra.mxu0 0.0
    %422 = vmatprep.subr.mxu0 0.0
    %423 = vmatpush1.msra.mxu0 0.0
    %424 = vmatprep.subr.mxu0 0.0
    %425 = vmatpush1.msra.mxu0 0.0
    %426 = vmatprep.subr.mxu0 0.0
    %427 = vmatpush1.msra.mxu0 %v388
    %428 = vmatprep.subr.mxu0 0.0
    %429 = vmatpush1.msra.mxu0 %v387
    %430 = vmatprep.subr.mxu0 0.0
    %431 = vmatpush1.msra.mxu0 %v386
    %432 = vmatprep.subr.mxu0 0.0
    %433 = vmatpush1.msra.mxu0 %v385
    %434 = vmatprep.subr.mxu0 0.0
    %435 = vmatpush2.msra.mxu0 0.0
    %436 = vmatprep.subr.mxu0 0.0
    %437 = vmatpush2.msra.mxu0 0.0
    %438 = vmatprep.subr.mxu0 0.0
    %439 = vmatpush2.msra.mxu0 0.0
    %440 = vmatprep.subr.mxu0 0.0
    %441 = vmatpush2.msra.mxu0 0.0
    %442 = vmatprep.subr.mxu0 0.0
    %443 = vmatpush2.msra.mxu0 0.0
    %444 = vmatprep.subr.mxu0 0.0
    %445 = vmatpush2.msra.mxu0 0.0
    %446 = vmatprep.subr.mxu0 0.0
    %447 = vmatpush2.msra.mxu0 0.0
    %448 = vmatprep.subr.mxu0 0.0
    %449 = vmatpush2.msra.mxu0 0.0
    %450 = vmatprep.subr.mxu0 0.0
    %451 = vmatpush2.msra.mxu0 0.0
    %452 = vmatprep.subr.mxu0 0.0
    %453 = vmatpush2.msra.mxu0 0.0
    %454 = vmatprep.subr.mxu0 0.0
    %455 = vmatpush2.msra.mxu0 0.0
    %456 = vmatprep.subr.mxu0 0.0
    %457 = vmatpush2.msra.mxu0 0.0
    %458 = vmatprep.subr.mxu0 0.0
    %459 = vmatpush2.msra.mxu0 0.0
    %460 = vmatprep.subr.mxu0 0.0
    %461 = vmatpush2.msra.mxu0 0.0
    %462 = vmatprep.subr.mxu0 0.0
    %463 = vmatpush2.msra.mxu0 0.0
    %464 = vmatprep.subr.mxu0 0.0
    %465 = vmatpush2.msra.mxu0 0.0
    %466 = vmatprep.mubr.f32.mxu0 0.0
    %467 = vmatmul.mubr.f32.gmra.mxu0 %v400
    %v468 = vpop.f32.mrf.mxu0
    %v469 = vadd.f32 0.0, %v468
    %v470 = vpop.f32.mrf.mxu0
    %471 = vdwg.mxu0
    %v472 = vadd.f32 %v397, %v469
    %v473 = vxor.u32 %v472, 2147483648
    %v474 = vmul.f32 %v473, 1.442695
    %v475 = vpow.pop %v474
    %v476 = vadd.f32 %v475, 1.0
    %v477 = vrcp.pop %v476
    %v478 = vmul.f32 1.0, %v477
    %v479 = vtanh.pop %v472
    %v480 = vmul.f32 %v478, 0.0
    %482 = vrot.lane.b32.xlu0 %v479, 64
    %v483 = vpop.permute.xlu0 %482
    %v485 = vmul.f32 %v478, %v483
    %487 = vrot.lane.b32.xlu0 %v485, 32
    %v488 = vpop.permute.xlu0 %487
    %v490 = vadd.f32 %v480, %v488
    %v491 = vtanh.pop %v490
    %493 = vrot.lane.b32.xlu0 %v491, 64
    %v494 = vpop.permute.xlu0 %493
    %v496 = vmul.f32 %v478, %v494
    %v497 = vld [vmem:[#allocation3 + $0x38] sm:$0xff]
    %498 = vmatprep.subr.mxu0 0.0
    %499 = vmatpush1.msra.mxu0 0.0
    %500 = vmatprep.subr.mxu0 0.0
    %501 = vmatpush1.msra.mxu0 0.0
    %502 = vmatprep.subr.mxu0 0.0
    %503 = vmatpush1.msra.mxu0 0.0
    %504 = vmatprep.subr.mxu0 0.0
    %505 = vmatpush1.msra.mxu0 0.0
    %506 = vmatprep.subr.mxu0 0.0
    %507 = vmatpush1.msra.mxu0 0.0
    %508 = vmatprep.subr.mxu0 0.0
    %509 = vmatpush1.msra.mxu0 0.0
    %510 = vmatprep.subr.mxu0 0.0
    %511 = vmatpush1.msra.mxu0 0.0
    %512 = vmatprep.subr.mxu0 0.0
    %513 = vmatpush1.msra.mxu0 0.0
    %514 = vmatprep.subr.mxu0 0.0
    %515 = vmatpush1.msra.mxu0 0.0
    %516 = vmatprep.subr.mxu0 0.0
    %517 = vmatpush1.msra.mxu0 0.0
    %518 = vmatprep.subr.mxu0 0.0
    %519 = vmatpush1.msra.mxu0 0.0
    %520 = vmatprep.subr.mxu0 0.0
    %521 = vmatpush1.msra.mxu0 0.0
    %522 = vmatprep.subr.mxu0 0.0
    %523 = vmatpush1.msra.mxu0 %v392
    %524 = vmatprep.subr.mxu0 0.0
    %525 = vmatpush1.msra.mxu0 %v391
    %526 = vmatprep.subr.mxu0 0.0
    %527 = vmatpush1.msra.mxu0 %v390
    %528 = vmatprep.subr.mxu0 0.0
    %529 = vmatpush1.msra.mxu0 %v389
    %530 = vmatprep.subr.mxu0 0.0
    %531 = vmatpush2.msra.mxu0 0.0
    %532 = vmatprep.subr.mxu0 0.0
    %533 = vmatpush2.msra.mxu0 0.0
    %534 = vmatprep.subr.mxu0 0.0
    %535 = vmatpush2.msra.mxu0 0.0
    %536 = vmatprep.subr.mxu0 0.0
    %537 = vmatpush2.msra.mxu0 0.0
    %538 = vmatprep.subr.mxu0 0.0
    %539 = vmatpush2.msra.mxu0 0.0
    %540 = vmatprep.subr.mxu0 0.0
    %541 = vmatpush2.msra.mxu0 0.0
    %542 = vmatprep.subr.mxu0 0.0
    %543 = vmatpush2.msra.mxu0 0.0
    %544 = vmatprep.subr.mxu0 0.0
    %545 = vmatpush2.msra.mxu0 0.0
    %546 = vmatprep.subr.mxu0 0.0
    %547 = vmatpush2.msra.mxu0 0.0
    %548 = vmatprep.subr.mxu0 0.0
    %549 = vmatpush2.msra.mxu0 0.0
    %550 = vmatprep.subr.mxu0 0.0
    %551 = vmatpush2.msra.mxu0 0.0
    %552 = vmatprep.subr.mxu0 0.0
    %553 = vmatpush2.msra.mxu0 0.0
    %554 = vmatprep.subr.mxu0 0.0
    %555 = vmatpush2.msra.mxu0 0.0
    %556 = vmatprep.subr.mxu0 0.0
    %557 = vmatpush2.msra.mxu0 0.0
    %558 = vmatprep.subr.mxu0 0.0
    %559 = vmatpush2.msra.mxu0 0.0
    %560 = vmatprep.subr.mxu0 0.0
    %561 = vmatpush2.msra.mxu0 0.0
    %562 = vmatprep.mubr.f32.mxu0 0.0
    %563 = vmatmul.mubr.f32.gmra.mxu0 %v400
    %v564 = vpop.f32.mrf.mxu0
    %v565 = vadd.f32 0.0, %v564
    %v566 = vpop.f32.mrf.mxu0
    %567 = vdwg.mxu0
    %v568 = vadd.f32 %v497, %v565
    %v569 = vxor.u32 %v568, 2147483648
    %v570 = vmul.f32 %v569, 1.442695
    %v571 = vpow.pop %v570
    %v572 = vadd.f32 %v571, 1.0
    %v573 = vrcp.pop %v572
    %v574 = vmul.f32 1.0, %v573
    %v575 = vtanh.pop %v568
    %v576 = vmul.f32 %v574, 0.0
    %578 = vrot.lane.b32.xlu0 %v575, 64
    %v579 = vpop.permute.xlu0 %578
    %v581 = vmul.f32 %v574, %v579
    %583 = vrot.lane.b32.xlu0 %v581, 32
    %v584 = vpop.permute.xlu0 %583
    %v586 = vadd.f32 %v576, %v584
    %v587 = vtanh.pop %v586
    %589 = vrot.lane.b32.xlu0 %v587, 64
    %v590 = vpop.permute.xlu0 %589
    %v592 = vmul.f32 %v574, %v590
    %v593 = vsel %vm394, 1, 0
    %594 = vset.pattern.permute.xlu0 0
    %595 = vperm.xlu0 %594, %v593
    %v596 = vpop.permute.xlu0 %595
    %vm597 = vcmp.eq.s32.totalorder %v596, 1
    %v598 = vsel %vm597, %v496, 0.0
    %600 = vrot.lane.b32.xlu0 %v598, 32
    %v601 = vpop.permute.xlu0 %600
    %603 = vst.msk [vmem:[#allocation4] sm:$0xff] %vm398, %v601
    %v604 = vsel %vm396, 1, 0
    %605 = vset.pattern.permute.xlu0 0
    %606 = vperm.xlu0 %605, %v604
    %v607 = vpop.permute.xlu0 %606
    %vm608 = vcmp.eq.s32.totalorder %v607, 1
    %v609 = vsel %vm608, %v592, 0.0
    %611 = vrot.lane.b32.xlu0 %v609, 64
    %v612 = vpop.permute.xlu0 %611
    %vm614 = vcmask 523520
    %615 = vst.msk [vmem:[#allocation4 + $0x38] sm:$0xff] %vm614, %v612
    %v616 = vsel %vm597, %v490, 0.0
    %v617 = vsel %vm608, %v586, 0.0
    %v618 = vld [vmem:[%s1 + $0x8] sm:$0xff]
    %vm619 = vcmp.gt.f32.partialorder %v618, 0.5
    %v620 = vld [vmem:[%s1 + $0x30] sm:$0xff]
    %vm621 = vcmp.gt.f32.partialorder %v620, 0.5
    %v622 = vld [vmem:[#allocation2 + $0x8] sm:$0xff]
    %v623 = vsel %vm398, %v601, 0
    %625 = vmatprep.subr.mxu0 0.0
    %626 = vmatpush1.msra.mxu0 0.0
    %627 = vmatprep.subr.mxu0 0.0
    %628 = vmatpush1.msra.mxu0 0.0
    %629 = vmatprep.subr.mxu0 0.0
    %630 = vmatpush1.msra.mxu0 0.0
    %631 = vmatprep.subr.mxu0 0.0
    %632 = vmatpush1.msra.mxu0 0.0
    %633 = vmatprep.subr.mxu0 0.0
    %634 = vmatpush1.msra.mxu0 0.0
    %635 = vmatprep.subr.mxu0 0.0
    %636 = vmatpush1.msra.mxu0 0.0
    %637 = vmatprep.subr.mxu0 0.0
    %638 = vmatpush1.msra.mxu0 0.0
    %639 = vmatprep.subr.mxu0 0.0
    %640 = vmatpush1.msra.mxu0 0.0
    %641 = vmatprep.subr.mxu0 0.0
    %642 = vmatpush1.msra.mxu0 0.0
    %643 = vmatprep.subr.mxu0 0.0
    %644 = vmatpush1.msra.mxu0 0.0
    %645 = vmatprep.subr.mxu0 0.0
    %646 = vmatpush1.msra.mxu0 0.0
    %647 = vmatprep.subr.mxu0 0.0
    %648 = vmatpush1.msra.mxu0 0.0
    %649 = vmatprep.subr.mxu0 0.0
    %650 = vmatpush1.msra.mxu0 %v388
    %651 = vmatprep.subr.mxu0 0.0
    %652 = vmatpush1.msra.mxu0 %v387
    %653 = vmatprep.subr.mxu0 0.0
    %654 = vmatpush1.msra.mxu0 %v386
    %655 = vmatprep.subr.mxu0 0.0
    %656 = vmatpush1.msra.mxu0 %v385
    %657 = vmatprep.subr.mxu0 0.0
    %658 = vmatpush2.msra.mxu0 0.0
    %659 = vmatprep.subr.mxu0 0.0
    %660 = vmatpush2.msra.mxu0 0.0
    %661 = vmatprep.subr.mxu0 0.0
    %662 = vmatpush2.msra.mxu0 0.0
    %663 = vmatprep.subr.mxu0 0.0
    %664 = vmatpush2.msra.mxu0 0.0
    %665 = vmatprep.subr.mxu0 0.0
    %666 = vmatpush2.msra.mxu0 0.0
    %667 = vmatprep.subr.mxu0 0.0
    %668 = vmatpush2.msra.mxu0 0.0
    %669 = vmatprep.subr.mxu0 0.0
    %670 = vmatpush2.msra.mxu0 0.0
    %671 = vmatprep.subr.mxu0 0.0
    %672 = vmatpush2.msra.mxu0 0.0
    %673 = vmatprep.subr.mxu0 0.0
    %674 = vmatpush2.msra.mxu0 0.0
    %675 = vmatprep.subr.mxu0 0.0
    %676 = vmatpush2.msra.mxu0 0.0
    %677 = vmatprep.subr.mxu0 0.0
    %678 = vmatpush2.msra.mxu0 0.0
    %679 = vmatprep.subr.mxu0 0.0
    %680 = vmatpush2.msra.mxu0 0.0
    %681 = vmatprep.subr.mxu0 0.0
    %682 = vmatpush2.msra.mxu0 0.0
    %683 = vmatprep.subr.mxu0 0.0
    %684 = vmatpush2.msra.mxu0 0.0
    %685 = vmatprep.subr.mxu0 0.0
    %686 = vmatpush2.msra.mxu0 0.0
    %687 = vmatprep.subr.mxu0 0.0
    %688 = vmatpush2.msra.mxu0 0.0
    %689 = vmatprep.mubr.f32.mxu0 0.0
    %690 = vmatmul.mubr.f32.gmra.mxu0 %v623
    %v691 = vpop.f32.mrf.mxu0
    %v692 = vadd.f32 0.0, %v691
    %v693 = vpop.f32.mrf.mxu0
    %694 = vdwg.mxu0
    %v695 = vadd.f32 %v622, %v692
    %v696 = vxor.u32 %v695, 2147483648
    %v697 = vmul.f32 %v696, 1.442695
    %v698 = vpow.pop %v697
    %v699 = vadd.f32 %v698, 1.0
    %v700 = vrcp.pop %v699
    %v701 = vmul.f32 1.0, %v700
    %v702 = vtanh.pop %v695
    %v703 = vmul.f32 %v701, %v616
    %705 = vrot.lane.b32.xlu0 %v702, 64
    %v706 = vpop.permute.xlu0 %705
    %v708 = vmul.f32 %v701, %v706
    %710 = vrot.lane.b32.xlu0 %v708, 32
    %v711 = vpop.permute.xlu0 %710
    %v713 = vadd.f32 %v703, %v711
    %v714 = vtanh.pop %v713
    %716 = vrot.lane.b32.xlu0 %v714, 64
    %v717 = vpop.permute.xlu0 %716
    %v719 = vmul.f32 %v701, %v717
    %v720 = vld [vmem:[#allocation3 + $0x30] sm:$0xff]
    %721 = vrot.lane.b32.xlu0 %v609, 32
    %v722 = vpop.permute.xlu0 %721
    %v723 = vsel %vm398, %v722, 0
    %725 = vmatprep.subr.mxu0 0.0
    %726 = vmatpush1.msra.mxu0 0.0
    %727 = vmatprep.subr.mxu0 0.0
    %728 = vmatpush1.msra.mxu0 0.0
    %729 = vmatprep.subr.mxu0 0.0
    %730 = vmatpush1.msra.mxu0 0.0
    %731 = vmatprep.subr.mxu0 0.0
    %732 = vmatpush1.msra.mxu0 0.0
    %733 = vmatprep.subr.mxu0 0.0
    %734 = vmatpush1.msra.mxu0 0.0
    %735 = vmatprep.subr.mxu0 0.0
    %736 = vmatpush1.msra.mxu0 0.0
    %737 = vmatprep.subr.mxu0 0.0
    %738 = vmatpush1.msra.mxu0 0.0
    %739 = vmatprep.subr.mxu0 0.0
    %740 = vmatpush1.msra.mxu0 0.0
    %741 = vmatprep.subr.mxu0 0.0
    %742 = vmatpush1.msra.mxu0 0.0
    %743 = vmatprep.subr.mxu0 0.0
    %744 = vmatpush1.msra.mxu0 0.0
    %745 = vmatprep.subr.mxu0 0.0
    %746 = vmatpush1.msra.mxu0 0.0
    %747 = vmatprep.subr.mxu0 0.0
    %748 = vmatpush1.msra.mxu0 0.0
    %749 = vmatprep.subr.mxu0 0.0
    %750 = vmatpush1.msra.mxu0 %v392
    %751 = vmatprep.subr.mxu0 0.0
    %752 = vmatpush1.msra.mxu0 %v391
    %753 = vmatprep.subr.mxu0 0.0
    %754 = vmatpush1.msra.mxu0 %v390
    %755 = vmatprep.subr.mxu0 0.0
    %756 = vmatpush1.msra.mxu0 %v389
    %757 = vmatprep.subr.mxu0 0.0
    %758 = vmatpush2.msra.mxu0 0.0
    %759 = vmatprep.subr.mxu0 0.0
    %760 = vmatpush2.msra.mxu0 0.0
    %761 = vmatprep.subr.mxu0 0.0
    %762 = vmatpush2.msra.mxu0 0.0
    %763 = vmatprep.subr.mxu0 0.0
    %764 = vmatpush2.msra.mxu0 0.0
    %765 = vmatprep.subr.mxu0 0.0
    %766 = vmatpush2.msra.mxu0 0.0
    %767 = vmatprep.subr.mxu0 0.0
    %768 = vmatpush2.msra.mxu0 0.0
    %769 = vmatprep.subr.mxu0 0.0
    %770 = vmatpush2.msra.mxu0 0.0
    %771 = vmatprep.subr.mxu0 0.0
    %772 = vmatpush2.msra.mxu0 0.0
    %773 = vmatprep.subr.mxu0 0.0
    %774 = vmatpush2.msra.mxu0 0.0
    %775 = vmatprep.subr.mxu0 0.0
    %776 = vmatpush2.msra.mxu0 0.0
    %777 = vmatprep.subr.mxu0 0.0
    %778 = vmatpush2.msra.mxu0 0.0
    %779 = vmatprep.subr.mxu0 0.0
    %780 = vmatpush2.msra.mxu0 0.0
    %781 = vmatprep.subr.mxu0 0.0
    %782 = vmatpush2.msra.mxu0 0.0
    %783 = vmatprep.subr.mxu0 0.0
    %784 = vmatpush2.msra.mxu0 0.0
    %785 = vmatprep.subr.mxu0 0.0
    %786 = vmatpush2.msra.mxu0 0.0
    %787 = vmatprep.subr.mxu0 0.0
    %788 = vmatpush2.msra.mxu0 0.0
    %789 = vmatprep.mubr.f32.mxu0 0.0
    %790 = vmatmul.mubr.f32.gmra.mxu0 %v723
    %v791 = vpop.f32.mrf.mxu0
    %v792 = vadd.f32 0.0, %v791
    %v793 = vpop.f32.mrf.mxu0
    %794 = vdwg.mxu0
    %v795 = vadd.f32 %v720, %v792
    %v796 = vxor.u32 %v795, 2147483648
    %v797 = vmul.f32 %v796, 1.442695
    %v798 = vpow.pop %v797
    %v799 = vadd.f32 %v798, 1.0
    %v800 = vrcp.pop %v799
    %v801 = vmul.f32 1.0, %v800
    %v802 = vtanh.pop %v795
    %v803 = vmul.f32 %v801, %v617
    %805 = vrot.lane.b32.xlu0 %v802, 64
    %v806 = vpop.permute.xlu0 %805
    %v808 = vmul.f32 %v801, %v806
    %810 = vrot.lane.b32.xlu0 %v808, 32
    %v811 = vpop.permute.xlu0 %810
    %v813 = vadd.f32 %v803, %v811
    %v814 = vtanh.pop %v813
    %816 = vrot.lane.b32.xlu0 %v814, 64
    %v817 = vpop.permute.xlu0 %816
    %v819 = vmul.f32 %v801, %v817
    %v820 = vsel %vm619, 1, 0
    %821 = vset.pattern.permute.xlu0 0
    %822 = vperm.xlu0 %821, %v820
    %v823 = vpop.permute.xlu0 %822
    %vm824 = vcmp.eq.s32.totalorder %v823, 1
    %v825 = vsel %vm824, %v719, 0.0
    %827 = vrot.lane.b32.xlu0 %v825, 32
    %v828 = vpop.permute.xlu0 %827
    %830 = vst.msk [vmem:[#allocation4 + $0x8] sm:$0xff] %vm398, %v828
    %v831 = vsel %vm621, 1, 0
    %832 = vset.pattern.permute.xlu0 0
    %833 = vperm.xlu0 %832, %v831
    %v834 = vpop.permute.xlu0 %833
    %vm835 = vcmp.eq.s32.totalorder %v834, 1
    %v836 = vsel %vm835, %v819, 0.0
    %838 = vrot.lane.b32.xlu0 %v836, 64
    %v839 = vpop.permute.xlu0 %838
    %841 = vst.msk [vmem:[#allocation4 + $0x30] sm:$0xff] %vm614, %v839
    %v842 = vsel %vm824, %v719, %v598
    %v843 = vsel %vm824, %v713, %v616
    %v844 = vsel %vm835, %v819, %v609
    %v845 = vsel %vm835, %v813, %v617
    %v846 = vld [vmem:[%s1 + $0x10] sm:$0xff]
    %vm847 = vcmp.gt.f32.partialorder %v846, 0.5
    %v848 = vld [vmem:[%s1 + $0x28] sm:$0xff]
    %vm849 = vcmp.gt.f32.partialorder %v848, 0.5
    %v850 = vld [vmem:[#allocation2 + $0x10] sm:$0xff]
    %852 = vrot.lane.b32.xlu0 %v842, 32
    %v853 = vpop.permute.xlu0 %852
    %v854 = vsel %vm398, %v853, 0
    %856 = vmatprep.subr.mxu0 0.0
    %857 = vmatpush1.msra.mxu0 0.0
    %858 = vmatprep.subr.mxu0 0.0
    %859 = vmatpush1.msra.mxu0 0.0
    %860 = vmatprep.subr.mxu0 0.0
    %861 = vmatpush1.msra.mxu0 0.0
    %862 = vmatprep.subr.mxu0 0.0
    %863 = vmatpush1.msra.mxu0 0.0
    %864 = vmatprep.subr.mxu0 0.0
    %865 = vmatpush1.msra.mxu0 0.0
    %866 = vmatprep.subr.mxu0 0.0
    %867 = vmatpush1.msra.mxu0 0.0
    %868 = vmatprep.subr.mxu0 0.0
    %869 = vmatpush1.msra.mxu0 0.0
    %870 = vmatprep.subr.mxu0 0.0
    %871 = vmatpush1.msra.mxu0 0.0
    %872 = vmatprep.subr.mxu0 0.0
    %873 = vmatpush1.msra.mxu0 0.0
    %874 = vmatprep.subr.mxu0 0.0
    %875 = vmatpush1.msra.mxu0 0.0
    %876 = vmatprep.subr.mxu0 0.0
    %877 = vmatpush1.msra.mxu0 0.0
    %878 = vmatprep.subr.mxu0 0.0
    %879 = vmatpush1.msra.mxu0 0.0
    %880 = vmatprep.subr.mxu0 0.0
    %881 = vmatpush1.msra.mxu0 %v388
    %882 = vmatprep.subr.mxu0 0.0
    %883 = vmatpush1.msra.mxu0 %v387
    %884 = vmatprep.subr.mxu0 0.0
    %885 = vmatpush1.msra.mxu0 %v386
    %886 = vmatprep.subr.mxu0 0.0
    %887 = vmatpush1.msra.mxu0 %v385
    %888 = vmatprep.subr.mxu0 0.0
    %889 = vmatpush2.msra.mxu0 0.0
    %890 = vmatprep.subr.mxu0 0.0
    %891 = vmatpush2.msra.mxu0 0.0
    %892 = vmatprep.subr.mxu0 0.0
    %893 = vmatpush2.msra.mxu0 0.0
    %894 = vmatprep.subr.mxu0 0.0
    %895 = vmatpush2.msra.mxu0 0.0
    %896 = vmatprep.subr.mxu0 0.0
    %897 = vmatpush2.msra.mxu0 0.0
    %898 = vmatprep.subr.mxu0 0.0
    %899 = vmatpush2.msra.mxu0 0.0
    %900 = vmatprep.subr.mxu0 0.0
    %901 = vmatpush2.msra.mxu0 0.0
    %902 = vmatprep.subr.mxu0 0.0
    %903 = vmatpush2.msra.mxu0 0.0
    %904 = vmatprep.subr.mxu0 0.0
    %905 = vmatpush2.msra.mxu0 0.0
    %906 = vmatprep.subr.mxu0 0.0
    %907 = vmatpush2.msra.mxu0 0.0
    %908 = vmatprep.subr.mxu0 0.0
    %909 = vmatpush2.msra.mxu0 0.0
    %910 = vmatprep.subr.mxu0 0.0
    %911 = vmatpush2.msra.mxu0 0.0
    %912 = vmatprep.subr.mxu0 0.0
    %913 = vmatpush2.msra.mxu0 0.0
    %914 = vmatprep.subr.mxu0 0.0
    %915 = vmatpush2.msra.mxu0 0.0
    %916 = vmatprep.subr.mxu0 0.0
    %917 = vmatpush2.msra.mxu0 0.0
    %918 = vmatprep.subr.mxu0 0.0
    %919 = vmatpush2.msra.mxu0 0.0
    %920 = vmatprep.mubr.f32.mxu0 0.0
    %921 = vmatmul.mubr.f32.gmra.mxu0 %v854
    %v922 = vpop.f32.mrf.mxu0
    %v923 = vadd.f32 0.0, %v922
    %v924 = vpop.f32.mrf.mxu0
    %925 = vdwg.mxu0
    %v926 = vadd.f32 %v850, %v923
    %v927 = vxor.u32 %v926, 2147483648
    %v928 = vmul.f32 %v927, 1.442695
    %v929 = vpow.pop %v928
    %v930 = vadd.f32 %v929, 1.0
    %v931 = vrcp.pop %v930
    %v932 = vmul.f32 1.0, %v931
    %v933 = vtanh.pop %v926
    %v934 = vmul.f32 %v932, %v843
    %936 = vrot.lane.b32.xlu0 %v933, 64
    %v937 = vpop.permute.xlu0 %936
    %v939 = vmul.f32 %v932, %v937
    %941 = vrot.lane.b32.xlu0 %v939, 32
    %v942 = vpop.permute.xlu0 %941
    %v944 = vadd.f32 %v934, %v942
    %v945 = vtanh.pop %v944
    %947 = vrot.lane.b32.xlu0 %v945, 64
    %v948 = vpop.permute.xlu0 %947
    %v950 = vmul.f32 %v932, %v948
    %v951 = vld [vmem:[#allocation3 + $0x28] sm:$0xff]
    %953 = vrot.lane.b32.xlu0 %v844, 32
    %v954 = vpop.permute.xlu0 %953
    %v955 = vsel %vm398, %v954, 0
    %957 = vmatprep.subr.mxu0 0.0
    %958 = vmatpush1.msra.mxu0 0.0
    %959 = vmatprep.subr.mxu0 0.0
    %960 = vmatpush1.msra.mxu0 0.0
    %961 = vmatprep.subr.mxu0 0.0
    %962 = vmatpush1.msra.mxu0 0.0
    %963 = vmatprep.subr.mxu0 0.0
    %964 = vmatpush1.msra.mxu0 0.0
    %965 = vmatprep.subr.mxu0 0.0
    %966 = vmatpush1.msra.mxu0 0.0
    %967 = vmatprep.subr.mxu0 0.0
    %968 = vmatpush1.msra.mxu0 0.0
    %969 = vmatprep.subr.mxu0 0.0
    %970 = vmatpush1.msra.mxu0 0.0
    %971 = vmatprep.subr.mxu0 0.0
    %972 = vmatpush1.msra.mxu0 0.0
    %973 = vmatprep.subr.mxu0 0.0
    %974 = vmatpush1.msra.mxu0 0.0
    %975 = vmatprep.subr.mxu0 0.0
    %976 = vmatpush1.msra.mxu0 0.0
    %977 = vmatprep.subr.mxu0 0.0
    %978 = vmatpush1.msra.mxu0 0.0
    %979 = vmatprep.subr.mxu0 0.0
    %980 = vmatpush1.msra.mxu0 0.0
    %981 = vmatprep.subr.mxu0 0.0
    %982 = vmatpush1.msra.mxu0 %v392
    %983 = vmatprep.subr.mxu0 0.0
    %984 = vmatpush1.msra.mxu0 %v391
    %985 = vmatprep.subr.mxu0 0.0
    %986 = vmatpush1.msra.mxu0 %v390
    %987 = vmatprep.subr.mxu0 0.0
    %988 = vmatpush1.msra.mxu0 %v389
    %989 = vmatprep.subr.mxu0 0.0
    %990 = vmatpush2.msra.mxu0 0.0
    %991 = vmatprep.subr.mxu0 0.0
    %992 = vmatpush2.msra.mxu0 0.0
    %993 = vmatprep.subr.mxu0 0.0
    %994 = vmatpush2.msra.mxu0 0.0
    %995 = vmatprep.subr.mxu0 0.0
    %996 = vmatpush2.msra.mxu0 0.0
    %997 = vmatprep.subr.mxu0 0.0
    %998 = vmatpush2.msra.mxu0 0.0
    %999 = vmatprep.subr.mxu0 0.0
    %1000 = vmatpush2.msra.mxu0 0.0
    %1001 = vmatprep.subr.mxu0 0.0
    %1002 = vmatpush2.msra.mxu0 0.0
    %1003 = vmatprep.subr.mxu0 0.0
    %1004 = vmatpush2.msra.mxu0 0.0
    %1005 = vmatprep.subr.mxu0 0.0
    %1006 = vmatpush2.msra.mxu0 0.0
    %1007 = vmatprep.subr.mxu0 0.0
    %1008 = vmatpush2.msra.mxu0 0.0
    %1009 = vmatprep.subr.mxu0 0.0
    %1010 = vmatpush2.msra.mxu0 0.0
    %1011 = vmatprep.subr.mxu0 0.0
    %1012 = vmatpush2.msra.mxu0 0.0
    %1013 = vmatprep.subr.mxu0 0.0
    %1014 = vmatpush2.msra.mxu0 0.0
    %1015 = vmatprep.subr.mxu0 0.0
    %1016 = vmatpush2.msra.mxu0 0.0
    %1017 = vmatprep.subr.mxu0 0.0
    %1018 = vmatpush2.msra.mxu0 0.0
    %1019 = vmatprep.subr.mxu0 0.0
    %1020 = vmatpush2.msra.mxu0 0.0
    %1021 = vmatprep.mubr.f32.mxu0 0.0
    %1022 = vmatmul.mubr.f32.gmra.mxu0 %v955
    %v1023 = vpop.f32.mrf.mxu0
    %v1024 = vadd.f32 0.0, %v1023
    %v1025 = vpop.f32.mrf.mxu0
    %1026 = vdwg.mxu0
    %v1027 = vadd.f32 %v951, %v1024
    %v1028 = vxor.u32 %v1027, 2147483648
    %v1029 = vmul.f32 %v1028, 1.442695
    %v1030 = vpow.pop %v1029
    %v1031 = vadd.f32 %v1030, 1.0
    %v1032 = vrcp.pop %v1031
    %v1033 = vmul.f32 1.0, %v1032
    %v1034 = vtanh.pop %v1027
    %v1035 = vmul.f32 %v1033, %v845
    %1037 = vrot.lane.b32.xlu0 %v1034, 64
    %v1038 = vpop.permute.xlu0 %1037
    %v1040 = vmul.f32 %v1033, %v1038
    %1042 = vrot.lane.b32.xlu0 %v1040, 32
    %v1043 = vpop.permute.xlu0 %1042
    %v1045 = vadd.f32 %v1035, %v1043
    %v1046 = vtanh.pop %v1045
    %1048 = vrot.lane.b32.xlu0 %v1046, 64
    %v1049 = vpop.permute.xlu0 %1048
    %v1051 = vmul.f32 %v1033, %v1049
    %v1052 = vsel %vm847, 1, 0
    %1053 = vset.pattern.permute.xlu0 0
    %1054 = vperm.xlu0 %1053, %v1052
    %v1055 = vpop.permute.xlu0 %1054
    %vm1056 = vcmp.eq.s32.totalorder %v1055, 1
    %v1057 = vsel %vm1056, %v950, 0.0
    %1059 = vrot.lane.b32.xlu0 %v1057, 32
    %v1060 = vpop.permute.xlu0 %1059
    %1062 = vst.msk [vmem:[#allocation4 + $0x10] sm:$0xff] %vm398, %v1060
    %v1063 = vsel %vm849, 1, 0
    %1064 = vset.pattern.permute.xlu0 0
    %1065 = vperm.xlu0 %1064, %v1063
    %v1066 = vpop.permute.xlu0 %1065
    %vm1067 = vcmp.eq.s32.totalorder %v1066, 1
    %v1068 = vsel %vm1067, %v1051, 0.0
    %1070 = vrot.lane.b32.xlu0 %v1068, 64
    %v1071 = vpop.permute.xlu0 %1070
    %1073 = vst.msk [vmem:[#allocation4 + $0x28] sm:$0xff] %vm614, %v1071
    %v1074 = vsel %vm1056, %v950, %v842
    %v1075 = vsel %vm1056, %v944, %v843
    %v1076 = vsel %vm1067, %v1051, %v844
    %v1077 = vsel %vm1067, %v1045, %v845
    %v1078 = vld [vmem:[%s1 + $0x18] sm:$0xff]
    %vm1079 = vcmp.gt.f32.partialorder %v1078, 0.5
    %v1080 = vld [vmem:[%s1 + $0x20] sm:$0xff]
    %vm1081 = vcmp.gt.f32.partialorder %v1080, 0.5
    %v1082 = vld [vmem:[#allocation2 + $0x18] sm:$0xff]
    %1084 = vrot.lane.b32.xlu0 %v1074, 32
    %v1085 = vpop.permute.xlu0 %1084
    %v1086 = vsel %vm398, %v1085, 0
    %1088 = vmatprep.subr.mxu0 0.0
    %1089 = vmatpush1.msra.mxu0 0.0
    %1090 = vmatprep.subr.mxu0 0.0
    %1091 = vmatpush1.msra.mxu0 0.0
    %1092 = vmatprep.subr.mxu0 0.0
    %1093 = vmatpush1.msra.mxu0 0.0
    %1094 = vmatprep.subr.mxu0 0.0
    %1095 = vmatpush1.msra.mxu0 0.0
    %1096 = vmatprep.subr.mxu0 0.0
    %1097 = vmatpush1.msra.mxu0 0.0
    %1098 = vmatprep.subr.mxu0 0.0
    %1099 = vmatpush1.msra.mxu0 0.0
    %1100 = vmatprep.subr.mxu0 0.0
    %1101 = vmatpush1.msra.mxu0 0.0
    %1102 = vmatprep.subr.mxu0 0.0
    %1103 = vmatpush1.msra.mxu0 0.0
    %1104 = vmatprep.subr.mxu0 0.0
    %1105 = vmatpush1.msra.mxu0 0.0
    %1106 = vmatprep.subr.mxu0 0.0
    %1107 = vmatpush1.msra.mxu0 0.0
    %1108 = vmatprep.subr.mxu0 0.0
    %1109 = vmatpush1.msra.mxu0 0.0
    %1110 = vmatprep.subr.mxu0 0.0
    %1111 = vmatpush1.msra.mxu0 0.0
    %1112 = vmatprep.subr.mxu0 0.0
    %1113 = vmatpush1.msra.mxu0 %v388
    %1114 = vmatprep.subr.mxu0 0.0
    %1115 = vmatpush1.msra.mxu0 %v387
    %1116 = vmatprep.subr.mxu0 0.0
    %1117 = vmatpush1.msra.mxu0 %v386
    %1118 = vmatprep.subr.mxu0 0.0
    %1119 = vmatpush1.msra.mxu0 %v385
    %1120 = vmatprep.subr.mxu0 0.0
    %1121 = vmatpush2.msra.mxu0 0.0
    %1122 = vmatprep.subr.mxu0 0.0
    %1123 = vmatpush2.msra.mxu0 0.0
    %1124 = vmatprep.subr.mxu0 0.0
    %1125 = vmatpush2.msra.mxu0 0.0
    %1126 = vmatprep.subr.mxu0 0.0
    %1127 = vmatpush2.msra.mxu0 0.0
    %1128 = vmatprep.subr.mxu0 0.0
    %1129 = vmatpush2.msra.mxu0 0.0
    %1130 = vmatprep.subr.mxu0 0.0
    %1131 = vmatpush2.msra.mxu0 0.0
    %1132 = vmatprep.subr.mxu0 0.0
    %1133 = vmatpush2.msra.mxu0 0.0
    %1134 = vmatprep.subr.mxu0 0.0
    %1135 = vmatpush2.msra.mxu0 0.0
    %1136 = vmatprep.subr.mxu0 0.0
    %1137 = vmatpush2.msra.mxu0 0.0
    %1138 = vmatprep.subr.mxu0 0.0
    %1139 = vmatpush2.msra.mxu0 0.0
    %1140 = vmatprep.subr.mxu0 0.0
    %1141 = vmatpush2.msra.mxu0 0.0
    %1142 = vmatprep.subr.mxu0 0.0
    %1143 = vmatpush2.msra.mxu0 0.0
    %1144 = vmatprep.subr.mxu0 0.0
    %1145 = vmatpush2.msra.mxu0 0.0
    %1146 = vmatprep.subr.mxu0 0.0
    %1147 = vmatpush2.msra.mxu0 0.0
    %1148 = vmatprep.subr.mxu0 0.0
    %1149 = vmatpush2.msra.mxu0 0.0
    %1150 = vmatprep.subr.mxu0 0.0
    %1151 = vmatpush2.msra.mxu0 0.0
    %1152 = vmatprep.mubr.f32.mxu0 0.0
    %1153 = vmatmul.mubr.f32.gmra.mxu0 %v1086
    %v1154 = vpop.f32.mrf.mxu0
    %v1155 = vadd.f32 0.0, %v1154
    %v1156 = vpop.f32.mrf.mxu0
    %1157 = vdwg.mxu0
    %v1158 = vadd.f32 %v1082, %v1155
    %v1159 = vxor.u32 %v1158, 2147483648
    %v1160 = vmul.f32 %v1159, 1.442695
    %v1161 = vpow.pop %v1160
    %v1162 = vadd.f32 %v1161, 1.0
    %v1163 = vrcp.pop %v1162
    %v1164 = vmul.f32 1.0, %v1163
    %v1165 = vtanh.pop %v1158
    %v1166 = vmul.f32 %v1164, %v1075
    %1168 = vrot.lane.b32.xlu0 %v1165, 64
    %v1169 = vpop.permute.xlu0 %1168
    %v1171 = vmul.f32 %v1164, %v1169
    %1173 = vrot.lane.b32.xlu0 %v1171, 32
    %v1174 = vpop.permute.xlu0 %1173
    %v1176 = vadd.f32 %v1166, %v1174
    %v1177 = vtanh.pop %v1176
    %1179 = vrot.lane.b32.xlu0 %v1177, 64
    %v1180 = vpop.permute.xlu0 %1179
    %v1182 = vmul.f32 %v1164, %v1180
    %v1183 = vld [vmem:[#allocation3 + $0x20] sm:$0xff]
    %1185 = vrot.lane.b32.xlu0 %v1076, 32
    %v1186 = vpop.permute.xlu0 %1185
    %v1187 = vsel %vm398, %v1186, 0
    %1189 = vmatprep.subr.mxu0 0.0
    %1190 = vmatpush1.msra.mxu0 0.0
    %1191 = vmatprep.subr.mxu0 0.0
    %1192 = vmatpush1.msra.mxu0 0.0
    %1193 = vmatprep.subr.mxu0 0.0
    %1194 = vmatpush1.msra.mxu0 0.0
    %1195 = vmatprep.subr.mxu0 0.0
    %1196 = vmatpush1.msra.mxu0 0.0
    %1197 = vmatprep.subr.mxu0 0.0
    %1198 = vmatpush1.msra.mxu0 0.0
    %1199 = vmatprep.subr.mxu0 0.0
    %1200 = vmatpush1.msra.mxu0 0.0
    %1201 = vmatprep.subr.mxu0 0.0
    %1202 = vmatpush1.msra.mxu0 0.0
    %1203 = vmatprep.subr.mxu0 0.0
    %1204 = vmatpush1.msra.mxu0 0.0
    %1205 = vmatprep.subr.mxu0 0.0
    %1206 = vmatpush1.msra.mxu0 0.0
    %1207 = vmatprep.subr.mxu0 0.0
    %1208 = vmatpush1.msra.mxu0 0.0
    %1209 = vmatprep.subr.mxu0 0.0
    %1210 = vmatpush1.msra.mxu0 0.0
    %1211 = vmatprep.subr.mxu0 0.0
    %1212 = vmatpush1.msra.mxu0 0.0
    %1213 = vmatprep.subr.mxu0 0.0
    %1214 = vmatpush1.msra.mxu0 %v392
    %1215 = vmatprep.subr.mxu0 0.0
    %1216 = vmatpush1.msra.mxu0 %v391
    %1217 = vmatprep.subr.mxu0 0.0
    %1218 = vmatpush1.msra.mxu0 %v390
    %1219 = vmatprep.subr.mxu0 0.0
    %1220 = vmatpush1.msra.mxu0 %v389
    %1221 = vmatprep.subr.mxu0 0.0
    %1222 = vmatpush2.msra.mxu0 0.0
    %1223 = vmatprep.subr.mxu0 0.0
    %1224 = vmatpush2.msra.mxu0 0.0
    %1225 = vmatprep.subr.mxu0 0.0
    %1226 = vmatpush2.msra.mxu0 0.0
    %1227 = vmatprep.subr.mxu0 0.0
    %1228 = vmatpush2.msra.mxu0 0.0
    %1229 = vmatprep.subr.mxu0 0.0
    %1230 = vmatpush2.msra.mxu0 0.0
    %1231 = vmatprep.subr.mxu0 0.0
    %1232 = vmatpush2.msra.mxu0 0.0
    %1233 = vmatprep.subr.mxu0 0.0
    %1234 = vmatpush2.msra.mxu0 0.0
    %1235 = vmatprep.subr.mxu0 0.0
    %1236 = vmatpush2.msra.mxu0 0.0
    %1237 = vmatprep.subr.mxu0 0.0
    %1238 = vmatpush2.msra.mxu0 0.0
    %1239 = vmatprep.subr.mxu0 0.0
    %1240 = vmatpush2.msra.mxu0 0.0
    %1241 = vmatprep.subr.mxu0 0.0
    %1242 = vmatpush2.msra.mxu0 0.0
    %1243 = vmatprep.subr.mxu0 0.0
    %1244 = vmatpush2.msra.mxu0 0.0
    %1245 = vmatprep.subr.mxu0 0.0
    %1246 = vmatpush2.msra.mxu0 0.0
    %1247 = vmatprep.subr.mxu0 0.0
    %1248 = vmatpush2.msra.mxu0 0.0
    %1249 = vmatprep.subr.mxu0 0.0
    %1250 = vmatpush2.msra.mxu0 0.0
    %1251 = vmatprep.subr.mxu0 0.0
    %1252 = vmatpush2.msra.mxu0 0.0
    %1253 = vmatprep.mubr.f32.mxu0 0.0
    %1254 = vmatmul.mubr.f32.gmra.mxu0 %v1187
    %v1255 = vpop.f32.mrf.mxu0
    %v1256 = vadd.f32 0.0, %v1255
    %v1257 = vpop.f32.mrf.mxu0
    %1258 = vdwg.mxu0
    %v1259 = vadd.f32 %v1183, %v1256
    %v1260 = vxor.u32 %v1259, 2147483648
    %v1261 = vmul.f32 %v1260, 1.442695
    %v1262 = vpow.pop %v1261
    %v1263 = vadd.f32 %v1262, 1.0
    %v1264 = vrcp.pop %v1263
    %v1265 = vmul.f32 1.0, %v1264
    %v1266 = vtanh.pop %v1259
    %v1267 = vmul.f32 %v1265, %v1077
    %1269 = vrot.lane.b32.xlu0 %v1266, 64
    %v1270 = vpop.permute.xlu0 %1269
    %v1272 = vmul.f32 %v1265, %v1270
    %1274 = vrot.lane.b32.xlu0 %v1272, 32
    %v1275 = vpop.permute.xlu0 %1274
    %v1277 = vadd.f32 %v1267, %v1275
    %v1278 = vtanh.pop %v1277
    %1280 = vrot.lane.b32.xlu0 %v1278, 64
    %v1281 = vpop.permute.xlu0 %1280
    %v1283 = vmul.f32 %v1265, %v1281
    %v1284 = vsel %vm1079, 1, 0
    %1285 = vset.pattern.permute.xlu0 0
    %1286 = vperm.xlu0 %1285, %v1284
    %v1287 = vpop.permute.xlu0 %1286
    %vm1288 = vcmp.eq.s32.totalorder %v1287, 1
    %v1289 = vsel %vm1288, %v1182, 0.0
    %1291 = vrot.lane.b32.xlu0 %v1289, 32
    %v1292 = vpop.permute.xlu0 %1291
    %1294 = vst.msk [vmem:[#allocation4 + $0x18] sm:$0xff] %vm398, %v1292
    %v1295 = vsel %vm1081, 1, 0
    %1296 = vset.pattern.permute.xlu0 0
    %1297 = vperm.xlu0 %1296, %v1295
    %v1298 = vpop.permute.xlu0 %1297
    %vm1299 = vcmp.eq.s32.totalorder %v1298, 1
    %v1300 = vsel %vm1299, %v1283, 0.0
    %1302 = vrot.lane.b32.xlu0 %v1300, 64
    %v1303 = vpop.permute.xlu0 %1302
    %1305 = vst.msk [vmem:[#allocation4 + $0x20] sm:$0xff] %vm614, %v1303
    %v1306 = vsel %vm1288, %v1182, %v1074
    %v1307 = vsel %vm1288, %v1176, %v1075
    %v1308 = vsel %vm1299, %v1283, %v1076
    %v1309 = vsel %vm1299, %v1277, %v1077
    %v1310 = vld [vmem:[%s1 + $0x20] sm:$0xff]
    %vm1311 = vcmp.gt.f32.partialorder %v1310, 0.5
    %v1312 = vld [vmem:[%s1 + $0x18] sm:$0xff]
    %vm1313 = vcmp.gt.f32.partialorder %v1312, 0.5
    %v1314 = vld [vmem:[#allocation2 + $0x20] sm:$0xff]
    %1316 = vrot.lane.b32.xlu0 %v1306, 32
    %v1317 = vpop.permute.xlu0 %1316
    %v1318 = vsel %vm398, %v1317, 0
    %1320 = vmatprep.subr.mxu0 0.0
    %1321 = vmatpush1.msra.mxu0 0.0
    %1322 = vmatprep.subr.mxu0 0.0
    %1323 = vmatpush1.msra.mxu0 0.0
    %1324 = vmatprep.subr.mxu0 0.0
    %1325 = vmatpush1.msra.mxu0 0.0
    %1326 = vmatprep.subr.mxu0 0.0
    %1327 = vmatpush1.msra.mxu0 0.0
    %1328 = vmatprep.subr.mxu0 0.0
    %1329 = vmatpush1.msra.mxu0 0.0
    %1330 = vmatprep.subr.mxu0 0.0
    %1331 = vmatpush1.msra.mxu0 0.0
    %1332 = vmatprep.subr.mxu0 0.0
    %1333 = vmatpush1.msra.mxu0 0.0
    %1334 = vmatprep.subr.mxu0 0.0
    %1335 = vmatpush1.msra.mxu0 0.0
    %1336 = vmatprep.subr.mxu0 0.0
    %1337 = vmatpush1.msra.mxu0 0.0
    %1338 = vmatprep.subr.mxu0 0.0
    %1339 = vmatpush1.msra.mxu0 0.0
    %1340 = vmatprep.subr.mxu0 0.0
    %1341 = vmatpush1.msra.mxu0 0.0
    %1342 = vmatprep.subr.mxu0 0.0
    %1343 = vmatpush1.msra.mxu0 0.0
    %1344 = vmatprep.subr.mxu0 0.0
    %1345 = vmatpush1.msra.mxu0 %v388
    %1346 = vmatprep.subr.mxu0 0.0
    %1347 = vmatpush1.msra.mxu0 %v387
    %1348 = vmatprep.subr.mxu0 0.0
    %1349 = vmatpush1.msra.mxu0 %v386
    %1350 = vmatprep.subr.mxu0 0.0
    %1351 = vmatpush1.msra.mxu0 %v385
    %1352 = vmatprep.subr.mxu0 0.0
    %1353 = vmatpush2.msra.mxu0 0.0
    %1354 = vmatprep.subr.mxu0 0.0
    %1355 = vmatpush2.msra.mxu0 0.0
    %1356 = vmatprep.subr.mxu0 0.0
    %1357 = vmatpush2.msra.mxu0 0.0
    %1358 = vmatprep.subr.mxu0 0.0
    %1359 = vmatpush2.msra.mxu0 0.0
    %1360 = vmatprep.subr.mxu0 0.0
    %1361 = vmatpush2.msra.mxu0 0.0
    %1362 = vmatprep.subr.mxu0 0.0
    %1363 = vmatpush2.msra.mxu0 0.0
    %1364 = vmatprep.subr.mxu0 0.0
    %1365 = vmatpush2.msra.mxu0 0.0
    %1366 = vmatprep.subr.mxu0 0.0
    %1367 = vmatpush2.msra.mxu0 0.0
    %1368 = vmatprep.subr.mxu0 0.0
    %1369 = vmatpush2.msra.mxu0 0.0
    %1370 = vmatprep.subr.mxu0 0.0
    %1371 = vmatpush2.msra.mxu0 0.0
    %1372 = vmatprep.subr.mxu0 0.0
    %1373 = vmatpush2.msra.mxu0 0.0
    %1374 = vmatprep.subr.mxu0 0.0
    %1375 = vmatpush2.msra.mxu0 0.0
    %1376 = vmatprep.subr.mxu0 0.0
    %1377 = vmatpush2.msra.mxu0 0.0
    %1378 = vmatprep.subr.mxu0 0.0
    %1379 = vmatpush2.msra.mxu0 0.0
    %1380 = vmatprep.subr.mxu0 0.0
    %1381 = vmatpush2.msra.mxu0 0.0
    %1382 = vmatprep.subr.mxu0 0.0
    %1383 = vmatpush2.msra.mxu0 0.0
    %1384 = vmatprep.mubr.f32.mxu0 0.0
    %1385 = vmatmul.mubr.f32.gmra.mxu0 %v1318
    %v1386 = vpop.f32.mrf.mxu0
    %v1387 = vadd.f32 0.0, %v1386
    %v1388 = vpop.f32.mrf.mxu0
    %1389 = vdwg.mxu0
    %v1390 = vadd.f32 %v1314, %v1387
    %v1391 = vxor.u32 %v1390, 2147483648
    %v1392 = vmul.f32 %v1391, 1.442695
    %v1393 = vpow.pop %v1392
    %v1394 = vadd.f32 %v1393, 1.0
    %v1395 = vrcp.pop %v1394
    %v1396 = vmul.f32 1.0, %v1395
    %v1397 = vtanh.pop %v1390
    %v1398 = vmul.f32 %v1396, %v1307
    %1400 = vrot.lane.b32.xlu0 %v1397, 64
    %v1401 = vpop.permute.xlu0 %1400
    %v1403 = vmul.f32 %v1396, %v1401
    %1405 = vrot.lane.b32.xlu0 %v1403, 32
    %v1406 = vpop.permute.xlu0 %1405
    %v1408 = vadd.f32 %v1398, %v1406
    %v1409 = vtanh.pop %v1408
    %1411 = vrot.lane.b32.xlu0 %v1409, 64
    %v1412 = vpop.permute.xlu0 %1411
    %v1414 = vmul.f32 %v1396, %v1412
    %v1415 = vld [vmem:[#allocation3 + $0x18] sm:$0xff]
    %1417 = vrot.lane.b32.xlu0 %v1308, 32
    %v1418 = vpop.permute.xlu0 %1417
    %v1419 = vsel %vm398, %v1418, 0
    %1421 = vmatprep.subr.mxu0 0.0
    %1422 = vmatpush1.msra.mxu0 0.0
    %1423 = vmatprep.subr.mxu0 0.0
    %1424 = vmatpush1.msra.mxu0 0.0
    %1425 = vmatprep.subr.mxu0 0.0
    %1426 = vmatpush1.msra.mxu0 0.0
    %1427 = vmatprep.subr.mxu0 0.0
    %1428 = vmatpush1.msra.mxu0 0.0
    %1429 = vmatprep.subr.mxu0 0.0
    %1430 = vmatpush1.msra.mxu0 0.0
    %1431 = vmatprep.subr.mxu0 0.0
    %1432 = vmatpush1.msra.mxu0 0.0
    %1433 = vmatprep.subr.mxu0 0.0
    %1434 = vmatpush1.msra.mxu0 0.0
    %1435 = vmatprep.subr.mxu0 0.0
    %1436 = vmatpush1.msra.mxu0 0.0
    %1437 = vmatprep.subr.mxu0 0.0
    %1438 = vmatpush1.msra.mxu0 0.0
    %1439 = vmatprep.subr.mxu0 0.0
    %1440 = vmatpush1.msra.mxu0 0.0
    %1441 = vmatprep.subr.mxu0 0.0
    %1442 = vmatpush1.msra.mxu0 0.0
    %1443 = vmatprep.subr.mxu0 0.0
    %1444 = vmatpush1.msra.mxu0 0.0
    %1445 = vmatprep.subr.mxu0 0.0
    %1446 = vmatpush1.msra.mxu0 %v392
    %1447 = vmatprep.subr.mxu0 0.0
    %1448 = vmatpush1.msra.mxu0 %v391
    %1449 = vmatprep.subr.mxu0 0.0
    %1450 = vmatpush1.msra.mxu0 %v390
    %1451 = vmatprep.subr.mxu0 0.0
    %1452 = vmatpush1.msra.mxu0 %v389
    %1453 = vmatprep.subr.mxu0 0.0
    %1454 = vmatpush2.msra.mxu0 0.0
    %1455 = vmatprep.subr.mxu0 0.0
    %1456 = vmatpush2.msra.mxu0 0.0
    %1457 = vmatprep.subr.mxu0 0.0
    %1458 = vmatpush2.msra.mxu0 0.0
    %1459 = vmatprep.subr.mxu0 0.0
    %1460 = vmatpush2.msra.mxu0 0.0
    %1461 = vmatprep.subr.mxu0 0.0
    %1462 = vmatpush2.msra.mxu0 0.0
    %1463 = vmatprep.subr.mxu0 0.0
    %1464 = vmatpush2.msra.mxu0 0.0
    %1465 = vmatprep.subr.mxu0 0.0
    %1466 = vmatpush2.msra.mxu0 0.0
    %1467 = vmatprep.subr.mxu0 0.0
    %1468 = vmatpush2.msra.mxu0 0.0
    %1469 = vmatprep.subr.mxu0 0.0
    %1470 = vmatpush2.msra.mxu0 0.0
    %1471 = vmatprep.subr.mxu0 0.0
    %1472 = vmatpush2.msra.mxu0 0.0
    %1473 = vmatprep.subr.mxu0 0.0
    %1474 = vmatpush2.msra.mxu0 0.0
    %1475 = vmatprep.subr.mxu0 0.0
    %1476 = vmatpush2.msra.mxu0 0.0
    %1477 = vmatprep.subr.mxu0 0.0
    %1478 = vmatpush2.msra.mxu0 0.0
    %1479 = vmatprep.subr.mxu0 0.0
    %1480 = vmatpush2.msra.mxu0 0.0
    %1481 = vmatprep.subr.mxu0 0.0
    %1482 = vmatpush2.msra.mxu0 0.0
    %1483 = vmatprep.subr.mxu0 0.0
    %1484 = vmatpush2.msra.mxu0 0.0
    %1485 = vmatprep.mubr.f32.mxu0 0.0
    %1486 = vmatmul.mubr.f32.gmra.mxu0 %v1419
    %v1487 = vpop.f32.mrf.mxu0
    %v1488 = vadd.f32 0.0, %v1487
    %v1489 = vpop.f32.mrf.mxu0
    %1490 = vdwg.mxu0
    %v1491 = vadd.f32 %v1415, %v1488
    %v1492 = vxor.u32 %v1491, 2147483648
    %v1493 = vmul.f32 %v1492, 1.442695
    %v1494 = vpow.pop %v1493
    %v1495 = vadd.f32 %v1494, 1.0
    %v1496 = vrcp.pop %v1495
    %v1497 = vmul.f32 1.0, %v1496
    %v1498 = vtanh.pop %v1491
    %v1499 = vmul.f32 %v1497, %v1309
    %1501 = vrot.lane.b32.xlu0 %v1498, 64
    %v1502 = vpop.permute.xlu0 %1501
    %v1504 = vmul.f32 %v1497, %v1502
    %1506 = vrot.lane.b32.xlu0 %v1504, 32
    %v1507 = vpop.permute.xlu0 %1506
    %v1509 = vadd.f32 %v1499, %v1507
    %v1510 = vtanh.pop %v1509
    %1512 = vrot.lane.b32.xlu0 %v1510, 64
    %v1513 = vpop.permute.xlu0 %1512
    %v1515 = vmul.f32 %v1497, %v1513
    %v1516 = vsel %vm1311, 1, 0
    %1517 = vset.pattern.permute.xlu0 0
    %1518 = vperm.xlu0 %1517, %v1516
    %v1519 = vpop.permute.xlu0 %1518
    %vm1520 = vcmp.eq.s32.totalorder %v1519, 1
    %v1521 = vsel %vm1520, %v1414, 0.0
    %1523 = vrot.lane.b32.xlu0 %v1521, 32
    %v1524 = vpop.permute.xlu0 %1523
    %1526 = vst.msk [vmem:[#allocation4 + $0x20] sm:$0xff] %vm398, %v1524
    %v1527 = vsel %vm1313, 1, 0
    %1528 = vset.pattern.permute.xlu0 0
    %1529 = vperm.xlu0 %1528, %v1527
    %v1530 = vpop.permute.xlu0 %1529
    %vm1531 = vcmp.eq.s32.totalorder %v1530, 1
    %v1532 = vsel %vm1531, %v1515, 0.0
    %1534 = vrot.lane.b32.xlu0 %v1532, 64
    %v1535 = vpop.permute.xlu0 %1534
    %1537 = vst.msk [vmem:[#allocation4 + $0x18] sm:$0xff] %vm614, %v1535
    %v1538 = vsel %vm1520, %v1414, %v1306
    %v1539 = vsel %vm1520, %v1408, %v1307
    %v1540 = vsel %vm1531, %v1515, %v1308
    %v1541 = vsel %vm1531, %v1509, %v1309
    %v1542 = vld [vmem:[%s1 + $0x28] sm:$0xff]
    %vm1543 = vcmp.gt.f32.partialorder %v1542, 0.5
    %v1544 = vld [vmem:[%s1 + $0x10] sm:$0xff]
    %vm1545 = vcmp.gt.f32.partialorder %v1544, 0.5
    %v1546 = vld [vmem:[#allocation2 + $0x28] sm:$0xff]
    %1548 = vrot.lane.b32.xlu0 %v1538, 32
    %v1549 = vpop.permute.xlu0 %1548
    %v1550 = vsel %vm398, %v1549, 0
    %1552 = vmatprep.subr.mxu0 0.0
    %1553 = vmatpush1.msra.mxu0 0.0
    %1554 = vmatprep.subr.mxu0 0.0
    %1555 = vmatpush1.msra.mxu0 0.0
    %1556 = vmatprep.subr.mxu0 0.0
    %1557 = vmatpush1.msra.mxu0 0.0
    %1558 = vmatprep.subr.mxu0 0.0
    %1559 = vmatpush1.msra.mxu0 0.0
    %1560 = vmatprep.subr.mxu0 0.0
    %1561 = vmatpush1.msra.mxu0 0.0
    %1562 = vmatprep.subr.mxu0 0.0
    %1563 = vmatpush1.msra.mxu0 0.0
    %1564 = vmatprep.subr.mxu0 0.0
    %1565 = vmatpush1.msra.mxu0 0.0
    %1566 = vmatprep.subr.mxu0 0.0
    %1567 = vmatpush1.msra.mxu0 0.0
    %1568 = vmatprep.subr.mxu0 0.0
    %1569 = vmatpush1.msra.mxu0 0.0
    %1570 = vmatprep.subr.mxu0 0.0
    %1571 = vmatpush1.msra.mxu0 0.0
    %1572 = vmatprep.subr.mxu0 0.0
    %1573 = vmatpush1.msra.mxu0 0.0
    %1574 = vmatprep.subr.mxu0 0.0
    %1575 = vmatpush1.msra.mxu0 0.0
    %1576 = vmatprep.subr.mxu0 0.0
    %1577 = vmatpush1.msra.mxu0 %v388
    %1578 = vmatprep.subr.mxu0 0.0
    %1579 = vmatpush1.msra.mxu0 %v387
    %1580 = vmatprep.subr.mxu0 0.0
    %1581 = vmatpush1.msra.mxu0 %v386
    %1582 = vmatprep.subr.mxu0 0.0
    %1583 = vmatpush1.msra.mxu0 %v385
    %1584 = vmatprep.subr.mxu0 0.0
    %1585 = vmatpush2.msra.mxu0 0.0
    %1586 = vmatprep.subr.mxu0 0.0
    %1587 = vmatpush2.msra.mxu0 0.0
    %1588 = vmatprep.subr.mxu0 0.0
    %1589 = vmatpush2.msra.mxu0 0.0
    %1590 = vmatprep.subr.mxu0 0.0
    %1591 = vmatpush2.msra.mxu0 0.0
    %1592 = vmatprep.subr.mxu0 0.0
    %1593 = vmatpush2.msra.mxu0 0.0
    %1594 = vmatprep.subr.mxu0 0.0
    %1595 = vmatpush2.msra.mxu0 0.0
    %1596 = vmatprep.subr.mxu0 0.0
    %1597 = vmatpush2.msra.mxu0 0.0
    %1598 = vmatprep.subr.mxu0 0.0
    %1599 = vmatpush2.msra.mxu0 0.0
    %1600 = vmatprep.subr.mxu0 0.0
    %1601 = vmatpush2.msra.mxu0 0.0
    %1602 = vmatprep.subr.mxu0 0.0
    %1603 = vmatpush2.msra.mxu0 0.0
    %1604 = vmatprep.subr.mxu0 0.0
    %1605 = vmatpush2.msra.mxu0 0.0
    %1606 = vmatprep.subr.mxu0 0.0
    %1607 = vmatpush2.msra.mxu0 0.0
    %1608 = vmatprep.subr.mxu0 0.0
    %1609 = vmatpush2.msra.mxu0 0.0
    %1610 = vmatprep.subr.mxu0 0.0
    %1611 = vmatpush2.msra.mxu0 0.0
    %1612 = vmatprep.subr.mxu0 0.0
    %1613 = vmatpush2.msra.mxu0 0.0
    %1614 = vmatprep.subr.mxu0 0.0
    %1615 = vmatpush2.msra.mxu0 0.0
    %1616 = vmatprep.mubr.f32.mxu0 0.0
    %1617 = vmatmul.mubr.f32.gmra.mxu0 %v1550
    %v1618 = vpop.f32.mrf.mxu0
    %v1619 = vadd.f32 0.0, %v1618
    %v1620 = vpop.f32.mrf.mxu0
    %1621 = vdwg.mxu0
    %v1622 = vadd.f32 %v1546, %v1619
    %v1623 = vxor.u32 %v1622, 2147483648
    %v1624 = vmul.f32 %v1623, 1.442695
    %v1625 = vpow.pop %v1624
    %v1626 = vadd.f32 %v1625, 1.0
    %v1627 = vrcp.pop %v1626
    %v1628 = vmul.f32 1.0, %v1627
    %v1629 = vtanh.pop %v1622
    %v1630 = vmul.f32 %v1628, %v1539
    %1632 = vrot.lane.b32.xlu0 %v1629, 64
    %v1633 = vpop.permute.xlu0 %1632
    %v1635 = vmul.f32 %v1628, %v1633
    %1637 = vrot.lane.b32.xlu0 %v1635, 32
    %v1638 = vpop.permute.xlu0 %1637
    %v1640 = vadd.f32 %v1630, %v1638
    %v1641 = vtanh.pop %v1640
    %1643 = vrot.lane.b32.xlu0 %v1641, 64
    %v1644 = vpop.permute.xlu0 %1643
    %v1646 = vmul.f32 %v1628, %v1644
    %v1647 = vld [vmem:[#allocation3 + $0x10] sm:$0xff]
    %1649 = vrot.lane.b32.xlu0 %v1540, 32
    %v1650 = vpop.permute.xlu0 %1649
    %v1651 = vsel %vm398, %v1650, 0
    %1653 = vmatprep.subr.mxu0 0.0
    %1654 = vmatpush1.msra.mxu0 0.0
    %1655 = vmatprep.subr.mxu0 0.0
    %1656 = vmatpush1.msra.mxu0 0.0
    %1657 = vmatprep.subr.mxu0 0.0
    %1658 = vmatpush1.msra.mxu0 0.0
    %1659 = vmatprep.subr.mxu0 0.0
    %1660 = vmatpush1.msra.mxu0 0.0
    %1661 = vmatprep.subr.mxu0 0.0
    %1662 = vmatpush1.msra.mxu0 0.0
    %1663 = vmatprep.subr.mxu0 0.0
    %1664 = vmatpush1.msra.mxu0 0.0
    %1665 = vmatprep.subr.mxu0 0.0
    %1666 = vmatpush1.msra.mxu0 0.0
    %1667 = vmatprep.subr.mxu0 0.0
    %1668 = vmatpush1.msra.mxu0 0.0
    %1669 = vmatprep.subr.mxu0 0.0
    %1670 = vmatpush1.msra.mxu0 0.0
    %1671 = vmatprep.subr.mxu0 0.0
    %1672 = vmatpush1.msra.mxu0 0.0
    %1673 = vmatprep.subr.mxu0 0.0
    %1674 = vmatpush1.msra.mxu0 0.0
    %1675 = vmatprep.subr.mxu0 0.0
    %1676 = vmatpush1.msra.mxu0 0.0
    %1677 = vmatprep.subr.mxu0 0.0
    %1678 = vmatpush1.msra.mxu0 %v392
    %1679 = vmatprep.subr.mxu0 0.0
    %1680 = vmatpush1.msra.mxu0 %v391
    %1681 = vmatprep.subr.mxu0 0.0
    %1682 = vmatpush1.msra.mxu0 %v390
    %1683 = vmatprep.subr.mxu0 0.0
    %1684 = vmatpush1.msra.mxu0 %v389
    %1685 = vmatprep.subr.mxu0 0.0
    %1686 = vmatpush2.msra.mxu0 0.0
    %1687 = vmatprep.subr.mxu0 0.0
    %1688 = vmatpush2.msra.mxu0 0.0
    %1689 = vmatprep.subr.mxu0 0.0
    %1690 = vmatpush2.msra.mxu0 0.0
    %1691 = vmatprep.subr.mxu0 0.0
    %1692 = vmatpush2.msra.mxu0 0.0
    %1693 = vmatprep.subr.mxu0 0.0
    %1694 = vmatpush2.msra.mxu0 0.0
    %1695 = vmatprep.subr.mxu0 0.0
    %1696 = vmatpush2.msra.mxu0 0.0
    %1697 = vmatprep.subr.mxu0 0.0
    %1698 = vmatpush2.msra.mxu0 0.0
    %1699 = vmatprep.subr.mxu0 0.0
    %1700 = vmatpush2.msra.mxu0 0.0
    %1701 = vmatprep.subr.mxu0 0.0
    %1702 = vmatpush2.msra.mxu0 0.0
    %1703 = vmatprep.subr.mxu0 0.0
    %1704 = vmatpush2.msra.mxu0 0.0
    %1705 = vmatprep.subr.mxu0 0.0
    %1706 = vmatpush2.msra.mxu0 0.0
    %1707 = vmatprep.subr.mxu0 0.0
    %1708 = vmatpush2.msra.mxu0 0.0
    %1709 = vmatprep.subr.mxu0 0.0
    %1710 = vmatpush2.msra.mxu0 0.0
    %1711 = vmatprep.subr.mxu0 0.0
    %1712 = vmatpush2.msra.mxu0 0.0
    %1713 = vmatprep.subr.mxu0 0.0
    %1714 = vmatpush2.msra.mxu0 0.0
    %1715 = vmatprep.subr.mxu0 0.0
    %1716 = vmatpush2.msra.mxu0 0.0
    %1717 = vmatprep.mubr.f32.mxu0 0.0
    %1718 = vmatmul.mubr.f32.gmra.mxu0 %v1651
    %v1719 = vpop.f32.mrf.mxu0
    %v1720 = vadd.f32 0.0, %v1719
    %v1721 = vpop.f32.mrf.mxu0
    %1722 = vdwg.mxu0
    %v1723 = vadd.f32 %v1647, %v1720
    %v1724 = vxor.u32 %v1723, 2147483648
    %v1725 = vmul.f32 %v1724, 1.442695
    %v1726 = vpow.pop %v1725
    %v1727 = vadd.f32 %v1726, 1.0
    %v1728 = vrcp.pop %v1727
    %v1729 = vmul.f32 1.0, %v1728
    %v1730 = vtanh.pop %v1723
    %v1731 = vmul.f32 %v1729, %v1541
    %1733 = vrot.lane.b32.xlu0 %v1730, 64
    %v1734 = vpop.permute.xlu0 %1733
    %v1736 = vmul.f32 %v1729, %v1734
    %1738 = vrot.lane.b32.xlu0 %v1736, 32
    %v1739 = vpop.permute.xlu0 %1738
    %v1741 = vadd.f32 %v1731, %v1739
    %v1742 = vtanh.pop %v1741
    %1744 = vrot.lane.b32.xlu0 %v1742, 64
    %v1745 = vpop.permute.xlu0 %1744
    %v1747 = vmul.f32 %v1729, %v1745
    %v1748 = vsel %vm1543, 1, 0
    %1749 = vset.pattern.permute.xlu0 0
    %1750 = vperm.xlu0 %1749, %v1748
    %v1751 = vpop.permute.xlu0 %1750
    %vm1752 = vcmp.eq.s32.totalorder %v1751, 1
    %v1753 = vsel %vm1752, %v1646, 0.0
    %1755 = vrot.lane.b32.xlu0 %v1753, 32
    %v1756 = vpop.permute.xlu0 %1755
    %1758 = vst.msk [vmem:[#allocation4 + $0x28] sm:$0xff] %vm398, %v1756
    %v1759 = vsel %vm1545, 1, 0
    %1760 = vset.pattern.permute.xlu0 0
    %1761 = vperm.xlu0 %1760, %v1759
    %v1762 = vpop.permute.xlu0 %1761
    %vm1763 = vcmp.eq.s32.totalorder %v1762, 1
    %v1764 = vsel %vm1763, %v1747, 0.0
    %1766 = vrot.lane.b32.xlu0 %v1764, 64
    %v1767 = vpop.permute.xlu0 %1766
    %1769 = vst.msk [vmem:[#allocation4 + $0x10] sm:$0xff] %vm614, %v1767
    %v1770 = vsel %vm1752, %v1646, %v1538
    %v1771 = vsel %vm1752, %v1640, %v1539
    %v1772 = vsel %vm1763, %v1747, %v1540
    %v1773 = vsel %vm1763, %v1741, %v1541
    %v1774 = vld [vmem:[%s1 + $0x30] sm:$0xff]
    %vm1775 = vcmp.gt.f32.partialorder %v1774, 0.5
    %v1776 = vld [vmem:[%s1 + $0x8] sm:$0xff]
    %vm1777 = vcmp.gt.f32.partialorder %v1776, 0.5
    %v1778 = vld [vmem:[#allocation2 + $0x30] sm:$0xff]
    %1780 = vrot.lane.b32.xlu0 %v1770, 32
    %v1781 = vpop.permute.xlu0 %1780
    %v1782 = vsel %vm398, %v1781, 0
    %1784 = vmatprep.subr.mxu0 0.0
    %1785 = vmatpush1.msra.mxu0 0.0
    %1786 = vmatprep.subr.mxu0 0.0
    %1787 = vmatpush1.msra.mxu0 0.0
    %1788 = vmatprep.subr.mxu0 0.0
    %1789 = vmatpush1.msra.mxu0 0.0
    %1790 = vmatprep.subr.mxu0 0.0
    %1791 = vmatpush1.msra.mxu0 0.0
    %1792 = vmatprep.subr.mxu0 0.0
    %1793 = vmatpush1.msra.mxu0 0.0
    %1794 = vmatprep.subr.mxu0 0.0
    %1795 = vmatpush1.msra.mxu0 0.0
    %1796 = vmatprep.subr.mxu0 0.0
    %1797 = vmatpush1.msra.mxu0 0.0
    %1798 = vmatprep.subr.mxu0 0.0
    %1799 = vmatpush1.msra.mxu0 0.0
    %1800 = vmatprep.subr.mxu0 0.0
    %1801 = vmatpush1.msra.mxu0 0.0
    %1802 = vmatprep.subr.mxu0 0.0
    %1803 = vmatpush1.msra.mxu0 0.0
    %1804 = vmatprep.subr.mxu0 0.0
    %1805 = vmatpush1.msra.mxu0 0.0
    %1806 = vmatprep.subr.mxu0 0.0
    %1807 = vmatpush1.msra.mxu0 0.0
    %1808 = vmatprep.subr.mxu0 0.0
    %1809 = vmatpush1.msra.mxu0 %v388
    %1810 = vmatprep.subr.mxu0 0.0
    %1811 = vmatpush1.msra.mxu0 %v387
    %1812 = vmatprep.subr.mxu0 0.0
    %1813 = vmatpush1.msra.mxu0 %v386
    %1814 = vmatprep.subr.mxu0 0.0
    %1815 = vmatpush1.msra.mxu0 %v385
    %1816 = vmatprep.subr.mxu0 0.0
    %1817 = vmatpush2.msra.mxu0 0.0
    %1818 = vmatprep.subr.mxu0 0.0
    %1819 = vmatpush2.msra.mxu0 0.0
    %1820 = vmatprep.subr.mxu0 0.0
    %1821 = vmatpush2.msra.mxu0 0.0
    %1822 = vmatprep.subr.mxu0 0.0
    %1823 = vmatpush2.msra.mxu0 0.0
    %1824 = vmatprep.subr.mxu0 0.0
    %1825 = vmatpush2.msra.mxu0 0.0
    %1826 = vmatprep.subr.mxu0 0.0
    %1827 = vmatpush2.msra.mxu0 0.0
    %1828 = vmatprep.subr.mxu0 0.0
    %1829 = vmatpush2.msra.mxu0 0.0
    %1830 = vmatprep.subr.mxu0 0.0
    %1831 = vmatpush2.msra.mxu0 0.0
    %1832 = vmatprep.subr.mxu0 0.0
    %1833 = vmatpush2.msra.mxu0 0.0
    %1834 = vmatprep.subr.mxu0 0.0
    %1835 = vmatpush2.msra.mxu0 0.0
    %1836 = vmatprep.subr.mxu0 0.0
    %1837 = vmatpush2.msra.mxu0 0.0
    %1838 = vmatprep.subr.mxu0 0.0
    %1839 = vmatpush2.msra.mxu0 0.0
    %1840 = vmatprep.subr.mxu0 0.0
    %1841 = vmatpush2.msra.mxu0 0.0
    %1842 = vmatprep.subr.mxu0 0.0
    %1843 = vmatpush2.msra.mxu0 0.0
    %1844 = vmatprep.subr.mxu0 0.0
    %1845 = vmatpush2.msra.mxu0 0.0
    %1846 = vmatprep.subr.mxu0 0.0
    %1847 = vmatpush2.msra.mxu0 0.0
    %1848 = vmatprep.mubr.f32.mxu0 0.0
    %1849 = vmatmul.mubr.f32.gmra.mxu0 %v1782
    %v1850 = vpop.f32.mrf.mxu0
    %v1851 = vadd.f32 0.0, %v1850
    %v1852 = vpop.f32.mrf.mxu0
    %1853 = vdwg.mxu0
    %v1854 = vadd.f32 %v1778, %v1851
    %v1855 = vxor.u32 %v1854, 2147483648
    %v1856 = vmul.f32 %v1855, 1.442695
    %v1857 = vpow.pop %v1856
    %v1858 = vadd.f32 %v1857, 1.0
    %v1859 = vrcp.pop %v1858
    %v1860 = vmul.f32 1.0, %v1859
    %v1861 = vtanh.pop %v1854
    %v1862 = vmul.f32 %v1860, %v1771
    %1864 = vrot.lane.b32.xlu0 %v1861, 64
    %v1865 = vpop.permute.xlu0 %1864
    %v1867 = vmul.f32 %v1860, %v1865
    %1869 = vrot.lane.b32.xlu0 %v1867, 32
    %v1870 = vpop.permute.xlu0 %1869
    %v1872 = vadd.f32 %v1862, %v1870
    %v1873 = vtanh.pop %v1872
    %1875 = vrot.lane.b32.xlu0 %v1873, 64
    %v1876 = vpop.permute.xlu0 %1875
    %v1878 = vmul.f32 %v1860, %v1876
    %v1879 = vld [vmem:[#allocation3 + $0x8] sm:$0xff]
    %1881 = vrot.lane.b32.xlu0 %v1772, 32
    %v1882 = vpop.permute.xlu0 %1881
    %v1883 = vsel %vm398, %v1882, 0
    %1885 = vmatprep.subr.mxu0 0.0
    %1886 = vmatpush1.msra.mxu0 0.0
    %1887 = vmatprep.subr.mxu0 0.0
    %1888 = vmatpush1.msra.mxu0 0.0
    %1889 = vmatprep.subr.mxu0 0.0
    %1890 = vmatpush1.msra.mxu0 0.0
    %1891 = vmatprep.subr.mxu0 0.0
    %1892 = vmatpush1.msra.mxu0 0.0
    %1893 = vmatprep.subr.mxu0 0.0
    %1894 = vmatpush1.msra.mxu0 0.0
    %1895 = vmatprep.subr.mxu0 0.0
    %1896 = vmatpush1.msra.mxu0 0.0
    %1897 = vmatprep.subr.mxu0 0.0
    %1898 = vmatpush1.msra.mxu0 0.0
    %1899 = vmatprep.subr.mxu0 0.0
    %1900 = vmatpush1.msra.mxu0 0.0
    %1901 = vmatprep.subr.mxu0 0.0
    %1902 = vmatpush1.msra.mxu0 0.0
    %1903 = vmatprep.subr.mxu0 0.0
    %1904 = vmatpush1.msra.mxu0 0.0
    %1905 = vmatprep.subr.mxu0 0.0
    %1906 = vmatpush1.msra.mxu0 0.0
    %1907 = vmatprep.subr.mxu0 0.0
    %1908 = vmatpush1.msra.mxu0 0.0
    %1909 = vmatprep.subr.mxu0 0.0
    %1910 = vmatpush1.msra.mxu0 %v392
    %1911 = vmatprep.subr.mxu0 0.0
    %1912 = vmatpush1.msra.mxu0 %v391
    %1913 = vmatprep.subr.mxu0 0.0
    %1914 = vmatpush1.msra.mxu0 %v390
    %1915 = vmatprep.subr.mxu0 0.0
    %1916 = vmatpush1.msra.mxu0 %v389
    %1917 = vmatprep.subr.mxu0 0.0
    %1918 = vmatpush2.msra.mxu0 0.0
    %1919 = vmatprep.subr.mxu0 0.0
    %1920 = vmatpush2.msra.mxu0 0.0
    %1921 = vmatprep.subr.mxu0 0.0
    %1922 = vmatpush2.msra.mxu0 0.0
    %1923 = vmatprep.subr.mxu0 0.0
    %1924 = vmatpush2.msra.mxu0 0.0
    %1925 = vmatprep.subr.mxu0 0.0
    %1926 = vmatpush2.msra.mxu0 0.0
    %1927 = vmatprep.subr.mxu0 0.0
    %1928 = vmatpush2.msra.mxu0 0.0
    %1929 = vmatprep.subr.mxu0 0.0
    %1930 = vmatpush2.msra.mxu0 0.0
    %1931 = vmatprep.subr.mxu0 0.0
    %1932 = vmatpush2.msra.mxu0 0.0
    %1933 = vmatprep.subr.mxu0 0.0
    %1934 = vmatpush2.msra.mxu0 0.0
    %1935 = vmatprep.subr.mxu0 0.0
    %1936 = vmatpush2.msra.mxu0 0.0
    %1937 = vmatprep.subr.mxu0 0.0
    %1938 = vmatpush2.msra.mxu0 0.0
    %1939 = vmatprep.subr.mxu0 0.0
    %1940 = vmatpush2.msra.mxu0 0.0
    %1941 = vmatprep.subr.mxu0 0.0
    %1942 = vmatpush2.msra.mxu0 0.0
    %1943 = vmatprep.subr.mxu0 0.0
    %1944 = vmatpush2.msra.mxu0 0.0
    %1945 = vmatprep.subr.mxu0 0.0
    %1946 = vmatpush2.msra.mxu0 0.0
    %1947 = vmatprep.subr.mxu0 0.0
    %1948 = vmatpush2.msra.mxu0 0.0
    %1949 = vmatprep.mubr.f32.mxu0 0.0
    %1950 = vmatmul.mubr.f32.gmra.mxu0 %v1883
    %v1951 = vpop.f32.mrf.mxu0
    %v1952 = vadd.f32 0.0, %v1951
    %v1953 = vpop.f32.mrf.mxu0
    %1954 = vdwg.mxu0
    %v1955 = vadd.f32 %v1879, %v1952
    %v1956 = vxor.u32 %v1955, 2147483648
    %v1957 = vmul.f32 %v1956, 1.442695
    %v1958 = vpow.pop %v1957
    %v1959 = vadd.f32 %v1958, 1.0
    %v1960 = vrcp.pop %v1959
    %v1961 = vmul.f32 1.0, %v1960
    %v1962 = vtanh.pop %v1955
    %v1963 = vmul.f32 %v1961, %v1773
    %1965 = vrot.lane.b32.xlu0 %v1962, 64
    %v1966 = vpop.permute.xlu0 %1965
    %v1968 = vmul.f32 %v1961, %v1966
    %1970 = vrot.lane.b32.xlu0 %v1968, 32
    %v1971 = vpop.permute.xlu0 %1970
    %v1973 = vadd.f32 %v1963, %v1971
    %v1974 = vtanh.pop %v1973
    %1976 = vrot.lane.b32.xlu0 %v1974, 64
    %v1977 = vpop.permute.xlu0 %1976
    %v1979 = vmul.f32 %v1961, %v1977
    %v1980 = vsel %vm1775, 1, 0
    %1981 = vset.pattern.permute.xlu0 0
    %1982 = vperm.xlu0 %1981, %v1980
    %v1983 = vpop.permute.xlu0 %1982
    %vm1984 = vcmp.eq.s32.totalorder %v1983, 1
    %v1985 = vsel %vm1984, %v1878, 0.0
    %1987 = vrot.lane.b32.xlu0 %v1985, 32
    %v1988 = vpop.permute.xlu0 %1987
    %1990 = vst.msk [vmem:[#allocation4 + $0x30] sm:$0xff] %vm398, %v1988
    %v1991 = vsel %vm1777, 1, 0
    %1992 = vset.pattern.permute.xlu0 0
    %1993 = vperm.xlu0 %1992, %v1991
    %v1994 = vpop.permute.xlu0 %1993
    %vm1995 = vcmp.eq.s32.totalorder %v1994, 1
    %v1996 = vsel %vm1995, %v1979, 0.0
    %1998 = vrot.lane.b32.xlu0 %v1996, 64
    %v1999 = vpop.permute.xlu0 %1998
    %2001 = vst.msk [vmem:[#allocation4 + $0x8] sm:$0xff] %vm614, %v1999
    %v2002 = vsel %vm1984, %v1878, %v1770
    %v2003 = vsel %vm1984, %v1872, %v1771
    %v2004 = vsel %vm1995, %v1979, %v1772
    %v2005 = vsel %vm1995, %v1973, %v1773
    %v2006 = vld [vmem:[%s1 + $0x38] sm:$0xff]
    %vm2007 = vcmp.gt.f32.partialorder %v2006, 0.5
    %v2008 = vld [vmem:[%s1] sm:$0xff]
    %vm2009 = vcmp.gt.f32.partialorder %v2008, 0.5
    %v2010 = vld [vmem:[#allocation2 + $0x38] sm:$0xff]
    %2012 = vrot.lane.b32.xlu0 %v2002, 32
    %v2013 = vpop.permute.xlu0 %2012
    %v2014 = vsel %vm398, %v2013, 0
    %2016 = vmatprep.subr.mxu0 0.0
    %2017 = vmatpush1.msra.mxu0 0.0
    %2018 = vmatprep.subr.mxu0 0.0
    %2019 = vmatpush1.msra.mxu0 0.0
    %2020 = vmatprep.subr.mxu0 0.0
    %2021 = vmatpush1.msra.mxu0 0.0
    %2022 = vmatprep.subr.mxu0 0.0
    %2023 = vmatpush1.msra.mxu0 0.0
    %2024 = vmatprep.subr.mxu0 0.0
    %2025 = vmatpush1.msra.mxu0 0.0
    %2026 = vmatprep.subr.mxu0 0.0
    %2027 = vmatpush1.msra.mxu0 0.0
    %2028 = vmatprep.subr.mxu0 0.0
    %2029 = vmatpush1.msra.mxu0 0.0
    %2030 = vmatprep.subr.mxu0 0.0
    %2031 = vmatpush1.msra.mxu0 0.0
    %2032 = vmatprep.subr.mxu0 0.0
    %2033 = vmatpush1.msra.mxu0 0.0
    %2034 = vmatprep.subr.mxu0 0.0
    %2035 = vmatpush1.msra.mxu0 0.0
    %2036 = vmatprep.subr.mxu0 0.0
    %2037 = vmatpush1.msra.mxu0 0.0
    %2038 = vmatprep.subr.mxu0 0.0
    %2039 = vmatpush1.msra.mxu0 0.0
    %2040 = vmatprep.subr.mxu0 0.0
    %2041 = vmatpush1.msra.mxu0 %v388
    %2042 = vmatprep.subr.mxu0 0.0
    %2043 = vmatpush1.msra.mxu0 %v387
    %2044 = vmatprep.subr.mxu0 0.0
    %2045 = vmatpush1.msra.mxu0 %v386
    %2046 = vmatprep.subr.mxu0 0.0
    %2047 = vmatpush1.msra.mxu0 %v385
    %2048 = vmatprep.subr.mxu0 0.0
    %2049 = vmatpush2.msra.mxu0 0.0
    %2050 = vmatprep.subr.mxu0 0.0
    %2051 = vmatpush2.msra.mxu0 0.0
    %2052 = vmatprep.subr.mxu0 0.0
    %2053 = vmatpush2.msra.mxu0 0.0
    %2054 = vmatprep.subr.mxu0 0.0
    %2055 = vmatpush2.msra.mxu0 0.0
    %2056 = vmatprep.subr.mxu0 0.0
    %2057 = vmatpush2.msra.mxu0 0.0
    %2058 = vmatprep.subr.mxu0 0.0
    %2059 = vmatpush2.msra.mxu0 0.0
    %2060 = vmatprep.subr.mxu0 0.0
    %2061 = vmatpush2.msra.mxu0 0.0
    %2062 = vmatprep.subr.mxu0 0.0
    %2063 = vmatpush2.msra.mxu0 0.0
    %2064 = vmatprep.subr.mxu0 0.0
    %2065 = vmatpush2.msra.mxu0 0.0
    %2066 = vmatprep.subr.mxu0 0.0
    %2067 = vmatpush2.msra.mxu0 0.0
    %2068 = vmatprep.subr.mxu0 0.0
    %2069 = vmatpush2.msra.mxu0 0.0
    %2070 = vmatprep.subr.mxu0 0.0
    %2071 = vmatpush2.msra.mxu0 0.0
    %2072 = vmatprep.subr.mxu0 0.0
    %2073 = vmatpush2.msra.mxu0 0.0
    %2074 = vmatprep.subr.mxu0 0.0
    %2075 = vmatpush2.msra.mxu0 0.0
    %2076 = vmatprep.subr.mxu0 0.0
    %2077 = vmatpush2.msra.mxu0 0.0
    %2078 = vmatprep.subr.mxu0 0.0
    %2079 = vmatpush2.msra.mxu0 0.0
    %2080 = vmatprep.mubr.f32.mxu0 0.0
    %2081 = vmatmul.mubr.f32.gmra.mxu0 %v2014
    %v2082 = vpop.f32.mrf.mxu0
    %v2083 = vadd.f32 0.0, %v2082
    %v2084 = vpop.f32.mrf.mxu0
    %2085 = vdwg.mxu0
    %v2086 = vadd.f32 %v2010, %v2083
    %v2087 = vxor.u32 %v2086, 2147483648
    %v2088 = vmul.f32 %v2087, 1.442695
    %v2089 = vpow.pop %v2088
    %v2090 = vadd.f32 %v2089, 1.0
    %v2091 = vrcp.pop %v2090
    %v2092 = vmul.f32 1.0, %v2091
    %v2093 = vtanh.pop %v2086
    %v2094 = vmul.f32 %v2092, %v2003
    %2096 = vrot.lane.b32.xlu0 %v2093, 64
    %v2097 = vpop.permute.xlu0 %2096
    %v2099 = vmul.f32 %v2092, %v2097
    %2101 = vrot.lane.b32.xlu0 %v2099, 32
    %v2102 = vpop.permute.xlu0 %2101
    %v2104 = vadd.f32 %v2094, %v2102
    %v2105 = vtanh.pop %v2104
    %2107 = vrot.lane.b32.xlu0 %v2105, 64
    %v2108 = vpop.permute.xlu0 %2107
    %v2110 = vmul.f32 %v2092, %v2108
    %v2111 = vld [vmem:[#allocation3] sm:$0xff]
    %2113 = vrot.lane.b32.xlu0 %v2004, 32
    %v2114 = vpop.permute.xlu0 %2113
    %v2115 = vsel %vm398, %v2114, 0
    %2117 = vmatprep.subr.mxu0 0.0
    %2118 = vmatpush1.msra.mxu0 0.0
    %2119 = vmatprep.subr.mxu0 0.0
    %2120 = vmatpush1.msra.mxu0 0.0
    %2121 = vmatprep.subr.mxu0 0.0
    %2122 = vmatpush1.msra.mxu0 0.0
    %2123 = vmatprep.subr.mxu0 0.0
    %2124 = vmatpush1.msra.mxu0 0.0
    %2125 = vmatprep.subr.mxu0 0.0
    %2126 = vmatpush1.msra.mxu0 0.0
    %2127 = vmatprep.subr.mxu0 0.0
    %2128 = vmatpush1.msra.mxu0 0.0
    %2129 = vmatprep.subr.mxu0 0.0
    %2130 = vmatpush1.msra.mxu0 0.0
    %2131 = vmatprep.subr.mxu0 0.0
    %2132 = vmatpush1.msra.mxu0 0.0
    %2133 = vmatprep.subr.mxu0 0.0
    %2134 = vmatpush1.msra.mxu0 0.0
    %2135 = vmatprep.subr.mxu0 0.0
    %2136 = vmatpush1.msra.mxu0 0.0
    %2137 = vmatprep.subr.mxu0 0.0
    %2138 = vmatpush1.msra.mxu0 0.0
    %2139 = vmatprep.subr.mxu0 0.0
    %2140 = vmatpush1.msra.mxu0 0.0
    %2141 = vmatprep.subr.mxu0 0.0
    %2142 = vmatpush1.msra.mxu0 %v392
    %2143 = vmatprep.subr.mxu0 0.0
    %2144 = vmatpush1.msra.mxu0 %v391
    %2145 = vmatprep.subr.mxu0 0.0
    %2146 = vmatpush1.msra.mxu0 %v390
    %2147 = vmatprep.subr.mxu0 0.0
    %2148 = vmatpush1.msra.mxu0 %v389
    %2149 = vmatprep.subr.mxu0 0.0
    %2150 = vmatpush2.msra.mxu0 0.0
    %2151 = vmatprep.subr.mxu0 0.0
    %2152 = vmatpush2.msra.mxu0 0.0
    %2153 = vmatprep.subr.mxu0 0.0
    %2154 = vmatpush2.msra.mxu0 0.0
    %2155 = vmatprep.subr.mxu0 0.0
    %2156 = vmatpush2.msra.mxu0 0.0
    %2157 = vmatprep.subr.mxu0 0.0
    %2158 = vmatpush2.msra.mxu0 0.0
    %2159 = vmatprep.subr.mxu0 0.0
    %2160 = vmatpush2.msra.mxu0 0.0
    %2161 = vmatprep.subr.mxu0 0.0
    %2162 = vmatpush2.msra.mxu0 0.0
    %2163 = vmatprep.subr.mxu0 0.0
    %2164 = vmatpush2.msra.mxu0 0.0
    %2165 = vmatprep.subr.mxu0 0.0
    %2166 = vmatpush2.msra.mxu0 0.0
    %2167 = vmatprep.subr.mxu0 0.0
    %2168 = vmatpush2.msra.mxu0 0.0
    %2169 = vmatprep.subr.mxu0 0.0
    %2170 = vmatpush2.msra.mxu0 0.0
    %2171 = vmatprep.subr.mxu0 0.0
    %2172 = vmatpush2.msra.mxu0 0.0
    %2173 = vmatprep.subr.mxu0 0.0
    %2174 = vmatpush2.msra.mxu0 0.0
    %2175 = vmatprep.subr.mxu0 0.0
    %2176 = vmatpush2.msra.mxu0 0.0
    %2177 = vmatprep.subr.mxu0 0.0
    %2178 = vmatpush2.msra.mxu0 0.0
    %2179 = vmatprep.subr.mxu0 0.0
    %2180 = vmatpush2.msra.mxu0 0.0
    %2181 = vmatprep.mubr.f32.mxu0 0.0
    %2182 = vmatmul.mubr.f32.gmra.mxu0 %v2115
    %v2183 = vpop.f32.mrf.mxu0
    %v2184 = vadd.f32 0.0, %v2183
    %v2185 = vpop.f32.mrf.mxu0
    %2186 = vdwg.mxu0
    %v2187 = vadd.f32 %v2111, %v2184
    %v2188 = vxor.u32 %v2187, 2147483648
    %v2189 = vmul.f32 %v2188, 1.442695
    %v2190 = vpow.pop %v2189
    %v2191 = vadd.f32 %v2190, 1.0
    %v2192 = vrcp.pop %v2191
    %v2193 = vmul.f32 1.0, %v2192
    %v2194 = vtanh.pop %v2187
    %v2195 = vmul.f32 %v2193, %v2005
    %2197 = vrot.lane.b32.xlu0 %v2194, 64
    %v2198 = vpop.permute.xlu0 %2197
    %v2200 = vmul.f32 %v2193, %v2198
    %2202 = vrot.lane.b32.xlu0 %v2200, 32
    %v2203 = vpop.permute.xlu0 %2202
    %v2205 = vadd.f32 %v2195, %v2203
    %v2206 = vtanh.pop %v2205
    %2208 = vrot.lane.b32.xlu0 %v2206, 64
    %v2209 = vpop.permute.xlu0 %2208
    %v2211 = vmul.f32 %v2193, %v2209
    %v2212 = vsel %vm2007, 1, 0
    %2213 = vset.pattern.permute.xlu0 0
    %2214 = vperm.xlu0 %2213, %v2212
    %v2215 = vpop.permute.xlu0 %2214
    %vm2216 = vcmp.eq.s32.totalorder %v2215, 1
    %v2217 = vsel %vm2216, %v2110, 0.0
    %2219 = vrot.lane.b32.xlu0 %v2217, 32
    %v2220 = vpop.permute.xlu0 %2219
    %2222 = vst.msk [vmem:[#allocation4 + $0x38] sm:$0xff] %vm398, %v2220
    %v2223 = vsel %vm2009, 1, 0
    %2224 = vset.pattern.permute.xlu0 0
    %2225 = vperm.xlu0 %2224, %v2223
    %v2226 = vpop.permute.xlu0 %2225
    %vm2227 = vcmp.eq.s32.totalorder %v2226, 1
    %v2228 = vsel %vm2227, %v2211, 0.0
    %2230 = vrot.lane.b32.xlu0 %v2228, 64
    %v2231 = vpop.permute.xlu0 %2230
    %2233 = vst.msk [vmem:[#allocation4] sm:$0xff] %vm614, %v2231
    %v2234 = vld [vmem:[#allocation4] sm:$0xff]
    %v2235 = vld [vmem:[#allocation4 + $0x8] sm:$0xff]
    %v2236 = vld [vmem:[#allocation4 + $0x10] sm:$0xff]
    %v2237 = vld [vmem:[#allocation4 + $0x18] sm:$0xff]
    %v2238 = vld [vmem:[#allocation4 + $0x20] sm:$0xff]
    %v2239 = vld [vmem:[#allocation4 + $0x28] sm:$0xff]
    %v2240 = vld [vmem:[#allocation4 + $0x30] sm:$0xff]
    %v2241 = vld [vmem:[#allocation4 + $0x38] sm:$0xff]
    %v2242 = vld [vmem:[%s8] sm:$0xff]
    %v2243 = vld [vmem:[%s8 + $0x8] sm:$0xff]
    %v2244 = vld [vmem:[%s8 + $0x10] sm:$0xff]
    %v2245 = vld [vmem:[%s8 + $0x18] sm:$0xff]
    %v2246 = vld [vmem:[%s8 + $0x20] sm:$0xff]
    %v2247 = vld [vmem:[%s8 + $0x28] sm:$0xff]
    %v2248 = vld [vmem:[%s8 + $0x30] sm:$0xff]
    %v2249 = vld [vmem:[%s8 + $0x38] sm:$0xff]
    %v2250 = vld [vmem:[%s10] sm:$0x1]
    %v2252 = vlaneseq
    %v2253 = vshrl.u32 %v2252, 7
    %v2254 = vsub.s32 0, %v2253
    %v2255 = vrot.slane %v2250, %v2254
    %vm2257 = vcmask 523264
    %v2259 = vsel %vm2257, %v2234, 0
    %v2262 = vsel %vm2257, %v2235, 0
    %v2265 = vsel %vm2257, %v2236, 0
    %v2268 = vsel %vm2257, %v2237, 0
    %v2271 = vsel %vm2257, %v2238, 0
    %v2274 = vsel %vm2257, %v2239, 0
    %v2277 = vsel %vm2257, %v2240, 0
    %v2280 = vsel %vm2257, %v2241, 0
    %2282 = vmatprep.subr.mxu0 0.0
    %2283 = vmatpush1.msra.mxu0 0.0
    %2284 = vmatprep.subr.mxu0 0.0
    %2285 = vmatpush1.msra.mxu0 0.0
    %2286 = vmatprep.subr.mxu0 0.0
    %2287 = vmatpush1.msra.mxu0 0.0
    %2288 = vmatprep.subr.mxu0 0.0
    %2289 = vmatpush1.msra.mxu0 0.0
    %2290 = vmatprep.subr.mxu0 0.0
    %2291 = vmatpush1.msra.mxu0 0.0
    %2292 = vmatprep.subr.mxu0 0.0
    %2293 = vmatpush1.msra.mxu0 0.0
    %2294 = vmatprep.subr.mxu0 0.0
    %2295 = vmatpush1.msra.mxu0 0.0
    %2296 = vmatprep.subr.mxu0 0.0
    %2297 = vmatpush1.msra.mxu0 0.0
    %2298 = vmatprep.subr.mxu0 0.0
    %2299 = vmatpush1.msra.mxu0 %v2249
    %2300 = vmatprep.subr.mxu0 0.0
    %2301 = vmatpush1.msra.mxu0 %v2248
    %2302 = vmatprep.subr.mxu0 0.0
    %2303 = vmatpush1.msra.mxu0 %v2247
    %2304 = vmatprep.subr.mxu0 0.0
    %2305 = vmatpush1.msra.mxu0 %v2246
    %2306 = vmatprep.subr.mxu0 0.0
    %2307 = vmatpush1.msra.mxu0 %v2245
    %2308 = vmatprep.subr.mxu0 0.0
    %2309 = vmatpush1.msra.mxu0 %v2244
    %2310 = vmatprep.subr.mxu0 0.0
    %2311 = vmatpush1.msra.mxu0 %v2243
    %2312 = vmatprep.subr.mxu0 0.0
    %2313 = vmatpush1.msra.mxu0 %v2242
    %2314 = vmatprep.subr.mxu0 0.0
    %2315 = vmatpush2.msra.mxu0 0.0
    %2316 = vmatprep.subr.mxu0 0.0
    %2317 = vmatpush2.msra.mxu0 0.0
    %2318 = vmatprep.subr.mxu0 0.0
    %2319 = vmatpush2.msra.mxu0 0.0
    %2320 = vmatprep.subr.mxu0 0.0
    %2321 = vmatpush2.msra.mxu0 0.0
    %2322 = vmatprep.subr.mxu0 0.0
    %2323 = vmatpush2.msra.mxu0 0.0
    %2324 = vmatprep.subr.mxu0 0.0
    %2325 = vmatpush2.msra.mxu0 0.0
    %2326 = vmatprep.subr.mxu0 0.0
    %2327 = vmatpush2.msra.mxu0 0.0
    %2328 = vmatprep.subr.mxu0 0.0
    %2329 = vmatpush2.msra.mxu0 0.0
    %2330 = vmatprep.subr.mxu0 0.0
    %2331 = vmatpush2.msra.mxu0 0.0
    %2332 = vmatprep.subr.mxu0 0.0
    %2333 = vmatpush2.msra.mxu0 0.0
    %2334 = vmatprep.subr.mxu0 0.0
    %2335 = vmatpush2.msra.mxu0 0.0
    %2336 = vmatprep.subr.mxu0 0.0
    %2337 = vmatpush2.msra.mxu0 0.0
    %2338 = vmatprep.subr.mxu0 0.0
    %2339 = vmatpush2.msra.mxu0 0.0
    %2340 = vmatprep.subr.mxu0 0.0
    %2341 = vmatpush2.msra.mxu0 0.0
    %2342 = vmatprep.subr.mxu0 0.0
    %2343 = vmatpush2.msra.mxu0 0.0
    %2344 = vmatprep.subr.mxu0 0.0
    %2345 = vmatpush2.msra.mxu0 0.0
    %2346 = vmatprep.mubr.f32.mxu0 0.0
    %2347 = vmatmul.mubr.f32.gmra.mxu0 %v2259
    %v2348 = vpop.f32.mrf.mxu0
    %v2349 = vadd.f32 %v2255, %v2348
    %v2350 = vpop.f32.mrf.mxu0
    %2351 = vmatprep.mubr.f32.mxu0 0.0
    %2352 = vmatmul.mubr.f32.gmra.mxu0 %v2262
    %v2353 = vpop.f32.mrf.mxu0
    %v2354 = vadd.f32 %v2255, %v2353
    %v2355 = vpop.f32.mrf.mxu0
    %2356 = vmatprep.mubr.f32.mxu0 0.0
    %2357 = vmatmul.mubr.f32.gmra.mxu0 %v2265
    %v2358 = vpop.f32.mrf.mxu0
    %v2359 = vadd.f32 %v2255, %v2358
    %v2360 = vpop.f32.mrf.mxu0
    %2361 = vmatprep.mubr.f32.mxu0 0.0
    %2362 = vmatmul.mubr.f32.gmra.mxu0 %v2268
    %v2363 = vpop.f32.mrf.mxu0
    %v2364 = vadd.f32 %v2255, %v2363
    %v2365 = vpop.f32.mrf.mxu0
    %2366 = vmatprep.mubr.f32.mxu0 0.0
    %2367 = vmatmul.mubr.f32.gmra.mxu0 %v2271
    %v2368 = vpop.f32.mrf.mxu0
    %v2369 = vadd.f32 %v2255, %v2368
    %v2370 = vpop.f32.mrf.mxu0
    %2371 = vmatprep.mubr.f32.mxu0 0.0
    %2372 = vmatmul.mubr.f32.gmra.mxu0 %v2274
    %v2373 = vpop.f32.mrf.mxu0
    %v2374 = vadd.f32 %v2255, %v2373
    %v2375 = vpop.f32.mrf.mxu0
    %2376 = vmatprep.mubr.f32.mxu0 0.0
    %2377 = vmatmul.mubr.f32.gmra.mxu0 %v2277
    %v2378 = vpop.f32.mrf.mxu0
    %v2379 = vadd.f32 %v2255, %v2378
    %v2380 = vpop.f32.mrf.mxu0
    %2381 = vmatprep.mubr.f32.mxu0 0.0
    %2382 = vmatmul.mubr.f32.gmra.mxu0 %v2280
    %v2383 = vpop.f32.mrf.mxu0
    %v2384 = vadd.f32 %v2255, %v2383
    %v2385 = vpop.f32.mrf.mxu0
    %2386 = vdwg.mxu0
    %2387 = vst [vmem:[#allocation2] sm:$0xff] %v2349
    %2388 = vst [vmem:[#allocation2 + $0x8] sm:$0xff] %v2354
    %2389 = vst [vmem:[#allocation2 + $0x10] sm:$0xff] %v2359
    %2390 = vst [vmem:[#allocation2 + $0x18] sm:$0xff] %v2364
    %2391 = vst [vmem:[#allocation2 + $0x20] sm:$0xff] %v2369
    %2392 = vst [vmem:[#allocation2 + $0x28] sm:$0xff] %v2374
    %2393 = vst [vmem:[#allocation2 + $0x30] sm:$0xff] %v2379
    %2394 = vst [vmem:[#allocation2 + $0x38] sm:$0xff] %v2384
    %v2395 = vld [vmem:[%s11] sm:$0xff]
    %v2396 = vld [vmem:[%s11 + $0x8] sm:$0xff]
    %v2397 = vld [vmem:[%s11 + $0x10] sm:$0xff]
    %v2398 = vld [vmem:[%s11 + $0x18] sm:$0xff]
    %v2399 = vld [vmem:[%s11 + $0x20] sm:$0xff]
    %v2400 = vld [vmem:[%s11 + $0x28] sm:$0xff]
    %v2401 = vld [vmem:[%s11 + $0x30] sm:$0xff]
    %v2402 = vld [vmem:[%s11 + $0x38] sm:$0xff]
    %v2403 = vld [vmem:[%s13] sm:$0x1]
    %v2405 = vlaneseq
    %v2406 = vshrl.u32 %v2405, 7
    %v2407 = vsub.s32 0, %v2406
    %v2408 = vrot.slane %v2403, %v2407
    %2410 = vmatprep.subr.mxu0 0.0
    %2411 = vmatpush1.msra.mxu0 0.0
    %2412 = vmatprep.subr.mxu0 0.0
    %2413 = vmatpush1.msra.mxu0 0.0
    %2414 = vmatprep.subr.mxu0 0.0
    %2415 = vmatpush1.msra.mxu0 0.0
    %2416 = vmatprep.subr.mxu0 0.0
    %2417 = vmatpush1.msra.mxu0 0.0
    %2418 = vmatprep.subr.mxu0 0.0
    %2419 = vmatpush1.msra.mxu0 0.0
    %2420 = vmatprep.subr.mxu0 0.0
    %2421 = vmatpush1.msra.mxu0 0.0
    %2422 = vmatprep.subr.mxu0 0.0
    %2423 = vmatpush1.msra.mxu0 0.0
    %2424 = vmatprep.subr.mxu0 0.0
    %2425 = vmatpush1.msra.mxu0 0.0
    %2426 = vmatprep.subr.mxu0 0.0
    %2427 = vmatpush1.msra.mxu0 %v2402
    %2428 = vmatprep.subr.mxu0 0.0
    %2429 = vmatpush1.msra.mxu0 %v2401
    %2430 = vmatprep.subr.mxu0 0.0
    %2431 = vmatpush1.msra.mxu0 %v2400
    %2432 = vmatprep.subr.mxu0 0.0
    %2433 = vmatpush1.msra.mxu0 %v2399
    %2434 = vmatprep.subr.mxu0 0.0
    %2435 = vmatpush1.msra.mxu0 %v2398
    %2436 = vmatprep.subr.mxu0 0.0
    %2437 = vmatpush1.msra.mxu0 %v2397
    %2438 = vmatprep.subr.mxu0 0.0
    %2439 = vmatpush1.msra.mxu0 %v2396
    %2440 = vmatprep.subr.mxu0 0.0
    %2441 = vmatpush1.msra.mxu0 %v2395
    %2442 = vmatprep.subr.mxu0 0.0
    %2443 = vmatpush2.msra.mxu0 0.0
    %2444 = vmatprep.subr.mxu0 0.0
    %2445 = vmatpush2.msra.mxu0 0.0
    %2446 = vmatprep.subr.mxu0 0.0
    %2447 = vmatpush2.msra.mxu0 0.0
    %2448 = vmatprep.subr.mxu0 0.0
    %2449 = vmatpush2.msra.mxu0 0.0
    %2450 = vmatprep.subr.mxu0 0.0
    %2451 = vmatpush2.msra.mxu0 0.0
    %2452 = vmatprep.subr.mxu0 0.0
    %2453 = vmatpush2.msra.mxu0 0.0
    %2454 = vmatprep.subr.mxu0 0.0
    %2455 = vmatpush2.msra.mxu0 0.0
    %2456 = vmatprep.subr.mxu0 0.0
    %2457 = vmatpush2.msra.mxu0 0.0
    %2458 = vmatprep.subr.mxu0 0.0
    %2459 = vmatpush2.msra.mxu0 0.0
    %2460 = vmatprep.subr.mxu0 0.0
    %2461 = vmatpush2.msra.mxu0 0.0
    %2462 = vmatprep.subr.mxu0 0.0
    %2463 = vmatpush2.msra.mxu0 0.0
    %2464 = vmatprep.subr.mxu0 0.0
    %2465 = vmatpush2.msra.mxu0 0.0
    %2466 = vmatprep.subr.mxu0 0.0
    %2467 = vmatpush2.msra.mxu0 0.0
    %2468 = vmatprep.subr.mxu0 0.0
    %2469 = vmatpush2.msra.mxu0 0.0
    %2470 = vmatprep.subr.mxu0 0.0
    %2471 = vmatpush2.msra.mxu0 0.0
    %2472 = vmatprep.subr.mxu0 0.0
    %2473 = vmatpush2.msra.mxu0 0.0
    %2474 = vmatprep.mubr.f32.mxu0 0.0
    %2475 = vmatmul.mubr.f32.gmra.mxu0 %v2259
    %v2476 = vpop.f32.mrf.mxu0
    %v2477 = vadd.f32 %v2408, %v2476
    %v2478 = vpop.f32.mrf.mxu0
    %2479 = vmatprep.mubr.f32.mxu0 0.0
    %2480 = vmatmul.mubr.f32.gmra.mxu0 %v2262
    %v2481 = vpop.f32.mrf.mxu0
    %v2482 = vadd.f32 %v2408, %v2481
    %v2483 = vpop.f32.mrf.mxu0
    %2484 = vmatprep.mubr.f32.mxu0 0.0
    %2485 = vmatmul.mubr.f32.gmra.mxu0 %v2265
    %v2486 = vpop.f32.mrf.mxu0
    %v2487 = vadd.f32 %v2408, %v2486
    %v2488 = vpop.f32.mrf.mxu0
    %2489 = vmatprep.mubr.f32.mxu0 0.0
    %2490 = vmatmul.mubr.f32.gmra.mxu0 %v2268
    %v2491 = vpop.f32.mrf.mxu0
    %v2492 = vadd.f32 %v2408, %v2491
    %v2493 = vpop.f32.mrf.mxu0
    %2494 = vmatprep.mubr.f32.mxu0 0.0
    %2495 = vmatmul.mubr.f32.gmra.mxu0 %v2271
    %v2496 = vpop.f32.mrf.mxu0
    %v2497 = vadd.f32 %v2408, %v2496
    %v2498 = vpop.f32.mrf.mxu0
    %2499 = vmatprep.mubr.f32.mxu0 0.0
    %2500 = vmatmul.mubr.f32.gmra.mxu0 %v2274
    %v2501 = vpop.f32.mrf.mxu0
    %v2502 = vadd.f32 %v2408, %v2501
    %v2503 = vpop.f32.mrf.mxu0
    %2504 = vmatprep.mubr.f32.mxu0 0.0
    %2505 = vmatmul.mubr.f32.gmra.mxu0 %v2277
    %v2506 = vpop.f32.mrf.mxu0
    %v2507 = vadd.f32 %v2408, %v2506
    %v2508 = vpop.f32.mrf.mxu0
    %2509 = vmatprep.mubr.f32.mxu0 0.0
    %2510 = vmatmul.mubr.f32.gmra.mxu0 %v2280
    %v2511 = vpop.f32.mrf.mxu0
    %v2512 = vadd.f32 %v2408, %v2511
    %v2513 = vpop.f32.mrf.mxu0
    %2514 = vdwg.mxu0
    %2515 = vst [vmem:[#allocation3] sm:$0xff] %v2477
    %2516 = vst [vmem:[#allocation3 + $0x8] sm:$0xff] %v2482
    %2517 = vst [vmem:[#allocation3 + $0x10] sm:$0xff] %v2487
    %2518 = vst [vmem:[#allocation3 + $0x18] sm:$0xff] %v2492
    %2519 = vst [vmem:[#allocation3 + $0x20] sm:$0xff] %v2497
    %2520 = vst [vmem:[#allocation3 + $0x28] sm:$0xff] %v2502
    %2521 = vst [vmem:[#allocation3 + $0x30] sm:$0xff] %v2507
    %2522 = vst [vmem:[#allocation3 + $0x38] sm:$0xff] %v2512
    %v2523 = vld [vmem:[%s9] sm:$0xff]
    %v2524 = vld [vmem:[%s9 + $0x8] sm:$0xff]
    %v2525 = vld [vmem:[%s9 + $0x10] sm:$0xff]
    %v2526 = vld [vmem:[%s9 + $0x18] sm:$0xff]
    %v2527 = vld [vmem:[%s12] sm:$0xff]
    %v2528 = vld [vmem:[%s12 + $0x8] sm:$0xff]
    %v2529 = vld [vmem:[%s12 + $0x10] sm:$0xff]
    %v2530 = vld [vmem:[%s12 + $0x18] sm:$0xff]
    %v2531 = vld [vmem:[%s1] sm:$0xff]
    %vm2532 = vcmp.gt.f32.partialorder %v2531, 0.5
    %v2533 = vld [vmem:[%s1 + $0x38] sm:$0xff]
    %vm2534 = vcmp.gt.f32.partialorder %v2533, 0.5
    %v2535 = vld [vmem:[#allocation2] sm:$0xff]
    %2536 = vmatprep.subr.mxu0 0.0
    %2537 = vmatpush1.msra.mxu0 0.0
    %2538 = vmatprep.subr.mxu0 0.0
    %2539 = vmatpush1.msra.mxu0 0.0
    %2540 = vmatprep.subr.mxu0 0.0
    %2541 = vmatpush1.msra.mxu0 0.0
    %2542 = vmatprep.subr.mxu0 0.0
    %2543 = vmatpush1.msra.mxu0 0.0
    %2544 = vmatprep.subr.mxu0 0.0
    %2545 = vmatpush1.msra.mxu0 0.0
    %2546 = vmatprep.subr.mxu0 0.0
    %2547 = vmatpush1.msra.mxu0 0.0
    %2548 = vmatprep.subr.mxu0 0.0
    %2549 = vmatpush1.msra.mxu0 0.0
    %2550 = vmatprep.subr.mxu0 0.0
    %2551 = vmatpush1.msra.mxu0 0.0
    %2552 = vmatprep.subr.mxu0 0.0
    %2553 = vmatpush1.msra.mxu0 0.0
    %2554 = vmatprep.subr.mxu0 0.0
    %2555 = vmatpush1.msra.mxu0 0.0
    %2556 = vmatprep.subr.mxu0 0.0
    %2557 = vmatpush1.msra.mxu0 0.0
    %2558 = vmatprep.subr.mxu0 0.0
    %2559 = vmatpush1.msra.mxu0 0.0
    %2560 = vmatprep.subr.mxu0 0.0
    %2561 = vmatpush1.msra.mxu0 %v2526
    %2562 = vmatprep.subr.mxu0 0.0
    %2563 = vmatpush1.msra.mxu0 %v2525
    %2564 = vmatprep.subr.mxu0 0.0
    %2565 = vmatpush1.msra.mxu0 %v2524
    %2566 = vmatprep.subr.mxu0 0.0
    %2567 = vmatpush1.msra.mxu0 %v2523
    %2568 = vmatprep.subr.mxu0 0.0
    %2569 = vmatpush2.msra.mxu0 0.0
    %2570 = vmatprep.subr.mxu0 0.0
    %2571 = vmatpush2.msra.mxu0 0.0
    %2572 = vmatprep.subr.mxu0 0.0
    %2573 = vmatpush2.msra.mxu0 0.0
    %2574 = vmatprep.subr.mxu0 0.0
    %2575 = vmatpush2.msra.mxu0 0.0
    %2576 = vmatprep.subr.mxu0 0.0
    %2577 = vmatpush2.msra.mxu0 0.0
    %2578 = vmatprep.subr.mxu0 0.0
    %2579 = vmatpush2.msra.mxu0 0.0
    %2580 = vmatprep.subr.mxu0 0.0
    %2581 = vmatpush2.msra.mxu0 0.0
    %2582 = vmatprep.subr.mxu0 0.0
    %2583 = vmatpush2.msra.mxu0 0.0
    %2584 = vmatprep.subr.mxu0 0.0
    %2585 = vmatpush2.msra.mxu0 0.0
    %2586 = vmatprep.subr.mxu0 0.0
    %2587 = vmatpush2.msra.mxu0 0.0
    %2588 = vmatprep.subr.mxu0 0.0
    %2589 = vmatpush2.msra.mxu0 0.0
    %2590 = vmatprep.subr.mxu0 0.0
    %2591 = vmatpush2.msra.mxu0 0.0
    %2592 = vmatprep.subr.mxu0 0.0
    %2593 = vmatpush2.msra.mxu0 0.0
    %2594 = vmatprep.subr.mxu0 0.0
    %2595 = vmatpush2.msra.mxu0 0.0
    %2596 = vmatprep.subr.mxu0 0.0
    %2597 = vmatpush2.msra.mxu0 0.0
    %2598 = vmatprep.subr.mxu0 0.0
    %2599 = vmatpush2.msra.mxu0 0.0
    %2600 = vmatprep.mubr.f32.mxu0 0.0
    %2601 = vmatmul.mubr.f32.gmra.mxu0 %v400
    %v2602 = vpop.f32.mrf.mxu0
    %v2603 = vadd.f32 0.0, %v2602
    %v2604 = vpop.f32.mrf.mxu0
    %2605 = vdwg.mxu0
    %v2606 = vadd.f32 %v2535, %v2603
    %v2607 = vxor.u32 %v2606, 2147483648
    %v2608 = vmul.f32 %v2607, 1.442695
    %v2609 = vpow.pop %v2608
    %v2610 = vadd.f32 %v2609, 1.0
    %v2611 = vrcp.pop %v2610
    %v2612 = vmul.f32 1.0, %v2611
    %v2613 = vtanh.pop %v2606
    %v2614 = vmul.f32 %v2612, 0.0
    %2616 = vrot.lane.b32.xlu0 %v2613, 64
    %v2617 = vpop.permute.xlu0 %2616
    %v2619 = vmul.f32 %v2612, %v2617
    %2621 = vrot.lane.b32.xlu0 %v2619, 32
    %v2622 = vpop.permute.xlu0 %2621
    %v2624 = vadd.f32 %v2614, %v2622
    %v2625 = vtanh.pop %v2624
    %2627 = vrot.lane.b32.xlu0 %v2625, 64
    %v2628 = vpop.permute.xlu0 %2627
    %v2630 = vmul.f32 %v2612, %v2628
    %v2631 = vld [vmem:[#allocation3 + $0x38] sm:$0xff]
    %2632 = vmatprep.subr.mxu0 0.0
    %2633 = vmatpush1.msra.mxu0 0.0
    %2634 = vmatprep.subr.mxu0 0.0
    %2635 = vmatpush1.msra.mxu0 0.0
    %2636 = vmatprep.subr.mxu0 0.0
    %2637 = vmatpush1.msra.mxu0 0.0
    %2638 = vmatprep.subr.mxu0 0.0
    %2639 = vmatpush1.msra.mxu0 0.0
    %2640 = vmatprep.subr.mxu0 0.0
    %2641 = vmatpush1.msra.mxu0 0.0
    %2642 = vmatprep.subr.mxu0 0.0
    %2643 = vmatpush1.msra.mxu0 0.0
    %2644 = vmatprep.subr.mxu0 0.0
    %2645 = vmatpush1.msra.mxu0 0.0
    %2646 = vmatprep.subr.mxu0 0.0
    %2647 = vmatpush1.msra.mxu0 0.0
    %2648 = vmatprep.subr.mxu0 0.0
    %2649 = vmatpush1.msra.mxu0 0.0
    %2650 = vmatprep.subr.mxu0 0.0
    %2651 = vmatpush1.msra.mxu0 0.0
    %2652 = vmatprep.subr.mxu0 0.0
    %2653 = vmatpush1.msra.mxu0 0.0
    %2654 = vmatprep.subr.mxu0 0.0
    %2655 = vmatpush1.msra.mxu0 0.0
    %2656 = vmatprep.subr.mxu0 0.0
    %2657 = vmatpush1.msra.mxu0 %v2530
    %2658 = vmatprep.subr.mxu0 0.0
    %2659 = vmatpush1.msra.mxu0 %v2529
    %2660 = vmatprep.subr.mxu0 0.0
    %2661 = vmatpush1.msra.mxu0 %v2528
    %2662 = vmatprep.subr.mxu0 0.0
    %2663 = vmatpush1.msra.mxu0 %v2527
    %2664 = vmatprep.subr.mxu0 0.0
    %2665 = vmatpush2.msra.mxu0 0.0
    %2666 = vmatprep.subr.mxu0 0.0
    %2667 = vmatpush2.msra.mxu0 0.0
    %2668 = vmatprep.subr.mxu0 0.0
    %2669 = vmatpush2.msra.mxu0 0.0
    %2670 = vmatprep.subr.mxu0 0.0
    %2671 = vmatpush2.msra.mxu0 0.0
    %2672 = vmatprep.subr.mxu0 0.0
    %2673 = vmatpush2.msra.mxu0 0.0
    %2674 = vmatprep.subr.mxu0 0.0
    %2675 = vmatpush2.msra.mxu0 0.0
    %2676 = vmatprep.subr.mxu0 0.0
    %2677 = vmatpush2.msra.mxu0 0.0
    %2678 = vmatprep.subr.mxu0 0.0
    %2679 = vmatpush2.msra.mxu0 0.0
    %2680 = vmatprep.subr.mxu0 0.0
    %2681 = vmatpush2.msra.mxu0 0.0
    %2682 = vmatprep.subr.mxu0 0.0
    %2683 = vmatpush2.msra.mxu0 0.0
    %2684 = vmatprep.subr.mxu0 0.0
    %2685 = vmatpush2.msra.mxu0 0.0
    %2686 = vmatprep.subr.mxu0 0.0
    %2687 = vmatpush2.msra.mxu0 0.0
    %2688 = vmatprep.subr.mxu0 0.0
    %2689 = vmatpush2.msra.mxu0 0.0
    %2690 = vmatprep.subr.mxu0 0.0
    %2691 = vmatpush2.msra.mxu0 0.0
    %2692 = vmatprep.subr.mxu0 0.0
    %2693 = vmatpush2.msra.mxu0 0.0
    %2694 = vmatprep.subr.mxu0 0.0
    %2695 = vmatpush2.msra.mxu0 0.0
    %2696 = vmatprep.mubr.f32.mxu0 0.0
    %2697 = vmatmul.mubr.f32.gmra.mxu0 %v400
    %v2698 = vpop.f32.mrf.mxu0
    %v2699 = vadd.f32 0.0, %v2698
    %v2700 = vpop.f32.mrf.mxu0
    %2701 = vdwg.mxu0
    %v2702 = vadd.f32 %v2631, %v2699
    %v2703 = vxor.u32 %v2702, 2147483648
    %v2704 = vmul.f32 %v2703, 1.442695
    %v2705 = vpow.pop %v2704
    %v2706 = vadd.f32 %v2705, 1.0
    %v2707 = vrcp.pop %v2706
    %v2708 = vmul.f32 1.0, %v2707
    %v2709 = vtanh.pop %v2702
    %v2710 = vmul.f32 %v2708, 0.0
    %2712 = vrot.lane.b32.xlu0 %v2709, 64
    %v2713 = vpop.permute.xlu0 %2712
    %v2715 = vmul.f32 %v2708, %v2713
    %2717 = vrot.lane.b32.xlu0 %v2715, 32
    %v2718 = vpop.permute.xlu0 %2717
    %v2720 = vadd.f32 %v2710, %v2718
    %v2721 = vtanh.pop %v2720
    %2723 = vrot.lane.b32.xlu0 %v2721, 64
    %v2724 = vpop.permute.xlu0 %2723
    %v2726 = vmul.f32 %v2708, %v2724
    %v2727 = vsel %vm2532, 1, 0
    %2728 = vset.pattern.permute.xlu0 0
    %2729 = vperm.xlu0 %2728, %v2727
    %v2730 = vpop.permute.xlu0 %2729
    %vm2731 = vcmp.eq.s32.totalorder %v2730, 1
    %v2732 = vsel %vm2731, %v2630, 0.0
    %2734 = vrot.lane.b32.xlu0 %v2732, 32
    %v2735 = vpop.permute.xlu0 %2734
    %2737 = vst.msk [vmem:[#allocation5] sm:$0xff] %vm398, %v2735
    %v2738 = vsel %vm2534, 1, 0
    %2739 = vset.pattern.permute.xlu0 0
    %2740 = vperm.xlu0 %2739, %v2738
    %v2741 = vpop.permute.xlu0 %2740
    %vm2742 = vcmp.eq.s32.totalorder %v2741, 1
    %v2743 = vsel %vm2742, %v2726, 0.0
    %2745 = vrot.lane.b32.xlu0 %v2743, 64
    %v2746 = vpop.permute.xlu0 %2745
    %2748 = vst.msk [vmem:[#allocation5 + $0x38] sm:$0xff] %vm614, %v2746
    %v2749 = vsel %vm2731, %v2624, 0.0
    %v2750 = vsel %vm2742, %v2720, 0.0
    %v2751 = vld [vmem:[%s1 + $0x8] sm:$0xff]
    %vm2752 = vcmp.gt.f32.partialorder %v2751, 0.5
    %v2753 = vld [vmem:[%s1 + $0x30] sm:$0xff]
    %vm2754 = vcmp.gt.f32.partialorder %v2753, 0.5
    %v2755 = vld [vmem:[#allocation2 + $0x8] sm:$0xff]
    %v2756 = vsel %vm398, %v2735, 0
    %2758 = vmatprep.subr.mxu0 0.0
    %2759 = vmatpush1.msra.mxu0 0.0
    %2760 = vmatprep.subr.mxu0 0.0
    %2761 = vmatpush1.msra.mxu0 0.0
    %2762 = vmatprep.subr.mxu0 0.0
    %2763 = vmatpush1.msra.mxu0 0.0
    %2764 = vmatprep.subr.mxu0 0.0
    %2765 = vmatpush1.msra.mxu0 0.0
    %2766 = vmatprep.subr.mxu0 0.0
    %2767 = vmatpush1.msra.mxu0 0.0
    %2768 = vmatprep.subr.mxu0 0.0
    %2769 = vmatpush1.msra.mxu0 0.0
    %2770 = vmatprep.subr.mxu0 0.0
    %2771 = vmatpush1.msra.mxu0 0.0
    %2772 = vmatprep.subr.mxu0 0.0
    %2773 = vmatpush1.msra.mxu0 0.0
    %2774 = vmatprep.subr.mxu0 0.0
    %2775 = vmatpush1.msra.mxu0 0.0
    %2776 = vmatprep.subr.mxu0 0.0
    %2777 = vmatpush1.msra.mxu0 0.0
    %2778 = vmatprep.subr.mxu0 0.0
    %2779 = vmatpush1.msra.mxu0 0.0
    %2780 = vmatprep.subr.mxu0 0.0
    %2781 = vmatpush1.msra.mxu0 0.0
    %2782 = vmatprep.subr.mxu0 0.0
    %2783 = vmatpush1.msra.mxu0 %v2526
    %2784 = vmatprep.subr.mxu0 0.0
    %2785 = vmatpush1.msra.mxu0 %v2525
    %2786 = vmatprep.subr.mxu0 0.0
    %2787 = vmatpush1.msra.mxu0 %v2524
    %2788 = vmatprep.subr.mxu0 0.0
    %2789 = vmatpush1.msra.mxu0 %v2523
    %2790 = vmatprep.subr.mxu0 0.0
    %2791 = vmatpush2.msra.mxu0 0.0
    %2792 = vmatprep.subr.mxu0 0.0
    %2793 = vmatpush2.msra.mxu0 0.0
    %2794 = vmatprep.subr.mxu0 0.0
    %2795 = vmatpush2.msra.mxu0 0.0
    %2796 = vmatprep.subr.mxu0 0.0
    %2797 = vmatpush2.msra.mxu0 0.0
    %2798 = vmatprep.subr.mxu0 0.0
    %2799 = vmatpush2.msra.mxu0 0.0
    %2800 = vmatprep.subr.mxu0 0.0
    %2801 = vmatpush2.msra.mxu0 0.0
    %2802 = vmatprep.subr.mxu0 0.0
    %2803 = vmatpush2.msra.mxu0 0.0
    %2804 = vmatprep.subr.mxu0 0.0
    %2805 = vmatpush2.msra.mxu0 0.0
    %2806 = vmatprep.subr.mxu0 0.0
    %2807 = vmatpush2.msra.mxu0 0.0
    %2808 = vmatprep.subr.mxu0 0.0
    %2809 = vmatpush2.msra.mxu0 0.0
    %2810 = vmatprep.subr.mxu0 0.0
    %2811 = vmatpush2.msra.mxu0 0.0
    %2812 = vmatprep.subr.mxu0 0.0
    %2813 = vmatpush2.msra.mxu0 0.0
    %2814 = vmatprep.subr.mxu0 0.0
    %2815 = vmatpush2.msra.mxu0 0.0
    %2816 = vmatprep.subr.mxu0 0.0
    %2817 = vmatpush2.msra.mxu0 0.0
    %2818 = vmatprep.subr.mxu0 0.0
    %2819 = vmatpush2.msra.mxu0 0.0
    %2820 = vmatprep.subr.mxu0 0.0
    %2821 = vmatpush2.msra.mxu0 0.0
    %2822 = vmatprep.mubr.f32.mxu0 0.0
    %2823 = vmatmul.mubr.f32.gmra.mxu0 %v2756
    %v2824 = vpop.f32.mrf.mxu0
    %v2825 = vadd.f32 0.0, %v2824
    %v2826 = vpop.f32.mrf.mxu0
    %2827 = vdwg.mxu0
    %v2828 = vadd.f32 %v2755, %v2825
    %v2829 = vxor.u32 %v2828, 2147483648
    %v2830 = vmul.f32 %v2829, 1.442695
    %v2831 = vpow.pop %v2830
    %v2832 = vadd.f32 %v2831, 1.0
    %v2833 = vrcp.pop %v2832
    %v2834 = vmul.f32 1.0, %v2833
    %v2835 = vtanh.pop %v2828
    %v2836 = vmul.f32 %v2834, %v2749
    %2838 = vrot.lane.b32.xlu0 %v2835, 64
    %v2839 = vpop.permute.xlu0 %2838
    %v2841 = vmul.f32 %v2834, %v2839
    %2843 = vrot.lane.b32.xlu0 %v2841, 32
    %v2844 = vpop.permute.xlu0 %2843
    %v2846 = vadd.f32 %v2836, %v2844
    %v2847 = vtanh.pop %v2846
    %2849 = vrot.lane.b32.xlu0 %v2847, 64
    %v2850 = vpop.permute.xlu0 %2849
    %v2852 = vmul.f32 %v2834, %v2850
    %v2853 = vld [vmem:[#allocation3 + $0x30] sm:$0xff]
    %2854 = vrot.lane.b32.xlu0 %v2743, 32
    %v2855 = vpop.permute.xlu0 %2854
    %v2856 = vsel %vm398, %v2855, 0
    %2858 = vmatprep.subr.mxu0 0.0
    %2859 = vmatpush1.msra.mxu0 0.0
    %2860 = vmatprep.subr.mxu0 0.0
    %2861 = vmatpush1.msra.mxu0 0.0
    %2862 = vmatprep.subr.mxu0 0.0
    %2863 = vmatpush1.msra.mxu0 0.0
    %2864 = vmatprep.subr.mxu0 0.0
    %2865 = vmatpush1.msra.mxu0 0.0
    %2866 = vmatprep.subr.mxu0 0.0
    %2867 = vmatpush1.msra.mxu0 0.0
    %2868 = vmatprep.subr.mxu0 0.0
    %2869 = vmatpush1.msra.mxu0 0.0
    %2870 = vmatprep.subr.mxu0 0.0
    %2871 = vmatpush1.msra.mxu0 0.0
    %2872 = vmatprep.subr.mxu0 0.0
    %2873 = vmatpush1.msra.mxu0 0.0
    %2874 = vmatprep.subr.mxu0 0.0
    %2875 = vmatpush1.msra.mxu0 0.0
    %2876 = vmatprep.subr.mxu0 0.0
    %2877 = vmatpush1.msra.mxu0 0.0
    %2878 = vmatprep.subr.mxu0 0.0
    %2879 = vmatpush1.msra.mxu0 0.0
    %2880 = vmatprep.subr.mxu0 0.0
    %2881 = vmatpush1.msra.mxu0 0.0
    %2882 = vmatprep.subr.mxu0 0.0
    %2883 = vmatpush1.msra.mxu0 %v2530
    %2884 = vmatprep.subr.mxu0 0.0
    %2885 = vmatpush1.msra.mxu0 %v2529
    %2886 = vmatprep.subr.mxu0 0.0
    %2887 = vmatpush1.msra.mxu0 %v2528
    %2888 = vmatprep.subr.mxu0 0.0
    %2889 = vmatpush1.msra.mxu0 %v2527
    %2890 = vmatprep.subr.mxu0 0.0
    %2891 = vmatpush2.msra.mxu0 0.0
    %2892 = vmatprep.subr.mxu0 0.0
    %2893 = vmatpush2.msra.mxu0 0.0
    %2894 = vmatprep.subr.mxu0 0.0
    %2895 = vmatpush2.msra.mxu0 0.0
    %2896 = vmatprep.subr.mxu0 0.0
    %2897 = vmatpush2.msra.mxu0 0.0
    %2898 = vmatprep.subr.mxu0 0.0
    %2899 = vmatpush2.msra.mxu0 0.0
    %2900 = vmatprep.subr.mxu0 0.0
    %2901 = vmatpush2.msra.mxu0 0.0
    %2902 = vmatprep.subr.mxu0 0.0
    %2903 = vmatpush2.msra.mxu0 0.0
    %2904 = vmatprep.subr.mxu0 0.0
    %2905 = vmatpush2.msra.mxu0 0.0
    %2906 = vmatprep.subr.mxu0 0.0
    %2907 = vmatpush2.msra.mxu0 0.0
    %2908 = vmatprep.subr.mxu0 0.0
    %2909 = vmatpush2.msra.mxu0 0.0
    %2910 = vmatprep.subr.mxu0 0.0
    %2911 = vmatpush2.msra.mxu0 0.0
    %2912 = vmatprep.subr.mxu0 0.0
    %2913 = vmatpush2.msra.mxu0 0.0
    %2914 = vmatprep.subr.mxu0 0.0
    %2915 = vmatpush2.msra.mxu0 0.0
    %2916 = vmatprep.subr.mxu0 0.0
    %2917 = vmatpush2.msra.mxu0 0.0
    %2918 = vmatprep.subr.mxu0 0.0
    %2919 = vmatpush2.msra.mxu0 0.0
    %2920 = vmatprep.subr.mxu0 0.0
    %2921 = vmatpush2.msra.mxu0 0.0
    %2922 = vmatprep.mubr.f32.mxu0 0.0
    %2923 = vmatmul.mubr.f32.gmra.mxu0 %v2856
    %v2924 = vpop.f32.mrf.mxu0
    %v2925 = vadd.f32 0.0, %v2924
    %v2926 = vpop.f32.mrf.mxu0
    %2927 = vdwg.mxu0
    %v2928 = vadd.f32 %v2853, %v2925
    %v2929 = vxor.u32 %v2928, 2147483648
    %v2930 = vmul.f32 %v2929, 1.442695
    %v2931 = vpow.pop %v2930
    %v2932 = vadd.f32 %v2931, 1.0
    %v2933 = vrcp.pop %v2932
    %v2934 = vmul.f32 1.0, %v2933
    %v2935 = vtanh.pop %v2928
    %v2936 = vmul.f32 %v2934, %v2750
    %2938 = vrot.lane.b32.xlu0 %v2935, 64
    %v2939 = vpop.permute.xlu0 %2938
    %v2941 = vmul.f32 %v2934, %v2939
    %2943 = vrot.lane.b32.xlu0 %v2941, 32
    %v2944 = vpop.permute.xlu0 %2943
    %v2946 = vadd.f32 %v2936, %v2944
    %v2947 = vtanh.pop %v2946
    %2949 = vrot.lane.b32.xlu0 %v2947, 64
    %v2950 = vpop.permute.xlu0 %2949
    %v2952 = vmul.f32 %v2934, %v2950
    %v2953 = vsel %vm2752, 1, 0
    %2954 = vset.pattern.permute.xlu0 0
    %2955 = vperm.xlu0 %2954, %v2953
    %v2956 = vpop.permute.xlu0 %2955
    %vm2957 = vcmp.eq.s32.totalorder %v2956, 1
    %v2958 = vsel %vm2957, %v2852, 0.0
    %2960 = vrot.lane.b32.xlu0 %v2958, 32
    %v2961 = vpop.permute.xlu0 %2960
    %2963 = vst.msk [vmem:[#allocation5 + $0x8] sm:$0xff] %vm398, %v2961
    %v2964 = vsel %vm2754, 1, 0
    %2965 = vset.pattern.permute.xlu0 0
    %2966 = vperm.xlu0 %2965, %v2964
    %v2967 = vpop.permute.xlu0 %2966
    %vm2968 = vcmp.eq.s32.totalorder %v2967, 1
    %v2969 = vsel %vm2968, %v2952, 0.0
    %2971 = vrot.lane.b32.xlu0 %v2969, 64
    %v2972 = vpop.permute.xlu0 %2971
    %2974 = vst.msk [vmem:[#allocation5 + $0x30] sm:$0xff] %vm614, %v2972
    %v2975 = vsel %vm2957, %v2852, %v2732
    %v2976 = vsel %vm2957, %v2846, %v2749
    %v2977 = vsel %vm2968, %v2952, %v2743
    %v2978 = vsel %vm2968, %v2946, %v2750
    %v2979 = vld [vmem:[%s1 + $0x10] sm:$0xff]
    %vm2980 = vcmp.gt.f32.partialorder %v2979, 0.5
    %v2981 = vld [vmem:[%s1 + $0x28] sm:$0xff]
    %vm2982 = vcmp.gt.f32.partialorder %v2981, 0.5
    %v2983 = vld [vmem:[#allocation2 + $0x10] sm:$0xff]
    %2985 = vrot.lane.b32.xlu0 %v2975, 32
    %v2986 = vpop.permute.xlu0 %2985
    %v2987 = vsel %vm398, %v2986, 0
    %2989 = vmatprep.subr.mxu0 0.0
    %2990 = vmatpush1.msra.mxu0 0.0
    %2991 = vmatprep.subr.mxu0 0.0
    %2992 = vmatpush1.msra.mxu0 0.0
    %2993 = vmatprep.subr.mxu0 0.0
    %2994 = vmatpush1.msra.mxu0 0.0
    %2995 = vmatprep.subr.mxu0 0.0
    %2996 = vmatpush1.msra.mxu0 0.0
    %2997 = vmatprep.subr.mxu0 0.0
    %2998 = vmatpush1.msra.mxu0 0.0
    %2999 = vmatprep.subr.mxu0 0.0
    %3000 = vmatpush1.msra.mxu0 0.0
    %3001 = vmatprep.subr.mxu0 0.0
    %3002 = vmatpush1.msra.mxu0 0.0
    %3003 = vmatprep.subr.mxu0 0.0
    %3004 = vmatpush1.msra.mxu0 0.0
    %3005 = vmatprep.subr.mxu0 0.0
    %3006 = vmatpush1.msra.mxu0 0.0
    %3007 = vmatprep.subr.mxu0 0.0
    %3008 = vmatpush1.msra.mxu0 0.0
    %3009 = vmatprep.subr.mxu0 0.0
    %3010 = vmatpush1.msra.mxu0 0.0
    %3011 = vmatprep.subr.mxu0 0.0
    %3012 = vmatpush1.msra.mxu0 0.0
    %3013 = vmatprep.subr.mxu0 0.0
    %3014 = vmatpush1.msra.mxu0 %v2526
    %3015 = vmatprep.subr.mxu0 0.0
    %3016 = vmatpush1.msra.mxu0 %v2525
    %3017 = vmatprep.subr.mxu0 0.0
    %3018 = vmatpush1.msra.mxu0 %v2524
    %3019 = vmatprep.subr.mxu0 0.0
    %3020 = vmatpush1.msra.mxu0 %v2523
    %3021 = vmatprep.subr.mxu0 0.0
    %3022 = vmatpush2.msra.mxu0 0.0
    %3023 = vmatprep.subr.mxu0 0.0
    %3024 = vmatpush2.msra.mxu0 0.0
    %3025 = vmatprep.subr.mxu0 0.0
    %3026 = vmatpush2.msra.mxu0 0.0
    %3027 = vmatprep.subr.mxu0 0.0
    %3028 = vmatpush2.msra.mxu0 0.0
    %3029 = vmatprep.subr.mxu0 0.0
    %3030 = vmatpush2.msra.mxu0 0.0
    %3031 = vmatprep.subr.mxu0 0.0
    %3032 = vmatpush2.msra.mxu0 0.0
    %3033 = vmatprep.subr.mxu0 0.0
    %3034 = vmatpush2.msra.mxu0 0.0
    %3035 = vmatprep.subr.mxu0 0.0
    %3036 = vmatpush2.msra.mxu0 0.0
    %3037 = vmatprep.subr.mxu0 0.0
    %3038 = vmatpush2.msra.mxu0 0.0
    %3039 = vmatprep.subr.mxu0 0.0
    %3040 = vmatpush2.msra.mxu0 0.0
    %3041 = vmatprep.subr.mxu0 0.0
    %3042 = vmatpush2.msra.mxu0 0.0
    %3043 = vmatprep.subr.mxu0 0.0
    %3044 = vmatpush2.msra.mxu0 0.0
    %3045 = vmatprep.subr.mxu0 0.0
    %3046 = vmatpush2.msra.mxu0 0.0
    %3047 = vmatprep.subr.mxu0 0.0
    %3048 = vmatpush2.msra.mxu0 0.0
    %3049 = vmatprep.subr.mxu0 0.0
    %3050 = vmatpush2.msra.mxu0 0.0
    %3051 = vmatprep.subr.mxu0 0.0
    %3052 = vmatpush2.msra.mxu0 0.0
    %3053 = vmatprep.mubr.f32.mxu0 0.0
    %3054 = vmatmul.mubr.f32.gmra.mxu0 %v2987
    %v3055 = vpop.f32.mrf.mxu0
    %v3056 = vadd.f32 0.0, %v3055
    %v3057 = vpop.f32.mrf.mxu0
    %3058 = vdwg.mxu0
    %v3059 = vadd.f32 %v2983, %v3056
    %v3060 = vxor.u32 %v3059, 2147483648
    %v3061 = vmul.f32 %v3060, 1.442695
    %v3062 = vpow.pop %v3061
    %v3063 = vadd.f32 %v3062, 1.0
    %v3064 = vrcp.pop %v3063
    %v3065 = vmul.f32 1.0, %v3064
    %v3066 = vtanh.pop %v3059
    %v3067 = vmul.f32 %v3065, %v2976
    %3069 = vrot.lane.b32.xlu0 %v3066, 64
    %v3070 = vpop.permute.xlu0 %3069
    %v3072 = vmul.f32 %v3065, %v3070
    %3074 = vrot.lane.b32.xlu0 %v3072, 32
    %v3075 = vpop.permute.xlu0 %3074
    %v3077 = vadd.f32 %v3067, %v3075
    %v3078 = vtanh.pop %v3077
    %3080 = vrot.lane.b32.xlu0 %v3078, 64
    %v3081 = vpop.permute.xlu0 %3080
    %v3083 = vmul.f32 %v3065, %v3081
    %v3084 = vld [vmem:[#allocation3 + $0x28] sm:$0xff]
    %3086 = vrot.lane.b32.xlu0 %v2977, 32
    %v3087 = vpop.permute.xlu0 %3086
    %v3088 = vsel %vm398, %v3087, 0
    %3090 = vmatprep.subr.mxu0 0.0
    %3091 = vmatpush1.msra.mxu0 0.0
    %3092 = vmatprep.subr.mxu0 0.0
    %3093 = vmatpush1.msra.mxu0 0.0
    %3094 = vmatprep.subr.mxu0 0.0
    %3095 = vmatpush1.msra.mxu0 0.0
    %3096 = vmatprep.subr.mxu0 0.0
    %3097 = vmatpush1.msra.mxu0 0.0
    %3098 = vmatprep.subr.mxu0 0.0
    %3099 = vmatpush1.msra.mxu0 0.0
    %3100 = vmatprep.subr.mxu0 0.0
    %3101 = vmatpush1.msra.mxu0 0.0
    %3102 = vmatprep.subr.mxu0 0.0
    %3103 = vmatpush1.msra.mxu0 0.0
    %3104 = vmatprep.subr.mxu0 0.0
    %3105 = vmatpush1.msra.mxu0 0.0
    %3106 = vmatprep.subr.mxu0 0.0
    %3107 = vmatpush1.msra.mxu0 0.0
    %3108 = vmatprep.subr.mxu0 0.0
    %3109 = vmatpush1.msra.mxu0 0.0
    %3110 = vmatprep.subr.mxu0 0.0
    %3111 = vmatpush1.msra.mxu0 0.0
    %3112 = vmatprep.subr.mxu0 0.0
    %3113 = vmatpush1.msra.mxu0 0.0
    %3114 = vmatprep.subr.mxu0 0.0
    %3115 = vmatpush1.msra.mxu0 %v2530
    %3116 = vmatprep.subr.mxu0 0.0
    %3117 = vmatpush1.msra.mxu0 %v2529
    %3118 = vmatprep.subr.mxu0 0.0
    %3119 = vmatpush1.msra.mxu0 %v2528
    %3120 = vmatprep.subr.mxu0 0.0
    %3121 = vmatpush1.msra.mxu0 %v2527
    %3122 = vmatprep.subr.mxu0 0.0
    %3123 = vmatpush2.msra.mxu0 0.0
    %3124 = vmatprep.subr.mxu0 0.0
    %3125 = vmatpush2.msra.mxu0 0.0
    %3126 = vmatprep.subr.mxu0 0.0
    %3127 = vmatpush2.msra.mxu0 0.0
    %3128 = vmatprep.subr.mxu0 0.0
    %3129 = vmatpush2.msra.mxu0 0.0
    %3130 = vmatprep.subr.mxu0 0.0
    %3131 = vmatpush2.msra.mxu0 0.0
    %3132 = vmatprep.subr.mxu0 0.0
    %3133 = vmatpush2.msra.mxu0 0.0
    %3134 = vmatprep.subr.mxu0 0.0
    %3135 = vmatpush2.msra.mxu0 0.0
    %3136 = vmatprep.subr.mxu0 0.0
    %3137 = vmatpush2.msra.mxu0 0.0
    %3138 = vmatprep.subr.mxu0 0.0
    %3139 = vmatpush2.msra.mxu0 0.0
    %3140 = vmatprep.subr.mxu0 0.0
    %3141 = vmatpush2.msra.mxu0 0.0
    %3142 = vmatprep.subr.mxu0 0.0
    %3143 = vmatpush2.msra.mxu0 0.0
    %3144 = vmatprep.subr.mxu0 0.0
    %3145 = vmatpush2.msra.mxu0 0.0
    %3146 = vmatprep.subr.mxu0 0.0
    %3147 = vmatpush2.msra.mxu0 0.0
    %3148 = vmatprep.subr.mxu0 0.0
    %3149 = vmatpush2.msra.mxu0 0.0
    %3150 = vmatprep.subr.mxu0 0.0
    %3151 = vmatpush2.msra.mxu0 0.0
    %3152 = vmatprep.subr.mxu0 0.0
    %3153 = vmatpush2.msra.mxu0 0.0
    %3154 = vmatprep.mubr.f32.mxu0 0.0
    %3155 = vmatmul.mubr.f32.gmra.mxu0 %v3088
    %v3156 = vpop.f32.mrf.mxu0
    %v3157 = vadd.f32 0.0, %v3156
    %v3158 = vpop.f32.mrf.mxu0
    %3159 = vdwg.mxu0
    %v3160 = vadd.f32 %v3084, %v3157
    %v3161 = vxor.u32 %v3160, 2147483648
    %v3162 = vmul.f32 %v3161, 1.442695
    %v3163 = vpow.pop %v3162
    %v3164 = vadd.f32 %v3163, 1.0
    %v3165 = vrcp.pop %v3164
    %v3166 = vmul.f32 1.0, %v3165
    %v3167 = vtanh.pop %v3160
    %v3168 = vmul.f32 %v3166, %v2978
    %3170 = vrot.lane.b32.xlu0 %v3167, 64
    %v3171 = vpop.permute.xlu0 %3170
    %v3173 = vmul.f32 %v3166, %v3171
    %3175 = vrot.lane.b32.xlu0 %v3173, 32
    %v3176 = vpop.permute.xlu0 %3175
    %v3178 = vadd.f32 %v3168, %v3176
    %v3179 = vtanh.pop %v3178
    %3181 = vrot.lane.b32.xlu0 %v3179, 64
    %v3182 = vpop.permute.xlu0 %3181
    %v3184 = vmul.f32 %v3166, %v3182
    %v3185 = vsel %vm2980, 1, 0
    %3186 = vset.pattern.permute.xlu0 0
    %3187 = vperm.xlu0 %3186, %v3185
    %v3188 = vpop.permute.xlu0 %3187
    %vm3189 = vcmp.eq.s32.totalorder %v3188, 1
    %v3190 = vsel %vm3189, %v3083, 0.0
    %3192 = vrot.lane.b32.xlu0 %v3190, 32
    %v3193 = vpop.permute.xlu0 %3192
    %3195 = vst.msk [vmem:[#allocation5 + $0x10] sm:$0xff] %vm398, %v3193
    %v3196 = vsel %vm2982, 1, 0
    %3197 = vset.pattern.permute.xlu0 0
    %3198 = vperm.xlu0 %3197, %v3196
    %v3199 = vpop.permute.xlu0 %3198
    %vm3200 = vcmp.eq.s32.totalorder %v3199, 1
    %v3201 = vsel %vm3200, %v3184, 0.0
    %3203 = vrot.lane.b32.xlu0 %v3201, 64
    %v3204 = vpop.permute.xlu0 %3203
    %3206 = vst.msk [vmem:[#allocation5 + $0x28] sm:$0xff] %vm614, %v3204
    %v3207 = vsel %vm3189, %v3083, %v2975
    %v3208 = vsel %vm3189, %v3077, %v2976
    %v3209 = vsel %vm3200, %v3184, %v2977
    %v3210 = vsel %vm3200, %v3178, %v2978
    %v3211 = vld [vmem:[%s1 + $0x18] sm:$0xff]
    %vm3212 = vcmp.gt.f32.partialorder %v3211, 0.5
    %v3213 = vld [vmem:[%s1 + $0x20] sm:$0xff]
    %vm3214 = vcmp.gt.f32.partialorder %v3213, 0.5
    %v3215 = vld [vmem:[#allocation2 + $0x18] sm:$0xff]
    %3217 = vrot.lane.b32.xlu0 %v3207, 32
    %v3218 = vpop.permute.xlu0 %3217
    %v3219 = vsel %vm398, %v3218, 0
    %3221 = vmatprep.subr.mxu0 0.0
    %3222 = vmatpush1.msra.mxu0 0.0
    %3223 = vmatprep.subr.mxu0 0.0
    %3224 = vmatpush1.msra.mxu0 0.0
    %3225 = vmatprep.subr.mxu0 0.0
    %3226 = vmatpush1.msra.mxu0 0.0
    %3227 = vmatprep.subr.mxu0 0.0
    %3228 = vmatpush1.msra.mxu0 0.0
    %3229 = vmatprep.subr.mxu0 0.0
    %3230 = vmatpush1.msra.mxu0 0.0
    %3231 = vmatprep.subr.mxu0 0.0
    %3232 = vmatpush1.msra.mxu0 0.0
    %3233 = vmatprep.subr.mxu0 0.0
    %3234 = vmatpush1.msra.mxu0 0.0
    %3235 = vmatprep.subr.mxu0 0.0
    %3236 = vmatpush1.msra.mxu0 0.0
    %3237 = vmatprep.subr.mxu0 0.0
    %3238 = vmatpush1.msra.mxu0 0.0
    %3239 = vmatprep.subr.mxu0 0.0
    %3240 = vmatpush1.msra.mxu0 0.0
    %3241 = vmatprep.subr.mxu0 0.0
    %3242 = vmatpush1.msra.mxu0 0.0
    %3243 = vmatprep.subr.mxu0 0.0
    %3244 = vmatpush1.msra.mxu0 0.0
    %3245 = vmatprep.subr.mxu0 0.0
    %3246 = vmatpush1.msra.mxu0 %v2526
    %3247 = vmatprep.subr.mxu0 0.0
    %3248 = vmatpush1.msra.mxu0 %v2525
    %3249 = vmatprep.subr.mxu0 0.0
    %3250 = vmatpush1.msra.mxu0 %v2524
    %3251 = vmatprep.subr.mxu0 0.0
    %3252 = vmatpush1.msra.mxu0 %v2523
    %3253 = vmatprep.subr.mxu0 0.0
    %3254 = vmatpush2.msra.mxu0 0.0
    %3255 = vmatprep.subr.mxu0 0.0
    %3256 = vmatpush2.msra.mxu0 0.0
    %3257 = vmatprep.subr.mxu0 0.0
    %3258 = vmatpush2.msra.mxu0 0.0
    %3259 = vmatprep.subr.mxu0 0.0
    %3260 = vmatpush2.msra.mxu0 0.0
    %3261 = vmatprep.subr.mxu0 0.0
    %3262 = vmatpush2.msra.mxu0 0.0
    %3263 = vmatprep.subr.mxu0 0.0
    %3264 = vmatpush2.msra.mxu0 0.0
    %3265 = vmatprep.subr.mxu0 0.0
    %3266 = vmatpush2.msra.mxu0 0.0
    %3267 = vmatprep.subr.mxu0 0.0
    %3268 = vmatpush2.msra.mxu0 0.0
    %3269 = vmatprep.subr.mxu0 0.0
    %3270 = vmatpush2.msra.mxu0 0.0
    %3271 = vmatprep.subr.mxu0 0.0
    %3272 = vmatpush2.msra.mxu0 0.0
    %3273 = vmatprep.subr.mxu0 0.0
    %3274 = vmatpush2.msra.mxu0 0.0
    %3275 = vmatprep.subr.mxu0 0.0
    %3276 = vmatpush2.msra.mxu0 0.0
    %3277 = vmatprep.subr.mxu0 0.0
    %3278 = vmatpush2.msra.mxu0 0.0
    %3279 = vmatprep.subr.mxu0 0.0
    %3280 = vmatpush2.msra.mxu0 0.0
    %3281 = vmatprep.subr.mxu0 0.0
    %3282 = vmatpush2.msra.mxu0 0.0
    %3283 = vmatprep.subr.mxu0 0.0
    %3284 = vmatpush2.msra.mxu0 0.0
    %3285 = vmatprep.mubr.f32.mxu0 0.0
    %3286 = vmatmul.mubr.f32.gmra.mxu0 %v3219
    %v3287 = vpop.f32.mrf.mxu0
    %v3288 = vadd.f32 0.0, %v3287
    %v3289 = vpop.f32.mrf.mxu0
    %3290 = vdwg.mxu0
    %v3291 = vadd.f32 %v3215, %v3288
    %v3292 = vxor.u32 %v3291, 2147483648
    %v3293 = vmul.f32 %v3292, 1.442695
    %v3294 = vpow.pop %v3293
    %v3295 = vadd.f32 %v3294, 1.0
    %v3296 = vrcp.pop %v3295
    %v3297 = vmul.f32 1.0, %v3296
    %v3298 = vtanh.pop %v3291
    %v3299 = vmul.f32 %v3297, %v3208
    %3301 = vrot.lane.b32.xlu0 %v3298, 64
    %v3302 = vpop.permute.xlu0 %3301
    %v3304 = vmul.f32 %v3297, %v3302
    %3306 = vrot.lane.b32.xlu0 %v3304, 32
    %v3307 = vpop.permute.xlu0 %3306
    %v3309 = vadd.f32 %v3299, %v3307
    %v3310 = vtanh.pop %v3309
    %3312 = vrot.lane.b32.xlu0 %v3310, 64
    %v3313 = vpop.permute.xlu0 %3312
    %v3315 = vmul.f32 %v3297, %v3313
    %v3316 = vld [vmem:[#allocation3 + $0x20] sm:$0xff]
    %3318 = vrot.lane.b32.xlu0 %v3209, 32
    %v3319 = vpop.permute.xlu0 %3318
    %v3320 = vsel %vm398, %v3319, 0
    %3322 = vmatprep.subr.mxu0 0.0
    %3323 = vmatpush1.msra.mxu0 0.0
    %3324 = vmatprep.subr.mxu0 0.0
    %3325 = vmatpush1.msra.mxu0 0.0
    %3326 = vmatprep.subr.mxu0 0.0
    %3327 = vmatpush1.msra.mxu0 0.0
    %3328 = vmatprep.subr.mxu0 0.0
    %3329 = vmatpush1.msra.mxu0 0.0
    %3330 = vmatprep.subr.mxu0 0.0
    %3331 = vmatpush1.msra.mxu0 0.0
    %3332 = vmatprep.subr.mxu0 0.0
    %3333 = vmatpush1.msra.mxu0 0.0
    %3334 = vmatprep.subr.mxu0 0.0
    %3335 = vmatpush1.msra.mxu0 0.0
    %3336 = vmatprep.subr.mxu0 0.0
    %3337 = vmatpush1.msra.mxu0 0.0
    %3338 = vmatprep.subr.mxu0 0.0
    %3339 = vmatpush1.msra.mxu0 0.0
    %3340 = vmatprep.subr.mxu0 0.0
    %3341 = vmatpush1.msra.mxu0 0.0
    %3342 = vmatprep.subr.mxu0 0.0
    %3343 = vmatpush1.msra.mxu0 0.0
    %3344 = vmatprep.subr.mxu0 0.0
    %3345 = vmatpush1.msra.mxu0 0.0
    %3346 = vmatprep.subr.mxu0 0.0
    %3347 = vmatpush1.msra.mxu0 %v2530
    %3348 = vmatprep.subr.mxu0 0.0
    %3349 = vmatpush1.msra.mxu0 %v2529
    %3350 = vmatprep.subr.mxu0 0.0
    %3351 = vmatpush1.msra.mxu0 %v2528
    %3352 = vmatprep.subr.mxu0 0.0
    %3353 = vmatpush1.msra.mxu0 %v2527
    %3354 = vmatprep.subr.mxu0 0.0
    %3355 = vmatpush2.msra.mxu0 0.0
    %3356 = vmatprep.subr.mxu0 0.0
    %3357 = vmatpush2.msra.mxu0 0.0
    %3358 = vmatprep.subr.mxu0 0.0
    %3359 = vmatpush2.msra.mxu0 0.0
    %3360 = vmatprep.subr.mxu0 0.0
    %3361 = vmatpush2.msra.mxu0 0.0
    %3362 = vmatprep.subr.mxu0 0.0
    %3363 = vmatpush2.msra.mxu0 0.0
    %3364 = vmatprep.subr.mxu0 0.0
    %3365 = vmatpush2.msra.mxu0 0.0
    %3366 = vmatprep.subr.mxu0 0.0
    %3367 = vmatpush2.msra.mxu0 0.0
    %3368 = vmatprep.subr.mxu0 0.0
    %3369 = vmatpush2.msra.mxu0 0.0
    %3370 = vmatprep.subr.mxu0 0.0
    %3371 = vmatpush2.msra.mxu0 0.0
    %3372 = vmatprep.subr.mxu0 0.0
    %3373 = vmatpush2.msra.mxu0 0.0
    %3374 = vmatprep.subr.mxu0 0.0
    %3375 = vmatpush2.msra.mxu0 0.0
    %3376 = vmatprep.subr.mxu0 0.0
    %3377 = vmatpush2.msra.mxu0 0.0
    %3378 = vmatprep.subr.mxu0 0.0
    %3379 = vmatpush2.msra.mxu0 0.0
    %3380 = vmatprep.subr.mxu0 0.0
    %3381 = vmatpush2.msra.mxu0 0.0
    %3382 = vmatprep.subr.mxu0 0.0
    %3383 = vmatpush2.msra.mxu0 0.0
    %3384 = vmatprep.subr.mxu0 0.0
    %3385 = vmatpush2.msra.mxu0 0.0
    %3386 = vmatprep.mubr.f32.mxu0 0.0
    %3387 = vmatmul.mubr.f32.gmra.mxu0 %v3320
    %v3388 = vpop.f32.mrf.mxu0
    %v3389 = vadd.f32 0.0, %v3388
    %v3390 = vpop.f32.mrf.mxu0
    %3391 = vdwg.mxu0
    %v3392 = vadd.f32 %v3316, %v3389
    %v3393 = vxor.u32 %v3392, 2147483648
    %v3394 = vmul.f32 %v3393, 1.442695
    %v3395 = vpow.pop %v3394
    %v3396 = vadd.f32 %v3395, 1.0
    %v3397 = vrcp.pop %v3396
    %v3398 = vmul.f32 1.0, %v3397
    %v3399 = vtanh.pop %v3392
    %v3400 = vmul.f32 %v3398, %v3210
    %3402 = vrot.lane.b32.xlu0 %v3399, 64
    %v3403 = vpop.permute.xlu0 %3402
    %v3405 = vmul.f32 %v3398, %v3403
    %3407 = vrot.lane.b32.xlu0 %v3405, 32
    %v3408 = vpop.permute.xlu0 %3407
    %v3410 = vadd.f32 %v3400, %v3408
    %v3411 = vtanh.pop %v3410
    %3413 = vrot.lane.b32.xlu0 %v3411, 64
    %v3414 = vpop.permute.xlu0 %3413
    %v3416 = vmul.f32 %v3398, %v3414
    %v3417 = vsel %vm3212, 1, 0
    %3418 = vset.pattern.permute.xlu0 0
    %3419 = vperm.xlu0 %3418, %v3417
    %v3420 = vpop.permute.xlu0 %3419
    %vm3421 = vcmp.eq.s32.totalorder %v3420, 1
    %v3422 = vsel %vm3421, %v3315, 0.0
    %3424 = vrot.lane.b32.xlu0 %v3422, 32
    %v3425 = vpop.permute.xlu0 %3424
    %3427 = vst.msk [vmem:[#allocation5 + $0x18] sm:$0xff] %vm398, %v3425
    %v3428 = vsel %vm3214, 1, 0
    %3429 = vset.pattern.permute.xlu0 0
    %3430 = vperm.xlu0 %3429, %v3428
    %v3431 = vpop.permute.xlu0 %3430
    %vm3432 = vcmp.eq.s32.totalorder %v3431, 1
    %v3433 = vsel %vm3432, %v3416, 0.0
    %3435 = vrot.lane.b32.xlu0 %v3433, 64
    %v3436 = vpop.permute.xlu0 %3435
    %3438 = vst.msk [vmem:[#allocation5 + $0x20] sm:$0xff] %vm614, %v3436
    %v3439 = vsel %vm3421, %v3315, %v3207
    %v3440 = vsel %vm3421, %v3309, %v3208
    %v3441 = vsel %vm3432, %v3416, %v3209
    %v3442 = vsel %vm3432, %v3410, %v3210
    %v3443 = vld [vmem:[%s1 + $0x20] sm:$0xff]
    %vm3444 = vcmp.gt.f32.partialorder %v3443, 0.5
    %v3445 = vld [vmem:[%s1 + $0x18] sm:$0xff]
    %vm3446 = vcmp.gt.f32.partialorder %v3445, 0.5
    %v3447 = vld [vmem:[#allocation2 + $0x20] sm:$0xff]
    %3449 = vrot.lane.b32.xlu0 %v3439, 32
    %v3450 = vpop.permute.xlu0 %3449
    %v3451 = vsel %vm398, %v3450, 0
    %3453 = vmatprep.subr.mxu0 0.0
    %3454 = vmatpush1.msra.mxu0 0.0
    %3455 = vmatprep.subr.mxu0 0.0
    %3456 = vmatpush1.msra.mxu0 0.0
    %3457 = vmatprep.subr.mxu0 0.0
    %3458 = vmatpush1.msra.mxu0 0.0
    %3459 = vmatprep.subr.mxu0 0.0
    %3460 = vmatpush1.msra.mxu0 0.0
    %3461 = vmatprep.subr.mxu0 0.0
    %3462 = vmatpush1.msra.mxu0 0.0
    %3463 = vmatprep.subr.mxu0 0.0
    %3464 = vmatpush1.msra.mxu0 0.0
    %3465 = vmatprep.subr.mxu0 0.0
    %3466 = vmatpush1.msra.mxu0 0.0
    %3467 = vmatprep.subr.mxu0 0.0
    %3468 = vmatpush1.msra.mxu0 0.0
    %3469 = vmatprep.subr.mxu0 0.0
    %3470 = vmatpush1.msra.mxu0 0.0
    %3471 = vmatprep.subr.mxu0 0.0
    %3472 = vmatpush1.msra.mxu0 0.0
    %3473 = vmatprep.subr.mxu0 0.0
    %3474 = vmatpush1.msra.mxu0 0.0
    %3475 = vmatprep.subr.mxu0 0.0
    %3476 = vmatpush1.msra.mxu0 0.0
    %3477 = vmatprep.subr.mxu0 0.0
    %3478 = vmatpush1.msra.mxu0 %v2526
    %3479 = vmatprep.subr.mxu0 0.0
    %3480 = vmatpush1.msra.mxu0 %v2525
    %3481 = vmatprep.subr.mxu0 0.0
    %3482 = vmatpush1.msra.mxu0 %v2524
    %3483 = vmatprep.subr.mxu0 0.0
    %3484 = vmatpush1.msra.mxu0 %v2523
    %3485 = vmatprep.subr.mxu0 0.0
    %3486 = vmatpush2.msra.mxu0 0.0
    %3487 = vmatprep.subr.mxu0 0.0
    %3488 = vmatpush2.msra.mxu0 0.0
    %3489 = vmatprep.subr.mxu0 0.0
    %3490 = vmatpush2.msra.mxu0 0.0
    %3491 = vmatprep.subr.mxu0 0.0
    %3492 = vmatpush2.msra.mxu0 0.0
    %3493 = vmatprep.subr.mxu0 0.0
    %3494 = vmatpush2.msra.mxu0 0.0
    %3495 = vmatprep.subr.mxu0 0.0
    %3496 = vmatpush2.msra.mxu0 0.0
    %3497 = vmatprep.subr.mxu0 0.0
    %3498 = vmatpush2.msra.mxu0 0.0
    %3499 = vmatprep.subr.mxu0 0.0
    %3500 = vmatpush2.msra.mxu0 0.0
    %3501 = vmatprep.subr.mxu0 0.0
    %3502 = vmatpush2.msra.mxu0 0.0
    %3503 = vmatprep.subr.mxu0 0.0
    %3504 = vmatpush2.msra.mxu0 0.0
    %3505 = vmatprep.subr.mxu0 0.0
    %3506 = vmatpush2.msra.mxu0 0.0
    %3507 = vmatprep.subr.mxu0 0.0
    %3508 = vmatpush2.msra.mxu0 0.0
    %3509 = vmatprep.subr.mxu0 0.0
    %3510 = vmatpush2.msra.mxu0 0.0
    %3511 = vmatprep.subr.mxu0 0.0
    %3512 = vmatpush2.msra.mxu0 0.0
    %3513 = vmatprep.subr.mxu0 0.0
    %3514 = vmatpush2.msra.mxu0 0.0
    %3515 = vmatprep.subr.mxu0 0.0
    %3516 = vmatpush2.msra.mxu0 0.0
    %3517 = vmatprep.mubr.f32.mxu0 0.0
    %3518 = vmatmul.mubr.f32.gmra.mxu0 %v3451
    %v3519 = vpop.f32.mrf.mxu0
    %v3520 = vadd.f32 0.0, %v3519
    %v3521 = vpop.f32.mrf.mxu0
    %3522 = vdwg.mxu0
    %v3523 = vadd.f32 %v3447, %v3520
    %v3524 = vxor.u32 %v3523, 2147483648
    %v3525 = vmul.f32 %v3524, 1.442695
    %v3526 = vpow.pop %v3525
    %v3527 = vadd.f32 %v3526, 1.0
    %v3528 = vrcp.pop %v3527
    %v3529 = vmul.f32 1.0, %v3528
    %v3530 = vtanh.pop %v3523
    %v3531 = vmul.f32 %v3529, %v3440
    %3533 = vrot.lane.b32.xlu0 %v3530, 64
    %v3534 = vpop.permute.xlu0 %3533
    %v3536 = vmul.f32 %v3529, %v3534
    %3538 = vrot.lane.b32.xlu0 %v3536, 32
    %v3539 = vpop.permute.xlu0 %3538
    %v3541 = vadd.f32 %v3531, %v3539
    %v3542 = vtanh.pop %v3541
    %3544 = vrot.lane.b32.xlu0 %v3542, 64
    %v3545 = vpop.permute.xlu0 %3544
    %v3547 = vmul.f32 %v3529, %v3545
    %v3548 = vld [vmem:[#allocation3 + $0x18] sm:$0xff]
    %3550 = vrot.lane.b32.xlu0 %v3441, 32
    %v3551 = vpop.permute.xlu0 %3550
    %v3552 = vsel %vm398, %v3551, 0
    %3554 = vmatprep.subr.mxu0 0.0
    %3555 = vmatpush1.msra.mxu0 0.0
    %3556 = vmatprep.subr.mxu0 0.0
    %3557 = vmatpush1.msra.mxu0 0.0
    %3558 = vmatprep.subr.mxu0 0.0
    %3559 = vmatpush1.msra.mxu0 0.0
    %3560 = vmatprep.subr.mxu0 0.0
    %3561 = vmatpush1.msra.mxu0 0.0
    %3562 = vmatprep.subr.mxu0 0.0
    %3563 = vmatpush1.msra.mxu0 0.0
    %3564 = vmatprep.subr.mxu0 0.0
    %3565 = vmatpush1.msra.mxu0 0.0
    %3566 = vmatprep.subr.mxu0 0.0
    %3567 = vmatpush1.msra.mxu0 0.0
    %3568 = vmatprep.subr.mxu0 0.0
    %3569 = vmatpush1.msra.mxu0 0.0
    %3570 = vmatprep.subr.mxu0 0.0
    %3571 = vmatpush1.msra.mxu0 0.0
    %3572 = vmatprep.subr.mxu0 0.0
    %3573 = vmatpush1.msra.mxu0 0.0
    %3574 = vmatprep.subr.mxu0 0.0
    %3575 = vmatpush1.msra.mxu0 0.0
    %3576 = vmatprep.subr.mxu0 0.0
    %3577 = vmatpush1.msra.mxu0 0.0
    %3578 = vmatprep.subr.mxu0 0.0
    %3579 = vmatpush1.msra.mxu0 %v2530
    %3580 = vmatprep.subr.mxu0 0.0
    %3581 = vmatpush1.msra.mxu0 %v2529
    %3582 = vmatprep.subr.mxu0 0.0
    %3583 = vmatpush1.msra.mxu0 %v2528
    %3584 = vmatprep.subr.mxu0 0.0
    %3585 = vmatpush1.msra.mxu0 %v2527
    %3586 = vmatprep.subr.mxu0 0.0
    %3587 = vmatpush2.msra.mxu0 0.0
    %3588 = vmatprep.subr.mxu0 0.0
    %3589 = vmatpush2.msra.mxu0 0.0
    %3590 = vmatprep.subr.mxu0 0.0
    %3591 = vmatpush2.msra.mxu0 0.0
    %3592 = vmatprep.subr.mxu0 0.0
    %3593 = vmatpush2.msra.mxu0 0.0
    %3594 = vmatprep.subr.mxu0 0.0
    %3595 = vmatpush2.msra.mxu0 0.0
    %3596 = vmatprep.subr.mxu0 0.0
    %3597 = vmatpush2.msra.mxu0 0.0
    %3598 = vmatprep.subr.mxu0 0.0
    %3599 = vmatpush2.msra.mxu0 0.0
    %3600 = vmatprep.subr.mxu0 0.0
    %3601 = vmatpush2.msra.mxu0 0.0
    %3602 = vmatprep.subr.mxu0 0.0
    %3603 = vmatpush2.msra.mxu0 0.0
    %3604 = vmatprep.subr.mxu0 0.0
    %3605 = vmatpush2.msra.mxu0 0.0
    %3606 = vmatprep.subr.mxu0 0.0
    %3607 = vmatpush2.msra.mxu0 0.0
    %3608 = vmatprep.subr.mxu0 0.0
    %3609 = vmatpush2.msra.mxu0 0.0
    %3610 = vmatprep.subr.mxu0 0.0
    %3611 = vmatpush2.msra.mxu0 0.0
    %3612 = vmatprep.subr.mxu0 0.0
    %3613 = vmatpush2.msra.mxu0 0.0
    %3614 = vmatprep.subr.mxu0 0.0
    %3615 = vmatpush2.msra.mxu0 0.0
    %3616 = vmatprep.subr.mxu0 0.0
    %3617 = vmatpush2.msra.mxu0 0.0
    %3618 = vmatprep.mubr.f32.mxu0 0.0
    %3619 = vmatmul.mubr.f32.gmra.mxu0 %v3552
    %v3620 = vpop.f32.mrf.mxu0
    %v3621 = vadd.f32 0.0, %v3620
    %v3622 = vpop.f32.mrf.mxu0
    %3623 = vdwg.mxu0
    %v3624 = vadd.f32 %v3548, %v3621
    %v3625 = vxor.u32 %v3624, 2147483648
    %v3626 = vmul.f32 %v3625, 1.442695
    %v3627 = vpow.pop %v3626
    %v3628 = vadd.f32 %v3627, 1.0
    %v3629 = vrcp.pop %v3628
    %v3630 = vmul.f32 1.0, %v3629
    %v3631 = vtanh.pop %v3624
    %v3632 = vmul.f32 %v3630, %v3442
    %3634 = vrot.lane.b32.xlu0 %v3631, 64
    %v3635 = vpop.permute.xlu0 %3634
    %v3637 = vmul.f32 %v3630, %v3635
    %3639 = vrot.lane.b32.xlu0 %v3637, 32
    %v3640 = vpop.permute.xlu0 %3639
    %v3642 = vadd.f32 %v3632, %v3640
    %v3643 = vtanh.pop %v3642
    %3645 = vrot.lane.b32.xlu0 %v3643, 64
    %v3646 = vpop.permute.xlu0 %3645
    %v3648 = vmul.f32 %v3630, %v3646
    %v3649 = vsel %vm3444, 1, 0
    %3650 = vset.pattern.permute.xlu0 0
    %3651 = vperm.xlu0 %3650, %v3649
    %v3652 = vpop.permute.xlu0 %3651
    %vm3653 = vcmp.eq.s32.totalorder %v3652, 1
    %v3654 = vsel %vm3653, %v3547, 0.0
    %3656 = vrot.lane.b32.xlu0 %v3654, 32
    %v3657 = vpop.permute.xlu0 %3656
    %3659 = vst.msk [vmem:[#allocation5 + $0x20] sm:$0xff] %vm398, %v3657
    %v3660 = vsel %vm3446, 1, 0
    %3661 = vset.pattern.permute.xlu0 0
    %3662 = vperm.xlu0 %3661, %v3660
    %v3663 = vpop.permute.xlu0 %3662
    %vm3664 = vcmp.eq.s32.totalorder %v3663, 1
    %v3665 = vsel %vm3664, %v3648, 0.0
    %3667 = vrot.lane.b32.xlu0 %v3665, 64
    %v3668 = vpop.permute.xlu0 %3667
    %3670 = vst.msk [vmem:[#allocation5 + $0x18] sm:$0xff] %vm614, %v3668
    %v3671 = vsel %vm3653, %v3547, %v3439
    %v3672 = vsel %vm3653, %v3541, %v3440
    %v3673 = vsel %vm3664, %v3648, %v3441
    %v3674 = vsel %vm3664, %v3642, %v3442
    %v3675 = vld [vmem:[%s1 + $0x28] sm:$0xff]
    %vm3676 = vcmp.gt.f32.partialorder %v3675, 0.5
    %v3677 = vld [vmem:[%s1 + $0x10] sm:$0xff]
    %vm3678 = vcmp.gt.f32.partialorder %v3677, 0.5
    %v3679 = vld [vmem:[#allocation2 + $0x28] sm:$0xff]
    %3681 = vrot.lane.b32.xlu0 %v3671, 32
    %v3682 = vpop.permute.xlu0 %3681
    %v3683 = vsel %vm398, %v3682, 0
    %3685 = vmatprep.subr.mxu0 0.0
    %3686 = vmatpush1.msra.mxu0 0.0
    %3687 = vmatprep.subr.mxu0 0.0
    %3688 = vmatpush1.msra.mxu0 0.0
    %3689 = vmatprep.subr.mxu0 0.0
    %3690 = vmatpush1.msra.mxu0 0.0
    %3691 = vmatprep.subr.mxu0 0.0
    %3692 = vmatpush1.msra.mxu0 0.0
    %3693 = vmatprep.subr.mxu0 0.0
    %3694 = vmatpush1.msra.mxu0 0.0
    %3695 = vmatprep.subr.mxu0 0.0
    %3696 = vmatpush1.msra.mxu0 0.0
    %3697 = vmatprep.subr.mxu0 0.0
    %3698 = vmatpush1.msra.mxu0 0.0
    %3699 = vmatprep.subr.mxu0 0.0
    %3700 = vmatpush1.msra.mxu0 0.0
    %3701 = vmatprep.subr.mxu0 0.0
    %3702 = vmatpush1.msra.mxu0 0.0
    %3703 = vmatprep.subr.mxu0 0.0
    %3704 = vmatpush1.msra.mxu0 0.0
    %3705 = vmatprep.subr.mxu0 0.0
    %3706 = vmatpush1.msra.mxu0 0.0
    %3707 = vmatprep.subr.mxu0 0.0
    %3708 = vmatpush1.msra.mxu0 0.0
    %3709 = vmatprep.subr.mxu0 0.0
    %3710 = vmatpush1.msra.mxu0 %v2526
    %3711 = vmatprep.subr.mxu0 0.0
    %3712 = vmatpush1.msra.mxu0 %v2525
    %3713 = vmatprep.subr.mxu0 0.0
    %3714 = vmatpush1.msra.mxu0 %v2524
    %3715 = vmatprep.subr.mxu0 0.0
    %3716 = vmatpush1.msra.mxu0 %v2523
    %3717 = vmatprep.subr.mxu0 0.0
    %3718 = vmatpush2.msra.mxu0 0.0
    %3719 = vmatprep.subr.mxu0 0.0
    %3720 = vmatpush2.msra.mxu0 0.0
    %3721 = vmatprep.subr.mxu0 0.0
    %3722 = vmatpush2.msra.mxu0 0.0
    %3723 = vmatprep.subr.mxu0 0.0
    %3724 = vmatpush2.msra.mxu0 0.0
    %3725 = vmatprep.subr.mxu0 0.0
    %3726 = vmatpush2.msra.mxu0 0.0
    %3727 = vmatprep.subr.mxu0 0.0
    %3728 = vmatpush2.msra.mxu0 0.0
    %3729 = vmatprep.subr.mxu0 0.0
    %3730 = vmatpush2.msra.mxu0 0.0
    %3731 = vmatprep.subr.mxu0 0.0
    %3732 = vmatpush2.msra.mxu0 0.0
    %3733 = vmatprep.subr.mxu0 0.0
    %3734 = vmatpush2.msra.mxu0 0.0
    %3735 = vmatprep.subr.mxu0 0.0
    %3736 = vmatpush2.msra.mxu0 0.0
    %3737 = vmatprep.subr.mxu0 0.0
    %3738 = vmatpush2.msra.mxu0 0.0
    %3739 = vmatprep.subr.mxu0 0.0
    %3740 = vmatpush2.msra.mxu0 0.0
    %3741 = vmatprep.subr.mxu0 0.0
    %3742 = vmatpush2.msra.mxu0 0.0
    %3743 = vmatprep.subr.mxu0 0.0
    %3744 = vmatpush2.msra.mxu0 0.0
    %3745 = vmatprep.subr.mxu0 0.0
    %3746 = vmatpush2.msra.mxu0 0.0
    %3747 = vmatprep.subr.mxu0 0.0
    %3748 = vmatpush2.msra.mxu0 0.0
    %3749 = vmatprep.mubr.f32.mxu0 0.0
    %3750 = vmatmul.mubr.f32.gmra.mxu0 %v3683
    %v3751 = vpop.f32.mrf.mxu0
    %v3752 = vadd.f32 0.0, %v3751
    %v3753 = vpop.f32.mrf.mxu0
    %3754 = vdwg.mxu0
    %v3755 = vadd.f32 %v3679, %v3752
    %v3756 = vxor.u32 %v3755, 2147483648
    %v3757 = vmul.f32 %v3756, 1.442695
    %v3758 = vpow.pop %v3757
    %v3759 = vadd.f32 %v3758, 1.0
    %v3760 = vrcp.pop %v3759
    %v3761 = vmul.f32 1.0, %v3760
    %v3762 = vtanh.pop %v3755
    %v3763 = vmul.f32 %v3761, %v3672
    %3765 = vrot.lane.b32.xlu0 %v3762, 64
    %v3766 = vpop.permute.xlu0 %3765
    %v3768 = vmul.f32 %v3761, %v3766
    %3770 = vrot.lane.b32.xlu0 %v3768, 32
    %v3771 = vpop.permute.xlu0 %3770
    %v3773 = vadd.f32 %v3763, %v3771
    %v3774 = vtanh.pop %v3773
    %3776 = vrot.lane.b32.xlu0 %v3774, 64
    %v3777 = vpop.permute.xlu0 %3776
    %v3779 = vmul.f32 %v3761, %v3777
    %v3780 = vld [vmem:[#allocation3 + $0x10] sm:$0xff]
    %3782 = vrot.lane.b32.xlu0 %v3673, 32
    %v3783 = vpop.permute.xlu0 %3782
    %v3784 = vsel %vm398, %v3783, 0
    %3786 = vmatprep.subr.mxu0 0.0
    %3787 = vmatpush1.msra.mxu0 0.0
    %3788 = vmatprep.subr.mxu0 0.0
    %3789 = vmatpush1.msra.mxu0 0.0
    %3790 = vmatprep.subr.mxu0 0.0
    %3791 = vmatpush1.msra.mxu0 0.0
    %3792 = vmatprep.subr.mxu0 0.0
    %3793 = vmatpush1.msra.mxu0 0.0
    %3794 = vmatprep.subr.mxu0 0.0
    %3795 = vmatpush1.msra.mxu0 0.0
    %3796 = vmatprep.subr.mxu0 0.0
    %3797 = vmatpush1.msra.mxu0 0.0
    %3798 = vmatprep.subr.mxu0 0.0
    %3799 = vmatpush1.msra.mxu0 0.0
    %3800 = vmatprep.subr.mxu0 0.0
    %3801 = vmatpush1.msra.mxu0 0.0
    %3802 = vmatprep.subr.mxu0 0.0
    %3803 = vmatpush1.msra.mxu0 0.0
    %3804 = vmatprep.subr.mxu0 0.0
    %3805 = vmatpush1.msra.mxu0 0.0
    %3806 = vmatprep.subr.mxu0 0.0
    %3807 = vmatpush1.msra.mxu0 0.0
    %3808 = vmatprep.subr.mxu0 0.0
    %3809 = vmatpush1.msra.mxu0 0.0
    %3810 = vmatprep.subr.mxu0 0.0
    %3811 = vmatpush1.msra.mxu0 %v2530
    %3812 = vmatprep.subr.mxu0 0.0
    %3813 = vmatpush1.msra.mxu0 %v2529
    %3814 = vmatprep.subr.mxu0 0.0
    %3815 = vmatpush1.msra.mxu0 %v2528
    %3816 = vmatprep.subr.mxu0 0.0
    %3817 = vmatpush1.msra.mxu0 %v2527
    %3818 = vmatprep.subr.mxu0 0.0
    %3819 = vmatpush2.msra.mxu0 0.0
    %3820 = vmatprep.subr.mxu0 0.0
    %3821 = vmatpush2.msra.mxu0 0.0
    %3822 = vmatprep.subr.mxu0 0.0
    %3823 = vmatpush2.msra.mxu0 0.0
    %3824 = vmatprep.subr.mxu0 0.0
    %3825 = vmatpush2.msra.mxu0 0.0
    %3826 = vmatprep.subr.mxu0 0.0
    %3827 = vmatpush2.msra.mxu0 0.0
    %3828 = vmatprep.subr.mxu0 0.0
    %3829 = vmatpush2.msra.mxu0 0.0
    %3830 = vmatprep.subr.mxu0 0.0
    %3831 = vmatpush2.msra.mxu0 0.0
    %3832 = vmatprep.subr.mxu0 0.0
    %3833 = vmatpush2.msra.mxu0 0.0
    %3834 = vmatprep.subr.mxu0 0.0
    %3835 = vmatpush2.msra.mxu0 0.0
    %3836 = vmatprep.subr.mxu0 0.0
    %3837 = vmatpush2.msra.mxu0 0.0
    %3838 = vmatprep.subr.mxu0 0.0
    %3839 = vmatpush2.msra.mxu0 0.0
    %3840 = vmatprep.subr.mxu0 0.0
    %3841 = vmatpush2.msra.mxu0 0.0
    %3842 = vmatprep.subr.mxu0 0.0
    %3843 = vmatpush2.msra.mxu0 0.0
    %3844 = vmatprep.subr.mxu0 0.0
    %3845 = vmatpush2.msra.mxu0 0.0
    %3846 = vmatprep.subr.mxu0 0.0
    %3847 = vmatpush2.msra.mxu0 0.0
    %3848 = vmatprep.subr.mxu0 0.0
    %3849 = vmatpush2.msra.mxu0 0.0
    %3850 = vmatprep.mubr.f32.mxu0 0.0
    %3851 = vmatmul.mubr.f32.gmra.mxu0 %v3784
    %v3852 = vpop.f32.mrf.mxu0
    %v3853 = vadd.f32 0.0, %v3852
    %v3854 = vpop.f32.mrf.mxu0
    %3855 = vdwg.mxu0
    %v3856 = vadd.f32 %v3780, %v3853
    %v3857 = vxor.u32 %v3856, 2147483648
    %v3858 = vmul.f32 %v3857, 1.442695
    %v3859 = vpow.pop %v3858
    %v3860 = vadd.f32 %v3859, 1.0
    %v3861 = vrcp.pop %v3860
    %v3862 = vmul.f32 1.0, %v3861
    %v3863 = vtanh.pop %v3856
    %v3864 = vmul.f32 %v3862, %v3674
    %3866 = vrot.lane.b32.xlu0 %v3863, 64
    %v3867 = vpop.permute.xlu0 %3866
    %v3869 = vmul.f32 %v3862, %v3867
    %3871 = vrot.lane.b32.xlu0 %v3869, 32
    %v3872 = vpop.permute.xlu0 %3871
    %v3874 = vadd.f32 %v3864, %v3872
    %v3875 = vtanh.pop %v3874
    %3877 = vrot.lane.b32.xlu0 %v3875, 64
    %v3878 = vpop.permute.xlu0 %3877
    %v3880 = vmul.f32 %v3862, %v3878
    %v3881 = vsel %vm3676, 1, 0
    %3882 = vset.pattern.permute.xlu0 0
    %3883 = vperm.xlu0 %3882, %v3881
    %v3884 = vpop.permute.xlu0 %3883
    %vm3885 = vcmp.eq.s32.totalorder %v3884, 1
    %v3886 = vsel %vm3885, %v3779, 0.0
    %3888 = vrot.lane.b32.xlu0 %v3886, 32
    %v3889 = vpop.permute.xlu0 %3888
    %3891 = vst.msk [vmem:[#allocation5 + $0x28] sm:$0xff] %vm398, %v3889
    %v3892 = vsel %vm3678, 1, 0
    %3893 = vset.pattern.permute.xlu0 0
    %3894 = vperm.xlu0 %3893, %v3892
    %v3895 = vpop.permute.xlu0 %3894
    %vm3896 = vcmp.eq.s32.totalorder %v3895, 1
    %v3897 = vsel %vm3896, %v3880, 0.0
    %3899 = vrot.lane.b32.xlu0 %v3897, 64
    %v3900 = vpop.permute.xlu0 %3899
    %3902 = vst.msk [vmem:[#allocation5 + $0x10] sm:$0xff] %vm614, %v3900
    %v3903 = vsel %vm3885, %v3779, %v3671
    %v3904 = vsel %vm3885, %v3773, %v3672
    %v3905 = vsel %vm3896, %v3880, %v3673
    %v3906 = vsel %vm3896, %v3874, %v3674
    %v3907 = vld [vmem:[%s1 + $0x30] sm:$0xff]
    %vm3908 = vcmp.gt.f32.partialorder %v3907, 0.5
    %v3909 = vld [vmem:[%s1 + $0x8] sm:$0xff]
    %vm3910 = vcmp.gt.f32.partialorder %v3909, 0.5
    %v3911 = vld [vmem:[#allocation2 + $0x30] sm:$0xff]
    %3913 = vrot.lane.b32.xlu0 %v3903, 32
    %v3914 = vpop.permute.xlu0 %3913
    %v3915 = vsel %vm398, %v3914, 0
    %3917 = vmatprep.subr.mxu0 0.0
    %3918 = vmatpush1.msra.mxu0 0.0
    %3919 = vmatprep.subr.mxu0 0.0
    %3920 = vmatpush1.msra.mxu0 0.0
    %3921 = vmatprep.subr.mxu0 0.0
    %3922 = vmatpush1.msra.mxu0 0.0
    %3923 = vmatprep.subr.mxu0 0.0
    %3924 = vmatpush1.msra.mxu0 0.0
    %3925 = vmatprep.subr.mxu0 0.0
    %3926 = vmatpush1.msra.mxu0 0.0
    %3927 = vmatprep.subr.mxu0 0.0
    %3928 = vmatpush1.msra.mxu0 0.0
    %3929 = vmatprep.subr.mxu0 0.0
    %3930 = vmatpush1.msra.mxu0 0.0
    %3931 = vmatprep.subr.mxu0 0.0
    %3932 = vmatpush1.msra.mxu0 0.0
    %3933 = vmatprep.subr.mxu0 0.0
    %3934 = vmatpush1.msra.mxu0 0.0
    %3935 = vmatprep.subr.mxu0 0.0
    %3936 = vmatpush1.msra.mxu0 0.0
    %3937 = vmatprep.subr.mxu0 0.0
    %3938 = vmatpush1.msra.mxu0 0.0
    %3939 = vmatprep.subr.mxu0 0.0
    %3940 = vmatpush1.msra.mxu0 0.0
    %3941 = vmatprep.subr.mxu0 0.0
    %3942 = vmatpush1.msra.mxu0 %v2526
    %3943 = vmatprep.subr.mxu0 0.0
    %3944 = vmatpush1.msra.mxu0 %v2525
    %3945 = vmatprep.subr.mxu0 0.0
    %3946 = vmatpush1.msra.mxu0 %v2524
    %3947 = vmatprep.subr.mxu0 0.0
    %3948 = vmatpush1.msra.mxu0 %v2523
    %3949 = vmatprep.subr.mxu0 0.0
    %3950 = vmatpush2.msra.mxu0 0.0
    %3951 = vmatprep.subr.mxu0 0.0
    %3952 = vmatpush2.msra.mxu0 0.0
    %3953 = vmatprep.subr.mxu0 0.0
    %3954 = vmatpush2.msra.mxu0 0.0
    %3955 = vmatprep.subr.mxu0 0.0
    %3956 = vmatpush2.msra.mxu0 0.0
    %3957 = vmatprep.subr.mxu0 0.0
    %3958 = vmatpush2.msra.mxu0 0.0
    %3959 = vmatprep.subr.mxu0 0.0
    %3960 = vmatpush2.msra.mxu0 0.0
    %3961 = vmatprep.subr.mxu0 0.0
    %3962 = vmatpush2.msra.mxu0 0.0
    %3963 = vmatprep.subr.mxu0 0.0
    %3964 = vmatpush2.msra.mxu0 0.0
    %3965 = vmatprep.subr.mxu0 0.0
    %3966 = vmatpush2.msra.mxu0 0.0
    %3967 = vmatprep.subr.mxu0 0.0
    %3968 = vmatpush2.msra.mxu0 0.0
    %3969 = vmatprep.subr.mxu0 0.0
    %3970 = vmatpush2.msra.mxu0 0.0
    %3971 = vmatprep.subr.mxu0 0.0
    %3972 = vmatpush2.msra.mxu0 0.0
    %3973 = vmatprep.subr.mxu0 0.0
    %3974 = vmatpush2.msra.mxu0 0.0
    %3975 = vmatprep.subr.mxu0 0.0
    %3976 = vmatpush2.msra.mxu0 0.0
    %3977 = vmatprep.subr.mxu0 0.0
    %3978 = vmatpush2.msra.mxu0 0.0
    %3979 = vmatprep.subr.mxu0 0.0
    %3980 = vmatpush2.msra.mxu0 0.0
    %3981 = vmatprep.mubr.f32.mxu0 0.0
    %3982 = vmatmul.mubr.f32.gmra.mxu0 %v3915
    %v3983 = vpop.f32.mrf.mxu0
    %v3984 = vadd.f32 0.0, %v3983
    %v3985 = vpop.f32.mrf.mxu0
    %3986 = vdwg.mxu0
    %v3987 = vadd.f32 %v3911, %v3984
    %v3988 = vxor.u32 %v3987, 2147483648
    %v3989 = vmul.f32 %v3988, 1.442695
    %v3990 = vpow.pop %v3989
    %v3991 = vadd.f32 %v3990, 1.0
    %v3992 = vrcp.pop %v3991
    %v3993 = vmul.f32 1.0, %v3992
    %v3994 = vtanh.pop %v3987
    %v3995 = vmul.f32 %v3993, %v3904
    %3997 = vrot.lane.b32.xlu0 %v3994, 64
    %v3998 = vpop.permute.xlu0 %3997
    %v4000 = vmul.f32 %v3993, %v3998
    %4002 = vrot.lane.b32.xlu0 %v4000, 32
    %v4003 = vpop.permute.xlu0 %4002
    %v4005 = vadd.f32 %v3995, %v4003
    %v4006 = vtanh.pop %v4005
    %4008 = vrot.lane.b32.xlu0 %v4006, 64
    %v4009 = vpop.permute.xlu0 %4008
    %v4011 = vmul.f32 %v3993, %v4009
    %v4012 = vld [vmem:[#allocation3 + $0x8] sm:$0xff]
    %4014 = vrot.lane.b32.xlu0 %v3905, 32
    %v4015 = vpop.permute.xlu0 %4014
    %v4016 = vsel %vm398, %v4015, 0
    %4018 = vmatprep.subr.mxu0 0.0
    %4019 = vmatpush1.msra.mxu0 0.0
    %4020 = vmatprep.subr.mxu0 0.0
    %4021 = vmatpush1.msra.mxu0 0.0
    %4022 = vmatprep.subr.mxu0 0.0
    %4023 = vmatpush1.msra.mxu0 0.0
    %4024 = vmatprep.subr.mxu0 0.0
    %4025 = vmatpush1.msra.mxu0 0.0
    %4026 = vmatprep.subr.mxu0 0.0
    %4027 = vmatpush1.msra.mxu0 0.0
    %4028 = vmatprep.subr.mxu0 0.0
    %4029 = vmatpush1.msra.mxu0 0.0
    %4030 = vmatprep.subr.mxu0 0.0
    %4031 = vmatpush1.msra.mxu0 0.0
    %4032 = vmatprep.subr.mxu0 0.0
    %4033 = vmatpush1.msra.mxu0 0.0
    %4034 = vmatprep.subr.mxu0 0.0
    %4035 = vmatpush1.msra.mxu0 0.0
    %4036 = vmatprep.subr.mxu0 0.0
    %4037 = vmatpush1.msra.mxu0 0.0
    %4038 = vmatprep.subr.mxu0 0.0
    %4039 = vmatpush1.msra.mxu0 0.0
    %4040 = vmatprep.subr.mxu0 0.0
    %4041 = vmatpush1.msra.mxu0 0.0
    %4042 = vmatprep.subr.mxu0 0.0
    %4043 = vmatpush1.msra.mxu0 %v2530
    %4044 = vmatprep.subr.mxu0 0.0
    %4045 = vmatpush1.msra.mxu0 %v2529
    %4046 = vmatprep.subr.mxu0 0.0
    %4047 = vmatpush1.msra.mxu0 %v2528
    %4048 = vmatprep.subr.mxu0 0.0
    %4049 = vmatpush1.msra.mxu0 %v2527
    %4050 = vmatprep.subr.mxu0 0.0
    %4051 = vmatpush2.msra.mxu0 0.0
    %4052 = vmatprep.subr.mxu0 0.0
    %4053 = vmatpush2.msra.mxu0 0.0
    %4054 = vmatprep.subr.mxu0 0.0
    %4055 = vmatpush2.msra.mxu0 0.0
    %4056 = vmatprep.subr.mxu0 0.0
    %4057 = vmatpush2.msra.mxu0 0.0
    %4058 = vmatprep.subr.mxu0 0.0
    %4059 = vmatpush2.msra.mxu0 0.0
    %4060 = vmatprep.subr.mxu0 0.0
    %4061 = vmatpush2.msra.mxu0 0.0
    %4062 = vmatprep.subr.mxu0 0.0
    %4063 = vmatpush2.msra.mxu0 0.0
    %4064 = vmatprep.subr.mxu0 0.0
    %4065 = vmatpush2.msra.mxu0 0.0
    %4066 = vmatprep.subr.mxu0 0.0
    %4067 = vmatpush2.msra.mxu0 0.0
    %4068 = vmatprep.subr.mxu0 0.0
    %4069 = vmatpush2.msra.mxu0 0.0
    %4070 = vmatprep.subr.mxu0 0.0
    %4071 = vmatpush2.msra.mxu0 0.0
    %4072 = vmatprep.subr.mxu0 0.0
    %4073 = vmatpush2.msra.mxu0 0.0
    %4074 = vmatprep.subr.mxu0 0.0
    %4075 = vmatpush2.msra.mxu0 0.0
    %4076 = vmatprep.subr.mxu0 0.0
    %4077 = vmatpush2.msra.mxu0 0.0
    %4078 = vmatprep.subr.mxu0 0.0
    %4079 = vmatpush2.msra.mxu0 0.0
    %4080 = vmatprep.subr.mxu0 0.0
    %4081 = vmatpush2.msra.mxu0 0.0
    %4082 = vmatprep.mubr.f32.mxu0 0.0
    %4083 = vmatmul.mubr.f32.gmra.mxu0 %v4016
    %v4084 = vpop.f32.mrf.mxu0
    %v4085 = vadd.f32 0.0, %v4084
    %v4086 = vpop.f32.mrf.mxu0
    %4087 = vdwg.mxu0
    %v4088 = vadd.f32 %v4012, %v4085
    %v4089 = vxor.u32 %v4088, 2147483648
    %v4090 = vmul.f32 %v4089, 1.442695
    %v4091 = vpow.pop %v4090
    %v4092 = vadd.f32 %v4091, 1.0
    %v4093 = vrcp.pop %v4092
    %v4094 = vmul.f32 1.0, %v4093
    %v4095 = vtanh.pop %v4088
    %v4096 = vmul.f32 %v4094, %v3906
    %4098 = vrot.lane.b32.xlu0 %v4095, 64
    %v4099 = vpop.permute.xlu0 %4098
    %v4101 = vmul.f32 %v4094, %v4099
    %4103 = vrot.lane.b32.xlu0 %v4101, 32
    %v4104 = vpop.permute.xlu0 %4103
    %v4106 = vadd.f32 %v4096, %v4104
    %v4107 = vtanh.pop %v4106
    %4109 = vrot.lane.b32.xlu0 %v4107, 64
    %v4110 = vpop.permute.xlu0 %4109
    %v4112 = vmul.f32 %v4094, %v4110
    %v4113 = vsel %vm3908, 1, 0
    %4114 = vset.pattern.permute.xlu0 0
    %4115 = vperm.xlu0 %4114, %v4113
    %v4116 = vpop.permute.xlu0 %4115
    %vm4117 = vcmp.eq.s32.totalorder %v4116, 1
    %v4118 = vsel %vm4117, %v4011, 0.0
    %4120 = vrot.lane.b32.xlu0 %v4118, 32
    %v4121 = vpop.permute.xlu0 %4120
    %4123 = vst.msk [vmem:[#allocation5 + $0x30] sm:$0xff] %vm398, %v4121
    %v4124 = vsel %vm3910, 1, 0
    %4125 = vset.pattern.permute.xlu0 0
    %4126 = vperm.xlu0 %4125, %v4124
    %v4127 = vpop.permute.xlu0 %4126
    %vm4128 = vcmp.eq.s32.totalorder %v4127, 1
    %v4129 = vsel %vm4128, %v4112, 0.0
    %4131 = vrot.lane.b32.xlu0 %v4129, 64
    %v4132 = vpop.permute.xlu0 %4131
    %4134 = vst.msk [vmem:[#allocation5 + $0x8] sm:$0xff] %vm614, %v4132
    %v4135 = vsel %vm4117, %v4011, %v3903
    %v4136 = vsel %vm4117, %v4005, %v3904
    %v4137 = vsel %vm4128, %v4112, %v3905
    %v4138 = vsel %vm4128, %v4106, %v3906
    %v4139 = vld [vmem:[%s1 + $0x38] sm:$0xff]
    %vm4140 = vcmp.gt.f32.partialorder %v4139, 0.5
    %v4141 = vld [vmem:[%s1] sm:$0xff]
    %vm4142 = vcmp.gt.f32.partialorder %v4141, 0.5
    %v4143 = vld [vmem:[#allocation2 + $0x38] sm:$0xff]
    %4145 = vrot.lane.b32.xlu0 %v4135, 32
    %v4146 = vpop.permute.xlu0 %4145
    %v4147 = vsel %vm398, %v4146, 0
    %4149 = vmatprep.subr.mxu0 0.0
    %4150 = vmatpush1.msra.mxu0 0.0
    %4151 = vmatprep.subr.mxu0 0.0
    %4152 = vmatpush1.msra.mxu0 0.0
    %4153 = vmatprep.subr.mxu0 0.0
    %4154 = vmatpush1.msra.mxu0 0.0
    %4155 = vmatprep.subr.mxu0 0.0
    %4156 = vmatpush1.msra.mxu0 0.0
    %4157 = vmatprep.subr.mxu0 0.0
    %4158 = vmatpush1.msra.mxu0 0.0
    %4159 = vmatprep.subr.mxu0 0.0
    %4160 = vmatpush1.msra.mxu0 0.0
    %4161 = vmatprep.subr.mxu0 0.0
    %4162 = vmatpush1.msra.mxu0 0.0
    %4163 = vmatprep.subr.mxu0 0.0
    %4164 = vmatpush1.msra.mxu0 0.0
    %4165 = vmatprep.subr.mxu0 0.0
    %4166 = vmatpush1.msra.mxu0 0.0
    %4167 = vmatprep.subr.mxu0 0.0
    %4168 = vmatpush1.msra.mxu0 0.0
    %4169 = vmatprep.subr.mxu0 0.0
    %4170 = vmatpush1.msra.mxu0 0.0
    %4171 = vmatprep.subr.mxu0 0.0
    %4172 = vmatpush1.msra.mxu0 0.0
    %4173 = vmatprep.subr.mxu0 0.0
    %4174 = vmatpush1.msra.mxu0 %v2526
    %4175 = vmatprep.subr.mxu0 0.0
    %4176 = vmatpush1.msra.mxu0 %v2525
    %4177 = vmatprep.subr.mxu0 0.0
    %4178 = vmatpush1.msra.mxu0 %v2524
    %4179 = vmatprep.subr.mxu0 0.0
    %4180 = vmatpush1.msra.mxu0 %v2523
    %4181 = vmatprep.subr.mxu0 0.0
    %4182 = vmatpush2.msra.mxu0 0.0
    %4183 = vmatprep.subr.mxu0 0.0
    %4184 = vmatpush2.msra.mxu0 0.0
    %4185 = vmatprep.subr.mxu0 0.0
    %4186 = vmatpush2.msra.mxu0 0.0
    %4187 = vmatprep.subr.mxu0 0.0
    %4188 = vmatpush2.msra.mxu0 0.0
    %4189 = vmatprep.subr.mxu0 0.0
    %4190 = vmatpush2.msra.mxu0 0.0
    %4191 = vmatprep.subr.mxu0 0.0
    %4192 = vmatpush2.msra.mxu0 0.0
    %4193 = vmatprep.subr.mxu0 0.0
    %4194 = vmatpush2.msra.mxu0 0.0
    %4195 = vmatprep.subr.mxu0 0.0
    %4196 = vmatpush2.msra.mxu0 0.0
    %4197 = vmatprep.subr.mxu0 0.0
    %4198 = vmatpush2.msra.mxu0 0.0
    %4199 = vmatprep.subr.mxu0 0.0
    %4200 = vmatpush2.msra.mxu0 0.0
    %4201 = vmatprep.subr.mxu0 0.0
    %4202 = vmatpush2.msra.mxu0 0.0
    %4203 = vmatprep.subr.mxu0 0.0
    %4204 = vmatpush2.msra.mxu0 0.0
    %4205 = vmatprep.subr.mxu0 0.0
    %4206 = vmatpush2.msra.mxu0 0.0
    %4207 = vmatprep.subr.mxu0 0.0
    %4208 = vmatpush2.msra.mxu0 0.0
    %4209 = vmatprep.subr.mxu0 0.0
    %4210 = vmatpush2.msra.mxu0 0.0
    %4211 = vmatprep.subr.mxu0 0.0
    %4212 = vmatpush2.msra.mxu0 0.0
    %4213 = vmatprep.mubr.f32.mxu0 0.0
    %4214 = vmatmul.mubr.f32.gmra.mxu0 %v4147
    %v4215 = vpop.f32.mrf.mxu0
    %v4216 = vadd.f32 0.0, %v4215
    %v4217 = vpop.f32.mrf.mxu0
    %4218 = vdwg.mxu0
    %v4219 = vadd.f32 %v4143, %v4216
    %v4220 = vxor.u32 %v4219, 2147483648
    %v4221 = vmul.f32 %v4220, 1.442695
    %v4222 = vpow.pop %v4221
    %v4223 = vadd.f32 %v4222, 1.0
    %v4224 = vrcp.pop %v4223
    %v4225 = vmul.f32 1.0, %v4224
    %v4226 = vtanh.pop %v4219
    %v4227 = vmul.f32 %v4225, %v4136
    %4229 = vrot.lane.b32.xlu0 %v4226, 64
    %v4230 = vpop.permute.xlu0 %4229
    %v4232 = vmul.f32 %v4225, %v4230
    %4234 = vrot.lane.b32.xlu0 %v4232, 32
    %v4235 = vpop.permute.xlu0 %4234
    %v4237 = vadd.f32 %v4227, %v4235
    %v4238 = vtanh.pop %v4237
    %4240 = vrot.lane.b32.xlu0 %v4238, 64
    %v4241 = vpop.permute.xlu0 %4240
    %v4243 = vmul.f32 %v4225, %v4241
    %v4244 = vld [vmem:[#allocation3] sm:$0xff]
    %4246 = vrot.lane.b32.xlu0 %v4137, 32
    %v4247 = vpop.permute.xlu0 %4246
    %v4248 = vsel %vm398, %v4247, 0
    %4250 = vmatprep.subr.mxu0 0.0
    %4251 = vmatpush1.msra.mxu0 0.0
    %4252 = vmatprep.subr.mxu0 0.0
    %4253 = vmatpush1.msra.mxu0 0.0
    %4254 = vmatprep.subr.mxu0 0.0
    %4255 = vmatpush1.msra.mxu0 0.0
    %4256 = vmatprep.subr.mxu0 0.0
    %4257 = vmatpush1.msra.mxu0 0.0
    %4258 = vmatprep.subr.mxu0 0.0
    %4259 = vmatpush1.msra.mxu0 0.0
    %4260 = vmatprep.subr.mxu0 0.0
    %4261 = vmatpush1.msra.mxu0 0.0
    %4262 = vmatprep.subr.mxu0 0.0
    %4263 = vmatpush1.msra.mxu0 0.0
    %4264 = vmatprep.subr.mxu0 0.0
    %4265 = vmatpush1.msra.mxu0 0.0
    %4266 = vmatprep.subr.mxu0 0.0
    %4267 = vmatpush1.msra.mxu0 0.0
    %4268 = vmatprep.subr.mxu0 0.0
    %4269 = vmatpush1.msra.mxu0 0.0
    %4270 = vmatprep.subr.mxu0 0.0
    %4271 = vmatpush1.msra.mxu0 0.0
    %4272 = vmatprep.subr.mxu0 0.0
    %4273 = vmatpush1.msra.mxu0 0.0
    %4274 = vmatprep.subr.mxu0 0.0
    %4275 = vmatpush1.msra.mxu0 %v2530
    %4276 = vmatprep.subr.mxu0 0.0
    %4277 = vmatpush1.msra.mxu0 %v2529
    %4278 = vmatprep.subr.mxu0 0.0
    %4279 = vmatpush1.msra.mxu0 %v2528
    %4280 = vmatprep.subr.mxu0 0.0
    %4281 = vmatpush1.msra.mxu0 %v2527
    %4282 = vmatprep.subr.mxu0 0.0
    %4283 = vmatpush2.msra.mxu0 0.0
    %4284 = vmatprep.subr.mxu0 0.0
    %4285 = vmatpush2.msra.mxu0 0.0
    %4286 = vmatprep.subr.mxu0 0.0
    %4287 = vmatpush2.msra.mxu0 0.0
    %4288 = vmatprep.subr.mxu0 0.0
    %4289 = vmatpush2.msra.mxu0 0.0
    %4290 = vmatprep.subr.mxu0 0.0
    %4291 = vmatpush2.msra.mxu0 0.0
    %4292 = vmatprep.subr.mxu0 0.0
    %4293 = vmatpush2.msra.mxu0 0.0
    %4294 = vmatprep.subr.mxu0 0.0
    %4295 = vmatpush2.msra.mxu0 0.0
    %4296 = vmatprep.subr.mxu0 0.0
    %4297 = vmatpush2.msra.mxu0 0.0
    %4298 = vmatprep.subr.mxu0 0.0
    %4299 = vmatpush2.msra.mxu0 0.0
    %4300 = vmatprep.subr.mxu0 0.0
    %4301 = vmatpush2.msra.mxu0 0.0
    %4302 = vmatprep.subr.mxu0 0.0
    %4303 = vmatpush2.msra.mxu0 0.0
    %4304 = vmatprep.subr.mxu0 0.0
    %4305 = vmatpush2.msra.mxu0 0.0
    %4306 = vmatprep.subr.mxu0 0.0
    %4307 = vmatpush2.msra.mxu0 0.0
    %4308 = vmatprep.subr.mxu0 0.0
    %4309 = vmatpush2.msra.mxu0 0.0
    %4310 = vmatprep.subr.mxu0 0.0
    %4311 = vmatpush2.msra.mxu0 0.0
    %4312 = vmatprep.subr.mxu0 0.0
    %4313 = vmatpush2.msra.mxu0 0.0
    %4314 = vmatprep.mubr.f32.mxu0 0.0
    %4315 = vmatmul.mubr.f32.gmra.mxu0 %v4248
    %v4316 = vpop.f32.mrf.mxu0
    %v4317 = vadd.f32 0.0, %v4316
    %v4318 = vpop.f32.mrf.mxu0
    %4319 = vdwg.mxu0
    %v4320 = vadd.f32 %v4244, %v4317
    %v4321 = vxor.u32 %v4320, 2147483648
    %v4322 = vmul.f32 %v4321, 1.442695
    %v4323 = vpow.pop %v4322
    %v4324 = vadd.f32 %v4323, 1.0
    %v4325 = vrcp.pop %v4324
    %v4326 = vmul.f32 1.0, %v4325
    %v4327 = vtanh.pop %v4320
    %v4328 = vmul.f32 %v4326, %v4138
    %4330 = vrot.lane.b32.xlu0 %v4327, 64
    %v4331 = vpop.permute.xlu0 %4330
    %v4333 = vmul.f32 %v4326, %v4331
    %4335 = vrot.lane.b32.xlu0 %v4333, 32
    %v4336 = vpop.permute.xlu0 %4335
    %v4338 = vadd.f32 %v4328, %v4336
    %v4339 = vtanh.pop %v4338
    %4341 = vrot.lane.b32.xlu0 %v4339, 64
    %v4342 = vpop.permute.xlu0 %4341
    %v4344 = vmul.f32 %v4326, %v4342
    %v4345 = vsel %vm4140, 1, 0
    %4346 = vset.pattern.permute.xlu0 0
    %4347 = vperm.xlu0 %4346, %v4345
    %v4348 = vpop.permute.xlu0 %4347
    %vm4349 = vcmp.eq.s32.totalorder %v4348, 1
    %v4350 = vsel %vm4349, %v4243, 0.0
    %4352 = vrot.lane.b32.xlu0 %v4350, 32
    %v4353 = vpop.permute.xlu0 %4352
    %4355 = vst.msk [vmem:[#allocation5 + $0x38] sm:$0xff] %vm398, %v4353
    %v4356 = vsel %vm4142, 1, 0
    %4357 = vset.pattern.permute.xlu0 0
    %4358 = vperm.xlu0 %4357, %v4356
    %v4359 = vpop.permute.xlu0 %4358
    %vm4360 = vcmp.eq.s32.totalorder %v4359, 1
    %v4361 = vsel %vm4360, %v4344, 0.0
    %4363 = vrot.lane.b32.xlu0 %v4361, 64
    %v4364 = vpop.permute.xlu0 %4363
    %4366 = vst.msk [vmem:[#allocation5] sm:$0xff] %vm614, %v4364
    %v4367 = vld [vmem:[#allocation5] sm:$0xff]
    %v4368 = vld [vmem:[#allocation5 + $0x8] sm:$0xff]
    %v4369 = vld [vmem:[#allocation5 + $0x10] sm:$0xff]
    %v4370 = vld [vmem:[#allocation5 + $0x18] sm:$0xff]
    %v4371 = vld [vmem:[#allocation5 + $0x20] sm:$0xff]
    %v4372 = vld [vmem:[#allocation5 + $0x28] sm:$0xff]
    %v4373 = vld [vmem:[#allocation5 + $0x30] sm:$0xff]
    %v4374 = vld [vmem:[#allocation5 + $0x38] sm:$0xff]
    %v4375 = vld [vmem:[%s14] sm:$0xff]
    %v4376 = vld [vmem:[%s14 + $0x8] sm:$0xff]
    %v4377 = vld [vmem:[%s14 + $0x10] sm:$0xff]
    %v4378 = vld [vmem:[%s14 + $0x18] sm:$0xff]
    %v4379 = vld [vmem:[%s14 + $0x20] sm:$0xff]
    %v4380 = vld [vmem:[%s14 + $0x28] sm:$0xff]
    %v4381 = vld [vmem:[%s14 + $0x30] sm:$0xff]
    %v4382 = vld [vmem:[%s14 + $0x38] sm:$0xff]
    %v4383 = vld [vmem:[%s15] sm:$0x1]
    %v4385 = vlaneseq
    %v4386 = vshrl.u32 %v4385, 7
    %v4387 = vsub.s32 0, %v4386
    %v4388 = vrot.slane %v4383, %v4387
    %v4391 = vsel %vm2257, %v4367, 0
    %v4394 = vsel %vm2257, %v4368, 0
    %v4397 = vsel %vm2257, %v4369, 0
    %v4400 = vsel %vm2257, %v4370, 0
    %v4403 = vsel %vm2257, %v4371, 0
    %v4406 = vsel %vm2257, %v4372, 0
    %v4409 = vsel %vm2257, %v4373, 0
    %v4412 = vsel %vm2257, %v4374, 0
    %4414 = vmatprep.subr.mxu0 0.0
    %4415 = vmatpush1.msra.mxu0 0.0
    %4416 = vmatprep.subr.mxu0 0.0
    %4417 = vmatpush1.msra.mxu0 0.0
    %4418 = vmatprep.subr.mxu0 0.0
    %4419 = vmatpush1.msra.mxu0 0.0
    %4420 = vmatprep.subr.mxu0 0.0
    %4421 = vmatpush1.msra.mxu0 0.0
    %4422 = vmatprep.subr.mxu0 0.0
    %4423 = vmatpush1.msra.mxu0 0.0
    %4424 = vmatprep.subr.mxu0 0.0
    %4425 = vmatpush1.msra.mxu0 0.0
    %4426 = vmatprep.subr.mxu0 0.0
    %4427 = vmatpush1.msra.mxu0 0.0
    %4428 = vmatprep.subr.mxu0 0.0
    %4429 = vmatpush1.msra.mxu0 0.0
    %4430 = vmatprep.subr.mxu0 0.0
    %4431 = vmatpush1.msra.mxu0 %v4382
    %4432 = vmatprep.subr.mxu0 0.0
    %4433 = vmatpush1.msra.mxu0 %v4381
    %4434 = vmatprep.subr.mxu0 0.0
    %4435 = vmatpush1.msra.mxu0 %v4380
    %4436 = vmatprep.subr.mxu0 0.0
    %4437 = vmatpush1.msra.mxu0 %v4379
    %4438 = vmatprep.subr.mxu0 0.0
    %4439 = vmatpush1.msra.mxu0 %v4378
    %4440 = vmatprep.subr.mxu0 0.0
    %4441 = vmatpush1.msra.mxu0 %v4377
    %4442 = vmatprep.subr.mxu0 0.0
    %4443 = vmatpush1.msra.mxu0 %v4376
    %4444 = vmatprep.subr.mxu0 0.0
    %4445 = vmatpush1.msra.mxu0 %v4375
    %4446 = vmatprep.subr.mxu0 0.0
    %4447 = vmatpush2.msra.mxu0 0.0
    %4448 = vmatprep.subr.mxu0 0.0
    %4449 = vmatpush2.msra.mxu0 0.0
    %4450 = vmatprep.subr.mxu0 0.0
    %4451 = vmatpush2.msra.mxu0 0.0
    %4452 = vmatprep.subr.mxu0 0.0
    %4453 = vmatpush2.msra.mxu0 0.0
    %4454 = vmatprep.subr.mxu0 0.0
    %4455 = vmatpush2.msra.mxu0 0.0
    %4456 = vmatprep.subr.mxu0 0.0
    %4457 = vmatpush2.msra.mxu0 0.0
    %4458 = vmatprep.subr.mxu0 0.0
    %4459 = vmatpush2.msra.mxu0 0.0
    %4460 = vmatprep.subr.mxu0 0.0
    %4461 = vmatpush2.msra.mxu0 0.0
    %4462 = vmatprep.subr.mxu0 0.0
    %4463 = vmatpush2.msra.mxu0 0.0
    %4464 = vmatprep.subr.mxu0 0.0
    %4465 = vmatpush2.msra.mxu0 0.0
    %4466 = vmatprep.subr.mxu0 0.0
    %4467 = vmatpush2.msra.mxu0 0.0
    %4468 = vmatprep.subr.mxu0 0.0
    %4469 = vmatpush2.msra.mxu0 0.0
    %4470 = vmatprep.subr.mxu0 0.0
    %4471 = vmatpush2.msra.mxu0 0.0
    %4472 = vmatprep.subr.mxu0 0.0
    %4473 = vmatpush2.msra.mxu0 0.0
    %4474 = vmatprep.subr.mxu0 0.0
    %4475 = vmatpush2.msra.mxu0 0.0
    %4476 = vmatprep.subr.mxu0 0.0
    %4477 = vmatpush2.msra.mxu0 0.0
    %4478 = vmatprep.mubr.f32.mxu0 0.0
    %4479 = vmatmul.mubr.f32.gmra.mxu0 %v4391
    %v4480 = vpop.f32.mrf.mxu0
    %v4481 = vadd.f32 %v4388, %v4480
    %v4482 = vpop.f32.mrf.mxu0
    %4483 = vmatprep.mubr.f32.mxu0 0.0
    %4484 = vmatmul.mubr.f32.gmra.mxu0 %v4394
    %v4485 = vpop.f32.mrf.mxu0
    %v4486 = vadd.f32 %v4388, %v4485
    %v4487 = vpop.f32.mrf.mxu0
    %4488 = vmatprep.mubr.f32.mxu0 0.0
    %4489 = vmatmul.mubr.f32.gmra.mxu0 %v4397
    %v4490 = vpop.f32.mrf.mxu0
    %v4491 = vadd.f32 %v4388, %v4490
    %v4492 = vpop.f32.mrf.mxu0
    %4493 = vmatprep.mubr.f32.mxu0 0.0
    %4494 = vmatmul.mubr.f32.gmra.mxu0 %v4400
    %v4495 = vpop.f32.mrf.mxu0
    %v4496 = vadd.f32 %v4388, %v4495
    %v4497 = vpop.f32.mrf.mxu0
    %4498 = vmatprep.mubr.f32.mxu0 0.0
    %4499 = vmatmul.mubr.f32.gmra.mxu0 %v4403
    %v4500 = vpop.f32.mrf.mxu0
    %v4501 = vadd.f32 %v4388, %v4500
    %v4502 = vpop.f32.mrf.mxu0
    %4503 = vmatprep.mubr.f32.mxu0 0.0
    %4504 = vmatmul.mubr.f32.gmra.mxu0 %v4406
    %v4505 = vpop.f32.mrf.mxu0
    %v4506 = vadd.f32 %v4388, %v4505
    %v4507 = vpop.f32.mrf.mxu0
    %4508 = vmatprep.mubr.f32.mxu0 0.0
    %4509 = vmatmul.mubr.f32.gmra.mxu0 %v4409
    %v4510 = vpop.f32.mrf.mxu0
    %v4511 = vadd.f32 %v4388, %v4510
    %v4512 = vpop.f32.mrf.mxu0
    %4513 = vmatprep.mubr.f32.mxu0 0.0
    %4514 = vmatmul.mubr.f32.gmra.mxu0 %v4412
    %v4515 = vpop.f32.mrf.mxu0
    %v4516 = vadd.f32 %v4388, %v4515
    %v4517 = vpop.f32.mrf.mxu0
    %4518 = vdwg.mxu0
    %v4519 = vtanh.pop %v4481
    %v4520 = vtanh.pop %v4486
    %v4521 = vtanh.pop %v4491
    %v4522 = vtanh.pop %v4496
    %v4523 = vtanh.pop %v4501
    %v4524 = vtanh.pop %v4506
    %v4525 = vtanh.pop %v4511
    %v4526 = vtanh.pop %v4516
    %v4527 = vld [vmem:[#allocation11] sm:$0xff]
    %v4528 = vld [vmem:[#allocation11 + $0x8] sm:$0xff]
    %v4529 = vld [vmem:[#allocation11 + $0x10] sm:$0xff]
    %v4530 = vld [vmem:[#allocation11 + $0x18] sm:$0xff]
    %v4531 = vld [vmem:[%s17] sm:$0x1]
    %v4533 = vlaneseq
    %v4534 = vshrl.u32 %v4533, 7
    %v4535 = vsub.s32 0, %v4534
    %v4536 = vrot.slane %v4531, %v4535
    %v4539 = vsel %vm398, %v4519, 0
    %v4542 = vsel %vm398, %v4520, 0
    %v4545 = vsel %vm398, %v4521, 0
    %v4548 = vsel %vm398, %v4522, 0
    %v4551 = vsel %vm398, %v4523, 0
    %v4554 = vsel %vm398, %v4524, 0
    %v4557 = vsel %vm398, %v4525, 0
    %v4560 = vsel %vm398, %v4526, 0
    %4562 = vmatprep.subr.mxu0 0.0
    %4563 = vmatpush1.msra.mxu0 0.0
    %4564 = vmatprep.subr.mxu0 0.0
    %4565 = vmatpush1.msra.mxu0 0.0
    %4566 = vmatprep.subr.mxu0 0.0
    %4567 = vmatpush1.msra.mxu0 0.0
    %4568 = vmatprep.subr.mxu0 0.0
    %4569 = vmatpush1.msra.mxu0 0.0
    %4570 = vmatprep.subr.mxu0 0.0
    %4571 = vmatpush1.msra.mxu0 0.0
    %4572 = vmatprep.subr.mxu0 0.0
    %4573 = vmatpush1.msra.mxu0 0.0
    %4574 = vmatprep.subr.mxu0 0.0
    %4575 = vmatpush1.msra.mxu0 0.0
    %4576 = vmatprep.subr.mxu0 0.0
    %4577 = vmatpush1.msra.mxu0 0.0
    %4578 = vmatprep.subr.mxu0 0.0
    %4579 = vmatpush1.msra.mxu0 0.0
    %4580 = vmatprep.subr.mxu0 0.0
    %4581 = vmatpush1.msra.mxu0 0.0
    %4582 = vmatprep.subr.mxu0 0.0
    %4583 = vmatpush1.msra.mxu0 0.0
    %4584 = vmatprep.subr.mxu0 0.0
    %4585 = vmatpush1.msra.mxu0 0.0
    %4586 = vmatprep.subr.mxu0 0.0
    %4587 = vmatpush1.msra.mxu0 %v4530
    %4588 = vmatprep.subr.mxu0 0.0
    %4589 = vmatpush1.msra.mxu0 %v4529
    %4590 = vmatprep.subr.mxu0 0.0
    %4591 = vmatpush1.msra.mxu0 %v4528
    %4592 = vmatprep.subr.mxu0 0.0
    %4593 = vmatpush1.msra.mxu0 %v4527
    %4594 = vmatprep.subr.mxu0 0.0
    %4595 = vmatpush2.msra.mxu0 0.0
    %4596 = vmatprep.subr.mxu0 0.0
    %4597 = vmatpush2.msra.mxu0 0.0
    %4598 = vmatprep.subr.mxu0 0.0
    %4599 = vmatpush2.msra.mxu0 0.0
    %4600 = vmatprep.subr.mxu0 0.0
    %4601 = vmatpush2.msra.mxu0 0.0
    %4602 = vmatprep.subr.mxu0 0.0
    %4603 = vmatpush2.msra.mxu0 0.0
    %4604 = vmatprep.subr.mxu0 0.0
    %4605 = vmatpush2.msra.mxu0 0.0
    %4606 = vmatprep.subr.mxu0 0.0
    %4607 = vmatpush2.msra.mxu0 0.0
    %4608 = vmatprep.subr.mxu0 0.0
    %4609 = vmatpush2.msra.mxu0 0.0
    %4610 = vmatprep.subr.mxu0 0.0
    %4611 = vmatpush2.msra.mxu0 0.0
    %4612 = vmatprep.subr.mxu0 0.0
    %4613 = vmatpush2.msra.mxu0 0.0
    %4614 = vmatprep.subr.mxu0 0.0
    %4615 = vmatpush2.msra.mxu0 0.0
    %4616 = vmatprep.subr.mxu0 0.0
    %4617 = vmatpush2.msra.mxu0 0.0
    %4618 = vmatprep.subr.mxu0 0.0
    %4619 = vmatpush2.msra.mxu0 0.0
    %4620 = vmatprep.subr.mxu0 0.0
    %4621 = vmatpush2.msra.mxu0 0.0
    %4622 = vmatprep.subr.mxu0 0.0
    %4623 = vmatpush2.msra.mxu0 0.0
    %4624 = vmatprep.subr.mxu0 0.0
    %4625 = vmatpush2.msra.mxu0 0.0
    %4626 = vmatprep.mubr.f32.mxu0 0.0
    %4627 = vmatmul.mubr.f32.gmra.mxu0 %v4539
    %v4628 = vpop.f32.mrf.mxu0
    %v4629 = vadd.f32 %v4536, %v4628
    %v4630 = vpop.f32.mrf.mxu0
    %4631 = vmatprep.mubr.f32.mxu0 0.0
    %4632 = vmatmul.mubr.f32.gmra.mxu0 %v4542
    %v4633 = vpop.f32.mrf.mxu0
    %v4634 = vadd.f32 %v4536, %v4633
    %v4635 = vpop.f32.mrf.mxu0
    %4636 = vmatprep.mubr.f32.mxu0 0.0
    %4637 = vmatmul.mubr.f32.gmra.mxu0 %v4545
    %v4638 = vpop.f32.mrf.mxu0
    %v4639 = vadd.f32 %v4536, %v4638
    %v4640 = vpop.f32.mrf.mxu0
    %4641 = vmatprep.mubr.f32.mxu0 0.0
    %4642 = vmatmul.mubr.f32.gmra.mxu0 %v4548
    %v4643 = vpop.f32.mrf.mxu0
    %v4644 = vadd.f32 %v4536, %v4643
    %v4645 = vpop.f32.mrf.mxu0
    %4646 = vmatprep.mubr.f32.mxu0 0.0
    %4647 = vmatmul.mubr.f32.gmra.mxu0 %v4551
    %v4648 = vpop.f32.mrf.mxu0
    %v4649 = vadd.f32 %v4536, %v4648
    %v4650 = vpop.f32.mrf.mxu0
    %4651 = vmatprep.mubr.f32.mxu0 0.0
    %4652 = vmatmul.mubr.f32.gmra.mxu0 %v4554
    %v4653 = vpop.f32.mrf.mxu0
    %v4654 = vadd.f32 %v4536, %v4653
    %v4655 = vpop.f32.mrf.mxu0
    %4656 = vmatprep.mubr.f32.mxu0 0.0
    %4657 = vmatmul.mubr.f32.gmra.mxu0 %v4557
    %v4658 = vpop.f32.mrf.mxu0
    %v4659 = vadd.f32 %v4536, %v4658
    %v4660 = vpop.f32.mrf.mxu0
    %4661 = vmatprep.mubr.f32.mxu0 0.0
    %4662 = vmatmul.mubr.f32.gmra.mxu0 %v4560
    %v4663 = vpop.f32.mrf.mxu0
    %v4664 = vadd.f32 %v4536, %v4663
    %v4665 = vpop.f32.mrf.mxu0
    %4666 = vdwg.mxu0
    %4667 = vmax.xlane.f32.xlu0 %v4629
    %v4668 = vpop.xlane.xlu0 %4667
    %4669 = vmax.xlane.f32.xlu0 %v4634
    %v4670 = vpop.xlane.xlu0 %4669
    %4671 = vmax.xlane.f32.xlu0 %v4639
    %v4672 = vpop.xlane.xlu0 %4671
    %4673 = vmax.xlane.f32.xlu0 %v4644
    %v4674 = vpop.xlane.xlu0 %4673
    %4675 = vmax.xlane.f32.xlu0 %v4649
    %v4676 = vpop.xlane.xlu0 %4675
    %4677 = vmax.xlane.f32.xlu0 %v4654
    %v4678 = vpop.xlane.xlu0 %4677
    %4679 = vmax.xlane.f32.xlu0 %v4659
    %v4680 = vpop.xlane.xlu0 %4679
    %4681 = vmax.xlane.f32.xlu0 %v4664
    %v4682 = vpop.xlane.xlu0 %4681
    %v4683 = vsub.f32 %v4629, %v4668
    %v4684 = vsub.f32 %v4634, %v4670
    %v4685 = vsub.f32 %v4639, %v4672
    %v4686 = vsub.f32 %v4644, %v4674
    %v4687 = vsub.f32 %v4649, %v4676
    %v4688 = vsub.f32 %v4654, %v4678
    %v4689 = vsub.f32 %v4659, %v4680
    %v4690 = vsub.f32 %v4664, %v4682
    %v4691 = vmul.f32 %v4683, 1.442695
    %v4692 = vpow.pop %v4691
    %v4693 = vmul.f32 %v4684, 1.442695
    %v4694 = vpow.pop %v4693
    %v4695 = vmul.f32 %v4685, 1.442695
    %v4696 = vpow.pop %v4695
    %v4697 = vmul.f32 %v4686, 1.442695
    %v4698 = vpow.pop %v4697
    %v4699 = vmul.f32 %v4687, 1.442695
    %v4700 = vpow.pop %v4699
    %v4701 = vmul.f32 %v4688, 1.442695
    %v4702 = vpow.pop %v4701
    %v4703 = vmul.f32 %v4689, 1.442695
    %v4704 = vpow.pop %v4703
    %v4705 = vmul.f32 %v4690, 1.442695
    %v4706 = vpow.pop %v4705
    %4707 = vadd.xlane.f32.xlu0 %v4692
    %v4708 = vpop.xlane.xlu0 %4707
    %4709 = vadd.xlane.f32.xlu0 %v4694
    %v4710 = vpop.xlane.xlu0 %4709
    %4711 = vadd.xlane.f32.xlu0 %v4696
    %v4712 = vpop.xlane.xlu0 %4711
    %4713 = vadd.xlane.f32.xlu0 %v4698
    %v4714 = vpop.xlane.xlu0 %4713
    %4715 = vadd.xlane.f32.xlu0 %v4700
    %v4716 = vpop.xlane.xlu0 %4715
    %4717 = vadd.xlane.f32.xlu0 %v4702
    %v4718 = vpop.xlane.xlu0 %4717
    %4719 = vadd.xlane.f32.xlu0 %v4704
    %v4720 = vpop.xlane.xlu0 %4719
    %4721 = vadd.xlane.f32.xlu0 %v4706
    %v4722 = vpop.xlane.xlu0 %4721
    %v4723 = vlog2.pop %v4708
    %v4724 = vmul.f32 %v4723, 0.6931472
    %v4725 = vlog2.pop %v4710
    %v4726 = vmul.f32 %v4725, 0.6931472
    %v4727 = vlog2.pop %v4712
    %v4728 = vmul.f32 %v4727, 0.6931472
    %v4729 = vlog2.pop %v4714
    %v4730 = vmul.f32 %v4729, 0.6931472
    %v4731 = vlog2.pop %v4716
    %v4732 = vmul.f32 %v4731, 0.6931472
    %v4733 = vlog2.pop %v4718
    %v4734 = vmul.f32 %v4733, 0.6931472
    %v4735 = vlog2.pop %v4720
    %v4736 = vmul.f32 %v4735, 0.6931472
    %v4737 = vlog2.pop %v4722
    %v4738 = vmul.f32 %v4737, 0.6931472
    %v4739 = vadd.f32 %v4724, %v4668
    %v4740 = vadd.f32 %v4726, %v4670
    %v4741 = vadd.f32 %v4728, %v4672
    %v4742 = vadd.f32 %v4730, %v4674
    %v4743 = vadd.f32 %v4732, %v4676
    %v4744 = vadd.f32 %v4734, %v4678
    %v4745 = vadd.f32 %v4736, %v4680
    %v4746 = vadd.f32 %v4738, %v4682
    %v4747 = vsub.f32 %v4629, %v4739
    %v4748 = vsub.f32 %v4634, %v4740
    %v4749 = vsub.f32 %v4639, %v4741
    %v4750 = vsub.f32 %v4644, %v4742
    %v4751 = vsub.f32 %v4649, %v4743
    %v4752 = vsub.f32 %v4654, %v4744
    %v4753 = vsub.f32 %v4659, %v4745
    %v4754 = vsub.f32 %v4664, %v4746
    %4755 = vst [vmem:[#allocation12] sm:$0xff] %v4747
    %4756 = vst [vmem:[#allocation12 + $0x8] sm:$0xff] %v4748
    %4757 = vst [vmem:[#allocation12 + $0x10] sm:$0xff] %v4749
    %4758 = vst [vmem:[#allocation12 + $0x18] sm:$0xff] %v4750
    %4759 = vst [vmem:[#allocation12 + $0x20] sm:$0xff] %v4751
    %4760 = vst [vmem:[#allocation12 + $0x28] sm:$0xff] %v4752
    %4761 = vst [vmem:[#allocation12 + $0x30] sm:$0xff] %v4753
    %4762 = vst [vmem:[#allocation12 + $0x38] sm:$0xff] %v4754
    // Predicated region
    $region86: #{tpu_custom_call.1} parent=1 // pred_check
      _
    $region87: #{tpu_custom_call.1} parent=1 // pred_check_branch
      %4764 = sbr.rel (0) target = $region89
    $region88: #{tpu_custom_call.1} parent=1 // pred_region
      %s4766 = ssub.s32 1024, 1024
      %4767 = vsyncadd [#allocation8], %s4766
      %s4768 = sshll.u32 [#allocation12], 4
      %s4769 = int_to_ptr.vmem [resolvable:$true] %s4768
      %4774 = dma.vmem_to_hbm [thread:$0]  %s4769, 1024, %s18, [#allocation8], 128, 128, 8
    $region89: #{tpu_custom_call.1} parent=1 // pred_fallthru
      _
    // Predicated region
    $region90: #{tpu_custom_call.1} parent=1 // pred_check
      _
    $region91: #{tpu_custom_call.1} parent=1 // pred_check_branch
      %4776 = sbr.rel (0) target = $region93
    $region92: #{tpu_custom_call.1} parent=1 // pred_region
      %4777 = dma.done [#allocation8], 1024
    $region93: #{tpu_custom_call.1} parent=1 // pred_fallthru
      _
    %4778 = vsyncpa [#allocation7], 1
    %4779 = vsyncpa [#allocation10], 1
    %4780 = vsyncpa [#allocation8], 1

</llo_original>
